<compile_context>
chip_gen: v6e
topology: v6e:2x2x1
jax: 0.10.0
libtpu: 0.0.40
codegen_flags: <defaults>
</compile_context>

<pallas_src>
import functools

import jax
import jax.numpy as jnp
from jax.experimental import pallas as pl
from jax.experimental.pallas import tpu as pltpu

EXPANSION = 4
BN_EPS = 1e-5
_LPAD = 8                 # interior column offset in the padded scratch -> aligned stores
FUSE_CONV2_TAPS = True    # True: single K=9*planes matmul; False: 9 accumulated K=planes matmuls


# ----------------------------------------------------------------------------
# Fused Bottleneck kernel: B batch images per grid step, all intermediates in VMEM.
# ----------------------------------------------------------------------------
def _bottleneck_kernel(*refs, B, H, W, Ho, Wo, Wp, planes, cout, stride, mode):
    """mode: 'fused_sc'  -- 1x1 conv shortcut fused into the conv1 matmul (stride==1)
             'conv_sc'   -- separate 1x1 stride-s conv shortcut
             'identity'  -- residual = input (Cin == Cout, stride == 1)"""
    if mode == "fused_sc":
        (x1_ref, w1sc_ref, b1_ref, bsc_ref, w2_ref, b2_ref, w3_ref, b3_ref,
         o_ref, h1p_ref) = refs
    elif mode == "conv_sc":
        (x1_ref, xsc_ref, w1_ref, b1_ref, wsc_ref, bsc_ref, w2_ref, b2_ref,
         w3_ref, b3_ref, o_ref, h1p_ref) = refs
    else:
        (x1_ref, w1_ref, b1_ref, w2_ref, b2_ref, w3_ref, b3_ref,
         o_ref, h1p_ref) = refs

    x1 = x1_ref[...].reshape(B * H * W, -1)                  # (B*H*W, Cin) bf16

    # --- conv1: 1x1 (+ folded BN1 + ReLU); 1x1 shortcut fused into the same matmul when possible.
    if mode == "fused_sc":
        hall = jnp.dot(x1, w1sc_ref[...], preferred_element_type=jnp.float32)
        sc = hall[:, :cout] + bsc_ref[...]                   # shortcut branch (f32)
        h1 = jnp.maximum(hall[:, cout:] + b1_ref[...], 0.0)  # (B*H*W, planes) f32
    else:
        h1 = jnp.maximum(
            jnp.dot(x1, w1_ref[...], preferred_element_type=jnp.float32) + b1_ref[...], 0.0)
        if mode == "conv_sc":
            sc = jnp.dot(xsc_ref[...].reshape(B * Ho * Wo, -1), wsc_ref[...],
                         preferred_element_type=jnp.float32) + bsc_ref[...]
        else:
            sc = x1.astype(jnp.float32)                      # identity residual (bf16 input reused)

    # --- stage h1 into the zero-padded bf16 scratch.
    # Interior lives at rows [1, H+1), cols [LPAD, LPAD+W): the interior store and all halo-zero
    # stores below are sublane/lane aligned.  Halos are rewritten every step (megacore-safe).
    h1p_ref[:, 0:1] = jnp.zeros((B, 1, Wp, planes), jnp.bfloat16)
    h1p_ref[:, H + 1:H + 2] = jnp.zeros((B, 1, Wp, planes), jnp.bfloat16)
    h1p_ref[:, :, 0:_LPAD, :] = jnp.zeros((B, H + 2, _LPAD, planes), jnp.bfloat16)
    h1p_ref[:, :, _LPAD + W:, :] = jnp.zeros((B, H + 2, Wp - _LPAD - W, planes), jnp.bfloat16)
    h1p_ref[:, 1:H + 1, _LPAD:_LPAD + W, :] = (
        h1.astype(jnp.bfloat16).reshape(B, H, W, planes))    # single bf16 cast of h1

    # --- conv2: 3x3 stride s (+ folded BN2 + ReLU).
    def tap(kh, kw):
        c0 = _LPAD - 1 + kw
        if stride == 1:
            t = h1p_ref[:, kh:kh + Ho, c0:c0 + Wo, :]
        else:
            t = h1p_ref[:, pl.ds(kh, Ho, stride=stride), pl.ds(c0, Wo, stride=stride), :]
        return t.reshape(B * Ho * Wo, planes)                # bf16, no per-tap cast

    if FUSE_CONV2_TAPS:
        im2col = jnp.concatenate([tap(kh, kw) for kh in range(3) for kw in range(3)],
                                 axis=-1)                    # (B*Ho*Wo, 9*planes) bf16
        acc = jnp.dot(im2col, w2_ref[...], preferred_element_type=jnp.float32)
    else:
        acc = jnp.zeros((B * Ho * Wo, planes), jnp.float32)
        for kh in range(3):
            for kw in range(3):
                k = (kh * 3 + kw) * planes
                acc = acc + jnp.dot(tap(kh, kw), w2_ref[k:k + planes, :],
                                    preferred_element_type=jnp.float32)
    h2 = jnp.maximum(acc + b2_ref[...], 0.0).astype(jnp.bfloat16)   # (B*Ho*Wo, planes)

    # --- conv3: 1x1 (+ folded BN3), residual add, ReLU; lane-dense bf16 store.
    y = jnp.dot(h2, w3_ref[...], preferred_element_type=jnp.float32) + b3_ref[...]
    o_ref[...] = jnp.maximum(y + sc, 0.0).reshape(B, Ho * Wo, cout).astype(o_ref.dtype)


# ----------------------------------------------------------------------------
# Host-side weight prep (BN folding) and the pallas_call wrapper.
# ----------------------------------------------------------------------------
def _fold_bn(p, eps=BN_EPS):
    """Fold inference-mode BN into the conv weight; bf16 (kh,kw,Cin,Cout) weight, f32 (1,Cout) bias."""
    scale = p["gamma"] * jax.lax.rsqrt(p["var"] + eps)
    bias = (p["beta"] - p["mean"] * scale).reshape(1, -1).astype(jnp.float32)
    w = jnp.transpose(p["w"], (2, 3, 1, 0)) * scale          # (kh, kw, Cin, Cout)
    return w.astype(jnp.bfloat16), bias


def bottleneck_forward(params, x_nchw, stride=1, batch_block=8):
    """Bottleneck forward. x_nchw: (N, C, H, W) float32. Returns NCHW float32 (kernel emits bf16 NHWC)."""
    N, Cin, H, W = x_nchw.shape
    planes = params["conv1"]["w"].shape[0]
    cout = params["conv3"]["w"].shape[0]                     # EXPANSION * planes
    Ho = (H + 2 - 3) // stride + 1
    Wo = (W + 2 - 3) // stride + 1
    Wp = ((_LPAD + W + 1 + 7) // 8) * 8                      # padded scratch width (aligned)
    has_sc_conv = "shortcut" in params

    B = min(batch_block, N)                                  # largest divisor of N <= batch_block
    while N % B:
        B -= 1

    x = jnp.transpose(x_nchw, (0, 2, 3, 1))                  # NCHW -> NHWC once
    x1 = x.reshape(N, H * W, Cin).astype(jnp.bfloat16)

    w1, b1 = _fold_bn(params["conv1"]); w1 = w1[0, 0]        # (Cin, planes)
    w2, b2 = _fold_bn(params["conv2"]); w2 = w2.reshape(9 * planes, planes)
    w3, b3 = _fold_bn(params["conv3"]); w3 = w3[0, 0]        # (planes, Cout)

    def full2d(a):
        return pl.BlockSpec(a.shape, lambda n: (0, 0))

    if has_sc_conv:
        wsc, bsc = _fold_bn(params["shortcut"]); wsc = wsc[0, 0]   # (Cin, Cout)

    x1_spec = pl.BlockSpec((B, H * W, Cin), lambda n: (n, 0, 0))
    if has_sc_conv and stride == 1:
        mode = "fused_sc"
        w1sc = jnp.concatenate([wsc, w1], axis=1)            # (Cin, Cout + planes)
        args = [x1, w1sc, b1, bsc, w2, b2, w3, b3]
        in_specs = [x1_spec] + [full2d(a) for a in args[1:]]
    elif has_sc_conv:
        mode = "conv_sc"
        # TODO(synk): strided shortcut pixels are gathered host-side; could be read strided in-kernel.
        xsc = x[:, ::stride, ::stride, :].reshape(N, Ho * Wo, Cin).astype(jnp.bfloat16)
        args = [x1, xsc, w1, b1, wsc, bsc, w2, b2, w3, b3]
        in_specs = [x1_spec, pl.BlockSpec((B, Ho * Wo, Cin), lambda n: (n, 0, 0))] \
                   + [full2d(a) for a in args[2:]]
    else:
        mode = "identity"
        args = [x1, w1, b1, w2, b2, w3, b3]
        in_specs = [x1_spec] + [full2d(a) for a in args[1:]]

    out = pl.pallas_call(
        functools.partial(_bottleneck_kernel, B=B, H=H, W=W, Ho=Ho, Wo=Wo, Wp=Wp,
                          planes=planes, cout=cout, stride=stride, mode=mode),
        out_shape=jax.ShapeDtypeStruct((N, Ho * Wo, cout), jnp.bfloat16),
        grid_spec=pltpu.PrefetchScalarGridSpec(
            num_scalar_prefetch=0,
            grid=(N // B,),
            in_specs=in_specs,
            out_specs=pl.BlockSpec((B, Ho * Wo, cout), lambda n: (n, 0, 0)),
            scratch_shapes=[pltpu.VMEM((B, H + 2, Wp, planes), jnp.bfloat16)],
        ),
        compiler_params=pltpu.CompilerParams(
            dimension_semantics=("parallel",),
            vmem_limit_bytes=32 * 1024 * 1024),
    )(*args)

    # Model-boundary conversion only; when chaining blocks keep the bf16 NHWC (N, Ho*Wo, Cout) form.
    return jnp.transpose(out.reshape(N, Ho, Wo, cout), (0, 3, 1, 2)).astype(jnp.float32)


# ----------------------------------------------------------------------------
# Pure-JAX f32 reference (mirrors the PyTorch module, inference-mode BN).
# ----------------------------------------------------------------------------
def _conv_bn_ref(x_nhwc, p, stride, pad, relu):
    w = jnp.transpose(p["w"], (2, 3, 1, 0))                  # HWIO
    y = jax.lax.conv_general_dilated(
        x_nhwc, w, window_strides=(stride, stride),
        padding=((pad, pad), (pad, pad)),
        dimension_numbers=("NHWC", "HWIO", "NHWC"),
        precision=jax.lax.Precision.HIGHEST)
    scale = p["gamma"] * jax.lax.rsqrt(p["var"] + BN_EPS)
    y = y * scale + (p["beta"] - p["mean"] * scale)
    return jnp.maximum(y, 0.0) if relu else y


def bottleneck_reference(params, x_nchw, stride=1):
    x = jnp.transpose(x_nchw, (0, 2, 3, 1))
    h = _conv_bn_ref(x, params["conv1"], 1, 0, True)
    h = _conv_bn_ref(h, params["conv2"], stride, 1, True)
    h = _conv_bn_ref(h, params["conv3"], 1, 0, False)
    sc = _conv_bn_ref(x, params["shortcut"], stride, 0, False) if "shortcut" in params else x
    return jnp.transpose(jnp.maximum(h + sc, 0.0), (0, 3, 1, 2))


# ----------------------------------------------------------------------------
# Deterministic parameter init (conv weight in PyTorch (Cout, Cin, kh, kw) layout).
# ----------------------------------------------------------------------------
def _init_conv_bn(key, cin, cout, ksize):
    kw_, kg, kb, km, kv = jax.random.split(key, 5)
    fan_in = cin * ksize * ksize
    return {
        "w": jax.random.normal(kw_, (cout, cin, ksize, ksize), jnp.float32) * (2.0 / fan_in) ** 0.5,
        "gamma": jax.random.uniform(kg, (cout,), jnp.float32, 0.5, 1.5),
        "beta": jax.random.normal(kb, (cout,), jnp.float32) * 0.1,
        "mean": jax.random.normal(km, (cout,), jnp.float32) * 0.1,
        "var": jax.random.uniform(kv, (cout,), jnp.float32, 0.5, 1.5),
    }


def init_bottleneck(key, in_planes, planes, stride=1):
    k1, k2, k3, k4 = jax.random.split(key, 4)
    params = {
        "conv1": _init_conv_bn(k1, in_planes, planes, 1),
        "conv2": _init_conv_bn(k2, planes, planes, 3),
        "conv3": _init_conv_bn(k3, planes, EXPANSION * planes, 1),
    }
    if stride != 1 or in_planes != EXPANSION * planes:
        params["shortcut"] = _init_conv_bn(k4, in_planes, EXPANSION * planes, 1)
    return params


# ----------------------------------------------------------------------------
if __name__ == "__main__":
    key = jax.random.PRNGKey(0)
    kp1, kp2, kx1, kx2 = jax.random.split(key, 4)

    N, H, W = 2, 16, 16
    planes = 64                        # Cout = 256 -> lane-dense stores; realistic K (per review)
    fwd = jax.jit(bottleneck_forward, static_argnames=("stride", "batch_block"))

    # Case 1: channel-changing block (conv shortcut, fused into conv1 matmul), stride=1.
    in_planes = 64
    params = init_bottleneck(kp1, in_planes, planes, stride=1)
    x = jax.random.normal(kx1, (N, in_planes, H, W), jnp.float32)
    y = fwd(params, x, stride=1)
    jax.block_until_ready(y)
    assert y.shape == (N, EXPANSION * planes, H, W)
    y_ref = bottleneck_reference(params, x, stride=1)
    err = float(jnp.max(jnp.abs(y - y_ref)))
    ref = float(jnp.max(jnp.abs(y_ref)))
    assert err <= 1e-1 * ref + 1e-1, f"conv-shortcut mismatch: max|err|={err}, max|ref|={ref}"

    # Case 2: identity-shortcut block (in_planes == expansion*planes, stride=1).
    in_planes2 = EXPANSION * planes
    params2 = init_bottleneck(kp2, in_planes2, planes, stride=1)
    x2 = jax.random.normal(kx2, (N, in_planes2, H, W), jnp.float32)
    y2 = fwd(params2, x2, stride=1)
    jax.block_until_ready(y2)
    assert y2.shape == (N, EXPANSION * planes, H, W)
    y2_ref = bottleneck_reference(params2, x2, stride=1)
    err2 = float(jnp.max(jnp.abs(y2 - y2_ref)))
    ref2 = float(jnp.max(jnp.abs(y2_ref)))
    assert err2 <= 1e-1 * ref2 + 1e-1, f"identity-shortcut mismatch: max|err|={err2}, max|ref|={ref2}"

    print("KERNEL_OK")
</pallas_src>

<mosaic_0001>
module attributes {stable_mosaic.version = 11 : i64} {
  func.func @_bottleneck_kernel(%arg0: i32, %arg1: memref<2x256x64xbf16, #tpu.memory_space<vmem>>, %arg2: memref<64x320xbf16, #tpu.memory_space<vmem>>, %arg3: memref<1x64xf32, #tpu.memory_space<vmem>>, %arg4: memref<1x256xf32, #tpu.memory_space<vmem>>, %arg5: memref<576x64xbf16, #tpu.memory_space<vmem>>, %arg6: memref<1x64xf32, #tpu.memory_space<vmem>>, %arg7: memref<64x256xbf16, #tpu.memory_space<vmem>>, %arg8: memref<1x256xf32, #tpu.memory_space<vmem>>, %arg9: memref<2x256x256xbf16, #tpu.memory_space<vmem>>, %arg10: memref<2x18x32x64xbf16, #tpu.memory_space<vmem>>) attributes {dimension_semantics = [#tpu.dimension_semantics<parallel>], iteration_bounds = array<i64: 1>, scalar_prefetch = 0 : i64, scratch_operands = 1 : i64, tpu.core_type = #tpu.core_type<tc>, window_params = [{transform_indices = @transform_0, window_bounds = array<i64: 2, 256, 64>}, {pipeline_mode = #tpu.pipeline_mode<synchronous>, transform_indices = @transform_1, window_bounds = array<i64: 64, 320>}, {pipeline_mode = #tpu.pipeline_mode<synchronous>, transform_indices = @transform_2, window_bounds = array<i64: 1, 64>}, {pipeline_mode = #tpu.pipeline_mode<synchronous>, transform_indices = @transform_3, window_bounds = array<i64: 1, 256>}, {pipeline_mode = #tpu.pipeline_mode<synchronous>, transform_indices = @transform_4, window_bounds = array<i64: 576, 64>}, {pipeline_mode = #tpu.pipeline_mode<synchronous>, transform_indices = @transform_5, window_bounds = array<i64: 1, 64>}, {pipeline_mode = #tpu.pipeline_mode<synchronous>, transform_indices = @transform_6, window_bounds = array<i64: 64, 256>}, {pipeline_mode = #tpu.pipeline_mode<synchronous>, transform_indices = @transform_7, window_bounds = array<i64: 1, 256>}, {transform_indices = @transform_8, window_bounds = array<i64: 2, 256, 256>}]} {
    %c0 = arith.constant 0 : index
    %c0_0 = arith.constant 0 : index
    %c0_1 = arith.constant 0 : index
    %0 = vector.load %arg1[%c0, %c0_0, %c0_1] : memref<2x256x64xbf16, #tpu.memory_space<vmem>>, vector<2x256x64xbf16>
    %1 = vector.shape_cast %0 : vector<2x256x64xbf16> to vector<512x64xbf16>
    %c0_2 = arith.constant 0 : index
    %c0_3 = arith.constant 0 : index
    %2 = vector.load %arg2[%c0_2, %c0_3] : memref<64x320xbf16, #tpu.memory_space<vmem>>, vector<64x320xbf16>
    %cst = arith.constant dense<0.000000e+00> : vector<512x320xf32>
    %3 = tpu.matmul %1, %2, %cst {dimension_numbers = #tpu.dot_dimension_numbers<[1], [0], [0], [1], [0, 0, 1, 1], [], []>} : vector<512x64xbf16>, vector<64x320xbf16>, vector<512x320xf32> -> vector<512x320xf32>
    %4 = vector.extract_strided_slice %3 {offsets = [0, 0], sizes = [512, 256], strides = [1, 1]} : vector<512x320xf32> to vector<512x256xf32>
    %c0_4 = arith.constant 0 : index
    %c0_5 = arith.constant 0 : index
    %5 = vector.load %arg4[%c0_4, %c0_5] : memref<1x256xf32, #tpu.memory_space<vmem>>, vector<1x256xf32>
    %6 = vector.broadcast %5 : vector<1x256xf32> to vector<512x256xf32>
    %7 = arith.addf %4, %6 : vector<512x256xf32>
    %8 = vector.extract_strided_slice %3 {offsets = [0, 256], sizes = [512, 64], strides = [1, 1]} : vector<512x320xf32> to vector<512x64xf32>
    %c0_6 = arith.constant 0 : index
    %c0_7 = arith.constant 0 : index
    %9 = vector.load %arg3[%c0_6, %c0_7] : memref<1x64xf32, #tpu.memory_space<vmem>>, vector<1x64xf32>
    %10 = vector.broadcast %9 : vector<1x64xf32> to vector<512x64xf32>
    %11 = arith.addf %8, %10 : vector<512x64xf32>
    %cst_8 = arith.constant 0.000000e+00 : f32
    %12 = vector.broadcast %cst_8 : f32 to vector<512x64xf32>
    %13 = arith.maximumf %11, %12 : vector<512x64xf32>
    %cst_9 = arith.constant 0.000000e+00 : bf16
    %14 = vector.broadcast %cst_9 : bf16 to vector<2x1x32x64xbf16>
    %c0_10 = arith.constant 0 : index
    %c0_11 = arith.constant 0 : index
    %c0_12 = arith.constant 0 : index
    %c0_13 = arith.constant 0 : index
    %15 = vector.load %arg10[%c0_10, %c0_11, %c0_12, %c0_13] : memref<2x18x32x64xbf16, #tpu.memory_space<vmem>>, vector<2x1x32x64xbf16>
    tpu.vector_store %arg10[%c0_10, %c0_11, %c0_12, %c0_13], %14 {strides = array<i32>} : memref<2x18x32x64xbf16, #tpu.memory_space<vmem>>, vector<2x1x32x64xbf16>,
    %cst_14 = arith.constant 0.000000e+00 : bf16
    %16 = vector.broadcast %cst_14 : bf16 to vector<2x1x32x64xbf16>
    %c0_15 = arith.constant 0 : index
    %c17 = arith.constant 17 : index
    %c0_16 = arith.constant 0 : index
    %c0_17 = arith.constant 0 : index
    %17 = vector.load %arg10[%c0_15, %c17, %c0_16, %c0_17] : memref<2x18x32x64xbf16, #tpu.memory_space<vmem>>, vector<2x1x32x64xbf16>
    tpu.vector_store %arg10[%c0_15, %c17, %c0_16, %c0_17], %16 {strides = array<i32>} : memref<2x18x32x64xbf16, #tpu.memory_space<vmem>>, vector<2x1x32x64xbf16>,
    %cst_18 = arith.constant 0.000000e+00 : bf16
    %18 = vector.broadcast %cst_18 : bf16 to vector<2x18x8x64xbf16>
    %c0_19 = arith.constant 0 : index
    %c0_20 = arith.constant 0 : index
    %c0_21 = arith.constant 0 : index
    %c0_22 = arith.constant 0 : index
    %19 = vector.load %arg10[%c0_19, %c0_20, %c0_21, %c0_22] : memref<2x18x32x64xbf16, #tpu.memory_space<vmem>>, vector<2x18x8x64xbf16>
    tpu.vector_store %arg10[%c0_19, %c0_20, %c0_21, %c0_22], %18 {strides = array<i32>} : memref<2x18x32x64xbf16, #tpu.memory_space<vmem>>, vector<2x18x8x64xbf16>,
    %cst_23 = arith.constant 0.000000e+00 : bf16
    %20 = vector.broadcast %cst_23 : bf16 to vector<2x18x8x64xbf16>
    %c0_24 = arith.constant 0 : index
    %c0_25 = arith.constant 0 : index
    %c24 = arith.constant 24 : index
    %c0_26 = arith.constant 0 : index
    %21 = vector.load %arg10[%c0_24, %c0_25, %c24, %c0_26] : memref<2x18x32x64xbf16, #tpu.memory_space<vmem>>, vector<2x18x8x64xbf16>
    tpu.vector_store %arg10[%c0_24, %c0_25, %c24, %c0_26], %20 {strides = array<i32>} : memref<2x18x32x64xbf16, #tpu.memory_space<vmem>>, vector<2x18x8x64xbf16>,
    %22 = arith.truncf %13 : vector<512x64xf32> to vector<512x64xbf16>
    %23 = vector.shape_cast %22 : vector<512x64xbf16> to vector<2x16x16x64xbf16>
    %c0_27 = arith.constant 0 : index
    %c1 = arith.constant 1 : index
    %c8 = arith.constant 8 : index
    %c0_28 = arith.constant 0 : index
    %24 = vector.load %arg10[%c0_27, %c1, %c8, %c0_28] : memref<2x18x32x64xbf16, #tpu.memory_space<vmem>>, vector<2x16x16x64xbf16>
    tpu.vector_store %arg10[%c0_27, %c1, %c8, %c0_28], %23 {strides = array<i32>} : memref<2x18x32x64xbf16, #tpu.memory_space<vmem>>, vector<2x16x16x64xbf16>,
    %c0_29 = arith.constant 0 : index
    %c0_30 = arith.constant 0 : index
    %c7 = arith.constant 7 : index
    %c0_31 = arith.constant 0 : index
    %25 = vector.load %arg10[%c0_29, %c0_30, %c7, %c0_31] : memref<2x18x32x64xbf16, #tpu.memory_space<vmem>>, vector<2x16x16x64xbf16>
    %26 = vector.shape_cast %25 : vector<2x16x16x64xbf16> to vector<512x64xbf16>
    %c0_32 = arith.constant 0 : index
    %c0_33 = arith.constant 0 : index
    %c8_34 = arith.constant 8 : index
    %c0_35 = arith.constant 0 : index
    %27 = vector.load %arg10[%c0_32, %c0_33, %c8_34, %c0_35] : memref<2x18x32x64xbf16, #tpu.memory_space<vmem>>, vector<2x16x16x64xbf16>
    %28 = vector.shape_cast %27 : vector<2x16x16x64xbf16> to vector<512x64xbf16>
    %c0_36 = arith.constant 0 : index
    %c0_37 = arith.constant 0 : index
    %c9 = arith.constant 9 : index
    %c0_38 = arith.constant 0 : index
    %29 = vector.load %arg10[%c0_36, %c0_37, %c9, %c0_38] : memref<2x18x32x64xbf16, #tpu.memory_space<vmem>>, vector<2x16x16x64xbf16>
    %30 = vector.shape_cast %29 : vector<2x16x16x64xbf16> to vector<512x64xbf16>
    %c0_39 = arith.constant 0 : index
    %c1_40 = arith.constant 1 : index
    %c7_41 = arith.constant 7 : index
    %c0_42 = arith.constant 0 : index
    %31 = vector.load %arg10[%c0_39, %c1_40, %c7_41, %c0_42] : memref<2x18x32x64xbf16, #tpu.memory_space<vmem>>, vector<2x16x16x64xbf16>
    %32 = vector.shape_cast %31 : vector<2x16x16x64xbf16> to vector<512x64xbf16>
    %c0_43 = arith.constant 0 : index
    %c1_44 = arith.constant 1 : index
    %c8_45 = arith.constant 8 : index
    %c0_46 = arith.constant 0 : index
    %33 = vector.load %arg10[%c0_43, %c1_44, %c8_45, %c0_46] : memref<2x18x32x64xbf16, #tpu.memory_space<vmem>>, vector<2x16x16x64xbf16>
    %34 = vector.shape_cast %33 : vector<2x16x16x64xbf16> to vector<512x64xbf16>
    %c0_47 = arith.constant 0 : index
    %c1_48 = arith.constant 1 : index
    %c9_49 = arith.constant 9 : index
    %c0_50 = arith.constant 0 : index
    %35 = vector.load %arg10[%c0_47, %c1_48, %c9_49, %c0_50] : memref<2x18x32x64xbf16, #tpu.memory_space<vmem>>, vector<2x16x16x64xbf16>
    %36 = vector.shape_cast %35 : vector<2x16x16x64xbf16> to vector<512x64xbf16>
    %c0_51 = arith.constant 0 : index
    %c2 = arith.constant 2 : index
    %c7_52 = arith.constant 7 : index
    %c0_53 = arith.constant 0 : index
    %37 = vector.load %arg10[%c0_51, %c2, %c7_52, %c0_53] : memref<2x18x32x64xbf16, #tpu.memory_space<vmem>>, vector<2x16x16x64xbf16>
    %38 = vector.shape_cast %37 : vector<2x16x16x64xbf16> to vector<512x64xbf16>
    %c0_54 = arith.constant 0 : index
    %c2_55 = arith.constant 2 : index
    %c8_56 = arith.constant 8 : index
    %c0_57 = arith.constant 0 : index
    %39 = vector.load %arg10[%c0_54, %c2_55, %c8_56, %c0_57] : memref<2x18x32x64xbf16, #tpu.memory_space<vmem>>, vector<2x16x16x64xbf16>
    %40 = vector.shape_cast %39 : vector<2x16x16x64xbf16> to vector<512x64xbf16>
    %c0_58 = arith.constant 0 : index
    %c2_59 = arith.constant 2 : index
    %c9_60 = arith.constant 9 : index
    %c0_61 = arith.constant 0 : index
    %41 = vector.load %arg10[%c0_58, %c2_59, %c9_60, %c0_61] : memref<2x18x32x64xbf16, #tpu.memory_space<vmem>>, vector<2x16x16x64xbf16>
    %42 = vector.shape_cast %41 : vector<2x16x16x64xbf16> to vector<512x64xbf16>
    %43 = tpu.concatenate %26, %28, %30, %32, %34, %36, %38, %40, %42 in 1 : vector<512x64xbf16>, vector<512x64xbf16>, vector<512x64xbf16>, vector<512x64xbf16>, vector<512x64xbf16>, vector<512x64xbf16>, vector<512x64xbf16>, vector<512x64xbf16>, vector<512x64xbf16> -> vector<512x576xbf16>
    %c0_62 = arith.constant 0 : index
    %c0_63 = arith.constant 0 : index
    %44 = vector.load %arg5[%c0_62, %c0_63] : memref<576x64xbf16, #tpu.memory_space<vmem>>, vector<576x64xbf16>
    %cst_64 = arith.constant dense<0.000000e+00> : vector<512x64xf32>
    %45 = tpu.matmul %43, %44, %cst_64 {dimension_numbers = #tpu.dot_dimension_numbers<[1], [0], [0], [1], [0, 0, 1, 1], [], []>} : vector<512x576xbf16>, vector<576x64xbf16>, vector<512x64xf32> -> vector<512x64xf32>
    %c0_65 = arith.constant 0 : index
    %c0_66 = arith.constant 0 : index
    %46 = vector.load %arg6[%c0_65, %c0_66] : memref<1x64xf32, #tpu.memory_space<vmem>>, vector<1x64xf32>
    %47 = vector.broadcast %46 : vector<1x64xf32> to vector<512x64xf32>
    %48 = arith.addf %45, %47 : vector<512x64xf32>
    %cst_67 = arith.constant 0.000000e+00 : f32
    %49 = vector.broadcast %cst_67 : f32 to vector<512x64xf32>
    %50 = arith.maximumf %48, %49 : vector<512x64xf32>
    %51 = arith.truncf %50 : vector<512x64xf32> to vector<512x64xbf16>
    %c0_68 = arith.constant 0 : index
    %c0_69 = arith.constant 0 : index
    %52 = vector.load %arg7[%c0_68, %c0_69] : memref<64x256xbf16, #tpu.memory_space<vmem>>, vector<64x256xbf16>
    %cst_70 = arith.constant dense<0.000000e+00> : vector<512x256xf32>
    %53 = tpu.matmul %51, %52, %cst_70 {dimension_numbers = #tpu.dot_dimension_numbers<[1], [0], [0], [1], [0, 0, 1, 1], [], []>} : vector<512x64xbf16>, vector<64x256xbf16>, vector<512x256xf32> -> vector<512x256xf32>
    %c0_71 = arith.constant 0 : index
    %c0_72 = arith.constant 0 : index
    %54 = vector.load %arg8[%c0_71, %c0_72] : memref<1x256xf32, #tpu.memory_space<vmem>>, vector<1x256xf32>
    %55 = vector.broadcast %54 : vector<1x256xf32> to vector<512x256xf32>
    %56 = arith.addf %53, %55 : vector<512x256xf32>
    %57 = arith.addf %56, %7 : vector<512x256xf32>
    %cst_73 = arith.constant 0.000000e+00 : f32
    %58 = vector.broadcast %cst_73 : f32 to vector<512x256xf32>
    %59 = arith.maximumf %57, %58 : vector<512x256xf32>
    %60 = vector.shape_cast %59 : vector<512x256xf32> to vector<2x256x256xf32>
    %61 = arith.truncf %60 : vector<2x256x256xf32> to vector<2x256x256xbf16>
    %c0_74 = arith.constant 0 : index
    %c0_75 = arith.constant 0 : index
    %c0_76 = arith.constant 0 : index
    %62 = vector.load %arg9[%c0_74, %c0_75, %c0_76] : memref<2x256x256xbf16, #tpu.memory_space<vmem>>, vector<2x256x256xbf16>
    tpu.vector_store %arg9[%c0_74, %c0_75, %c0_76], %61 {strides = array<i32>} : memref<2x256x256xbf16, #tpu.memory_space<vmem>>, vector<2x256x256xbf16>,
    return
  }
  func.func @transform_0(%arg0: i32) -> (i32, i32, i32) {
    %c0_i32 = arith.constant 0 : i32
    %c0_i32_0 = arith.constant 0 : i32
    %c0_i32_1 = arith.constant 0 : i32
    return %arg0, %c0_i32, %c0_i32_0 : i32, i32, i32
  }
  func.func @transform_1(%arg0: i32) -> (i32, i32) {
    %c0_i32 = arith.constant 0 : i32
    %c0_i32_0 = arith.constant 0 : i32
    %c0_i32_1 = arith.constant 0 : i32
    return %c0_i32, %c0_i32_0 : i32, i32
  }
  func.func @transform_2(%arg0: i32) -> (i32, i32) {
    %c0_i32 = arith.constant 0 : i32
    %c0_i32_0 = arith.constant 0 : i32
    %c0_i32_1 = arith.constant 0 : i32
    return %c0_i32, %c0_i32_0 : i32, i32
  }
  func.func @transform_3(%arg0: i32) -> (i32, i32) {
    %c0_i32 = arith.constant 0 : i32
    %c0_i32_0 = arith.constant 0 : i32
    %c0_i32_1 = arith.constant 0 : i32
    return %c0_i32, %c0_i32_0 : i32, i32
  }
  func.func @transform_4(%arg0: i32) -> (i32, i32) {
    %c0_i32 = arith.constant 0 : i32
    %c0_i32_0 = arith.constant 0 : i32
    %c0_i32_1 = arith.constant 0 : i32
    return %c0_i32, %c0_i32_0 : i32, i32
  }
  func.func @transform_5(%arg0: i32) -> (i32, i32) {
    %c0_i32 = arith.constant 0 : i32
    %c0_i32_0 = arith.constant 0 : i32
    %c0_i32_1 = arith.constant 0 : i32
    return %c0_i32, %c0_i32_0 : i32, i32
  }
  func.func @transform_6(%arg0: i32) -> (i32, i32) {
    %c0_i32 = arith.constant 0 : i32
    %c0_i32_0 = arith.constant 0 : i32
    %c0_i32_1 = arith.constant 0 : i32
    return %c0_i32, %c0_i32_0 : i32, i32
  }
  func.func @transform_7(%arg0: i32) -> (i32, i32) {
    %c0_i32 = arith.constant 0 : i32
    %c0_i32_0 = arith.constant 0 : i32
    %c0_i32_1 = arith.constant 0 : i32
    return %c0_i32, %c0_i32_0 : i32, i32
  }
  func.func @transform_8(%arg0: i32) -> (i32, i32, i32) {
    %c0_i32 = arith.constant 0 : i32
    %c0_i32_0 = arith.constant 0 : i32
    %c0_i32_1 = arith.constant 0 : i32
    return %arg0, %c0_i32, %c0_i32_0 : i32, i32, i32
  }
}

</mosaic_0001>

<llo_original>
// kernel: bottleneck_forward.1
$region0: #{bottleneck_forward.1}
  #allocation0 [shape = 'u32[]', space=smem, size = 0x4, offset = 0x4, fixed_abs, tag = 'smem constant byte address 0x4 - core index']
  #allocation1 [shape = 'u32[144,128]{1,0:T(1,128)}', space=vmem, size = 0x12000, scoped, tag = 'internal scratch']
  #allocation2 [shape = 'bf16[2,18,32,64]{3,2,1,0:T(8,128)(2,1)}', space=vmem, size = 0x48000, scoped, tag = 'scratch operand']
  %s0 = inlined_call_operand.vmem [shape: bf16[2,256,64], index: 0, kind: input, shape index: {}]
  %s1 = inlined_call_operand.vmem [shape: bf16[64,320], index: 1, kind: input, shape index: {}]
  %s2 = inlined_call_operand.vmem [shape: f32[1,64], index: 2, kind: input, shape index: {}]
  %s3 = inlined_call_operand.vmem [shape: f32[1,256], index: 3, kind: input, shape index: {}]
  %s4 = inlined_call_operand.vmem [shape: bf16[576,64], index: 4, kind: input, shape index: {}]
  %s5 = inlined_call_operand.vmem [shape: f32[1,64], index: 5, kind: input, shape index: {}]
  %s6 = inlined_call_operand.vmem [shape: bf16[64,256], index: 6, kind: input, shape index: {}]
  %s7 = inlined_call_operand.vmem [shape: f32[1,256], index: 7, kind: input, shape index: {}]
  %s8 = inlined_call_operand.vmem [shape: bf16[2,256,256], index: 8, kind: output, shape index: {}]
  %s9 = sld [smem:[#allocation0]]
  $region42: #{bottleneck_forward.1} parent=0
    _
  %s11 = ssub.s32 1, %s9
  %s12 = scalar_select 0, %s11, %s9
  // Predicated region
  $region2: #{bottleneck_forward.1} parent=0 // pred_check
    _
  $region3: #{bottleneck_forward.1} parent=0 // pred_check_branch
    %14 = sbr.rel (0) target = $region5
  $region4: #{bottleneck_forward.1} parent=0 // pred_region
    _
  $region5: #{bottleneck_forward.1} parent=0 // pred_fallthru
    _
  // Predicated region
  $region6: #{bottleneck_forward.1} parent=0 // pred_check
    _
  $region7: #{bottleneck_forward.1} parent=0 // pred_check_branch
    %16 = sbr.rel (0) target = $region9
  $region8: #{bottleneck_forward.1} parent=0 // pred_region
    _
  $region9: #{bottleneck_forward.1} parent=0 // pred_fallthru
    _
  // Predicated region
  $region10: #{bottleneck_forward.1} parent=0 // pred_check
    _
  $region11: #{bottleneck_forward.1} parent=0 // pred_check_branch
    %18 = sbr.rel (0) target = $region13
  $region12: #{bottleneck_forward.1} parent=0 // pred_region
    _
  $region13: #{bottleneck_forward.1} parent=0 // pred_fallthru
    _
  // Predicated region
  $region14: #{bottleneck_forward.1} parent=0 // pred_check
    _
  $region15: #{bottleneck_forward.1} parent=0 // pred_check_branch
    %20 = sbr.rel (0) target = $region17
  $region16: #{bottleneck_forward.1} parent=0 // pred_region
    _
  $region17: #{bottleneck_forward.1} parent=0 // pred_fallthru
    _
  // Predicated region
  $region18: #{bottleneck_forward.1} parent=0 // pred_check
    _
  $region19: #{bottleneck_forward.1} parent=0 // pred_check_branch
    %22 = sbr.rel (0) target = $region21
  $region20: #{bottleneck_forward.1} parent=0 // pred_region
    _
  $region21: #{bottleneck_forward.1} parent=0 // pred_fallthru
    _
  // Predicated region
  $region22: #{bottleneck_forward.1} parent=0 // pred_check
    _
  $region23: #{bottleneck_forward.1} parent=0 // pred_check_branch
    %24 = sbr.rel (0) target = $region25
  $region24: #{bottleneck_forward.1} parent=0 // pred_region
    _
  $region25: #{bottleneck_forward.1} parent=0 // pred_fallthru
    _
  // Predicated region
  $region26: #{bottleneck_forward.1} parent=0 // pred_check
    _
  $region27: #{bottleneck_forward.1} parent=0 // pred_check_branch
    %26 = sbr.rel (0) target = $region29
  $region28: #{bottleneck_forward.1} parent=0 // pred_region
    _
  $region29: #{bottleneck_forward.1} parent=0 // pred_fallthru
    _
  // Predicated region
  $region30: #{bottleneck_forward.1} parent=0 // pred_check
    _
  $region31: #{bottleneck_forward.1} parent=0 // pred_check_branch
    %28 = sbr.rel (0) target = $region33
  $region32: #{bottleneck_forward.1} parent=0 // pred_region
    _
  $region33: #{bottleneck_forward.1} parent=0 // pred_fallthru
    _
  %v30 = vld [vmem:[%s0] sm:$0xf]
  %v31 = vld [vmem:[%s0 + $0x4] sm:$0xf]
  %v32 = vld [vmem:[%s0 + $0x8] sm:$0xf]
  %v33 = vld [vmem:[%s0 + $0xc] sm:$0xf]
  %v34 = vld [vmem:[%s0 + $0x10] sm:$0xf]
  %v35 = vld [vmem:[%s0 + $0x14] sm:$0xf]
  %v36 = vld [vmem:[%s0 + $0x18] sm:$0xf]
  %v37 = vld [vmem:[%s0 + $0x1c] sm:$0xf]
  %v38 = vld [vmem:[%s0 + $0x20] sm:$0xf]
  %v39 = vld [vmem:[%s0 + $0x24] sm:$0xf]
  %v40 = vld [vmem:[%s0 + $0x28] sm:$0xf]
  %v41 = vld [vmem:[%s0 + $0x2c] sm:$0xf]
  %v42 = vld [vmem:[%s0 + $0x30] sm:$0xf]
  %v43 = vld [vmem:[%s0 + $0x34] sm:$0xf]
  %v44 = vld [vmem:[%s0 + $0x38] sm:$0xf]
  %v45 = vld [vmem:[%s0 + $0x3c] sm:$0xf]
  %v46 = vld [vmem:[%s0 + $0x40] sm:$0xf]
  %v47 = vld [vmem:[%s0 + $0x44] sm:$0xf]
  %v48 = vld [vmem:[%s0 + $0x48] sm:$0xf]
  %v49 = vld [vmem:[%s0 + $0x4c] sm:$0xf]
  %v50 = vld [vmem:[%s0 + $0x50] sm:$0xf]
  %v51 = vld [vmem:[%s0 + $0x54] sm:$0xf]
  %v52 = vld [vmem:[%s0 + $0x58] sm:$0xf]
  %v53 = vld [vmem:[%s0 + $0x5c] sm:$0xf]
  %v54 = vld [vmem:[%s0 + $0x60] sm:$0xf]
  %v55 = vld [vmem:[%s0 + $0x64] sm:$0xf]
  %v56 = vld [vmem:[%s0 + $0x68] sm:$0xf]
  %v57 = vld [vmem:[%s0 + $0x6c] sm:$0xf]
  %v58 = vld [vmem:[%s0 + $0x70] sm:$0xf]
  %v59 = vld [vmem:[%s0 + $0x74] sm:$0xf]
  %v60 = vld [vmem:[%s0 + $0x78] sm:$0xf]
  %v61 = vld [vmem:[%s0 + $0x7c] sm:$0xf]
  %v62 = vld [vmem:[%s0 + $0x80] sm:$0xf]
  %v63 = vld [vmem:[%s0 + $0x84] sm:$0xf]
  %v64 = vld [vmem:[%s0 + $0x88] sm:$0xf]
  %v65 = vld [vmem:[%s0 + $0x8c] sm:$0xf]
  %v66 = vld [vmem:[%s0 + $0x90] sm:$0xf]
  %v67 = vld [vmem:[%s0 + $0x94] sm:$0xf]
  %v68 = vld [vmem:[%s0 + $0x98] sm:$0xf]
  %v69 = vld [vmem:[%s0 + $0x9c] sm:$0xf]
  %v70 = vld [vmem:[%s0 + $0xa0] sm:$0xf]
  %v71 = vld [vmem:[%s0 + $0xa4] sm:$0xf]
  %v72 = vld [vmem:[%s0 + $0xa8] sm:$0xf]
  %v73 = vld [vmem:[%s0 + $0xac] sm:$0xf]
  %v74 = vld [vmem:[%s0 + $0xb0] sm:$0xf]
  %v75 = vld [vmem:[%s0 + $0xb4] sm:$0xf]
  %v76 = vld [vmem:[%s0 + $0xb8] sm:$0xf]
  %v77 = vld [vmem:[%s0 + $0xbc] sm:$0xf]
  %v78 = vld [vmem:[%s0 + $0xc0] sm:$0xf]
  %v79 = vld [vmem:[%s0 + $0xc4] sm:$0xf]
  %v80 = vld [vmem:[%s0 + $0xc8] sm:$0xf]
  %v81 = vld [vmem:[%s0 + $0xcc] sm:$0xf]
  %v82 = vld [vmem:[%s0 + $0xd0] sm:$0xf]
  %v83 = vld [vmem:[%s0 + $0xd4] sm:$0xf]
  %v84 = vld [vmem:[%s0 + $0xd8] sm:$0xf]
  %v85 = vld [vmem:[%s0 + $0xdc] sm:$0xf]
  %v86 = vld [vmem:[%s0 + $0xe0] sm:$0xf]
  %v87 = vld [vmem:[%s0 + $0xe4] sm:$0xf]
  %v88 = vld [vmem:[%s0 + $0xe8] sm:$0xf]
  %v89 = vld [vmem:[%s0 + $0xec] sm:$0xf]
  %v90 = vld [vmem:[%s0 + $0xf0] sm:$0xf]
  %v91 = vld [vmem:[%s0 + $0xf4] sm:$0xf]
  %v92 = vld [vmem:[%s0 + $0xf8] sm:$0xf]
  %v93 = vld [vmem:[%s0 + $0xfc] sm:$0xf]
  %v94 = vld [vmem:[%s1] sm:$0xff]
  %v95 = vld [vmem:[%s1 + $0x8] sm:$0xf]
  %v96 = vld [vmem:[%s1 + $0xc] sm:$0xff]
  %v97 = vld [vmem:[%s1 + $0x14] sm:$0xf]
  %v98 = vld [vmem:[%s1 + $0x18] sm:$0xff]
  %v99 = vld [vmem:[%s1 + $0x20] sm:$0xf]
  %v100 = vld [vmem:[%s1 + $0x24] sm:$0xff]
  %v101 = vld [vmem:[%s1 + $0x2c] sm:$0xf]
  %v102 = vld [vmem:[%s1 + $0x30] sm:$0xff]
  %v103 = vld [vmem:[%s1 + $0x38] sm:$0xf]
  %v104 = vld [vmem:[%s1 + $0x3c] sm:$0xff]
  %v105 = vld [vmem:[%s1 + $0x44] sm:$0xf]
  %v106 = vld [vmem:[%s1 + $0x48] sm:$0xff]
  %v107 = vld [vmem:[%s1 + $0x50] sm:$0xf]
  %v108 = vld [vmem:[%s1 + $0x54] sm:$0xff]
  %v109 = vld [vmem:[%s1 + $0x5c] sm:$0xf]
  %v174 = vunpack.c.l.b16 %v30
  %v175 = vunpack.c.l.b16 %v31
  %v176 = vunpack.c.l.b16 %v32
  %v177 = vunpack.c.l.b16 %v33
  %v178 = vunpack.c.l.b16 %v34
  %v179 = vunpack.c.l.b16 %v35
  %v180 = vunpack.c.l.b16 %v36
  %v181 = vunpack.c.l.b16 %v37
  %v182 = vunpack.c.l.b16 %v38
  %v183 = vunpack.c.l.b16 %v39
  %v184 = vunpack.c.l.b16 %v40
  %v185 = vunpack.c.l.b16 %v41
  %v186 = vunpack.c.l.b16 %v42
  %v187 = vunpack.c.l.b16 %v43
  %v188 = vunpack.c.l.b16 %v44
  %v189 = vunpack.c.l.b16 %v45
  %v190 = vunpack.c.l.b16 %v46
  %v191 = vunpack.c.l.b16 %v47
  %v192 = vunpack.c.l.b16 %v48
  %v193 = vunpack.c.l.b16 %v49
  %v194 = vunpack.c.l.b16 %v50
  %v195 = vunpack.c.l.b16 %v51
  %v196 = vunpack.c.l.b16 %v52
  %v197 = vunpack.c.l.b16 %v53
  %v198 = vunpack.c.l.b16 %v54
  %v199 = vunpack.c.l.b16 %v55
  %v200 = vunpack.c.l.b16 %v56
  %v201 = vunpack.c.l.b16 %v57
  %v202 = vunpack.c.l.b16 %v58
  %v203 = vunpack.c.l.b16 %v59
  %v204 = vunpack.c.l.b16 %v60
  %v205 = vunpack.c.l.b16 %v61
  %v206 = vunpack.c.l.b16 %v62
  %v207 = vunpack.c.l.b16 %v63
  %v208 = vunpack.c.l.b16 %v64
  %v209 = vunpack.c.l.b16 %v65
  %v210 = vunpack.c.l.b16 %v66
  %v211 = vunpack.c.l.b16 %v67
  %v212 = vunpack.c.l.b16 %v68
  %v213 = vunpack.c.l.b16 %v69
  %v214 = vunpack.c.l.b16 %v70
  %v215 = vunpack.c.l.b16 %v71
  %v216 = vunpack.c.l.b16 %v72
  %v217 = vunpack.c.l.b16 %v73
  %v218 = vunpack.c.l.b16 %v74
  %v219 = vunpack.c.l.b16 %v75
  %v220 = vunpack.c.l.b16 %v76
  %v221 = vunpack.c.l.b16 %v77
  %v222 = vunpack.c.l.b16 %v78
  %v223 = vunpack.c.l.b16 %v79
  %v224 = vunpack.c.l.b16 %v80
  %v225 = vunpack.c.l.b16 %v81
  %v226 = vunpack.c.l.b16 %v82
  %v227 = vunpack.c.l.b16 %v83
  %v228 = vunpack.c.l.b16 %v84
  %v229 = vunpack.c.l.b16 %v85
  %v230 = vunpack.c.l.b16 %v86
  %v231 = vunpack.c.l.b16 %v87
  %v232 = vunpack.c.l.b16 %v88
  %v233 = vunpack.c.l.b16 %v89
  %v234 = vunpack.c.l.b16 %v90
  %v235 = vunpack.c.l.b16 %v91
  %v236 = vunpack.c.l.b16 %v92
  %v237 = vunpack.c.l.b16 %v93
  %v238 = vpack.c.b16 %v175, %v174
  %v239 = vpack.c.b16 %v177, %v176
  %v240 = vpack.c.b16 %v179, %v178
  %v241 = vpack.c.b16 %v181, %v180
  %v242 = vpack.c.b16 %v183, %v182
  %v243 = vpack.c.b16 %v185, %v184
  %v244 = vpack.c.b16 %v187, %v186
  %v245 = vpack.c.b16 %v189, %v188
  %v246 = vpack.c.b16 %v191, %v190
  %v247 = vpack.c.b16 %v193, %v192
  %v248 = vpack.c.b16 %v195, %v194
  %v249 = vpack.c.b16 %v197, %v196
  %v250 = vpack.c.b16 %v199, %v198
  %v251 = vpack.c.b16 %v201, %v200
  %v252 = vpack.c.b16 %v203, %v202
  %v253 = vpack.c.b16 %v205, %v204
  %v254 = vpack.c.b16 %v207, %v206
  %v255 = vpack.c.b16 %v209, %v208
  %v256 = vpack.c.b16 %v211, %v210
  %v257 = vpack.c.b16 %v213, %v212
  %v258 = vpack.c.b16 %v215, %v214
  %v259 = vpack.c.b16 %v217, %v216
  %v260 = vpack.c.b16 %v219, %v218
  %v261 = vpack.c.b16 %v221, %v220
  %v262 = vpack.c.b16 %v223, %v222
  %v263 = vpack.c.b16 %v225, %v224
  %v264 = vpack.c.b16 %v227, %v226
  %v265 = vpack.c.b16 %v229, %v228
  %v266 = vpack.c.b16 %v231, %v230
  %v267 = vpack.c.b16 %v233, %v232
  %v268 = vpack.c.b16 %v235, %v234
  %v269 = vpack.c.b16 %v237, %v236
  %v286 = vunpack.c.l.b16 %v94
  %v287 = vunpack.c.h.b16 %v94
  %v288 = vunpack.c.l.b16 %v95
  %v289 = vunpack.c.l.b16 %v96
  %v290 = vunpack.c.h.b16 %v96
  %v291 = vunpack.c.l.b16 %v97
  %v292 = vunpack.c.l.b16 %v98
  %v293 = vunpack.c.h.b16 %v98
  %v294 = vunpack.c.l.b16 %v99
  %v295 = vunpack.c.l.b16 %v100
  %v296 = vunpack.c.h.b16 %v100
  %v297 = vunpack.c.l.b16 %v101
  %v298 = vunpack.c.l.b16 %v102
  %v299 = vunpack.c.h.b16 %v102
  %v300 = vunpack.c.l.b16 %v103
  %v301 = vunpack.c.l.b16 %v104
  %v302 = vunpack.c.h.b16 %v104
  %v303 = vunpack.c.l.b16 %v105
  %v304 = vunpack.c.l.b16 %v106
  %v305 = vunpack.c.h.b16 %v106
  %v306 = vunpack.c.l.b16 %v107
  %v307 = vunpack.c.l.b16 %v108
  %v308 = vunpack.c.h.b16 %v108
  %v309 = vunpack.c.l.b16 %v109
  %v310 = vpack.c.b16 %v289, %v286
  %v311 = vpack.c.b16 %v290, %v287
  %v312 = vpack.c.b16 %v291, %v288
  %v313 = vpack.c.b16 %v295, %v292
  %v314 = vpack.c.b16 %v296, %v293
  %v315 = vpack.c.b16 %v297, %v294
  %v316 = vpack.c.b16 %v301, %v298
  %v317 = vpack.c.b16 %v302, %v299
  %v318 = vpack.c.b16 %v303, %v300
  %v319 = vpack.c.b16 %v307, %v304
  %v320 = vpack.c.b16 %v308, %v305
  %v321 = vpack.c.b16 %v309, %v306
  %vm334 = vcmask 523264
  %v336 = vsel %vm334, %v238, 0
  %v339 = vsel %vm334, %v239, 0
  %v342 = vsel %vm334, %v240, 0
  %v345 = vsel %vm334, %v241, 0
  %v348 = vsel %vm334, %v242, 0
  %v351 = vsel %vm334, %v243, 0
  %v354 = vsel %vm334, %v244, 0
  %v357 = vsel %vm334, %v245, 0
  %v360 = vsel %vm334, %v246, 0
  %v363 = vsel %vm334, %v247, 0
  %v366 = vsel %vm334, %v248, 0
  %v369 = vsel %vm334, %v249, 0
  %v372 = vsel %vm334, %v250, 0
  %v375 = vsel %vm334, %v251, 0
  %v378 = vsel %vm334, %v252, 0
  %v381 = vsel %vm334, %v253, 0
  %v384 = vsel %vm334, %v254, 0
  %v387 = vsel %vm334, %v255, 0
  %v390 = vsel %vm334, %v256, 0
  %v393 = vsel %vm334, %v257, 0
  %v396 = vsel %vm334, %v258, 0
  %v399 = vsel %vm334, %v259, 0
  %v402 = vsel %vm334, %v260, 0
  %v405 = vsel %vm334, %v261, 0
  %v408 = vsel %vm334, %v262, 0
  %v411 = vsel %vm334, %v263, 0
  %v414 = vsel %vm334, %v264, 0
  %v417 = vsel %vm334, %v265, 0
  %v420 = vsel %vm334, %v266, 0
  %v423 = vsel %vm334, %v267, 0
  %v426 = vsel %vm334, %v268, 0
  %v429 = vsel %vm334, %v269, 0
  %431 = vmatprep.subr.bf16.mxu0 0
  %432 = vmatpush1.bf16.msra.mxu0 0
  %433 = vmatprep.subr.bf16.mxu0 0
  %434 = vmatpush1.bf16.msra.mxu0 0
  %435 = vmatprep.subr.bf16.mxu0 0
  %436 = vmatpush1.bf16.msra.mxu0 0
  %437 = vmatprep.subr.bf16.mxu0 0
  %438 = vmatpush1.bf16.msra.mxu0 0
  %439 = vmatprep.subr.bf16.mxu0 %v320
  %440 = vmatpush1.bf16.msra.mxu0 %v319
  %441 = vmatprep.subr.bf16.mxu0 %v317
  %442 = vmatpush1.bf16.msra.mxu0 %v316
  %443 = vmatprep.subr.bf16.mxu0 %v314
  %444 = vmatpush1.bf16.msra.mxu0 %v313
  %445 = vmatprep.subr.bf16.mxu0 %v311
  %446 = vmatpush1.bf16.msra.mxu0 %v310
  %447 = vmatprep.subr.bf16.mxu0 0
  %448 = vmatpush2.bf16.msra.mxu0 0
  %449 = vmatprep.subr.bf16.mxu0 0
  %450 = vmatpush2.bf16.msra.mxu0 0
  %451 = vmatprep.subr.bf16.mxu0 0
  %452 = vmatpush2.bf16.msra.mxu0 0
  %453 = vmatprep.subr.bf16.mxu0 0
  %454 = vmatpush2.bf16.msra.mxu0 0
  %455 = vmatprep.subr.bf16.mxu0 0
  %456 = vmatpush2.bf16.msra.mxu0 0
  %457 = vmatprep.subr.bf16.mxu0 0
  %458 = vmatpush2.bf16.msra.mxu0 0
  %459 = vmatprep.subr.bf16.mxu0 0
  %460 = vmatpush2.bf16.msra.mxu0 0
  %461 = vmatprep.subr.bf16.mxu0 0
  %462 = vmatpush2.bf16.msra.mxu0 0
  %463 = vmatprep.mubr.bf16.mxu0 0
  %464 = vmatmul.mubr.bf16.gmra.mxu0 %v336
  %v465 = vpop.f32.mrf.mxu0
  %v466 = vadd.f32 0.0, %v465
  %v467 = vpop.f32.mrf.mxu0
  %v468 = vadd.f32 0.0, %v467
  %v469 = vpop.f32.mrf.mxu0
  %v470 = vadd.f32 0.0, %v469
  %v471 = vpop.f32.mrf.mxu0
  %v472 = vadd.f32 0.0, %v471
  %473 = vmatprep.mubr.bf16.mxu0 0
  %474 = vmatmul.mubr.bf16.gmra.mxu0 %v339
  %v475 = vpop.f32.mrf.mxu0
  %v476 = vadd.f32 0.0, %v475
  %v477 = vpop.f32.mrf.mxu0
  %v478 = vadd.f32 0.0, %v477
  %v479 = vpop.f32.mrf.mxu0
  %v480 = vadd.f32 0.0, %v479
  %v481 = vpop.f32.mrf.mxu0
  %v482 = vadd.f32 0.0, %v481
  %483 = vmatprep.mubr.bf16.mxu0 0
  %484 = vmatmul.mubr.bf16.gmra.mxu0 %v342
  %v485 = vpop.f32.mrf.mxu0
  %v486 = vadd.f32 0.0, %v485
  %v487 = vpop.f32.mrf.mxu0
  %v488 = vadd.f32 0.0, %v487
  %v489 = vpop.f32.mrf.mxu0
  %v490 = vadd.f32 0.0, %v489
  %v491 = vpop.f32.mrf.mxu0
  %v492 = vadd.f32 0.0, %v491
  %493 = vmatprep.mubr.bf16.mxu0 0
  %494 = vmatmul.mubr.bf16.gmra.mxu0 %v345
  %v495 = vpop.f32.mrf.mxu0
  %v496 = vadd.f32 0.0, %v495
  %v497 = vpop.f32.mrf.mxu0
  %v498 = vadd.f32 0.0, %v497
  %v499 = vpop.f32.mrf.mxu0
  %v500 = vadd.f32 0.0, %v499
  %v501 = vpop.f32.mrf.mxu0
  %v502 = vadd.f32 0.0, %v501
  %503 = vmatprep.mubr.bf16.mxu0 0
  %504 = vmatmul.mubr.bf16.gmra.mxu0 %v348
  %v505 = vpop.f32.mrf.mxu0
  %v506 = vadd.f32 0.0, %v505
  %v507 = vpop.f32.mrf.mxu0
  %v508 = vadd.f32 0.0, %v507
  %v509 = vpop.f32.mrf.mxu0
  %v510 = vadd.f32 0.0, %v509
  %v511 = vpop.f32.mrf.mxu0
  %v512 = vadd.f32 0.0, %v511
  %513 = vmatprep.mubr.bf16.mxu0 0
  %514 = vmatmul.mubr.bf16.gmra.mxu0 %v351
  %v515 = vpop.f32.mrf.mxu0
  %v516 = vadd.f32 0.0, %v515
  %v517 = vpop.f32.mrf.mxu0
  %v518 = vadd.f32 0.0, %v517
  %v519 = vpop.f32.mrf.mxu0
  %v520 = vadd.f32 0.0, %v519
  %v521 = vpop.f32.mrf.mxu0
  %v522 = vadd.f32 0.0, %v521
  %523 = vmatprep.mubr.bf16.mxu0 0
  %524 = vmatmul.mubr.bf16.gmra.mxu0 %v354
  %v525 = vpop.f32.mrf.mxu0
  %v526 = vadd.f32 0.0, %v525
  %v527 = vpop.f32.mrf.mxu0
  %v528 = vadd.f32 0.0, %v527
  %v529 = vpop.f32.mrf.mxu0
  %v530 = vadd.f32 0.0, %v529
  %v531 = vpop.f32.mrf.mxu0
  %v532 = vadd.f32 0.0, %v531
  %533 = vmatprep.mubr.bf16.mxu0 0
  %534 = vmatmul.mubr.bf16.gmra.mxu0 %v357
  %v535 = vpop.f32.mrf.mxu0
  %v536 = vadd.f32 0.0, %v535
  %v537 = vpop.f32.mrf.mxu0
  %v538 = vadd.f32 0.0, %v537
  %v539 = vpop.f32.mrf.mxu0
  %v540 = vadd.f32 0.0, %v539
  %v541 = vpop.f32.mrf.mxu0
  %v542 = vadd.f32 0.0, %v541
  %543 = vmatprep.mubr.bf16.mxu0 0
  %544 = vmatmul.mubr.bf16.gmra.mxu0 %v360
  %v545 = vpop.f32.mrf.mxu0
  %v546 = vadd.f32 0.0, %v545
  %v547 = vpop.f32.mrf.mxu0
  %v548 = vadd.f32 0.0, %v547
  %v549 = vpop.f32.mrf.mxu0
  %v550 = vadd.f32 0.0, %v549
  %v551 = vpop.f32.mrf.mxu0
  %v552 = vadd.f32 0.0, %v551
  %553 = vmatprep.mubr.bf16.mxu0 0
  %554 = vmatmul.mubr.bf16.gmra.mxu0 %v363
  %v555 = vpop.f32.mrf.mxu0
  %v556 = vadd.f32 0.0, %v555
  %v557 = vpop.f32.mrf.mxu0
  %v558 = vadd.f32 0.0, %v557
  %v559 = vpop.f32.mrf.mxu0
  %v560 = vadd.f32 0.0, %v559
  %v561 = vpop.f32.mrf.mxu0
  %v562 = vadd.f32 0.0, %v561
  %563 = vmatprep.mubr.bf16.mxu0 0
  %564 = vmatmul.mubr.bf16.gmra.mxu0 %v366
  %v565 = vpop.f32.mrf.mxu0
  %v566 = vadd.f32 0.0, %v565
  %v567 = vpop.f32.mrf.mxu0
  %v568 = vadd.f32 0.0, %v567
  %v569 = vpop.f32.mrf.mxu0
  %v570 = vadd.f32 0.0, %v569
  %v571 = vpop.f32.mrf.mxu0
  %v572 = vadd.f32 0.0, %v571
  %573 = vmatprep.mubr.bf16.mxu0 0
  %574 = vmatmul.mubr.bf16.gmra.mxu0 %v369
  %v575 = vpop.f32.mrf.mxu0
  %v576 = vadd.f32 0.0, %v575
  %v577 = vpop.f32.mrf.mxu0
  %v578 = vadd.f32 0.0, %v577
  %v579 = vpop.f32.mrf.mxu0
  %v580 = vadd.f32 0.0, %v579
  %v581 = vpop.f32.mrf.mxu0
  %v582 = vadd.f32 0.0, %v581
  %583 = vmatprep.mubr.bf16.mxu0 0
  %584 = vmatmul.mubr.bf16.gmra.mxu0 %v372
  %v585 = vpop.f32.mrf.mxu0
  %v586 = vadd.f32 0.0, %v585
  %v587 = vpop.f32.mrf.mxu0
  %v588 = vadd.f32 0.0, %v587
  %v589 = vpop.f32.mrf.mxu0
  %v590 = vadd.f32 0.0, %v589
  %v591 = vpop.f32.mrf.mxu0
  %v592 = vadd.f32 0.0, %v591
  %593 = vmatprep.mubr.bf16.mxu0 0
  %594 = vmatmul.mubr.bf16.gmra.mxu0 %v375
  %v595 = vpop.f32.mrf.mxu0
  %v596 = vadd.f32 0.0, %v595
  %v597 = vpop.f32.mrf.mxu0
  %v598 = vadd.f32 0.0, %v597
  %v599 = vpop.f32.mrf.mxu0
  %v600 = vadd.f32 0.0, %v599
  %v601 = vpop.f32.mrf.mxu0
  %v602 = vadd.f32 0.0, %v601
  %603 = vmatprep.mubr.bf16.mxu0 0
  %604 = vmatmul.mubr.bf16.gmra.mxu0 %v378
  %v605 = vpop.f32.mrf.mxu0
  %v606 = vadd.f32 0.0, %v605
  %v607 = vpop.f32.mrf.mxu0
  %v608 = vadd.f32 0.0, %v607
  %v609 = vpop.f32.mrf.mxu0
  %v610 = vadd.f32 0.0, %v609
  %v611 = vpop.f32.mrf.mxu0
  %v612 = vadd.f32 0.0, %v611
  %613 = vmatprep.mubr.bf16.mxu0 0
  %614 = vmatmul.mubr.bf16.gmra.mxu0 %v381
  %v615 = vpop.f32.mrf.mxu0
  %v616 = vadd.f32 0.0, %v615
  %v617 = vpop.f32.mrf.mxu0
  %v618 = vadd.f32 0.0, %v617
  %v619 = vpop.f32.mrf.mxu0
  %v620 = vadd.f32 0.0, %v619
  %v621 = vpop.f32.mrf.mxu0
  %v622 = vadd.f32 0.0, %v621
  %623 = vmatprep.mubr.bf16.mxu0 0
  %624 = vmatmul.mubr.bf16.gmra.mxu0 %v384
  %v625 = vpop.f32.mrf.mxu0
  %v626 = vadd.f32 0.0, %v625
  %v627 = vpop.f32.mrf.mxu0
  %v628 = vadd.f32 0.0, %v627
  %v629 = vpop.f32.mrf.mxu0
  %v630 = vadd.f32 0.0, %v629
  %v631 = vpop.f32.mrf.mxu0
  %v632 = vadd.f32 0.0, %v631
  %633 = vmatprep.mubr.bf16.mxu0 0
  %634 = vmatmul.mubr.bf16.gmra.mxu0 %v387
  %v635 = vpop.f32.mrf.mxu0
  %v636 = vadd.f32 0.0, %v635
  %v637 = vpop.f32.mrf.mxu0
  %v638 = vadd.f32 0.0, %v637
  %v639 = vpop.f32.mrf.mxu0
  %v640 = vadd.f32 0.0, %v639
  %v641 = vpop.f32.mrf.mxu0
  %v642 = vadd.f32 0.0, %v641
  %643 = vmatprep.mubr.bf16.mxu0 0
  %644 = vmatmul.mubr.bf16.gmra.mxu0 %v390
  %v645 = vpop.f32.mrf.mxu0
  %v646 = vadd.f32 0.0, %v645
  %v647 = vpop.f32.mrf.mxu0
  %v648 = vadd.f32 0.0, %v647
  %v649 = vpop.f32.mrf.mxu0
  %v650 = vadd.f32 0.0, %v649
  %v651 = vpop.f32.mrf.mxu0
  %v652 = vadd.f32 0.0, %v651
  %653 = vmatprep.mubr.bf16.mxu0 0
  %654 = vmatmul.mubr.bf16.gmra.mxu0 %v393
  %v655 = vpop.f32.mrf.mxu0
  %v656 = vadd.f32 0.0, %v655
  %v657 = vpop.f32.mrf.mxu0
  %v658 = vadd.f32 0.0, %v657
  %v659 = vpop.f32.mrf.mxu0
  %v660 = vadd.f32 0.0, %v659
  %v661 = vpop.f32.mrf.mxu0
  %v662 = vadd.f32 0.0, %v661
  %663 = vmatprep.mubr.bf16.mxu0 0
  %664 = vmatmul.mubr.bf16.gmra.mxu0 %v396
  %v665 = vpop.f32.mrf.mxu0
  %v666 = vadd.f32 0.0, %v665
  %v667 = vpop.f32.mrf.mxu0
  %v668 = vadd.f32 0.0, %v667
  %v669 = vpop.f32.mrf.mxu0
  %v670 = vadd.f32 0.0, %v669
  %v671 = vpop.f32.mrf.mxu0
  %v672 = vadd.f32 0.0, %v671
  %673 = vmatprep.mubr.bf16.mxu0 0
  %674 = vmatmul.mubr.bf16.gmra.mxu0 %v399
  %v675 = vpop.f32.mrf.mxu0
  %v676 = vadd.f32 0.0, %v675
  %v677 = vpop.f32.mrf.mxu0
  %v678 = vadd.f32 0.0, %v677
  %v679 = vpop.f32.mrf.mxu0
  %v680 = vadd.f32 0.0, %v679
  %v681 = vpop.f32.mrf.mxu0
  %v682 = vadd.f32 0.0, %v681
  %683 = vmatprep.mubr.bf16.mxu0 0
  %684 = vmatmul.mubr.bf16.gmra.mxu0 %v402
  %v685 = vpop.f32.mrf.mxu0
  %v686 = vadd.f32 0.0, %v685
  %v687 = vpop.f32.mrf.mxu0
  %v688 = vadd.f32 0.0, %v687
  %v689 = vpop.f32.mrf.mxu0
  %v690 = vadd.f32 0.0, %v689
  %v691 = vpop.f32.mrf.mxu0
  %v692 = vadd.f32 0.0, %v691
  %693 = vmatprep.mubr.bf16.mxu0 0
  %694 = vmatmul.mubr.bf16.gmra.mxu0 %v405
  %v695 = vpop.f32.mrf.mxu0
  %v696 = vadd.f32 0.0, %v695
  %v697 = vpop.f32.mrf.mxu0
  %v698 = vadd.f32 0.0, %v697
  %v699 = vpop.f32.mrf.mxu0
  %v700 = vadd.f32 0.0, %v699
  %v701 = vpop.f32.mrf.mxu0
  %v702 = vadd.f32 0.0, %v701
  %703 = vmatprep.mubr.bf16.mxu0 0
  %704 = vmatmul.mubr.bf16.gmra.mxu0 %v408
  %v705 = vpop.f32.mrf.mxu0
  %v706 = vadd.f32 0.0, %v705
  %v707 = vpop.f32.mrf.mxu0
  %v708 = vadd.f32 0.0, %v707
  %v709 = vpop.f32.mrf.mxu0
  %v710 = vadd.f32 0.0, %v709
  %v711 = vpop.f32.mrf.mxu0
  %v712 = vadd.f32 0.0, %v711
  %713 = vmatprep.mubr.bf16.mxu0 0
  %714 = vmatmul.mubr.bf16.gmra.mxu0 %v411
  %v715 = vpop.f32.mrf.mxu0
  %v716 = vadd.f32 0.0, %v715
  %v717 = vpop.f32.mrf.mxu0
  %v718 = vadd.f32 0.0, %v717
  %v719 = vpop.f32.mrf.mxu0
  %v720 = vadd.f32 0.0, %v719
  %v721 = vpop.f32.mrf.mxu0
  %v722 = vadd.f32 0.0, %v721
  %723 = vmatprep.mubr.bf16.mxu0 0
  %724 = vmatmul.mubr.bf16.gmra.mxu0 %v414
  %v725 = vpop.f32.mrf.mxu0
  %v726 = vadd.f32 0.0, %v725
  %v727 = vpop.f32.mrf.mxu0
  %v728 = vadd.f32 0.0, %v727
  %v729 = vpop.f32.mrf.mxu0
  %v730 = vadd.f32 0.0, %v729
  %v731 = vpop.f32.mrf.mxu0
  %v732 = vadd.f32 0.0, %v731
  %733 = vmatprep.mubr.bf16.mxu0 0
  %734 = vmatmul.mubr.bf16.gmra.mxu0 %v417
  %v735 = vpop.f32.mrf.mxu0
  %v736 = vadd.f32 0.0, %v735
  %v737 = vpop.f32.mrf.mxu0
  %v738 = vadd.f32 0.0, %v737
  %v739 = vpop.f32.mrf.mxu0
  %v740 = vadd.f32 0.0, %v739
  %v741 = vpop.f32.mrf.mxu0
  %v742 = vadd.f32 0.0, %v741
  %743 = vmatprep.mubr.bf16.mxu0 0
  %744 = vmatmul.mubr.bf16.gmra.mxu0 %v420
  %v745 = vpop.f32.mrf.mxu0
  %v746 = vadd.f32 0.0, %v745
  %v747 = vpop.f32.mrf.mxu0
  %v748 = vadd.f32 0.0, %v747
  %v749 = vpop.f32.mrf.mxu0
  %v750 = vadd.f32 0.0, %v749
  %v751 = vpop.f32.mrf.mxu0
  %v752 = vadd.f32 0.0, %v751
  %753 = vmatprep.mubr.bf16.mxu0 0
  %754 = vmatmul.mubr.bf16.gmra.mxu0 %v423
  %v755 = vpop.f32.mrf.mxu0
  %v756 = vadd.f32 0.0, %v755
  %v757 = vpop.f32.mrf.mxu0
  %v758 = vadd.f32 0.0, %v757
  %v759 = vpop.f32.mrf.mxu0
  %v760 = vadd.f32 0.0, %v759
  %v761 = vpop.f32.mrf.mxu0
  %v762 = vadd.f32 0.0, %v761
  %763 = vmatprep.mubr.bf16.mxu0 0
  %764 = vmatmul.mubr.bf16.gmra.mxu0 %v426
  %v765 = vpop.f32.mrf.mxu0
  %v766 = vadd.f32 0.0, %v765
  %v767 = vpop.f32.mrf.mxu0
  %v768 = vadd.f32 0.0, %v767
  %v769 = vpop.f32.mrf.mxu0
  %v770 = vadd.f32 0.0, %v769
  %v771 = vpop.f32.mrf.mxu0
  %v772 = vadd.f32 0.0, %v771
  %773 = vmatprep.mubr.bf16.mxu0 0
  %774 = vmatmul.mubr.bf16.gmra.mxu0 %v429
  %v775 = vpop.f32.mrf.mxu0
  %v776 = vadd.f32 0.0, %v775
  %v777 = vpop.f32.mrf.mxu0
  %v778 = vadd.f32 0.0, %v777
  %v779 = vpop.f32.mrf.mxu0
  %v780 = vadd.f32 0.0, %v779
  %v781 = vpop.f32.mrf.mxu0
  %v782 = vadd.f32 0.0, %v781
  %783 = vdwg.mxu0
  %784 = vmatprep.subr.bf16.mxu0 0
  %785 = vmatpush1.bf16.msra.mxu0 0
  %786 = vmatprep.subr.bf16.mxu0 0
  %787 = vmatpush1.bf16.msra.mxu0 0
  %788 = vmatprep.subr.bf16.mxu0 0
  %789 = vmatpush1.bf16.msra.mxu0 0
  %790 = vmatprep.subr.bf16.mxu0 0
  %791 = vmatpush1.bf16.msra.mxu0 0
  %792 = vmatprep.subr.bf16.mxu0 0
  %793 = vmatpush1.bf16.msra.mxu0 %v321
  %794 = vmatprep.subr.bf16.mxu0 0
  %795 = vmatpush1.bf16.msra.mxu0 %v318
  %796 = vmatprep.subr.bf16.mxu0 0
  %797 = vmatpush1.bf16.msra.mxu0 %v315
  %798 = vmatprep.subr.bf16.mxu0 0
  %799 = vmatpush1.bf16.msra.mxu0 %v312
  %800 = vmatprep.subr.bf16.mxu0 0
  %801 = vmatpush2.bf16.msra.mxu0 0
  %802 = vmatprep.subr.bf16.mxu0 0
  %803 = vmatpush2.bf16.msra.mxu0 0
  %804 = vmatprep.subr.bf16.mxu0 0
  %805 = vmatpush2.bf16.msra.mxu0 0
  %806 = vmatprep.subr.bf16.mxu0 0
  %807 = vmatpush2.bf16.msra.mxu0 0
  %808 = vmatprep.subr.bf16.mxu0 0
  %809 = vmatpush2.bf16.msra.mxu0 0
  %810 = vmatprep.subr.bf16.mxu0 0
  %811 = vmatpush2.bf16.msra.mxu0 0
  %812 = vmatprep.subr.bf16.mxu0 0
  %813 = vmatpush2.bf16.msra.mxu0 0
  %814 = vmatprep.subr.bf16.mxu0 0
  %815 = vmatpush2.bf16.msra.mxu0 0
  %816 = vmatprep.mubr.bf16.mxu0 0
  %817 = vmatmul.mubr.bf16.gmra.mxu0 %v336
  %v818 = vpop.f32.mrf.mxu0
  %v819 = vadd.f32 0.0, %v818
  %v820 = vpop.f32.mrf.mxu0
  %v821 = vpop.f32.mrf.mxu0
  %v822 = vadd.f32 0.0, %v821
  %v823 = vpop.f32.mrf.mxu0
  %824 = vmatprep.mubr.bf16.mxu0 0
  %825 = vmatmul.mubr.bf16.gmra.mxu0 %v339
  %v826 = vpop.f32.mrf.mxu0
  %v827 = vadd.f32 0.0, %v826
  %v828 = vpop.f32.mrf.mxu0
  %v829 = vpop.f32.mrf.mxu0
  %v830 = vadd.f32 0.0, %v829
  %v831 = vpop.f32.mrf.mxu0
  %832 = vmatprep.mubr.bf16.mxu0 0
  %833 = vmatmul.mubr.bf16.gmra.mxu0 %v342
  %v834 = vpop.f32.mrf.mxu0
  %v835 = vadd.f32 0.0, %v834
  %v836 = vpop.f32.mrf.mxu0
  %v837 = vpop.f32.mrf.mxu0
  %v838 = vadd.f32 0.0, %v837
  %v839 = vpop.f32.mrf.mxu0
  %840 = vmatprep.mubr.bf16.mxu0 0
  %841 = vmatmul.mubr.bf16.gmra.mxu0 %v345
  %v842 = vpop.f32.mrf.mxu0
  %v843 = vadd.f32 0.0, %v842
  %v844 = vpop.f32.mrf.mxu0
  %v845 = vpop.f32.mrf.mxu0
  %v846 = vadd.f32 0.0, %v845
  %v847 = vpop.f32.mrf.mxu0
  %848 = vmatprep.mubr.bf16.mxu0 0
  %849 = vmatmul.mubr.bf16.gmra.mxu0 %v348
  %v850 = vpop.f32.mrf.mxu0
  %v851 = vadd.f32 0.0, %v850
  %v852 = vpop.f32.mrf.mxu0
  %v853 = vpop.f32.mrf.mxu0
  %v854 = vadd.f32 0.0, %v853
  %v855 = vpop.f32.mrf.mxu0
  %856 = vmatprep.mubr.bf16.mxu0 0
  %857 = vmatmul.mubr.bf16.gmra.mxu0 %v351
  %v858 = vpop.f32.mrf.mxu0
  %v859 = vadd.f32 0.0, %v858
  %v860 = vpop.f32.mrf.mxu0
  %v861 = vpop.f32.mrf.mxu0
  %v862 = vadd.f32 0.0, %v861
  %v863 = vpop.f32.mrf.mxu0
  %864 = vmatprep.mubr.bf16.mxu0 0
  %865 = vmatmul.mubr.bf16.gmra.mxu0 %v354
  %v866 = vpop.f32.mrf.mxu0
  %v867 = vadd.f32 0.0, %v866
  %v868 = vpop.f32.mrf.mxu0
  %v869 = vpop.f32.mrf.mxu0
  %v870 = vadd.f32 0.0, %v869
  %v871 = vpop.f32.mrf.mxu0
  %872 = vmatprep.mubr.bf16.mxu0 0
  %873 = vmatmul.mubr.bf16.gmra.mxu0 %v357
  %v874 = vpop.f32.mrf.mxu0
  %v875 = vadd.f32 0.0, %v874
  %v876 = vpop.f32.mrf.mxu0
  %v877 = vpop.f32.mrf.mxu0
  %v878 = vadd.f32 0.0, %v877
  %v879 = vpop.f32.mrf.mxu0
  %880 = vmatprep.mubr.bf16.mxu0 0
  %881 = vmatmul.mubr.bf16.gmra.mxu0 %v360
  %v882 = vpop.f32.mrf.mxu0
  %v883 = vadd.f32 0.0, %v882
  %v884 = vpop.f32.mrf.mxu0
  %v885 = vpop.f32.mrf.mxu0
  %v886 = vadd.f32 0.0, %v885
  %v887 = vpop.f32.mrf.mxu0
  %888 = vmatprep.mubr.bf16.mxu0 0
  %889 = vmatmul.mubr.bf16.gmra.mxu0 %v363
  %v890 = vpop.f32.mrf.mxu0
  %v891 = vadd.f32 0.0, %v890
  %v892 = vpop.f32.mrf.mxu0
  %v893 = vpop.f32.mrf.mxu0
  %v894 = vadd.f32 0.0, %v893
  %v895 = vpop.f32.mrf.mxu0
  %896 = vmatprep.mubr.bf16.mxu0 0
  %897 = vmatmul.mubr.bf16.gmra.mxu0 %v366
  %v898 = vpop.f32.mrf.mxu0
  %v899 = vadd.f32 0.0, %v898
  %v900 = vpop.f32.mrf.mxu0
  %v901 = vpop.f32.mrf.mxu0
  %v902 = vadd.f32 0.0, %v901
  %v903 = vpop.f32.mrf.mxu0
  %904 = vmatprep.mubr.bf16.mxu0 0
  %905 = vmatmul.mubr.bf16.gmra.mxu0 %v369
  %v906 = vpop.f32.mrf.mxu0
  %v907 = vadd.f32 0.0, %v906
  %v908 = vpop.f32.mrf.mxu0
  %v909 = vpop.f32.mrf.mxu0
  %v910 = vadd.f32 0.0, %v909
  %v911 = vpop.f32.mrf.mxu0
  %912 = vmatprep.mubr.bf16.mxu0 0
  %913 = vmatmul.mubr.bf16.gmra.mxu0 %v372
  %v914 = vpop.f32.mrf.mxu0
  %v915 = vadd.f32 0.0, %v914
  %v916 = vpop.f32.mrf.mxu0
  %v917 = vpop.f32.mrf.mxu0
  %v918 = vadd.f32 0.0, %v917
  %v919 = vpop.f32.mrf.mxu0
  %920 = vmatprep.mubr.bf16.mxu0 0
  %921 = vmatmul.mubr.bf16.gmra.mxu0 %v375
  %v922 = vpop.f32.mrf.mxu0
  %v923 = vadd.f32 0.0, %v922
  %v924 = vpop.f32.mrf.mxu0
  %v925 = vpop.f32.mrf.mxu0
  %v926 = vadd.f32 0.0, %v925
  %v927 = vpop.f32.mrf.mxu0
  %928 = vmatprep.mubr.bf16.mxu0 0
  %929 = vmatmul.mubr.bf16.gmra.mxu0 %v378
  %v930 = vpop.f32.mrf.mxu0
  %v931 = vadd.f32 0.0, %v930
  %v932 = vpop.f32.mrf.mxu0
  %v933 = vpop.f32.mrf.mxu0
  %v934 = vadd.f32 0.0, %v933
  %v935 = vpop.f32.mrf.mxu0
  %936 = vmatprep.mubr.bf16.mxu0 0
  %937 = vmatmul.mubr.bf16.gmra.mxu0 %v381
  %v938 = vpop.f32.mrf.mxu0
  %v939 = vadd.f32 0.0, %v938
  %v940 = vpop.f32.mrf.mxu0
  %v941 = vpop.f32.mrf.mxu0
  %v942 = vadd.f32 0.0, %v941
  %v943 = vpop.f32.mrf.mxu0
  %944 = vmatprep.mubr.bf16.mxu0 0
  %945 = vmatmul.mubr.bf16.gmra.mxu0 %v384
  %v946 = vpop.f32.mrf.mxu0
  %v947 = vadd.f32 0.0, %v946
  %v948 = vpop.f32.mrf.mxu0
  %v949 = vpop.f32.mrf.mxu0
  %v950 = vadd.f32 0.0, %v949
  %v951 = vpop.f32.mrf.mxu0
  %952 = vmatprep.mubr.bf16.mxu0 0
  %953 = vmatmul.mubr.bf16.gmra.mxu0 %v387
  %v954 = vpop.f32.mrf.mxu0
  %v955 = vadd.f32 0.0, %v954
  %v956 = vpop.f32.mrf.mxu0
  %v957 = vpop.f32.mrf.mxu0
  %v958 = vadd.f32 0.0, %v957
  %v959 = vpop.f32.mrf.mxu0
  %960 = vmatprep.mubr.bf16.mxu0 0
  %961 = vmatmul.mubr.bf16.gmra.mxu0 %v390
  %v962 = vpop.f32.mrf.mxu0
  %v963 = vadd.f32 0.0, %v962
  %v964 = vpop.f32.mrf.mxu0
  %v965 = vpop.f32.mrf.mxu0
  %v966 = vadd.f32 0.0, %v965
  %v967 = vpop.f32.mrf.mxu0
  %968 = vmatprep.mubr.bf16.mxu0 0
  %969 = vmatmul.mubr.bf16.gmra.mxu0 %v393
  %v970 = vpop.f32.mrf.mxu0
  %v971 = vadd.f32 0.0, %v970
  %v972 = vpop.f32.mrf.mxu0
  %v973 = vpop.f32.mrf.mxu0
  %v974 = vadd.f32 0.0, %v973
  %v975 = vpop.f32.mrf.mxu0
  %976 = vmatprep.mubr.bf16.mxu0 0
  %977 = vmatmul.mubr.bf16.gmra.mxu0 %v396
  %v978 = vpop.f32.mrf.mxu0
  %v979 = vadd.f32 0.0, %v978
  %v980 = vpop.f32.mrf.mxu0
  %v981 = vpop.f32.mrf.mxu0
  %v982 = vadd.f32 0.0, %v981
  %v983 = vpop.f32.mrf.mxu0
  %984 = vmatprep.mubr.bf16.mxu0 0
  %985 = vmatmul.mubr.bf16.gmra.mxu0 %v399
  %v986 = vpop.f32.mrf.mxu0
  %v987 = vadd.f32 0.0, %v986
  %v988 = vpop.f32.mrf.mxu0
  %v989 = vpop.f32.mrf.mxu0
  %v990 = vadd.f32 0.0, %v989
  %v991 = vpop.f32.mrf.mxu0
  %992 = vmatprep.mubr.bf16.mxu0 0
  %993 = vmatmul.mubr.bf16.gmra.mxu0 %v402
  %v994 = vpop.f32.mrf.mxu0
  %v995 = vadd.f32 0.0, %v994
  %v996 = vpop.f32.mrf.mxu0
  %v997 = vpop.f32.mrf.mxu0
  %v998 = vadd.f32 0.0, %v997
  %v999 = vpop.f32.mrf.mxu0
  %1000 = vmatprep.mubr.bf16.mxu0 0
  %1001 = vmatmul.mubr.bf16.gmra.mxu0 %v405
  %v1002 = vpop.f32.mrf.mxu0
  %v1003 = vadd.f32 0.0, %v1002
  %v1004 = vpop.f32.mrf.mxu0
  %v1005 = vpop.f32.mrf.mxu0
  %v1006 = vadd.f32 0.0, %v1005
  %v1007 = vpop.f32.mrf.mxu0
  %1008 = vmatprep.mubr.bf16.mxu0 0
  %1009 = vmatmul.mubr.bf16.gmra.mxu0 %v408
  %v1010 = vpop.f32.mrf.mxu0
  %v1011 = vadd.f32 0.0, %v1010
  %v1012 = vpop.f32.mrf.mxu0
  %v1013 = vpop.f32.mrf.mxu0
  %v1014 = vadd.f32 0.0, %v1013
  %v1015 = vpop.f32.mrf.mxu0
  %1016 = vmatprep.mubr.bf16.mxu0 0
  %1017 = vmatmul.mubr.bf16.gmra.mxu0 %v411
  %v1018 = vpop.f32.mrf.mxu0
  %v1019 = vadd.f32 0.0, %v1018
  %v1020 = vpop.f32.mrf.mxu0
  %v1021 = vpop.f32.mrf.mxu0
  %v1022 = vadd.f32 0.0, %v1021
  %v1023 = vpop.f32.mrf.mxu0
  %1024 = vmatprep.mubr.bf16.mxu0 0
  %1025 = vmatmul.mubr.bf16.gmra.mxu0 %v414
  %v1026 = vpop.f32.mrf.mxu0
  %v1027 = vadd.f32 0.0, %v1026
  %v1028 = vpop.f32.mrf.mxu0
  %v1029 = vpop.f32.mrf.mxu0
  %v1030 = vadd.f32 0.0, %v1029
  %v1031 = vpop.f32.mrf.mxu0
  %1032 = vmatprep.mubr.bf16.mxu0 0
  %1033 = vmatmul.mubr.bf16.gmra.mxu0 %v417
  %v1034 = vpop.f32.mrf.mxu0
  %v1035 = vadd.f32 0.0, %v1034
  %v1036 = vpop.f32.mrf.mxu0
  %v1037 = vpop.f32.mrf.mxu0
  %v1038 = vadd.f32 0.0, %v1037
  %v1039 = vpop.f32.mrf.mxu0
  %1040 = vmatprep.mubr.bf16.mxu0 0
  %1041 = vmatmul.mubr.bf16.gmra.mxu0 %v420
  %v1042 = vpop.f32.mrf.mxu0
  %v1043 = vadd.f32 0.0, %v1042
  %v1044 = vpop.f32.mrf.mxu0
  %v1045 = vpop.f32.mrf.mxu0
  %v1046 = vadd.f32 0.0, %v1045
  %v1047 = vpop.f32.mrf.mxu0
  %1048 = vmatprep.mubr.bf16.mxu0 0
  %1049 = vmatmul.mubr.bf16.gmra.mxu0 %v423
  %v1050 = vpop.f32.mrf.mxu0
  %v1051 = vadd.f32 0.0, %v1050
  %v1052 = vpop.f32.mrf.mxu0
  %v1053 = vpop.f32.mrf.mxu0
  %v1054 = vadd.f32 0.0, %v1053
  %v1055 = vpop.f32.mrf.mxu0
  %1056 = vmatprep.mubr.bf16.mxu0 0
  %1057 = vmatmul.mubr.bf16.gmra.mxu0 %v426
  %v1058 = vpop.f32.mrf.mxu0
  %v1059 = vadd.f32 0.0, %v1058
  %v1060 = vpop.f32.mrf.mxu0
  %v1061 = vpop.f32.mrf.mxu0
  %v1062 = vadd.f32 0.0, %v1061
  %v1063 = vpop.f32.mrf.mxu0
  %1064 = vmatprep.mubr.bf16.mxu0 0
  %1065 = vmatmul.mubr.bf16.gmra.mxu0 %v429
  %v1066 = vpop.f32.mrf.mxu0
  %v1067 = vadd.f32 0.0, %v1066
  %v1068 = vpop.f32.mrf.mxu0
  %v1069 = vpop.f32.mrf.mxu0
  %v1070 = vadd.f32 0.0, %v1069
  %v1071 = vpop.f32.mrf.mxu0
  %1072 = vdwg.mxu0
  %v1073 = vld [vmem:[%s3] sm:$0x3]
  %v1075 = vlaneseq
  %v1076 = vshrl.u32 %v1075, 7
  %v1077 = vsub.s32 0, %v1076
  %v1078 = vrot.slane %v1073, %v1077
  %v1079 = vlaneseq
  %v1080 = vshrl.u32 %v1079, 7
  %v1081 = vsub.s32 1, %v1080
  %v1082 = vrot.slane %v1073, %v1081
  %v1085 = vadd.f32 %v466, %v1078
  %v1086 = vadd.f32 %v468, %v1082
  %v1087 = vadd.f32 %v470, %v1078
  %v1088 = vadd.f32 %v472, %v1082
  %v1089 = vadd.f32 %v476, %v1078
  %v1090 = vadd.f32 %v478, %v1082
  %v1091 = vadd.f32 %v480, %v1078
  %v1092 = vadd.f32 %v482, %v1082
  %v1093 = vadd.f32 %v486, %v1078
  %v1094 = vadd.f32 %v488, %v1082
  %v1095 = vadd.f32 %v490, %v1078
  %v1096 = vadd.f32 %v492, %v1082
  %v1097 = vadd.f32 %v496, %v1078
  %v1098 = vadd.f32 %v498, %v1082
  %v1099 = vadd.f32 %v500, %v1078
  %v1100 = vadd.f32 %v502, %v1082
  %v1101 = vadd.f32 %v506, %v1078
  %v1102 = vadd.f32 %v508, %v1082
  %v1103 = vadd.f32 %v510, %v1078
  %v1104 = vadd.f32 %v512, %v1082
  %v1105 = vadd.f32 %v516, %v1078
  %v1106 = vadd.f32 %v518, %v1082
  %v1107 = vadd.f32 %v520, %v1078
  %v1108 = vadd.f32 %v522, %v1082
  %v1109 = vadd.f32 %v526, %v1078
  %v1110 = vadd.f32 %v528, %v1082
  %v1111 = vadd.f32 %v530, %v1078
  %v1112 = vadd.f32 %v532, %v1082
  %v1113 = vadd.f32 %v536, %v1078
  %v1114 = vadd.f32 %v538, %v1082
  %v1115 = vadd.f32 %v540, %v1078
  %v1116 = vadd.f32 %v542, %v1082
  %v1117 = vadd.f32 %v546, %v1078
  %v1118 = vadd.f32 %v548, %v1082
  %v1119 = vadd.f32 %v550, %v1078
  %v1120 = vadd.f32 %v552, %v1082
  %v1121 = vadd.f32 %v556, %v1078
  %v1122 = vadd.f32 %v558, %v1082
  %v1123 = vadd.f32 %v560, %v1078
  %v1124 = vadd.f32 %v562, %v1082
  %v1125 = vadd.f32 %v566, %v1078
  %v1126 = vadd.f32 %v568, %v1082
  %v1127 = vadd.f32 %v570, %v1078
  %v1128 = vadd.f32 %v572, %v1082
  %v1129 = vadd.f32 %v576, %v1078
  %v1130 = vadd.f32 %v578, %v1082
  %v1131 = vadd.f32 %v580, %v1078
  %v1132 = vadd.f32 %v582, %v1082
  %v1133 = vadd.f32 %v586, %v1078
  %v1134 = vadd.f32 %v588, %v1082
  %v1135 = vadd.f32 %v590, %v1078
  %v1136 = vadd.f32 %v592, %v1082
  %v1137 = vadd.f32 %v596, %v1078
  %v1138 = vadd.f32 %v598, %v1082
  %v1139 = vadd.f32 %v600, %v1078
  %v1140 = vadd.f32 %v602, %v1082
  %v1141 = vadd.f32 %v606, %v1078
  %v1142 = vadd.f32 %v608, %v1082
  %v1143 = vadd.f32 %v610, %v1078
  %v1144 = vadd.f32 %v612, %v1082
  %v1145 = vadd.f32 %v616, %v1078
  %v1146 = vadd.f32 %v618, %v1082
  %v1147 = vadd.f32 %v620, %v1078
  %v1148 = vadd.f32 %v622, %v1082
  %v1149 = vadd.f32 %v626, %v1078
  %v1150 = vadd.f32 %v628, %v1082
  %v1151 = vadd.f32 %v630, %v1078
  %v1152 = vadd.f32 %v632, %v1082
  %v1153 = vadd.f32 %v636, %v1078
  %v1154 = vadd.f32 %v638, %v1082
  %v1155 = vadd.f32 %v640, %v1078
  %v1156 = vadd.f32 %v642, %v1082
  %v1157 = vadd.f32 %v646, %v1078
  %v1158 = vadd.f32 %v648, %v1082
  %v1159 = vadd.f32 %v650, %v1078
  %v1160 = vadd.f32 %v652, %v1082
  %v1161 = vadd.f32 %v656, %v1078
  %v1162 = vadd.f32 %v658, %v1082
  %v1163 = vadd.f32 %v660, %v1078
  %v1164 = vadd.f32 %v662, %v1082
  %v1165 = vadd.f32 %v666, %v1078
  %v1166 = vadd.f32 %v668, %v1082
  %v1167 = vadd.f32 %v670, %v1078
  %v1168 = vadd.f32 %v672, %v1082
  %v1169 = vadd.f32 %v676, %v1078
  %v1170 = vadd.f32 %v678, %v1082
  %v1171 = vadd.f32 %v680, %v1078
  %v1172 = vadd.f32 %v682, %v1082
  %v1173 = vadd.f32 %v686, %v1078
  %v1174 = vadd.f32 %v688, %v1082
  %v1175 = vadd.f32 %v690, %v1078
  %v1176 = vadd.f32 %v692, %v1082
  %v1177 = vadd.f32 %v696, %v1078
  %v1178 = vadd.f32 %v698, %v1082
  %v1179 = vadd.f32 %v700, %v1078
  %v1180 = vadd.f32 %v702, %v1082
  %v1181 = vadd.f32 %v706, %v1078
  %v1182 = vadd.f32 %v708, %v1082
  %v1183 = vadd.f32 %v710, %v1078
  %v1184 = vadd.f32 %v712, %v1082
  %v1185 = vadd.f32 %v716, %v1078
  %v1186 = vadd.f32 %v718, %v1082
  %v1187 = vadd.f32 %v720, %v1078
  %v1188 = vadd.f32 %v722, %v1082
  %v1189 = vadd.f32 %v726, %v1078
  %v1190 = vadd.f32 %v728, %v1082
  %v1191 = vadd.f32 %v730, %v1078
  %v1192 = vadd.f32 %v732, %v1082
  %v1193 = vadd.f32 %v736, %v1078
  %v1194 = vadd.f32 %v738, %v1082
  %v1195 = vadd.f32 %v740, %v1078
  %v1196 = vadd.f32 %v742, %v1082
  %v1197 = vadd.f32 %v746, %v1078
  %v1198 = vadd.f32 %v748, %v1082
  %v1199 = vadd.f32 %v750, %v1078
  %v1200 = vadd.f32 %v752, %v1082
  %v1201 = vadd.f32 %v756, %v1078
  %v1202 = vadd.f32 %v758, %v1082
  %v1203 = vadd.f32 %v760, %v1078
  %v1204 = vadd.f32 %v762, %v1082
  %v1205 = vadd.f32 %v766, %v1078
  %v1206 = vadd.f32 %v768, %v1082
  %v1207 = vadd.f32 %v770, %v1078
  %v1208 = vadd.f32 %v772, %v1082
  %v1209 = vadd.f32 %v776, %v1078
  %v1210 = vadd.f32 %v778, %v1082
  %v1211 = vadd.f32 %v780, %v1078
  %v1212 = vadd.f32 %v782, %v1082
  %v1213 = vld [vmem:[%s2] sm:$0x1]
  %v1215 = vlaneseq
  %v1216 = vshrl.u32 %v1215, 7
  %v1217 = vsub.s32 0, %v1216
  %v1218 = vrot.slane %v1213, %v1217
  %v1220 = vadd.f32 %v819, %v1218
  %v1221 = vadd.f32 %v822, %v1218
  %v1222 = vadd.f32 %v827, %v1218
  %v1223 = vadd.f32 %v830, %v1218
  %v1224 = vadd.f32 %v835, %v1218
  %v1225 = vadd.f32 %v838, %v1218
  %v1226 = vadd.f32 %v843, %v1218
  %v1227 = vadd.f32 %v846, %v1218
  %v1228 = vadd.f32 %v851, %v1218
  %v1229 = vadd.f32 %v854, %v1218
  %v1230 = vadd.f32 %v859, %v1218
  %v1231 = vadd.f32 %v862, %v1218
  %v1232 = vadd.f32 %v867, %v1218
  %v1233 = vadd.f32 %v870, %v1218
  %v1234 = vadd.f32 %v875, %v1218
  %v1235 = vadd.f32 %v878, %v1218
  %v1236 = vadd.f32 %v883, %v1218
  %v1237 = vadd.f32 %v886, %v1218
  %v1238 = vadd.f32 %v891, %v1218
  %v1239 = vadd.f32 %v894, %v1218
  %v1240 = vadd.f32 %v899, %v1218
  %v1241 = vadd.f32 %v902, %v1218
  %v1242 = vadd.f32 %v907, %v1218
  %v1243 = vadd.f32 %v910, %v1218
  %v1244 = vadd.f32 %v915, %v1218
  %v1245 = vadd.f32 %v918, %v1218
  %v1246 = vadd.f32 %v923, %v1218
  %v1247 = vadd.f32 %v926, %v1218
  %v1248 = vadd.f32 %v931, %v1218
  %v1249 = vadd.f32 %v934, %v1218
  %v1250 = vadd.f32 %v939, %v1218
  %v1251 = vadd.f32 %v942, %v1218
  %v1252 = vadd.f32 %v947, %v1218
  %v1253 = vadd.f32 %v950, %v1218
  %v1254 = vadd.f32 %v955, %v1218
  %v1255 = vadd.f32 %v958, %v1218
  %v1256 = vadd.f32 %v963, %v1218
  %v1257 = vadd.f32 %v966, %v1218
  %v1258 = vadd.f32 %v971, %v1218
  %v1259 = vadd.f32 %v974, %v1218
  %v1260 = vadd.f32 %v979, %v1218
  %v1261 = vadd.f32 %v982, %v1218
  %v1262 = vadd.f32 %v987, %v1218
  %v1263 = vadd.f32 %v990, %v1218
  %v1264 = vadd.f32 %v995, %v1218
  %v1265 = vadd.f32 %v998, %v1218
  %v1266 = vadd.f32 %v1003, %v1218
  %v1267 = vadd.f32 %v1006, %v1218
  %v1268 = vadd.f32 %v1011, %v1218
  %v1269 = vadd.f32 %v1014, %v1218
  %v1270 = vadd.f32 %v1019, %v1218
  %v1271 = vadd.f32 %v1022, %v1218
  %v1272 = vadd.f32 %v1027, %v1218
  %v1273 = vadd.f32 %v1030, %v1218
  %v1274 = vadd.f32 %v1035, %v1218
  %v1275 = vadd.f32 %v1038, %v1218
  %v1276 = vadd.f32 %v1043, %v1218
  %v1277 = vadd.f32 %v1046, %v1218
  %v1278 = vadd.f32 %v1051, %v1218
  %v1279 = vadd.f32 %v1054, %v1218
  %v1280 = vadd.f32 %v1059, %v1218
  %v1281 = vadd.f32 %v1062, %v1218
  %v1282 = vadd.f32 %v1067, %v1218
  %v1283 = vadd.f32 %v1070, %v1218
  %v1284 = vmax.f32 %v1220, 0.0
  %v1285 = vmax.f32 %v1221, 0.0
  %v1286 = vmax.f32 %v1222, 0.0
  %v1287 = vmax.f32 %v1223, 0.0
  %v1288 = vmax.f32 %v1224, 0.0
  %v1289 = vmax.f32 %v1225, 0.0
  %v1290 = vmax.f32 %v1226, 0.0
  %v1291 = vmax.f32 %v1227, 0.0
  %v1292 = vmax.f32 %v1228, 0.0
  %v1293 = vmax.f32 %v1229, 0.0
  %v1294 = vmax.f32 %v1230, 0.0
  %v1295 = vmax.f32 %v1231, 0.0
  %v1296 = vmax.f32 %v1232, 0.0
  %v1297 = vmax.f32 %v1233, 0.0
  %v1298 = vmax.f32 %v1234, 0.0
  %v1299 = vmax.f32 %v1235, 0.0
  %v1300 = vmax.f32 %v1236, 0.0
  %v1301 = vmax.f32 %v1237, 0.0
  %v1302 = vmax.f32 %v1238, 0.0
  %v1303 = vmax.f32 %v1239, 0.0
  %v1304 = vmax.f32 %v1240, 0.0
  %v1305 = vmax.f32 %v1241, 0.0
  %v1306 = vmax.f32 %v1242, 0.0
  %v1307 = vmax.f32 %v1243, 0.0
  %v1308 = vmax.f32 %v1244, 0.0
  %v1309 = vmax.f32 %v1245, 0.0
  %v1310 = vmax.f32 %v1246, 0.0
  %v1311 = vmax.f32 %v1247, 0.0
  %v1312 = vmax.f32 %v1248, 0.0
  %v1313 = vmax.f32 %v1249, 0.0
  %v1314 = vmax.f32 %v1250, 0.0
  %v1315 = vmax.f32 %v1251, 0.0
  %v1316 = vmax.f32 %v1252, 0.0
  %v1317 = vmax.f32 %v1253, 0.0
  %v1318 = vmax.f32 %v1254, 0.0
  %v1319 = vmax.f32 %v1255, 0.0
  %v1320 = vmax.f32 %v1256, 0.0
  %v1321 = vmax.f32 %v1257, 0.0
  %v1322 = vmax.f32 %v1258, 0.0
  %v1323 = vmax.f32 %v1259, 0.0
  %v1324 = vmax.f32 %v1260, 0.0
  %v1325 = vmax.f32 %v1261, 0.0
  %v1326 = vmax.f32 %v1262, 0.0
  %v1327 = vmax.f32 %v1263, 0.0
  %v1328 = vmax.f32 %v1264, 0.0
  %v1329 = vmax.f32 %v1265, 0.0
  %v1330 = vmax.f32 %v1266, 0.0
  %v1331 = vmax.f32 %v1267, 0.0
  %v1332 = vmax.f32 %v1268, 0.0
  %v1333 = vmax.f32 %v1269, 0.0
  %v1334 = vmax.f32 %v1270, 0.0
  %v1335 = vmax.f32 %v1271, 0.0
  %v1336 = vmax.f32 %v1272, 0.0
  %v1337 = vmax.f32 %v1273, 0.0
  %v1338 = vmax.f32 %v1274, 0.0
  %v1339 = vmax.f32 %v1275, 0.0
  %v1340 = vmax.f32 %v1276, 0.0
  %v1341 = vmax.f32 %v1277, 0.0
  %v1342 = vmax.f32 %v1278, 0.0
  %v1343 = vmax.f32 %v1279, 0.0
  %v1344 = vmax.f32 %v1280, 0.0
  %v1345 = vmax.f32 %v1281, 0.0
  %v1346 = vmax.f32 %v1282, 0.0
  %v1347 = vmax.f32 %v1283, 0.0
  %vm1348 = vcmask 519168
  %1349 = vst.msk [vmem:[#allocation2] sm:$0xf] %vm1348, 0
  %1350 = vst.msk [vmem:[#allocation2 + $0x4] sm:$0xf] %vm1348, 0
  %1351 = vst.msk [vmem:[#allocation2 + $0x8] sm:$0xf] %vm1348, 0
  %1352 = vst.msk [vmem:[#allocation2 + $0xc] sm:$0xf] %vm1348, 0
  %1353 = vst.msk [vmem:[#allocation2 + $0x120] sm:$0xf] %vm1348, 0
  %1354 = vst.msk [vmem:[#allocation2 + $0x124] sm:$0xf] %vm1348, 0
  %1355 = vst.msk [vmem:[#allocation2 + $0x128] sm:$0xf] %vm1348, 0
  %1356 = vst.msk [vmem:[#allocation2 + $0x12c] sm:$0xf] %vm1348, 0
  %s1357 = scalar_lea.vmem [#allocation2], 272
  %1358 = vst.msk [vmem:[%s1357] sm:$0xf] %vm1348, 0
  %1359 = vst.msk [vmem:[%s1357 + $0x4] sm:$0xf] %vm1348, 0
  %1360 = vst.msk [vmem:[%s1357 + $0x8] sm:$0xf] %vm1348, 0
  %1361 = vst.msk [vmem:[%s1357 + $0xc] sm:$0xf] %vm1348, 0
  %1362 = vst.msk [vmem:[%s1357 + $0x120] sm:$0xf] %vm1348, 0
  %1363 = vst.msk [vmem:[%s1357 + $0x124] sm:$0xf] %vm1348, 0
  %1364 = vst.msk [vmem:[%s1357 + $0x128] sm:$0xf] %vm1348, 0
  %1365 = vst.msk [vmem:[%s1357 + $0x12c] sm:$0xf] %vm1348, 0
  %1366 = vst.msk [vmem:[#allocation2] sm:$0xf] %vm1348, 0
  %1367 = vst.msk [vmem:[#allocation2 + $0x10] sm:$0xf] %vm1348, 0
  %1368 = vst.msk [vmem:[#allocation2 + $0x20] sm:$0xf] %vm1348, 0
  %1369 = vst.msk [vmem:[#allocation2 + $0x30] sm:$0xf] %vm1348, 0
  %1370 = vst.msk [vmem:[#allocation2 + $0x40] sm:$0xf] %vm1348, 0
  %1371 = vst.msk [vmem:[#allocation2 + $0x50] sm:$0xf] %vm1348, 0
  %1372 = vst.msk [vmem:[#allocation2 + $0x60] sm:$0xf] %vm1348, 0
  %1373 = vst.msk [vmem:[#allocation2 + $0x70] sm:$0xf] %vm1348, 0
  %1374 = vst.msk [vmem:[#allocation2 + $0x80] sm:$0xf] %vm1348, 0
  %1375 = vst.msk [vmem:[#allocation2 + $0x90] sm:$0xf] %vm1348, 0
  %1376 = vst.msk [vmem:[#allocation2 + $0xa0] sm:$0xf] %vm1348, 0
  %1377 = vst.msk [vmem:[#allocation2 + $0xb0] sm:$0xf] %vm1348, 0
  %1378 = vst.msk [vmem:[#allocation2 + $0xc0] sm:$0xf] %vm1348, 0
  %1379 = vst.msk [vmem:[#allocation2 + $0xd0] sm:$0xf] %vm1348, 0
  %1380 = vst.msk [vmem:[#allocation2 + $0xe0] sm:$0xf] %vm1348, 0
  %1381 = vst.msk [vmem:[#allocation2 + $0xf0] sm:$0xf] %vm1348, 0
  %1382 = vst.msk [vmem:[#allocation2 + $0x100] sm:$0xf] %vm1348, 0
  %1383 = vst.msk [vmem:[#allocation2 + $0x110] sm:$0xf] %vm1348, 0
  %1384 = vst.msk [vmem:[#allocation2 + $0x120] sm:$0xf] %vm1348, 0
  %1385 = vst.msk [vmem:[#allocation2 + $0x130] sm:$0xf] %vm1348, 0
  %1386 = vst.msk [vmem:[#allocation2 + $0x140] sm:$0xf] %vm1348, 0
  %1387 = vst.msk [vmem:[#allocation2 + $0x150] sm:$0xf] %vm1348, 0
  %1388 = vst.msk [vmem:[#allocation2 + $0x160] sm:$0xf] %vm1348, 0
  %1389 = vst.msk [vmem:[#allocation2 + $0x170] sm:$0xf] %vm1348, 0
  %1390 = vst.msk [vmem:[#allocation2 + $0x180] sm:$0xf] %vm1348, 0
  %1391 = vst.msk [vmem:[#allocation2 + $0x190] sm:$0xf] %vm1348, 0
  %1392 = vst.msk [vmem:[#allocation2 + $0x1a0] sm:$0xf] %vm1348, 0
  %1393 = vst.msk [vmem:[#allocation2 + $0x1b0] sm:$0xf] %vm1348, 0
  %1394 = vst.msk [vmem:[#allocation2 + $0x1c0] sm:$0xf] %vm1348, 0
  %1395 = vst.msk [vmem:[#allocation2 + $0x1d0] sm:$0xf] %vm1348, 0
  %1396 = vst.msk [vmem:[#allocation2 + $0x1e0] sm:$0xf] %vm1348, 0
  %1397 = vst.msk [vmem:[#allocation2 + $0x1f0] sm:$0xf] %vm1348, 0
  %1398 = vst.msk [vmem:[#allocation2 + $0x200] sm:$0xf] %vm1348, 0
  %1399 = vst.msk [vmem:[#allocation2 + $0x210] sm:$0xf] %vm1348, 0
  %1400 = vst.msk [vmem:[#allocation2 + $0x220] sm:$0xf] %vm1348, 0
  %1401 = vst.msk [vmem:[#allocation2 + $0x230] sm:$0xf] %vm1348, 0
  %1402 = vst.msk [vmem:[#allocation2 + $0xc] sm:$0xf] %vm1348, 0
  %1403 = vst.msk [vmem:[#allocation2 + $0x1c] sm:$0xf] %vm1348, 0
  %1404 = vst.msk [vmem:[#allocation2 + $0x2c] sm:$0xf] %vm1348, 0
  %1405 = vst.msk [vmem:[#allocation2 + $0x3c] sm:$0xf] %vm1348, 0
  %1406 = vst.msk [vmem:[#allocation2 + $0x4c] sm:$0xf] %vm1348, 0
  %1407 = vst.msk [vmem:[#allocation2 + $0x5c] sm:$0xf] %vm1348, 0
  %1408 = vst.msk [vmem:[#allocation2 + $0x6c] sm:$0xf] %vm1348, 0
  %1409 = vst.msk [vmem:[#allocation2 + $0x7c] sm:$0xf] %vm1348, 0
  %1410 = vst.msk [vmem:[#allocation2 + $0x8c] sm:$0xf] %vm1348, 0
  %1411 = vst.msk [vmem:[#allocation2 + $0x9c] sm:$0xf] %vm1348, 0
  %1412 = vst.msk [vmem:[#allocation2 + $0xac] sm:$0xf] %vm1348, 0
  %1413 = vst.msk [vmem:[#allocation2 + $0xbc] sm:$0xf] %vm1348, 0
  %1414 = vst.msk [vmem:[#allocation2 + $0xcc] sm:$0xf] %vm1348, 0
  %1415 = vst.msk [vmem:[#allocation2 + $0xdc] sm:$0xf] %vm1348, 0
  %1416 = vst.msk [vmem:[#allocation2 + $0xec] sm:$0xf] %vm1348, 0
  %1417 = vst.msk [vmem:[#allocation2 + $0xfc] sm:$0xf] %vm1348, 0
  %1418 = vst.msk [vmem:[#allocation2 + $0x10c] sm:$0xf] %vm1348, 0
  %1419 = vst.msk [vmem:[#allocation2 + $0x11c] sm:$0xf] %vm1348, 0
  %1420 = vst.msk [vmem:[#allocation2 + $0x12c] sm:$0xf] %vm1348, 0
  %1421 = vst.msk [vmem:[#allocation2 + $0x13c] sm:$0xf] %vm1348, 0
  %1422 = vst.msk [vmem:[#allocation2 + $0x14c] sm:$0xf] %vm1348, 0
  %1423 = vst.msk [vmem:[#allocation2 + $0x15c] sm:$0xf] %vm1348, 0
  %1424 = vst.msk [vmem:[#allocation2 + $0x16c] sm:$0xf] %vm1348, 0
  %1425 = vst.msk [vmem:[#allocation2 + $0x17c] sm:$0xf] %vm1348, 0
  %1426 = vst.msk [vmem:[#allocation2 + $0x18c] sm:$0xf] %vm1348, 0
  %1427 = vst.msk [vmem:[#allocation2 + $0x19c] sm:$0xf] %vm1348, 0
  %1428 = vst.msk [vmem:[#allocation2 + $0x1ac] sm:$0xf] %vm1348, 0
  %1429 = vst.msk [vmem:[#allocation2 + $0x1bc] sm:$0xf] %vm1348, 0
  %1430 = vst.msk [vmem:[#allocation2 + $0x1cc] sm:$0xf] %vm1348, 0
  %1431 = vst.msk [vmem:[#allocation2 + $0x1dc] sm:$0xf] %vm1348, 0
  %1432 = vst.msk [vmem:[#allocation2 + $0x1ec] sm:$0xf] %vm1348, 0
  %1433 = vst.msk [vmem:[#allocation2 + $0x1fc] sm:$0xf] %vm1348, 0
  %1434 = vst.msk [vmem:[#allocation2 + $0x20c] sm:$0xf] %vm1348, 0
  %1435 = vst.msk [vmem:[#allocation2 + $0x21c] sm:$0xf] %vm1348, 0
  %1436 = vst.msk [vmem:[#allocation2 + $0x22c] sm:$0xf] %vm1348, 0
  %1437 = vst.msk [vmem:[#allocation2 + $0x23c] sm:$0xf] %vm1348, 0
  %v1438 = vpack.c.bf16 %v1285, %v1284
  %v1439 = vpack.c.bf16 %v1287, %v1286
  %v1440 = vpack.c.bf16 %v1289, %v1288
  %v1441 = vpack.c.bf16 %v1291, %v1290
  %v1442 = vpack.c.bf16 %v1293, %v1292
  %v1443 = vpack.c.bf16 %v1295, %v1294
  %v1444 = vpack.c.bf16 %v1297, %v1296
  %v1445 = vpack.c.bf16 %v1299, %v1298
  %v1446 = vpack.c.bf16 %v1301, %v1300
  %v1447 = vpack.c.bf16 %v1303, %v1302
  %v1448 = vpack.c.bf16 %v1305, %v1304
  %v1449 = vpack.c.bf16 %v1307, %v1306
  %v1450 = vpack.c.bf16 %v1309, %v1308
  %v1451 = vpack.c.bf16 %v1311, %v1310
  %v1452 = vpack.c.bf16 %v1313, %v1312
  %v1453 = vpack.c.bf16 %v1315, %v1314
  %v1454 = vpack.c.bf16 %v1317, %v1316
  %v1455 = vpack.c.bf16 %v1319, %v1318
  %v1456 = vpack.c.bf16 %v1321, %v1320
  %v1457 = vpack.c.bf16 %v1323, %v1322
  %v1458 = vpack.c.bf16 %v1325, %v1324
  %v1459 = vpack.c.bf16 %v1327, %v1326
  %v1460 = vpack.c.bf16 %v1329, %v1328
  %v1461 = vpack.c.bf16 %v1331, %v1330
  %v1462 = vpack.c.bf16 %v1333, %v1332
  %v1463 = vpack.c.bf16 %v1335, %v1334
  %v1464 = vpack.c.bf16 %v1337, %v1336
  %v1465 = vpack.c.bf16 %v1339, %v1338
  %v1466 = vpack.c.bf16 %v1341, %v1340
  %v1467 = vpack.c.bf16 %v1343, %v1342
  %v1468 = vpack.c.bf16 %v1345, %v1344
  %v1469 = vpack.c.bf16 %v1347, %v1346
  %v1502 = vunpack.c.l.b16 %v1438
  %v1503 = vunpack.c.h.b16 %v1438
  %v1504 = vunpack.c.l.b16 %v1439
  %v1505 = vunpack.c.h.b16 %v1439
  %v1506 = vunpack.c.l.b16 %v1440
  %v1507 = vunpack.c.h.b16 %v1440
  %v1508 = vunpack.c.l.b16 %v1441
  %v1509 = vunpack.c.h.b16 %v1441
  %v1510 = vunpack.c.l.b16 %v1442
  %v1511 = vunpack.c.h.b16 %v1442
  %v1512 = vunpack.c.l.b16 %v1443
  %v1513 = vunpack.c.h.b16 %v1443
  %v1514 = vunpack.c.l.b16 %v1444
  %v1515 = vunpack.c.h.b16 %v1444
  %v1516 = vunpack.c.l.b16 %v1445
  %v1517 = vunpack.c.h.b16 %v1445
  %v1518 = vunpack.c.l.b16 %v1446
  %v1519 = vunpack.c.h.b16 %v1446
  %v1520 = vunpack.c.l.b16 %v1447
  %v1521 = vunpack.c.h.b16 %v1447
  %v1522 = vunpack.c.l.b16 %v1448
  %v1523 = vunpack.c.h.b16 %v1448
  %v1524 = vunpack.c.l.b16 %v1449
  %v1525 = vunpack.c.h.b16 %v1449
  %v1526 = vunpack.c.l.b16 %v1450
  %v1527 = vunpack.c.h.b16 %v1450
  %v1528 = vunpack.c.l.b16 %v1451
  %v1529 = vunpack.c.h.b16 %v1451
  %v1530 = vunpack.c.l.b16 %v1452
  %v1531 = vunpack.c.h.b16 %v1452
  %v1532 = vunpack.c.l.b16 %v1453
  %v1533 = vunpack.c.h.b16 %v1453
  %v1534 = vunpack.c.l.b16 %v1454
  %v1535 = vunpack.c.h.b16 %v1454
  %v1536 = vunpack.c.l.b16 %v1455
  %v1537 = vunpack.c.h.b16 %v1455
  %v1538 = vunpack.c.l.b16 %v1456
  %v1539 = vunpack.c.h.b16 %v1456
  %v1540 = vunpack.c.l.b16 %v1457
  %v1541 = vunpack.c.h.b16 %v1457
  %v1542 = vunpack.c.l.b16 %v1458
  %v1543 = vunpack.c.h.b16 %v1458
  %v1544 = vunpack.c.l.b16 %v1459
  %v1545 = vunpack.c.h.b16 %v1459
  %v1546 = vunpack.c.l.b16 %v1460
  %v1547 = vunpack.c.h.b16 %v1460
  %v1548 = vunpack.c.l.b16 %v1461
  %v1549 = vunpack.c.h.b16 %v1461
  %v1550 = vunpack.c.l.b16 %v1462
  %v1551 = vunpack.c.h.b16 %v1462
  %v1552 = vunpack.c.l.b16 %v1463
  %v1553 = vunpack.c.h.b16 %v1463
  %v1554 = vunpack.c.l.b16 %v1464
  %v1555 = vunpack.c.h.b16 %v1464
  %v1556 = vunpack.c.l.b16 %v1465
  %v1557 = vunpack.c.h.b16 %v1465
  %v1558 = vunpack.c.l.b16 %v1466
  %v1559 = vunpack.c.h.b16 %v1466
  %v1560 = vunpack.c.l.b16 %v1467
  %v1561 = vunpack.c.h.b16 %v1467
  %v1562 = vunpack.c.l.b16 %v1468
  %v1563 = vunpack.c.h.b16 %v1468
  %v1564 = vunpack.c.l.b16 %v1469
  %v1565 = vunpack.c.h.b16 %v1469
  %v1566 = vpack.c.b16 %v1502, %v1502
  %v1567 = vpack.c.b16 %v1503, %v1503
  %v1568 = vpack.c.b16 %v1504, %v1504
  %v1569 = vpack.c.b16 %v1505, %v1505
  %v1570 = vpack.c.b16 %v1506, %v1506
  %v1571 = vpack.c.b16 %v1507, %v1507
  %v1572 = vpack.c.b16 %v1508, %v1508
  %v1573 = vpack.c.b16 %v1509, %v1509
  %v1574 = vpack.c.b16 %v1510, %v1510
  %v1575 = vpack.c.b16 %v1511, %v1511
  %v1576 = vpack.c.b16 %v1512, %v1512
  %v1577 = vpack.c.b16 %v1513, %v1513
  %v1578 = vpack.c.b16 %v1514, %v1514
  %v1579 = vpack.c.b16 %v1515, %v1515
  %v1580 = vpack.c.b16 %v1516, %v1516
  %v1581 = vpack.c.b16 %v1517, %v1517
  %v1582 = vpack.c.b16 %v1518, %v1518
  %v1583 = vpack.c.b16 %v1519, %v1519
  %v1584 = vpack.c.b16 %v1520, %v1520
  %v1585 = vpack.c.b16 %v1521, %v1521
  %v1586 = vpack.c.b16 %v1522, %v1522
  %v1587 = vpack.c.b16 %v1523, %v1523
  %v1588 = vpack.c.b16 %v1524, %v1524
  %v1589 = vpack.c.b16 %v1525, %v1525
  %v1590 = vpack.c.b16 %v1526, %v1526
  %v1591 = vpack.c.b16 %v1527, %v1527
  %v1592 = vpack.c.b16 %v1528, %v1528
  %v1593 = vpack.c.b16 %v1529, %v1529
  %v1594 = vpack.c.b16 %v1530, %v1530
  %v1595 = vpack.c.b16 %v1531, %v1531
  %v1596 = vpack.c.b16 %v1532, %v1532
  %v1597 = vpack.c.b16 %v1533, %v1533
  %v1598 = vpack.c.b16 %v1534, %v1534
  %v1599 = vpack.c.b16 %v1535, %v1535
  %v1600 = vpack.c.b16 %v1536, %v1536
  %v1601 = vpack.c.b16 %v1537, %v1537
  %v1602 = vpack.c.b16 %v1538, %v1538
  %v1603 = vpack.c.b16 %v1539, %v1539
  %v1604 = vpack.c.b16 %v1540, %v1540
  %v1605 = vpack.c.b16 %v1541, %v1541
  %v1606 = vpack.c.b16 %v1542, %v1542
  %v1607 = vpack.c.b16 %v1543, %v1543
  %v1608 = vpack.c.b16 %v1544, %v1544
  %v1609 = vpack.c.b16 %v1545, %v1545
  %v1610 = vpack.c.b16 %v1546, %v1546
  %v1611 = vpack.c.b16 %v1547, %v1547
  %v1612 = vpack.c.b16 %v1548, %v1548
  %v1613 = vpack.c.b16 %v1549, %v1549
  %v1614 = vpack.c.b16 %v1550, %v1550
  %v1615 = vpack.c.b16 %v1551, %v1551
  %v1616 = vpack.c.b16 %v1552, %v1552
  %v1617 = vpack.c.b16 %v1553, %v1553
  %v1618 = vpack.c.b16 %v1554, %v1554
  %v1619 = vpack.c.b16 %v1555, %v1555
  %v1620 = vpack.c.b16 %v1556, %v1556
  %v1621 = vpack.c.b16 %v1557, %v1557
  %v1622 = vpack.c.b16 %v1558, %v1558
  %v1623 = vpack.c.b16 %v1559, %v1559
  %v1624 = vpack.c.b16 %v1560, %v1560
  %v1625 = vpack.c.b16 %v1561, %v1561
  %v1626 = vpack.c.b16 %v1562, %v1562
  %v1627 = vpack.c.b16 %v1563, %v1563
  %v1628 = vpack.c.b16 %v1564, %v1564
  %v1629 = vpack.c.b16 %v1565, %v1565
  %s1694 = scalar_lea.vmem [#allocation2], 16
  %1695 = vst.msk [vmem:[%s1694 + $0x4] sm:$0xf] %vm1348, %v1566
  %1696 = vst.msk [vmem:[%s1694 + $0x8] sm:$0xf] %vm1348, %v1567
  %1697 = vst.msk [vmem:[%s1694 + $0x14] sm:$0xf] %vm1348, %v1568
  %1698 = vst.msk [vmem:[%s1694 + $0x18] sm:$0xf] %vm1348, %v1569
  %1699 = vst.msk [vmem:[%s1694 + $0x24] sm:$0xf] %vm1348, %v1570
  %1700 = vst.msk [vmem:[%s1694 + $0x28] sm:$0xf] %vm1348, %v1571
  %1701 = vst.msk [vmem:[%s1694 + $0x34] sm:$0xf] %vm1348, %v1572
  %1702 = vst.msk [vmem:[%s1694 + $0x38] sm:$0xf] %vm1348, %v1573
  %1703 = vst.msk [vmem:[%s1694 + $0x44] sm:$0xf] %vm1348, %v1574
  %1704 = vst.msk [vmem:[%s1694 + $0x48] sm:$0xf] %vm1348, %v1575
  %1705 = vst.msk [vmem:[%s1694 + $0x54] sm:$0xf] %vm1348, %v1576
  %1706 = vst.msk [vmem:[%s1694 + $0x58] sm:$0xf] %vm1348, %v1577
  %1707 = vst.msk [vmem:[%s1694 + $0x64] sm:$0xf] %vm1348, %v1578
  %1708 = vst.msk [vmem:[%s1694 + $0x68] sm:$0xf] %vm1348, %v1579
  %1709 = vst.msk [vmem:[%s1694 + $0x74] sm:$0xf] %vm1348, %v1580
  %1710 = vst.msk [vmem:[%s1694 + $0x78] sm:$0xf] %vm1348, %v1581
  %1711 = vst.msk [vmem:[%s1694 + $0x84] sm:$0xf] %vm1348, %v1582
  %1712 = vst.msk [vmem:[%s1694 + $0x88] sm:$0xf] %vm1348, %v1583
  %1713 = vst.msk [vmem:[%s1694 + $0x94] sm:$0xf] %vm1348, %v1584
  %1714 = vst.msk [vmem:[%s1694 + $0x98] sm:$0xf] %vm1348, %v1585
  %1715 = vst.msk [vmem:[%s1694 + $0xa4] sm:$0xf] %vm1348, %v1586
  %1716 = vst.msk [vmem:[%s1694 + $0xa8] sm:$0xf] %vm1348, %v1587
  %1717 = vst.msk [vmem:[%s1694 + $0xb4] sm:$0xf] %vm1348, %v1588
  %1718 = vst.msk [vmem:[%s1694 + $0xb8] sm:$0xf] %vm1348, %v1589
  %1719 = vst.msk [vmem:[%s1694 + $0xc4] sm:$0xf] %vm1348, %v1590
  %1720 = vst.msk [vmem:[%s1694 + $0xc8] sm:$0xf] %vm1348, %v1591
  %1721 = vst.msk [vmem:[%s1694 + $0xd4] sm:$0xf] %vm1348, %v1592
  %1722 = vst.msk [vmem:[%s1694 + $0xd8] sm:$0xf] %vm1348, %v1593
  %1723 = vst.msk [vmem:[%s1694 + $0xe4] sm:$0xf] %vm1348, %v1594
  %1724 = vst.msk [vmem:[%s1694 + $0xe8] sm:$0xf] %vm1348, %v1595
  %1725 = vst.msk [vmem:[%s1694 + $0xf4] sm:$0xf] %vm1348, %v1596
  %1726 = vst.msk [vmem:[%s1694 + $0xf8] sm:$0xf] %vm1348, %v1597
  %1727 = vst.msk [vmem:[%s1694 + $0x124] sm:$0xf] %vm1348, %v1598
  %1728 = vst.msk [vmem:[%s1694 + $0x128] sm:$0xf] %vm1348, %v1599
  %1729 = vst.msk [vmem:[%s1694 + $0x134] sm:$0xf] %vm1348, %v1600
  %1730 = vst.msk [vmem:[%s1694 + $0x138] sm:$0xf] %vm1348, %v1601
  %1731 = vst.msk [vmem:[%s1694 + $0x144] sm:$0xf] %vm1348, %v1602
  %1732 = vst.msk [vmem:[%s1694 + $0x148] sm:$0xf] %vm1348, %v1603
  %1733 = vst.msk [vmem:[%s1694 + $0x154] sm:$0xf] %vm1348, %v1604
  %1734 = vst.msk [vmem:[%s1694 + $0x158] sm:$0xf] %vm1348, %v1605
  %1735 = vst.msk [vmem:[%s1694 + $0x164] sm:$0xf] %vm1348, %v1606
  %1736 = vst.msk [vmem:[%s1694 + $0x168] sm:$0xf] %vm1348, %v1607
  %1737 = vst.msk [vmem:[%s1694 + $0x174] sm:$0xf] %vm1348, %v1608
  %1738 = vst.msk [vmem:[%s1694 + $0x178] sm:$0xf] %vm1348, %v1609
  %1739 = vst.msk [vmem:[%s1694 + $0x184] sm:$0xf] %vm1348, %v1610
  %1740 = vst.msk [vmem:[%s1694 + $0x188] sm:$0xf] %vm1348, %v1611
  %1741 = vst.msk [vmem:[%s1694 + $0x194] sm:$0xf] %vm1348, %v1612
  %1742 = vst.msk [vmem:[%s1694 + $0x198] sm:$0xf] %vm1348, %v1613
  %1743 = vst.msk [vmem:[%s1694 + $0x1a4] sm:$0xf] %vm1348, %v1614
  %1744 = vst.msk [vmem:[%s1694 + $0x1a8] sm:$0xf] %vm1348, %v1615
  %1745 = vst.msk [vmem:[%s1694 + $0x1b4] sm:$0xf] %vm1348, %v1616
  %1746 = vst.msk [vmem:[%s1694 + $0x1b8] sm:$0xf] %vm1348, %v1617
  %1747 = vst.msk [vmem:[%s1694 + $0x1c4] sm:$0xf] %vm1348, %v1618
  %1748 = vst.msk [vmem:[%s1694 + $0x1c8] sm:$0xf] %vm1348, %v1619
  %1749 = vst.msk [vmem:[%s1694 + $0x1d4] sm:$0xf] %vm1348, %v1620
  %1750 = vst.msk [vmem:[%s1694 + $0x1d8] sm:$0xf] %vm1348, %v1621
  %1751 = vst.msk [vmem:[%s1694 + $0x1e4] sm:$0xf] %vm1348, %v1622
  %1752 = vst.msk [vmem:[%s1694 + $0x1e8] sm:$0xf] %vm1348, %v1623
  %1753 = vst.msk [vmem:[%s1694 + $0x1f4] sm:$0xf] %vm1348, %v1624
  %1754 = vst.msk [vmem:[%s1694 + $0x1f8] sm:$0xf] %vm1348, %v1625
  %1755 = vst.msk [vmem:[%s1694 + $0x204] sm:$0xf] %vm1348, %v1626
  %1756 = vst.msk [vmem:[%s1694 + $0x208] sm:$0xf] %vm1348, %v1627
  %1757 = vst.msk [vmem:[%s1694 + $0x214] sm:$0xf] %vm1348, %v1628
  %1758 = vst.msk [vmem:[%s1694 + $0x218] sm:$0xf] %vm1348, %v1629
  %v1759 = vld [vmem:[#allocation2] sm:$0x8]
  %v1760 = vld [vmem:[#allocation2 + $0x4] sm:$0xf]
  %v1761 = vld [vmem:[#allocation2 + $0x8] sm:$0xf]
  %v1762 = vld [vmem:[#allocation2 + $0x10] sm:$0x8]
  %v1763 = vld [vmem:[#allocation2 + $0x14] sm:$0xf]
  %v1764 = vld [vmem:[#allocation2 + $0x18] sm:$0xf]
  %v1765 = vld [vmem:[#allocation2 + $0x20] sm:$0x8]
  %v1766 = vld [vmem:[#allocation2 + $0x24] sm:$0xf]
  %v1767 = vld [vmem:[#allocation2 + $0x28] sm:$0xf]
  %v1768 = vld [vmem:[#allocation2 + $0x30] sm:$0x8]
  %v1769 = vld [vmem:[#allocation2 + $0x34] sm:$0xf]
  %v1770 = vld [vmem:[#allocation2 + $0x38] sm:$0xf]
  %v1771 = vld [vmem:[#allocation2 + $0x40] sm:$0x8]
  %v1772 = vld [vmem:[#allocation2 + $0x44] sm:$0xf]
  %v1773 = vld [vmem:[#allocation2 + $0x48] sm:$0xf]
  %v1774 = vld [vmem:[#allocation2 + $0x50] sm:$0x8]
  %v1775 = vld [vmem:[#allocation2 + $0x54] sm:$0xf]
  %v1776 = vld [vmem:[#allocation2 + $0x58] sm:$0xf]
  %v1777 = vld [vmem:[#allocation2 + $0x60] sm:$0x8]
  %v1778 = vld [vmem:[#allocation2 + $0x64] sm:$0xf]
  %v1779 = vld [vmem:[#allocation2 + $0x68] sm:$0xf]
  %v1780 = vld [vmem:[#allocation2 + $0x70] sm:$0x8]
  %v1781 = vld [vmem:[#allocation2 + $0x74] sm:$0xf]
  %v1782 = vld [vmem:[#allocation2 + $0x78] sm:$0xf]
  %v1783 = vld [vmem:[#allocation2 + $0x80] sm:$0x8]
  %v1784 = vld [vmem:[#allocation2 + $0x84] sm:$0xf]
  %v1785 = vld [vmem:[#allocation2 + $0x88] sm:$0xf]
  %v1786 = vld [vmem:[#allocation2 + $0x90] sm:$0x8]
  %v1787 = vld [vmem:[#allocation2 + $0x94] sm:$0xf]
  %v1788 = vld [vmem:[#allocation2 + $0x98] sm:$0xf]
  %v1789 = vld [vmem:[#allocation2 + $0xa0] sm:$0x8]
  %v1790 = vld [vmem:[#allocation2 + $0xa4] sm:$0xf]
  %v1791 = vld [vmem:[#allocation2 + $0xa8] sm:$0xf]
  %v1792 = vld [vmem:[#allocation2 + $0xb0] sm:$0x8]
  %v1793 = vld [vmem:[#allocation2 + $0xb4] sm:$0xf]
  %v1794 = vld [vmem:[#allocation2 + $0xb8] sm:$0xf]
  %v1795 = vld [vmem:[#allocation2 + $0xc0] sm:$0x8]
  %v1796 = vld [vmem:[#allocation2 + $0xc4] sm:$0xf]
  %v1797 = vld [vmem:[#allocation2 + $0xc8] sm:$0xf]
  %v1798 = vld [vmem:[#allocation2 + $0xd0] sm:$0x8]
  %v1799 = vld [vmem:[#allocation2 + $0xd4] sm:$0xf]
  %v1800 = vld [vmem:[#allocation2 + $0xd8] sm:$0xf]
  %v1801 = vld [vmem:[#allocation2 + $0xe0] sm:$0x8]
  %v1802 = vld [vmem:[#allocation2 + $0xe4] sm:$0xf]
  %v1803 = vld [vmem:[#allocation2 + $0xe8] sm:$0xf]
  %v1804 = vld [vmem:[#allocation2 + $0xf0] sm:$0x8]
  %v1805 = vld [vmem:[#allocation2 + $0xf4] sm:$0xf]
  %v1806 = vld [vmem:[#allocation2 + $0xf8] sm:$0xf]
  %v1807 = vld [vmem:[#allocation2 + $0x120] sm:$0x8]
  %v1808 = vld [vmem:[#allocation2 + $0x124] sm:$0xf]
  %v1809 = vld [vmem:[#allocation2 + $0x128] sm:$0xf]
  %v1810 = vld [vmem:[#allocation2 + $0x130] sm:$0x8]
  %v1811 = vld [vmem:[#allocation2 + $0x134] sm:$0xf]
  %v1812 = vld [vmem:[#allocation2 + $0x138] sm:$0xf]
  %v1813 = vld [vmem:[#allocation2 + $0x140] sm:$0x8]
  %v1814 = vld [vmem:[#allocation2 + $0x144] sm:$0xf]
  %v1815 = vld [vmem:[#allocation2 + $0x148] sm:$0xf]
  %v1816 = vld [vmem:[#allocation2 + $0x150] sm:$0x8]
  %v1817 = vld [vmem:[#allocation2 + $0x154] sm:$0xf]
  %v1818 = vld [vmem:[#allocation2 + $0x158] sm:$0xf]
  %v1819 = vld [vmem:[#allocation2 + $0x160] sm:$0x8]
  %v1820 = vld [vmem:[#allocation2 + $0x164] sm:$0xf]
  %v1821 = vld [vmem:[#allocation2 + $0x168] sm:$0xf]
  %v1822 = vld [vmem:[#allocation2 + $0x170] sm:$0x8]
  %v1823 = vld [vmem:[#allocation2 + $0x174] sm:$0xf]
  %v1824 = vld [vmem:[#allocation2 + $0x178] sm:$0xf]
  %v1825 = vld [vmem:[#allocation2 + $0x180] sm:$0x8]
  %v1826 = vld [vmem:[#allocation2 + $0x184] sm:$0xf]
  %v1827 = vld [vmem:[#allocation2 + $0x188] sm:$0xf]
  %v1828 = vld [vmem:[#allocation2 + $0x190] sm:$0x8]
  %v1829 = vld [vmem:[#allocation2 + $0x194] sm:$0xf]
  %v1830 = vld [vmem:[#allocation2 + $0x198] sm:$0xf]
  %v1831 = vld [vmem:[#allocation2 + $0x1a0] sm:$0x8]
  %v1832 = vld [vmem:[#allocation2 + $0x1a4] sm:$0xf]
  %v1833 = vld [vmem:[#allocation2 + $0x1a8] sm:$0xf]
  %v1834 = vld [vmem:[#allocation2 + $0x1b0] sm:$0x8]
  %v1835 = vld [vmem:[#allocation2 + $0x1b4] sm:$0xf]
  %v1836 = vld [vmem:[#allocation2 + $0x1b8] sm:$0xf]
  %v1837 = vld [vmem:[#allocation2 + $0x1c0] sm:$0x8]
  %v1838 = vld [vmem:[#allocation2 + $0x1c4] sm:$0xf]
  %v1839 = vld [vmem:[#allocation2 + $0x1c8] sm:$0xf]
  %v1840 = vld [vmem:[#allocation2 + $0x1d0] sm:$0x8]
  %v1841 = vld [vmem:[#allocation2 + $0x1d4] sm:$0xf]
  %v1842 = vld [vmem:[#allocation2 + $0x1d8] sm:$0xf]
  %v1843 = vld [vmem:[#allocation2 + $0x1e0] sm:$0x8]
  %v1844 = vld [vmem:[#allocation2 + $0x1e4] sm:$0xf]
  %v1845 = vld [vmem:[#allocation2 + $0x1e8] sm:$0xf]
  %v1846 = vld [vmem:[#allocation2 + $0x1f0] sm:$0x8]
  %v1847 = vld [vmem:[#allocation2 + $0x1f4] sm:$0xf]
  %v1848 = vld [vmem:[#allocation2 + $0x1f8] sm:$0xf]
  %v1849 = vld [vmem:[#allocation2 + $0x200] sm:$0x8]
  %v1850 = vld [vmem:[#allocation2 + $0x204] sm:$0xf]
  %v1851 = vld [vmem:[#allocation2 + $0x208] sm:$0xf]
  %v1852 = vld [vmem:[#allocation2 + $0x210] sm:$0x8]
  %v1853 = vld [vmem:[#allocation2 + $0x214] sm:$0xf]
  %v1854 = vld [vmem:[#allocation2 + $0x218] sm:$0xf]
  %vm1855 = vsmask.f32 256
  %vm1856 = vsmask.f32 4368
  %vm1857 = vmor %vm1855, %vm1856
  %v1859 = vshrl.u32 %v1759, 16
  %v1861 = vrot.slane %v1859, 7
  %v1862 = vrot.slane %v1861, 4
  %v1864 = vshrl.u32 %v1760, 16
  %v1866 = vrot.slane %v1864, 7
  %v1867 = vshll.u32 %v1760, 16
  %v1869 = vor.u32 %v1866, %v1867
  %v1870 = vsel %vm1857, %v1862, %v1869
  %v1871 = vrot.slane %v1866, 4
  %v1873 = vshrl.u32 %v1761, 16
  %v1875 = vrot.slane %v1873, 7
  %v1876 = vshll.u32 %v1761, 16
  %v1878 = vor.u32 %v1875, %v1876
  %v1879 = vsel %vm1857, %v1871, %v1878
  %v1881 = vshrl.u32 %v1762, 16
  %v1883 = vrot.slane %v1881, 7
  %v1884 = vrot.slane %v1883, 4
  %v1886 = vshrl.u32 %v1763, 16
  %v1888 = vrot.slane %v1886, 7
  %v1889 = vshll.u32 %v1763, 16
  %v1891 = vor.u32 %v1888, %v1889
  %v1892 = vsel %vm1857, %v1884, %v1891
  %v1893 = vrot.slane %v1888, 4
  %v1895 = vshrl.u32 %v1764, 16
  %v1897 = vrot.slane %v1895, 7
  %v1898 = vshll.u32 %v1764, 16
  %v1900 = vor.u32 %v1897, %v1898
  %v1901 = vsel %vm1857, %v1893, %v1900
  %v1903 = vshrl.u32 %v1765, 16
  %v1905 = vrot.slane %v1903, 7
  %v1906 = vrot.slane %v1905, 4
  %v1908 = vshrl.u32 %v1766, 16
  %v1910 = vrot.slane %v1908, 7
  %v1911 = vshll.u32 %v1766, 16
  %v1913 = vor.u32 %v1910, %v1911
  %v1914 = vsel %vm1857, %v1906, %v1913
  %v1915 = vrot.slane %v1910, 4
  %v1917 = vshrl.u32 %v1767, 16
  %v1919 = vrot.slane %v1917, 7
  %v1920 = vshll.u32 %v1767, 16
  %v1922 = vor.u32 %v1919, %v1920
  %v1923 = vsel %vm1857, %v1915, %v1922
  %v1925 = vshrl.u32 %v1768, 16
  %v1927 = vrot.slane %v1925, 7
  %v1928 = vrot.slane %v1927, 4
  %v1930 = vshrl.u32 %v1769, 16
  %v1932 = vrot.slane %v1930, 7
  %v1933 = vshll.u32 %v1769, 16
  %v1935 = vor.u32 %v1932, %v1933
  %v1936 = vsel %vm1857, %v1928, %v1935
  %v1937 = vrot.slane %v1932, 4
  %v1939 = vshrl.u32 %v1770, 16
  %v1941 = vrot.slane %v1939, 7
  %v1942 = vshll.u32 %v1770, 16
  %v1944 = vor.u32 %v1941, %v1942
  %v1945 = vsel %vm1857, %v1937, %v1944
  %v1947 = vshrl.u32 %v1771, 16
  %v1949 = vrot.slane %v1947, 7
  %v1950 = vrot.slane %v1949, 4
  %v1952 = vshrl.u32 %v1772, 16
  %v1954 = vrot.slane %v1952, 7
  %v1955 = vshll.u32 %v1772, 16
  %v1957 = vor.u32 %v1954, %v1955
  %v1958 = vsel %vm1857, %v1950, %v1957
  %v1959 = vrot.slane %v1954, 4
  %v1961 = vshrl.u32 %v1773, 16
  %v1963 = vrot.slane %v1961, 7
  %v1964 = vshll.u32 %v1773, 16
  %v1966 = vor.u32 %v1963, %v1964
  %v1967 = vsel %vm1857, %v1959, %v1966
  %v1969 = vshrl.u32 %v1774, 16
  %v1971 = vrot.slane %v1969, 7
  %v1972 = vrot.slane %v1971, 4
  %v1974 = vshrl.u32 %v1775, 16
  %v1976 = vrot.slane %v1974, 7
  %v1977 = vshll.u32 %v1775, 16
  %v1979 = vor.u32 %v1976, %v1977
  %v1980 = vsel %vm1857, %v1972, %v1979
  %v1981 = vrot.slane %v1976, 4
  %v1983 = vshrl.u32 %v1776, 16
  %v1985 = vrot.slane %v1983, 7
  %v1986 = vshll.u32 %v1776, 16
  %v1988 = vor.u32 %v1985, %v1986
  %v1989 = vsel %vm1857, %v1981, %v1988
  %v1991 = vshrl.u32 %v1777, 16
  %v1993 = vrot.slane %v1991, 7
  %v1994 = vrot.slane %v1993, 4
  %v1996 = vshrl.u32 %v1778, 16
  %v1998 = vrot.slane %v1996, 7
  %v1999 = vshll.u32 %v1778, 16
  %v2001 = vor.u32 %v1998, %v1999
  %v2002 = vsel %vm1857, %v1994, %v2001
  %v2003 = vrot.slane %v1998, 4
  %v2005 = vshrl.u32 %v1779, 16
  %v2007 = vrot.slane %v2005, 7
  %v2008 = vshll.u32 %v1779, 16
  %v2010 = vor.u32 %v2007, %v2008
  %v2011 = vsel %vm1857, %v2003, %v2010
  %v2013 = vshrl.u32 %v1780, 16
  %v2015 = vrot.slane %v2013, 7
  %v2016 = vrot.slane %v2015, 4
  %v2018 = vshrl.u32 %v1781, 16
  %v2020 = vrot.slane %v2018, 7
  %v2021 = vshll.u32 %v1781, 16
  %v2023 = vor.u32 %v2020, %v2021
  %v2024 = vsel %vm1857, %v2016, %v2023
  %v2025 = vrot.slane %v2020, 4
  %v2027 = vshrl.u32 %v1782, 16
  %v2029 = vrot.slane %v2027, 7
  %v2030 = vshll.u32 %v1782, 16
  %v2032 = vor.u32 %v2029, %v2030
  %v2033 = vsel %vm1857, %v2025, %v2032
  %v2035 = vshrl.u32 %v1783, 16
  %v2037 = vrot.slane %v2035, 7
  %v2038 = vrot.slane %v2037, 4
  %v2040 = vshrl.u32 %v1784, 16
  %v2042 = vrot.slane %v2040, 7
  %v2043 = vshll.u32 %v1784, 16
  %v2045 = vor.u32 %v2042, %v2043
  %v2046 = vsel %vm1857, %v2038, %v2045
  %v2047 = vrot.slane %v2042, 4
  %v2049 = vshrl.u32 %v1785, 16
  %v2051 = vrot.slane %v2049, 7
  %v2052 = vshll.u32 %v1785, 16
  %v2054 = vor.u32 %v2051, %v2052
  %v2055 = vsel %vm1857, %v2047, %v2054
  %v2057 = vshrl.u32 %v1786, 16
  %v2059 = vrot.slane %v2057, 7
  %v2060 = vrot.slane %v2059, 4
  %v2062 = vshrl.u32 %v1787, 16
  %v2064 = vrot.slane %v2062, 7
  %v2065 = vshll.u32 %v1787, 16
  %v2067 = vor.u32 %v2064, %v2065
  %v2068 = vsel %vm1857, %v2060, %v2067
  %v2069 = vrot.slane %v2064, 4
  %v2071 = vshrl.u32 %v1788, 16
  %v2073 = vrot.slane %v2071, 7
  %v2074 = vshll.u32 %v1788, 16
  %v2076 = vor.u32 %v2073, %v2074
  %v2077 = vsel %vm1857, %v2069, %v2076
  %v2079 = vshrl.u32 %v1789, 16
  %v2081 = vrot.slane %v2079, 7
  %v2082 = vrot.slane %v2081, 4
  %v2084 = vshrl.u32 %v1790, 16
  %v2086 = vrot.slane %v2084, 7
  %v2087 = vshll.u32 %v1790, 16
  %v2089 = vor.u32 %v2086, %v2087
  %v2090 = vsel %vm1857, %v2082, %v2089
  %v2091 = vrot.slane %v2086, 4
  %v2093 = vshrl.u32 %v1791, 16
  %v2095 = vrot.slane %v2093, 7
  %v2096 = vshll.u32 %v1791, 16
  %v2098 = vor.u32 %v2095, %v2096
  %v2099 = vsel %vm1857, %v2091, %v2098
  %v2101 = vshrl.u32 %v1792, 16
  %v2103 = vrot.slane %v2101, 7
  %v2104 = vrot.slane %v2103, 4
  %v2106 = vshrl.u32 %v1793, 16
  %v2108 = vrot.slane %v2106, 7
  %v2109 = vshll.u32 %v1793, 16
  %v2111 = vor.u32 %v2108, %v2109
  %v2112 = vsel %vm1857, %v2104, %v2111
  %v2113 = vrot.slane %v2108, 4
  %v2115 = vshrl.u32 %v1794, 16
  %v2117 = vrot.slane %v2115, 7
  %v2118 = vshll.u32 %v1794, 16
  %v2120 = vor.u32 %v2117, %v2118
  %v2121 = vsel %vm1857, %v2113, %v2120
  %v2123 = vshrl.u32 %v1795, 16
  %v2125 = vrot.slane %v2123, 7
  %v2126 = vrot.slane %v2125, 4
  %v2128 = vshrl.u32 %v1796, 16
  %v2130 = vrot.slane %v2128, 7
  %v2131 = vshll.u32 %v1796, 16
  %v2133 = vor.u32 %v2130, %v2131
  %v2134 = vsel %vm1857, %v2126, %v2133
  %v2135 = vrot.slane %v2130, 4
  %v2137 = vshrl.u32 %v1797, 16
  %v2139 = vrot.slane %v2137, 7
  %v2140 = vshll.u32 %v1797, 16
  %v2142 = vor.u32 %v2139, %v2140
  %v2143 = vsel %vm1857, %v2135, %v2142
  %v2145 = vshrl.u32 %v1798, 16
  %v2147 = vrot.slane %v2145, 7
  %v2148 = vrot.slane %v2147, 4
  %v2150 = vshrl.u32 %v1799, 16
  %v2152 = vrot.slane %v2150, 7
  %v2153 = vshll.u32 %v1799, 16
  %v2155 = vor.u32 %v2152, %v2153
  %v2156 = vsel %vm1857, %v2148, %v2155
  %v2157 = vrot.slane %v2152, 4
  %v2159 = vshrl.u32 %v1800, 16
  %v2161 = vrot.slane %v2159, 7
  %v2162 = vshll.u32 %v1800, 16
  %v2164 = vor.u32 %v2161, %v2162
  %v2165 = vsel %vm1857, %v2157, %v2164
  %v2167 = vshrl.u32 %v1801, 16
  %v2169 = vrot.slane %v2167, 7
  %v2170 = vrot.slane %v2169, 4
  %v2172 = vshrl.u32 %v1802, 16
  %v2174 = vrot.slane %v2172, 7
  %v2175 = vshll.u32 %v1802, 16
  %v2177 = vor.u32 %v2174, %v2175
  %v2178 = vsel %vm1857, %v2170, %v2177
  %v2179 = vrot.slane %v2174, 4
  %v2181 = vshrl.u32 %v1803, 16
  %v2183 = vrot.slane %v2181, 7
  %v2184 = vshll.u32 %v1803, 16
  %v2186 = vor.u32 %v2183, %v2184
  %v2187 = vsel %vm1857, %v2179, %v2186
  %v2189 = vshrl.u32 %v1804, 16
  %v2191 = vrot.slane %v2189, 7
  %v2192 = vrot.slane %v2191, 4
  %v2194 = vshrl.u32 %v1805, 16
  %v2196 = vrot.slane %v2194, 7
  %v2197 = vshll.u32 %v1805, 16
  %v2199 = vor.u32 %v2196, %v2197
  %v2200 = vsel %vm1857, %v2192, %v2199
  %v2201 = vrot.slane %v2196, 4
  %v2203 = vshrl.u32 %v1806, 16
  %v2205 = vrot.slane %v2203, 7
  %v2206 = vshll.u32 %v1806, 16
  %v2208 = vor.u32 %v2205, %v2206
  %v2209 = vsel %vm1857, %v2201, %v2208
  %v2211 = vshrl.u32 %v1807, 16
  %v2213 = vrot.slane %v2211, 7
  %v2214 = vrot.slane %v2213, 4
  %v2216 = vshrl.u32 %v1808, 16
  %v2218 = vrot.slane %v2216, 7
  %v2219 = vshll.u32 %v1808, 16
  %v2221 = vor.u32 %v2218, %v2219
  %v2222 = vsel %vm1857, %v2214, %v2221
  %v2223 = vrot.slane %v2218, 4
  %v2225 = vshrl.u32 %v1809, 16
  %v2227 = vrot.slane %v2225, 7
  %v2228 = vshll.u32 %v1809, 16
  %v2230 = vor.u32 %v2227, %v2228
  %v2231 = vsel %vm1857, %v2223, %v2230
  %v2233 = vshrl.u32 %v1810, 16
  %v2235 = vrot.slane %v2233, 7
  %v2236 = vrot.slane %v2235, 4
  %v2238 = vshrl.u32 %v1811, 16
  %v2240 = vrot.slane %v2238, 7
  %v2241 = vshll.u32 %v1811, 16
  %v2243 = vor.u32 %v2240, %v2241
  %v2244 = vsel %vm1857, %v2236, %v2243
  %v2245 = vrot.slane %v2240, 4
  %v2247 = vshrl.u32 %v1812, 16
  %v2249 = vrot.slane %v2247, 7
  %v2250 = vshll.u32 %v1812, 16
  %v2252 = vor.u32 %v2249, %v2250
  %v2253 = vsel %vm1857, %v2245, %v2252
  %v2255 = vshrl.u32 %v1813, 16
  %v2257 = vrot.slane %v2255, 7
  %v2258 = vrot.slane %v2257, 4
  %v2260 = vshrl.u32 %v1814, 16
  %v2262 = vrot.slane %v2260, 7
  %v2263 = vshll.u32 %v1814, 16
  %v2265 = vor.u32 %v2262, %v2263
  %v2266 = vsel %vm1857, %v2258, %v2265
  %v2267 = vrot.slane %v2262, 4
  %v2269 = vshrl.u32 %v1815, 16
  %v2271 = vrot.slane %v2269, 7
  %v2272 = vshll.u32 %v1815, 16
  %v2274 = vor.u32 %v2271, %v2272
  %v2275 = vsel %vm1857, %v2267, %v2274
  %v2277 = vshrl.u32 %v1816, 16
  %v2279 = vrot.slane %v2277, 7
  %v2280 = vrot.slane %v2279, 4
  %v2282 = vshrl.u32 %v1817, 16
  %v2284 = vrot.slane %v2282, 7
  %v2285 = vshll.u32 %v1817, 16
  %v2287 = vor.u32 %v2284, %v2285
  %v2288 = vsel %vm1857, %v2280, %v2287
  %v2289 = vrot.slane %v2284, 4
  %v2291 = vshrl.u32 %v1818, 16
  %v2293 = vrot.slane %v2291, 7
  %v2294 = vshll.u32 %v1818, 16
  %v2296 = vor.u32 %v2293, %v2294
  %v2297 = vsel %vm1857, %v2289, %v2296
  %v2299 = vshrl.u32 %v1819, 16
  %v2301 = vrot.slane %v2299, 7
  %v2302 = vrot.slane %v2301, 4
  %v2304 = vshrl.u32 %v1820, 16
  %v2306 = vrot.slane %v2304, 7
  %v2307 = vshll.u32 %v1820, 16
  %v2309 = vor.u32 %v2306, %v2307
  %v2310 = vsel %vm1857, %v2302, %v2309
  %v2311 = vrot.slane %v2306, 4
  %v2313 = vshrl.u32 %v1821, 16
  %v2315 = vrot.slane %v2313, 7
  %v2316 = vshll.u32 %v1821, 16
  %v2318 = vor.u32 %v2315, %v2316
  %v2319 = vsel %vm1857, %v2311, %v2318
  %v2321 = vshrl.u32 %v1822, 16
  %v2323 = vrot.slane %v2321, 7
  %v2324 = vrot.slane %v2323, 4
  %v2326 = vshrl.u32 %v1823, 16
  %v2328 = vrot.slane %v2326, 7
  %v2329 = vshll.u32 %v1823, 16
  %v2331 = vor.u32 %v2328, %v2329
  %v2332 = vsel %vm1857, %v2324, %v2331
  %v2333 = vrot.slane %v2328, 4
  %v2335 = vshrl.u32 %v1824, 16
  %v2337 = vrot.slane %v2335, 7
  %v2338 = vshll.u32 %v1824, 16
  %v2340 = vor.u32 %v2337, %v2338
  %v2341 = vsel %vm1857, %v2333, %v2340
  %v2343 = vshrl.u32 %v1825, 16
  %v2345 = vrot.slane %v2343, 7
  %v2346 = vrot.slane %v2345, 4
  %v2348 = vshrl.u32 %v1826, 16
  %v2350 = vrot.slane %v2348, 7
  %v2351 = vshll.u32 %v1826, 16
  %v2353 = vor.u32 %v2350, %v2351
  %v2354 = vsel %vm1857, %v2346, %v2353
  %v2355 = vrot.slane %v2350, 4
  %v2357 = vshrl.u32 %v1827, 16
  %v2359 = vrot.slane %v2357, 7
  %v2360 = vshll.u32 %v1827, 16
  %v2362 = vor.u32 %v2359, %v2360
  %v2363 = vsel %vm1857, %v2355, %v2362
  %v2365 = vshrl.u32 %v1828, 16
  %v2367 = vrot.slane %v2365, 7
  %v2368 = vrot.slane %v2367, 4
  %v2370 = vshrl.u32 %v1829, 16
  %v2372 = vrot.slane %v2370, 7
  %v2373 = vshll.u32 %v1829, 16
  %v2375 = vor.u32 %v2372, %v2373
  %v2376 = vsel %vm1857, %v2368, %v2375
  %v2377 = vrot.slane %v2372, 4
  %v2379 = vshrl.u32 %v1830, 16
  %v2381 = vrot.slane %v2379, 7
  %v2382 = vshll.u32 %v1830, 16
  %v2384 = vor.u32 %v2381, %v2382
  %v2385 = vsel %vm1857, %v2377, %v2384
  %v2387 = vshrl.u32 %v1831, 16
  %v2389 = vrot.slane %v2387, 7
  %v2390 = vrot.slane %v2389, 4
  %v2392 = vshrl.u32 %v1832, 16
  %v2394 = vrot.slane %v2392, 7
  %v2395 = vshll.u32 %v1832, 16
  %v2397 = vor.u32 %v2394, %v2395
  %v2398 = vsel %vm1857, %v2390, %v2397
  %v2399 = vrot.slane %v2394, 4
  %v2401 = vshrl.u32 %v1833, 16
  %v2403 = vrot.slane %v2401, 7
  %v2404 = vshll.u32 %v1833, 16
  %v2406 = vor.u32 %v2403, %v2404
  %v2407 = vsel %vm1857, %v2399, %v2406
  %v2409 = vshrl.u32 %v1834, 16
  %v2411 = vrot.slane %v2409, 7
  %v2412 = vrot.slane %v2411, 4
  %v2414 = vshrl.u32 %v1835, 16
  %v2416 = vrot.slane %v2414, 7
  %v2417 = vshll.u32 %v1835, 16
  %v2419 = vor.u32 %v2416, %v2417
  %v2420 = vsel %vm1857, %v2412, %v2419
  %v2421 = vrot.slane %v2416, 4
  %v2423 = vshrl.u32 %v1836, 16
  %v2425 = vrot.slane %v2423, 7
  %v2426 = vshll.u32 %v1836, 16
  %v2428 = vor.u32 %v2425, %v2426
  %v2429 = vsel %vm1857, %v2421, %v2428
  %v2431 = vshrl.u32 %v1837, 16
  %v2433 = vrot.slane %v2431, 7
  %v2434 = vrot.slane %v2433, 4
  %v2436 = vshrl.u32 %v1838, 16
  %v2438 = vrot.slane %v2436, 7
  %v2439 = vshll.u32 %v1838, 16
  %v2441 = vor.u32 %v2438, %v2439
  %v2442 = vsel %vm1857, %v2434, %v2441
  %v2443 = vrot.slane %v2438, 4
  %v2445 = vshrl.u32 %v1839, 16
  %v2447 = vrot.slane %v2445, 7
  %v2448 = vshll.u32 %v1839, 16
  %v2450 = vor.u32 %v2447, %v2448
  %v2451 = vsel %vm1857, %v2443, %v2450
  %v2453 = vshrl.u32 %v1840, 16
  %v2455 = vrot.slane %v2453, 7
  %v2456 = vrot.slane %v2455, 4
  %v2458 = vshrl.u32 %v1841, 16
  %v2460 = vrot.slane %v2458, 7
  %v2461 = vshll.u32 %v1841, 16
  %v2463 = vor.u32 %v2460, %v2461
  %v2464 = vsel %vm1857, %v2456, %v2463
  %v2465 = vrot.slane %v2460, 4
  %v2467 = vshrl.u32 %v1842, 16
  %v2469 = vrot.slane %v2467, 7
  %v2470 = vshll.u32 %v1842, 16
  %v2472 = vor.u32 %v2469, %v2470
  %v2473 = vsel %vm1857, %v2465, %v2472
  %v2475 = vshrl.u32 %v1843, 16
  %v2477 = vrot.slane %v2475, 7
  %v2478 = vrot.slane %v2477, 4
  %v2480 = vshrl.u32 %v1844, 16
  %v2482 = vrot.slane %v2480, 7
  %v2483 = vshll.u32 %v1844, 16
  %v2485 = vor.u32 %v2482, %v2483
  %v2486 = vsel %vm1857, %v2478, %v2485
  %v2487 = vrot.slane %v2482, 4
  %v2489 = vshrl.u32 %v1845, 16
  %v2491 = vrot.slane %v2489, 7
  %v2492 = vshll.u32 %v1845, 16
  %v2494 = vor.u32 %v2491, %v2492
  %v2495 = vsel %vm1857, %v2487, %v2494
  %v2497 = vshrl.u32 %v1846, 16
  %v2499 = vrot.slane %v2497, 7
  %v2500 = vrot.slane %v2499, 4
  %v2502 = vshrl.u32 %v1847, 16
  %v2504 = vrot.slane %v2502, 7
  %v2505 = vshll.u32 %v1847, 16
  %v2507 = vor.u32 %v2504, %v2505
  %v2508 = vsel %vm1857, %v2500, %v2507
  %v2509 = vrot.slane %v2504, 4
  %v2511 = vshrl.u32 %v1848, 16
  %v2513 = vrot.slane %v2511, 7
  %v2514 = vshll.u32 %v1848, 16
  %v2516 = vor.u32 %v2513, %v2514
  %v2517 = vsel %vm1857, %v2509, %v2516
  %v2519 = vshrl.u32 %v1849, 16
  %v2521 = vrot.slane %v2519, 7
  %v2522 = vrot.slane %v2521, 4
  %v2524 = vshrl.u32 %v1850, 16
  %v2526 = vrot.slane %v2524, 7
  %v2527 = vshll.u32 %v1850, 16
  %v2529 = vor.u32 %v2526, %v2527
  %v2530 = vsel %vm1857, %v2522, %v2529
  %v2531 = vrot.slane %v2526, 4
  %v2533 = vshrl.u32 %v1851, 16
  %v2535 = vrot.slane %v2533, 7
  %v2536 = vshll.u32 %v1851, 16
  %v2538 = vor.u32 %v2535, %v2536
  %v2539 = vsel %vm1857, %v2531, %v2538
  %v2541 = vshrl.u32 %v1852, 16
  %v2543 = vrot.slane %v2541, 7
  %v2544 = vrot.slane %v2543, 4
  %v2546 = vshrl.u32 %v1853, 16
  %v2548 = vrot.slane %v2546, 7
  %v2549 = vshll.u32 %v1853, 16
  %v2551 = vor.u32 %v2548, %v2549
  %v2552 = vsel %vm1857, %v2544, %v2551
  %v2553 = vrot.slane %v2548, 4
  %v2555 = vshrl.u32 %v1854, 16
  %v2557 = vrot.slane %v2555, 7
  %v2558 = vshll.u32 %v1854, 16
  %v2560 = vor.u32 %v2557, %v2558
  %v2561 = vsel %vm1857, %v2553, %v2560
  %v2562 = vld [vmem:[#allocation2 + $0xc] sm:$0x1]
  %v2563 = vld [vmem:[#allocation2 + $0x1c] sm:$0x1]
  %v2564 = vld [vmem:[#allocation2 + $0x2c] sm:$0x1]
  %v2565 = vld [vmem:[#allocation2 + $0x3c] sm:$0x1]
  %v2566 = vld [vmem:[#allocation2 + $0x4c] sm:$0x1]
  %v2567 = vld [vmem:[#allocation2 + $0x5c] sm:$0x1]
  %v2568 = vld [vmem:[#allocation2 + $0x6c] sm:$0x1]
  %v2569 = vld [vmem:[#allocation2 + $0x7c] sm:$0x1]
  %v2570 = vld [vmem:[#allocation2 + $0x8c] sm:$0x1]
  %v2571 = vld [vmem:[#allocation2 + $0x9c] sm:$0x1]
  %v2572 = vld [vmem:[#allocation2 + $0xac] sm:$0x1]
  %v2573 = vld [vmem:[#allocation2 + $0xbc] sm:$0x1]
  %v2574 = vld [vmem:[#allocation2 + $0xcc] sm:$0x1]
  %v2575 = vld [vmem:[#allocation2 + $0xdc] sm:$0x1]
  %v2576 = vld [vmem:[#allocation2 + $0xec] sm:$0x1]
  %v2577 = vld [vmem:[#allocation2 + $0xfc] sm:$0x1]
  %v2578 = vld [vmem:[#allocation2 + $0x12c] sm:$0x1]
  %v2579 = vld [vmem:[#allocation2 + $0x13c] sm:$0x1]
  %v2580 = vld [vmem:[#allocation2 + $0x14c] sm:$0x1]
  %v2581 = vld [vmem:[#allocation2 + $0x15c] sm:$0x1]
  %v2582 = vld [vmem:[#allocation2 + $0x16c] sm:$0x1]
  %v2583 = vld [vmem:[#allocation2 + $0x17c] sm:$0x1]
  %v2584 = vld [vmem:[#allocation2 + $0x18c] sm:$0x1]
  %v2585 = vld [vmem:[#allocation2 + $0x19c] sm:$0x1]
  %v2586 = vld [vmem:[#allocation2 + $0x1ac] sm:$0x1]
  %v2587 = vld [vmem:[#allocation2 + $0x1bc] sm:$0x1]
  %v2588 = vld [vmem:[#allocation2 + $0x1cc] sm:$0x1]
  %v2589 = vld [vmem:[#allocation2 + $0x1dc] sm:$0x1]
  %v2590 = vld [vmem:[#allocation2 + $0x1ec] sm:$0x1]
  %v2591 = vld [vmem:[#allocation2 + $0x1fc] sm:$0x1]
  %v2592 = vld [vmem:[#allocation2 + $0x20c] sm:$0x1]
  %v2593 = vld [vmem:[#allocation2 + $0x21c] sm:$0x1]
  %vm2594 = vsmask.f32 3328
  %vm2595 = vsmask.f32 7440
  %vm2596 = vmor %vm2594, %vm2595
  %v2597 = vrot.slane %v1864, 4
  %v2598 = vrot.slane %v1867, 5
  %v2599 = vor.u32 %v2597, %v2598
  %v2600 = vrot.slane %v2599, 4
  %v2601 = vrot.slane %v1876, 5
  %v2602 = vsel %vm2596, %v2600, %v2601
  %v2603 = vrot.slane %v1873, 4
  %v2604 = vor.u32 %v2603, %v2601
  %v2605 = vrot.slane %v2604, 4
  %v2607 = vshll.u32 %v2562, 16
  %v2609 = vrot.slane %v2607, 5
  %v2610 = vsel %vm2596, %v2605, %v2609
  %v2611 = vrot.slane %v1886, 4
  %v2612 = vrot.slane %v1889, 5
  %v2613 = vor.u32 %v2611, %v2612
  %v2614 = vrot.slane %v2613, 4
  %v2615 = vrot.slane %v1898, 5
  %v2616 = vsel %vm2596, %v2614, %v2615
  %v2617 = vrot.slane %v1895, 4
  %v2618 = vor.u32 %v2617, %v2615
  %v2619 = vrot.slane %v2618, 4
  %v2621 = vshll.u32 %v2563, 16
  %v2623 = vrot.slane %v2621, 5
  %v2624 = vsel %vm2596, %v2619, %v2623
  %v2625 = vrot.slane %v1908, 4
  %v2626 = vrot.slane %v1911, 5
  %v2627 = vor.u32 %v2625, %v2626
  %v2628 = vrot.slane %v2627, 4
  %v2629 = vrot.slane %v1920, 5
  %v2630 = vsel %vm2596, %v2628, %v2629
  %v2631 = vrot.slane %v1917, 4
  %v2632 = vor.u32 %v2631, %v2629
  %v2633 = vrot.slane %v2632, 4
  %v2635 = vshll.u32 %v2564, 16
  %v2637 = vrot.slane %v2635, 5
  %v2638 = vsel %vm2596, %v2633, %v2637
  %v2639 = vrot.slane %v1930, 4
  %v2640 = vrot.slane %v1933, 5
  %v2641 = vor.u32 %v2639, %v2640
  %v2642 = vrot.slane %v2641, 4
  %v2643 = vrot.slane %v1942, 5
  %v2644 = vsel %vm2596, %v2642, %v2643
  %v2645 = vrot.slane %v1939, 4
  %v2646 = vor.u32 %v2645, %v2643
  %v2647 = vrot.slane %v2646, 4
  %v2649 = vshll.u32 %v2565, 16
  %v2651 = vrot.slane %v2649, 5
  %v2652 = vsel %vm2596, %v2647, %v2651
  %v2653 = vrot.slane %v1952, 4
  %v2654 = vrot.slane %v1955, 5
  %v2655 = vor.u32 %v2653, %v2654
  %v2656 = vrot.slane %v2655, 4
  %v2657 = vrot.slane %v1964, 5
  %v2658 = vsel %vm2596, %v2656, %v2657
  %v2659 = vrot.slane %v1961, 4
  %v2660 = vor.u32 %v2659, %v2657
  %v2661 = vrot.slane %v2660, 4
  %v2663 = vshll.u32 %v2566, 16
  %v2665 = vrot.slane %v2663, 5
  %v2666 = vsel %vm2596, %v2661, %v2665
  %v2667 = vrot.slane %v1974, 4
  %v2668 = vrot.slane %v1977, 5
  %v2669 = vor.u32 %v2667, %v2668
  %v2670 = vrot.slane %v2669, 4
  %v2671 = vrot.slane %v1986, 5
  %v2672 = vsel %vm2596, %v2670, %v2671
  %v2673 = vrot.slane %v1983, 4
  %v2674 = vor.u32 %v2673, %v2671
  %v2675 = vrot.slane %v2674, 4
  %v2677 = vshll.u32 %v2567, 16
  %v2679 = vrot.slane %v2677, 5
  %v2680 = vsel %vm2596, %v2675, %v2679
  %v2681 = vrot.slane %v1996, 4
  %v2682 = vrot.slane %v1999, 5
  %v2683 = vor.u32 %v2681, %v2682
  %v2684 = vrot.slane %v2683, 4
  %v2685 = vrot.slane %v2008, 5
  %v2686 = vsel %vm2596, %v2684, %v2685
  %v2687 = vrot.slane %v2005, 4
  %v2688 = vor.u32 %v2687, %v2685
  %v2689 = vrot.slane %v2688, 4
  %v2691 = vshll.u32 %v2568, 16
  %v2693 = vrot.slane %v2691, 5
  %v2694 = vsel %vm2596, %v2689, %v2693
  %v2695 = vrot.slane %v2018, 4
  %v2696 = vrot.slane %v2021, 5
  %v2697 = vor.u32 %v2695, %v2696
  %v2698 = vrot.slane %v2697, 4
  %v2699 = vrot.slane %v2030, 5
  %v2700 = vsel %vm2596, %v2698, %v2699
  %v2701 = vrot.slane %v2027, 4
  %v2702 = vor.u32 %v2701, %v2699
  %v2703 = vrot.slane %v2702, 4
  %v2705 = vshll.u32 %v2569, 16
  %v2707 = vrot.slane %v2705, 5
  %v2708 = vsel %vm2596, %v2703, %v2707
  %v2709 = vrot.slane %v2040, 4
  %v2710 = vrot.slane %v2043, 5
  %v2711 = vor.u32 %v2709, %v2710
  %v2712 = vrot.slane %v2711, 4
  %v2713 = vrot.slane %v2052, 5
  %v2714 = vsel %vm2596, %v2712, %v2713
  %v2715 = vrot.slane %v2049, 4
  %v2716 = vor.u32 %v2715, %v2713
  %v2717 = vrot.slane %v2716, 4
  %v2719 = vshll.u32 %v2570, 16
  %v2721 = vrot.slane %v2719, 5
  %v2722 = vsel %vm2596, %v2717, %v2721
  %v2723 = vrot.slane %v2062, 4
  %v2724 = vrot.slane %v2065, 5
  %v2725 = vor.u32 %v2723, %v2724
  %v2726 = vrot.slane %v2725, 4
  %v2727 = vrot.slane %v2074, 5
  %v2728 = vsel %vm2596, %v2726, %v2727
  %v2729 = vrot.slane %v2071, 4
  %v2730 = vor.u32 %v2729, %v2727
  %v2731 = vrot.slane %v2730, 4
  %v2733 = vshll.u32 %v2571, 16
  %v2735 = vrot.slane %v2733, 5
  %v2736 = vsel %vm2596, %v2731, %v2735
  %v2737 = vrot.slane %v2084, 4
  %v2738 = vrot.slane %v2087, 5
  %v2739 = vor.u32 %v2737, %v2738
  %v2740 = vrot.slane %v2739, 4
  %v2741 = vrot.slane %v2096, 5
  %v2742 = vsel %vm2596, %v2740, %v2741
  %v2743 = vrot.slane %v2093, 4
  %v2744 = vor.u32 %v2743, %v2741
  %v2745 = vrot.slane %v2744, 4
  %v2747 = vshll.u32 %v2572, 16
  %v2749 = vrot.slane %v2747, 5
  %v2750 = vsel %vm2596, %v2745, %v2749
  %v2751 = vrot.slane %v2106, 4
  %v2752 = vrot.slane %v2109, 5
  %v2753 = vor.u32 %v2751, %v2752
  %v2754 = vrot.slane %v2753, 4
  %v2755 = vrot.slane %v2118, 5
  %v2756 = vsel %vm2596, %v2754, %v2755
  %v2757 = vrot.slane %v2115, 4
  %v2758 = vor.u32 %v2757, %v2755
  %v2759 = vrot.slane %v2758, 4
  %v2761 = vshll.u32 %v2573, 16
  %v2763 = vrot.slane %v2761, 5
  %v2764 = vsel %vm2596, %v2759, %v2763
  %v2765 = vrot.slane %v2128, 4
  %v2766 = vrot.slane %v2131, 5
  %v2767 = vor.u32 %v2765, %v2766
  %v2768 = vrot.slane %v2767, 4
  %v2769 = vrot.slane %v2140, 5
  %v2770 = vsel %vm2596, %v2768, %v2769
  %v2771 = vrot.slane %v2137, 4
  %v2772 = vor.u32 %v2771, %v2769
  %v2773 = vrot.slane %v2772, 4
  %v2775 = vshll.u32 %v2574, 16
  %v2777 = vrot.slane %v2775, 5
  %v2778 = vsel %vm2596, %v2773, %v2777
  %v2779 = vrot.slane %v2150, 4
  %v2780 = vrot.slane %v2153, 5
  %v2781 = vor.u32 %v2779, %v2780
  %v2782 = vrot.slane %v2781, 4
  %v2783 = vrot.slane %v2162, 5
  %v2784 = vsel %vm2596, %v2782, %v2783
  %v2785 = vrot.slane %v2159, 4
  %v2786 = vor.u32 %v2785, %v2783
  %v2787 = vrot.slane %v2786, 4
  %v2789 = vshll.u32 %v2575, 16
  %v2791 = vrot.slane %v2789, 5
  %v2792 = vsel %vm2596, %v2787, %v2791
  %v2793 = vrot.slane %v2172, 4
  %v2794 = vrot.slane %v2175, 5
  %v2795 = vor.u32 %v2793, %v2794
  %v2796 = vrot.slane %v2795, 4
  %v2797 = vrot.slane %v2184, 5
  %v2798 = vsel %vm2596, %v2796, %v2797
  %v2799 = vrot.slane %v2181, 4
  %v2800 = vor.u32 %v2799, %v2797
  %v2801 = vrot.slane %v2800, 4
  %v2803 = vshll.u32 %v2576, 16
  %v2805 = vrot.slane %v2803, 5
  %v2806 = vsel %vm2596, %v2801, %v2805
  %v2807 = vrot.slane %v2194, 4
  %v2808 = vrot.slane %v2197, 5
  %v2809 = vor.u32 %v2807, %v2808
  %v2810 = vrot.slane %v2809, 4
  %v2811 = vrot.slane %v2206, 5
  %v2812 = vsel %vm2596, %v2810, %v2811
  %v2813 = vrot.slane %v2203, 4
  %v2814 = vor.u32 %v2813, %v2811
  %v2815 = vrot.slane %v2814, 4
  %v2817 = vshll.u32 %v2577, 16
  %v2819 = vrot.slane %v2817, 5
  %v2820 = vsel %vm2596, %v2815, %v2819
  %v2821 = vrot.slane %v2216, 4
  %v2822 = vrot.slane %v2219, 5
  %v2823 = vor.u32 %v2821, %v2822
  %v2824 = vrot.slane %v2823, 4
  %v2825 = vrot.slane %v2228, 5
  %v2826 = vsel %vm2596, %v2824, %v2825
  %v2827 = vrot.slane %v2225, 4
  %v2828 = vor.u32 %v2827, %v2825
  %v2829 = vrot.slane %v2828, 4
  %v2831 = vshll.u32 %v2578, 16
  %v2833 = vrot.slane %v2831, 5
  %v2834 = vsel %vm2596, %v2829, %v2833
  %v2835 = vrot.slane %v2238, 4
  %v2836 = vrot.slane %v2241, 5
  %v2837 = vor.u32 %v2835, %v2836
  %v2838 = vrot.slane %v2837, 4
  %v2839 = vrot.slane %v2250, 5
  %v2840 = vsel %vm2596, %v2838, %v2839
  %v2841 = vrot.slane %v2247, 4
  %v2842 = vor.u32 %v2841, %v2839
  %v2843 = vrot.slane %v2842, 4
  %v2845 = vshll.u32 %v2579, 16
  %v2847 = vrot.slane %v2845, 5
  %v2848 = vsel %vm2596, %v2843, %v2847
  %v2849 = vrot.slane %v2260, 4
  %v2850 = vrot.slane %v2263, 5
  %v2851 = vor.u32 %v2849, %v2850
  %v2852 = vrot.slane %v2851, 4
  %v2853 = vrot.slane %v2272, 5
  %v2854 = vsel %vm2596, %v2852, %v2853
  %v2855 = vrot.slane %v2269, 4
  %v2856 = vor.u32 %v2855, %v2853
  %v2857 = vrot.slane %v2856, 4
  %v2859 = vshll.u32 %v2580, 16
  %v2861 = vrot.slane %v2859, 5
  %v2862 = vsel %vm2596, %v2857, %v2861
  %v2863 = vrot.slane %v2282, 4
  %v2864 = vrot.slane %v2285, 5
  %v2865 = vor.u32 %v2863, %v2864
  %v2866 = vrot.slane %v2865, 4
  %v2867 = vrot.slane %v2294, 5
  %v2868 = vsel %vm2596, %v2866, %v2867
  %v2869 = vrot.slane %v2291, 4
  %v2870 = vor.u32 %v2869, %v2867
  %v2871 = vrot.slane %v2870, 4
  %v2873 = vshll.u32 %v2581, 16
  %v2875 = vrot.slane %v2873, 5
  %v2876 = vsel %vm2596, %v2871, %v2875
  %v2877 = vrot.slane %v2304, 4
  %v2878 = vrot.slane %v2307, 5
  %v2879 = vor.u32 %v2877, %v2878
  %v2880 = vrot.slane %v2879, 4
  %v2881 = vrot.slane %v2316, 5
  %v2882 = vsel %vm2596, %v2880, %v2881
  %v2883 = vrot.slane %v2313, 4
  %v2884 = vor.u32 %v2883, %v2881
  %v2885 = vrot.slane %v2884, 4
  %v2887 = vshll.u32 %v2582, 16
  %v2889 = vrot.slane %v2887, 5
  %v2890 = vsel %vm2596, %v2885, %v2889
  %v2891 = vrot.slane %v2326, 4
  %v2892 = vrot.slane %v2329, 5
  %v2893 = vor.u32 %v2891, %v2892
  %v2894 = vrot.slane %v2893, 4
  %v2895 = vrot.slane %v2338, 5
  %v2896 = vsel %vm2596, %v2894, %v2895
  %v2897 = vrot.slane %v2335, 4
  %v2898 = vor.u32 %v2897, %v2895
  %v2899 = vrot.slane %v2898, 4
  %v2901 = vshll.u32 %v2583, 16
  %v2903 = vrot.slane %v2901, 5
  %v2904 = vsel %vm2596, %v2899, %v2903
  %v2905 = vrot.slane %v2348, 4
  %v2906 = vrot.slane %v2351, 5
  %v2907 = vor.u32 %v2905, %v2906
  %v2908 = vrot.slane %v2907, 4
  %v2909 = vrot.slane %v2360, 5
  %v2910 = vsel %vm2596, %v2908, %v2909
  %v2911 = vrot.slane %v2357, 4
  %v2912 = vor.u32 %v2911, %v2909
  %v2913 = vrot.slane %v2912, 4
  %v2915 = vshll.u32 %v2584, 16
  %v2917 = vrot.slane %v2915, 5
  %v2918 = vsel %vm2596, %v2913, %v2917
  %v2919 = vrot.slane %v2370, 4
  %v2920 = vrot.slane %v2373, 5
  %v2921 = vor.u32 %v2919, %v2920
  %v2922 = vrot.slane %v2921, 4
  %v2923 = vrot.slane %v2382, 5
  %v2924 = vsel %vm2596, %v2922, %v2923
  %v2925 = vrot.slane %v2379, 4
  %v2926 = vor.u32 %v2925, %v2923
  %v2927 = vrot.slane %v2926, 4
  %v2929 = vshll.u32 %v2585, 16
  %v2931 = vrot.slane %v2929, 5
  %v2932 = vsel %vm2596, %v2927, %v2931
  %v2933 = vrot.slane %v2392, 4
  %v2934 = vrot.slane %v2395, 5
  %v2935 = vor.u32 %v2933, %v2934
  %v2936 = vrot.slane %v2935, 4
  %v2937 = vrot.slane %v2404, 5
  %v2938 = vsel %vm2596, %v2936, %v2937
  %v2939 = vrot.slane %v2401, 4
  %v2940 = vor.u32 %v2939, %v2937
  %v2941 = vrot.slane %v2940, 4
  %v2943 = vshll.u32 %v2586, 16
  %v2945 = vrot.slane %v2943, 5
  %v2946 = vsel %vm2596, %v2941, %v2945
  %v2947 = vrot.slane %v2414, 4
  %v2948 = vrot.slane %v2417, 5
  %v2949 = vor.u32 %v2947, %v2948
  %v2950 = vrot.slane %v2949, 4
  %v2951 = vrot.slane %v2426, 5
  %v2952 = vsel %vm2596, %v2950, %v2951
  %v2953 = vrot.slane %v2423, 4
  %v2954 = vor.u32 %v2953, %v2951
  %v2955 = vrot.slane %v2954, 4
  %v2957 = vshll.u32 %v2587, 16
  %v2959 = vrot.slane %v2957, 5
  %v2960 = vsel %vm2596, %v2955, %v2959
  %v2961 = vrot.slane %v2436, 4
  %v2962 = vrot.slane %v2439, 5
  %v2963 = vor.u32 %v2961, %v2962
  %v2964 = vrot.slane %v2963, 4
  %v2965 = vrot.slane %v2448, 5
  %v2966 = vsel %vm2596, %v2964, %v2965
  %v2967 = vrot.slane %v2445, 4
  %v2968 = vor.u32 %v2967, %v2965
  %v2969 = vrot.slane %v2968, 4
  %v2971 = vshll.u32 %v2588, 16
  %v2973 = vrot.slane %v2971, 5
  %v2974 = vsel %vm2596, %v2969, %v2973
  %v2975 = vrot.slane %v2458, 4
  %v2976 = vrot.slane %v2461, 5
  %v2977 = vor.u32 %v2975, %v2976
  %v2978 = vrot.slane %v2977, 4
  %v2979 = vrot.slane %v2470, 5
  %v2980 = vsel %vm2596, %v2978, %v2979
  %v2981 = vrot.slane %v2467, 4
  %v2982 = vor.u32 %v2981, %v2979
  %v2983 = vrot.slane %v2982, 4
  %v2985 = vshll.u32 %v2589, 16
  %v2987 = vrot.slane %v2985, 5
  %v2988 = vsel %vm2596, %v2983, %v2987
  %v2989 = vrot.slane %v2480, 4
  %v2990 = vrot.slane %v2483, 5
  %v2991 = vor.u32 %v2989, %v2990
  %v2992 = vrot.slane %v2991, 4
  %v2993 = vrot.slane %v2492, 5
  %v2994 = vsel %vm2596, %v2992, %v2993
  %v2995 = vrot.slane %v2489, 4
  %v2996 = vor.u32 %v2995, %v2993
  %v2997 = vrot.slane %v2996, 4
  %v2999 = vshll.u32 %v2590, 16
  %v3001 = vrot.slane %v2999, 5
  %v3002 = vsel %vm2596, %v2997, %v3001
  %v3003 = vrot.slane %v2502, 4
  %v3004 = vrot.slane %v2505, 5
  %v3005 = vor.u32 %v3003, %v3004
  %v3006 = vrot.slane %v3005, 4
  %v3007 = vrot.slane %v2514, 5
  %v3008 = vsel %vm2596, %v3006, %v3007
  %v3009 = vrot.slane %v2511, 4
  %v3010 = vor.u32 %v3009, %v3007
  %v3011 = vrot.slane %v3010, 4
  %v3013 = vshll.u32 %v2591, 16
  %v3015 = vrot.slane %v3013, 5
  %v3016 = vsel %vm2596, %v3011, %v3015
  %v3017 = vrot.slane %v2524, 4
  %v3018 = vrot.slane %v2527, 5
  %v3019 = vor.u32 %v3017, %v3018
  %v3020 = vrot.slane %v3019, 4
  %v3021 = vrot.slane %v2536, 5
  %v3022 = vsel %vm2596, %v3020, %v3021
  %v3023 = vrot.slane %v2533, 4
  %v3024 = vor.u32 %v3023, %v3021
  %v3025 = vrot.slane %v3024, 4
  %v3027 = vshll.u32 %v2592, 16
  %v3029 = vrot.slane %v3027, 5
  %v3030 = vsel %vm2596, %v3025, %v3029
  %v3031 = vrot.slane %v2546, 4
  %v3032 = vrot.slane %v2549, 5
  %v3033 = vor.u32 %v3031, %v3032
  %v3034 = vrot.slane %v3033, 4
  %v3035 = vrot.slane %v2558, 5
  %v3036 = vsel %vm2596, %v3034, %v3035
  %v3037 = vrot.slane %v2555, 4
  %v3038 = vor.u32 %v3037, %v3035
  %v3039 = vrot.slane %v3038, 4
  %v3041 = vshll.u32 %v2593, 16
  %v3043 = vrot.slane %v3041, 5
  %v3044 = vsel %vm2596, %v3039, %v3043
  %v3045 = vld [vmem:[%s1694] sm:$0x8]
  %v3046 = vld [vmem:[%s1694 + $0x4] sm:$0xf]
  %v3047 = vld [vmem:[%s1694 + $0x8] sm:$0xf]
  %v3048 = vld [vmem:[%s1694 + $0x10] sm:$0x8]
  %v3049 = vld [vmem:[%s1694 + $0x14] sm:$0xf]
  %v3050 = vld [vmem:[%s1694 + $0x18] sm:$0xf]
  %v3051 = vld [vmem:[%s1694 + $0x20] sm:$0x8]
  %v3052 = vld [vmem:[%s1694 + $0x24] sm:$0xf]
  %v3053 = vld [vmem:[%s1694 + $0x28] sm:$0xf]
  %v3054 = vld [vmem:[%s1694 + $0x30] sm:$0x8]
  %v3055 = vld [vmem:[%s1694 + $0x34] sm:$0xf]
  %v3056 = vld [vmem:[%s1694 + $0x38] sm:$0xf]
  %v3057 = vld [vmem:[%s1694 + $0x40] sm:$0x8]
  %v3058 = vld [vmem:[%s1694 + $0x44] sm:$0xf]
  %v3059 = vld [vmem:[%s1694 + $0x48] sm:$0xf]
  %v3060 = vld [vmem:[%s1694 + $0x50] sm:$0x8]
  %v3061 = vld [vmem:[%s1694 + $0x54] sm:$0xf]
  %v3062 = vld [vmem:[%s1694 + $0x58] sm:$0xf]
  %v3063 = vld [vmem:[%s1694 + $0x60] sm:$0x8]
  %v3064 = vld [vmem:[%s1694 + $0x64] sm:$0xf]
  %v3065 = vld [vmem:[%s1694 + $0x68] sm:$0xf]
  %v3066 = vld [vmem:[%s1694 + $0x70] sm:$0x8]
  %v3067 = vld [vmem:[%s1694 + $0x74] sm:$0xf]
  %v3068 = vld [vmem:[%s1694 + $0x78] sm:$0xf]
  %v3069 = vld [vmem:[%s1694 + $0x80] sm:$0x8]
  %v3070 = vld [vmem:[%s1694 + $0x84] sm:$0xf]
  %v3071 = vld [vmem:[%s1694 + $0x88] sm:$0xf]
  %v3072 = vld [vmem:[%s1694 + $0x90] sm:$0x8]
  %v3073 = vld [vmem:[%s1694 + $0x94] sm:$0xf]
  %v3074 = vld [vmem:[%s1694 + $0x98] sm:$0xf]
  %v3075 = vld [vmem:[%s1694 + $0xa0] sm:$0x8]
  %v3076 = vld [vmem:[%s1694 + $0xa4] sm:$0xf]
  %v3077 = vld [vmem:[%s1694 + $0xa8] sm:$0xf]
  %v3078 = vld [vmem:[%s1694 + $0xb0] sm:$0x8]
  %v3079 = vld [vmem:[%s1694 + $0xb4] sm:$0xf]
  %v3080 = vld [vmem:[%s1694 + $0xb8] sm:$0xf]
  %v3081 = vld [vmem:[%s1694 + $0xc0] sm:$0x8]
  %v3082 = vld [vmem:[%s1694 + $0xc4] sm:$0xf]
  %v3083 = vld [vmem:[%s1694 + $0xc8] sm:$0xf]
  %v3084 = vld [vmem:[%s1694 + $0xd0] sm:$0x8]
  %v3085 = vld [vmem:[%s1694 + $0xd4] sm:$0xf]
  %v3086 = vld [vmem:[%s1694 + $0xd8] sm:$0xf]
  %v3087 = vld [vmem:[%s1694 + $0xe0] sm:$0x8]
  %v3088 = vld [vmem:[%s1694 + $0xe4] sm:$0xf]
  %v3089 = vld [vmem:[%s1694 + $0xe8] sm:$0xf]
  %v3090 = vld [vmem:[%s1694 + $0xf0] sm:$0x8]
  %v3091 = vld [vmem:[%s1694 + $0xf4] sm:$0xf]
  %v3092 = vld [vmem:[%s1694 + $0xf8] sm:$0xf]
  %v3093 = vld [vmem:[%s1694 + $0x120] sm:$0x8]
  %v3094 = vld [vmem:[%s1694 + $0x124] sm:$0xf]
  %v3095 = vld [vmem:[%s1694 + $0x128] sm:$0xf]
  %v3096 = vld [vmem:[%s1694 + $0x130] sm:$0x8]
  %v3097 = vld [vmem:[%s1694 + $0x134] sm:$0xf]
  %v3098 = vld [vmem:[%s1694 + $0x138] sm:$0xf]
  %v3099 = vld [vmem:[%s1694 + $0x140] sm:$0x8]
  %v3100 = vld [vmem:[%s1694 + $0x144] sm:$0xf]
  %v3101 = vld [vmem:[%s1694 + $0x148] sm:$0xf]
  %v3102 = vld [vmem:[%s1694 + $0x150] sm:$0x8]
  %v3103 = vld [vmem:[%s1694 + $0x154] sm:$0xf]
  %v3104 = vld [vmem:[%s1694 + $0x158] sm:$0xf]
  %v3105 = vld [vmem:[%s1694 + $0x160] sm:$0x8]
  %v3106 = vld [vmem:[%s1694 + $0x164] sm:$0xf]
  %v3107 = vld [vmem:[%s1694 + $0x168] sm:$0xf]
  %v3108 = vld [vmem:[%s1694 + $0x170] sm:$0x8]
  %v3109 = vld [vmem:[%s1694 + $0x174] sm:$0xf]
  %v3110 = vld [vmem:[%s1694 + $0x178] sm:$0xf]
  %v3111 = vld [vmem:[%s1694 + $0x180] sm:$0x8]
  %v3112 = vld [vmem:[%s1694 + $0x184] sm:$0xf]
  %v3113 = vld [vmem:[%s1694 + $0x188] sm:$0xf]
  %v3114 = vld [vmem:[%s1694 + $0x190] sm:$0x8]
  %v3115 = vld [vmem:[%s1694 + $0x194] sm:$0xf]
  %v3116 = vld [vmem:[%s1694 + $0x198] sm:$0xf]
  %v3117 = vld [vmem:[%s1694 + $0x1a0] sm:$0x8]
  %v3118 = vld [vmem:[%s1694 + $0x1a4] sm:$0xf]
  %v3119 = vld [vmem:[%s1694 + $0x1a8] sm:$0xf]
  %v3120 = vld [vmem:[%s1694 + $0x1b0] sm:$0x8]
  %v3121 = vld [vmem:[%s1694 + $0x1b4] sm:$0xf]
  %v3122 = vld [vmem:[%s1694 + $0x1b8] sm:$0xf]
  %v3123 = vld [vmem:[%s1694 + $0x1c0] sm:$0x8]
  %v3124 = vld [vmem:[%s1694 + $0x1c4] sm:$0xf]
  %v3125 = vld [vmem:[%s1694 + $0x1c8] sm:$0xf]
  %v3126 = vld [vmem:[%s1694 + $0x1d0] sm:$0x8]
  %v3127 = vld [vmem:[%s1694 + $0x1d4] sm:$0xf]
  %v3128 = vld [vmem:[%s1694 + $0x1d8] sm:$0xf]
  %v3129 = vld [vmem:[%s1694 + $0x1e0] sm:$0x8]
  %v3130 = vld [vmem:[%s1694 + $0x1e4] sm:$0xf]
  %v3131 = vld [vmem:[%s1694 + $0x1e8] sm:$0xf]
  %v3132 = vld [vmem:[%s1694 + $0x1f0] sm:$0x8]
  %v3133 = vld [vmem:[%s1694 + $0x1f4] sm:$0xf]
  %v3134 = vld [vmem:[%s1694 + $0x1f8] sm:$0xf]
  %v3135 = vld [vmem:[%s1694 + $0x200] sm:$0x8]
  %v3136 = vld [vmem:[%s1694 + $0x204] sm:$0xf]
  %v3137 = vld [vmem:[%s1694 + $0x208] sm:$0xf]
  %v3138 = vld [vmem:[%s1694 + $0x210] sm:$0x8]
  %v3139 = vld [vmem:[%s1694 + $0x214] sm:$0xf]
  %v3140 = vld [vmem:[%s1694 + $0x218] sm:$0xf]
  %v3142 = vshrl.u32 %v3045, 16
  %v3144 = vrot.slane %v3142, 7
  %v3145 = vrot.slane %v3144, 4
  %v3147 = vshrl.u32 %v3046, 16
  %v3149 = vrot.slane %v3147, 7
  %v3150 = vshll.u32 %v3046, 16
  %v3152 = vor.u32 %v3149, %v3150
  %v3153 = vsel %vm1857, %v3145, %v3152
  %v3154 = vrot.slane %v3149, 4
  %v3156 = vshrl.u32 %v3047, 16
  %v3158 = vrot.slane %v3156, 7
  %v3159 = vshll.u32 %v3047, 16
  %v3161 = vor.u32 %v3158, %v3159
  %v3162 = vsel %vm1857, %v3154, %v3161
  %v3164 = vshrl.u32 %v3048, 16
  %v3166 = vrot.slane %v3164, 7
  %v3167 = vrot.slane %v3166, 4
  %v3169 = vshrl.u32 %v3049, 16
  %v3171 = vrot.slane %v3169, 7
  %v3172 = vshll.u32 %v3049, 16
  %v3174 = vor.u32 %v3171, %v3172
  %v3175 = vsel %vm1857, %v3167, %v3174
  %v3176 = vrot.slane %v3171, 4
  %v3178 = vshrl.u32 %v3050, 16
  %v3180 = vrot.slane %v3178, 7
  %v3181 = vshll.u32 %v3050, 16
  %v3183 = vor.u32 %v3180, %v3181
  %v3184 = vsel %vm1857, %v3176, %v3183
  %v3186 = vshrl.u32 %v3051, 16
  %v3188 = vrot.slane %v3186, 7
  %v3189 = vrot.slane %v3188, 4
  %v3191 = vshrl.u32 %v3052, 16
  %v3193 = vrot.slane %v3191, 7
  %v3194 = vshll.u32 %v3052, 16
  %v3196 = vor.u32 %v3193, %v3194
  %v3197 = vsel %vm1857, %v3189, %v3196
  %v3198 = vrot.slane %v3193, 4
  %v3200 = vshrl.u32 %v3053, 16
  %v3202 = vrot.slane %v3200, 7
  %v3203 = vshll.u32 %v3053, 16
  %v3205 = vor.u32 %v3202, %v3203
  %v3206 = vsel %vm1857, %v3198, %v3205
  %v3208 = vshrl.u32 %v3054, 16
  %v3210 = vrot.slane %v3208, 7
  %v3211 = vrot.slane %v3210, 4
  %v3213 = vshrl.u32 %v3055, 16
  %v3215 = vrot.slane %v3213, 7
  %v3216 = vshll.u32 %v3055, 16
  %v3218 = vor.u32 %v3215, %v3216
  %v3219 = vsel %vm1857, %v3211, %v3218
  %v3220 = vrot.slane %v3215, 4
  %v3222 = vshrl.u32 %v3056, 16
  %v3224 = vrot.slane %v3222, 7
  %v3225 = vshll.u32 %v3056, 16
  %v3227 = vor.u32 %v3224, %v3225
  %v3228 = vsel %vm1857, %v3220, %v3227
  %v3230 = vshrl.u32 %v3057, 16
  %v3232 = vrot.slane %v3230, 7
  %v3233 = vrot.slane %v3232, 4
  %v3235 = vshrl.u32 %v3058, 16
  %v3237 = vrot.slane %v3235, 7
  %v3238 = vshll.u32 %v3058, 16
  %v3240 = vor.u32 %v3237, %v3238
  %v3241 = vsel %vm1857, %v3233, %v3240
  %v3242 = vrot.slane %v3237, 4
  %v3244 = vshrl.u32 %v3059, 16
  %v3246 = vrot.slane %v3244, 7
  %v3247 = vshll.u32 %v3059, 16
  %v3249 = vor.u32 %v3246, %v3247
  %v3250 = vsel %vm1857, %v3242, %v3249
  %v3252 = vshrl.u32 %v3060, 16
  %v3254 = vrot.slane %v3252, 7
  %v3255 = vrot.slane %v3254, 4
  %v3257 = vshrl.u32 %v3061, 16
  %v3259 = vrot.slane %v3257, 7
  %v3260 = vshll.u32 %v3061, 16
  %v3262 = vor.u32 %v3259, %v3260
  %v3263 = vsel %vm1857, %v3255, %v3262
  %v3264 = vrot.slane %v3259, 4
  %v3266 = vshrl.u32 %v3062, 16
  %v3268 = vrot.slane %v3266, 7
  %v3269 = vshll.u32 %v3062, 16
  %v3271 = vor.u32 %v3268, %v3269
  %v3272 = vsel %vm1857, %v3264, %v3271
  %v3274 = vshrl.u32 %v3063, 16
  %v3276 = vrot.slane %v3274, 7
  %v3277 = vrot.slane %v3276, 4
  %v3279 = vshrl.u32 %v3064, 16
  %v3281 = vrot.slane %v3279, 7
  %v3282 = vshll.u32 %v3064, 16
  %v3284 = vor.u32 %v3281, %v3282
  %v3285 = vsel %vm1857, %v3277, %v3284
  %v3286 = vrot.slane %v3281, 4
  %v3288 = vshrl.u32 %v3065, 16
  %v3290 = vrot.slane %v3288, 7
  %v3291 = vshll.u32 %v3065, 16
  %v3293 = vor.u32 %v3290, %v3291
  %v3294 = vsel %vm1857, %v3286, %v3293
  %v3296 = vshrl.u32 %v3066, 16
  %v3298 = vrot.slane %v3296, 7
  %v3299 = vrot.slane %v3298, 4
  %v3301 = vshrl.u32 %v3067, 16
  %v3303 = vrot.slane %v3301, 7
  %v3304 = vshll.u32 %v3067, 16
  %v3306 = vor.u32 %v3303, %v3304
  %v3307 = vsel %vm1857, %v3299, %v3306
  %v3308 = vrot.slane %v3303, 4
  %v3310 = vshrl.u32 %v3068, 16
  %v3312 = vrot.slane %v3310, 7
  %v3313 = vshll.u32 %v3068, 16
  %v3315 = vor.u32 %v3312, %v3313
  %v3316 = vsel %vm1857, %v3308, %v3315
  %v3318 = vshrl.u32 %v3069, 16
  %v3320 = vrot.slane %v3318, 7
  %v3321 = vrot.slane %v3320, 4
  %v3323 = vshrl.u32 %v3070, 16
  %v3325 = vrot.slane %v3323, 7
  %v3326 = vshll.u32 %v3070, 16
  %v3328 = vor.u32 %v3325, %v3326
  %v3329 = vsel %vm1857, %v3321, %v3328
  %v3330 = vrot.slane %v3325, 4
  %v3332 = vshrl.u32 %v3071, 16
  %v3334 = vrot.slane %v3332, 7
  %v3335 = vshll.u32 %v3071, 16
  %v3337 = vor.u32 %v3334, %v3335
  %v3338 = vsel %vm1857, %v3330, %v3337
  %v3340 = vshrl.u32 %v3072, 16
  %v3342 = vrot.slane %v3340, 7
  %v3343 = vrot.slane %v3342, 4
  %v3345 = vshrl.u32 %v3073, 16
  %v3347 = vrot.slane %v3345, 7
  %v3348 = vshll.u32 %v3073, 16
  %v3350 = vor.u32 %v3347, %v3348
  %v3351 = vsel %vm1857, %v3343, %v3350
  %v3352 = vrot.slane %v3347, 4
  %v3354 = vshrl.u32 %v3074, 16
  %v3356 = vrot.slane %v3354, 7
  %v3357 = vshll.u32 %v3074, 16
  %v3359 = vor.u32 %v3356, %v3357
  %v3360 = vsel %vm1857, %v3352, %v3359
  %v3362 = vshrl.u32 %v3075, 16
  %v3364 = vrot.slane %v3362, 7
  %v3365 = vrot.slane %v3364, 4
  %v3367 = vshrl.u32 %v3076, 16
  %v3369 = vrot.slane %v3367, 7
  %v3370 = vshll.u32 %v3076, 16
  %v3372 = vor.u32 %v3369, %v3370
  %v3373 = vsel %vm1857, %v3365, %v3372
  %v3374 = vrot.slane %v3369, 4
  %v3376 = vshrl.u32 %v3077, 16
  %v3378 = vrot.slane %v3376, 7
  %v3379 = vshll.u32 %v3077, 16
  %v3381 = vor.u32 %v3378, %v3379
  %v3382 = vsel %vm1857, %v3374, %v3381
  %v3384 = vshrl.u32 %v3078, 16
  %v3386 = vrot.slane %v3384, 7
  %v3387 = vrot.slane %v3386, 4
  %v3389 = vshrl.u32 %v3079, 16
  %v3391 = vrot.slane %v3389, 7
  %v3392 = vshll.u32 %v3079, 16
  %v3394 = vor.u32 %v3391, %v3392
  %v3395 = vsel %vm1857, %v3387, %v3394
  %v3396 = vrot.slane %v3391, 4
  %v3398 = vshrl.u32 %v3080, 16
  %v3400 = vrot.slane %v3398, 7
  %v3401 = vshll.u32 %v3080, 16
  %v3403 = vor.u32 %v3400, %v3401
  %v3404 = vsel %vm1857, %v3396, %v3403
  %v3406 = vshrl.u32 %v3081, 16
  %v3408 = vrot.slane %v3406, 7
  %v3409 = vrot.slane %v3408, 4
  %v3411 = vshrl.u32 %v3082, 16
  %v3413 = vrot.slane %v3411, 7
  %v3414 = vshll.u32 %v3082, 16
  %v3416 = vor.u32 %v3413, %v3414
  %v3417 = vsel %vm1857, %v3409, %v3416
  %v3418 = vrot.slane %v3413, 4
  %v3420 = vshrl.u32 %v3083, 16
  %v3422 = vrot.slane %v3420, 7
  %v3423 = vshll.u32 %v3083, 16
  %v3425 = vor.u32 %v3422, %v3423
  %v3426 = vsel %vm1857, %v3418, %v3425
  %v3428 = vshrl.u32 %v3084, 16
  %v3430 = vrot.slane %v3428, 7
  %v3431 = vrot.slane %v3430, 4
  %v3433 = vshrl.u32 %v3085, 16
  %v3435 = vrot.slane %v3433, 7
  %v3436 = vshll.u32 %v3085, 16
  %v3438 = vor.u32 %v3435, %v3436
  %v3439 = vsel %vm1857, %v3431, %v3438
  %v3440 = vrot.slane %v3435, 4
  %v3442 = vshrl.u32 %v3086, 16
  %v3444 = vrot.slane %v3442, 7
  %v3445 = vshll.u32 %v3086, 16
  %v3447 = vor.u32 %v3444, %v3445
  %v3448 = vsel %vm1857, %v3440, %v3447
  %v3450 = vshrl.u32 %v3087, 16
  %v3452 = vrot.slane %v3450, 7
  %v3453 = vrot.slane %v3452, 4
  %v3455 = vshrl.u32 %v3088, 16
  %v3457 = vrot.slane %v3455, 7
  %v3458 = vshll.u32 %v3088, 16
  %v3460 = vor.u32 %v3457, %v3458
  %v3461 = vsel %vm1857, %v3453, %v3460
  %v3462 = vrot.slane %v3457, 4
  %v3464 = vshrl.u32 %v3089, 16
  %v3466 = vrot.slane %v3464, 7
  %v3467 = vshll.u32 %v3089, 16
  %v3469 = vor.u32 %v3466, %v3467
  %v3470 = vsel %vm1857, %v3462, %v3469
  %v3472 = vshrl.u32 %v3090, 16
  %v3474 = vrot.slane %v3472, 7
  %v3475 = vrot.slane %v3474, 4
  %v3477 = vshrl.u32 %v3091, 16
  %v3479 = vrot.slane %v3477, 7
  %v3480 = vshll.u32 %v3091, 16
  %v3482 = vor.u32 %v3479, %v3480
  %v3483 = vsel %vm1857, %v3475, %v3482
  %v3484 = vrot.slane %v3479, 4
  %v3486 = vshrl.u32 %v3092, 16
  %v3488 = vrot.slane %v3486, 7
  %v3489 = vshll.u32 %v3092, 16
  %v3491 = vor.u32 %v3488, %v3489
  %v3492 = vsel %vm1857, %v3484, %v3491
  %v3494 = vshrl.u32 %v3093, 16
  %v3496 = vrot.slane %v3494, 7
  %v3497 = vrot.slane %v3496, 4
  %v3499 = vshrl.u32 %v3094, 16
  %v3501 = vrot.slane %v3499, 7
  %v3502 = vshll.u32 %v3094, 16
  %v3504 = vor.u32 %v3501, %v3502
  %v3505 = vsel %vm1857, %v3497, %v3504
  %v3506 = vrot.slane %v3501, 4
  %v3508 = vshrl.u32 %v3095, 16
  %v3510 = vrot.slane %v3508, 7
  %v3511 = vshll.u32 %v3095, 16
  %v3513 = vor.u32 %v3510, %v3511
  %v3514 = vsel %vm1857, %v3506, %v3513
  %v3516 = vshrl.u32 %v3096, 16
  %v3518 = vrot.slane %v3516, 7
  %v3519 = vrot.slane %v3518, 4
  %v3521 = vshrl.u32 %v3097, 16
  %v3523 = vrot.slane %v3521, 7
  %v3524 = vshll.u32 %v3097, 16
  %v3526 = vor.u32 %v3523, %v3524
  %v3527 = vsel %vm1857, %v3519, %v3526
  %v3528 = vrot.slane %v3523, 4
  %v3530 = vshrl.u32 %v3098, 16
  %v3532 = vrot.slane %v3530, 7
  %v3533 = vshll.u32 %v3098, 16
  %v3535 = vor.u32 %v3532, %v3533
  %v3536 = vsel %vm1857, %v3528, %v3535
  %v3538 = vshrl.u32 %v3099, 16
  %v3540 = vrot.slane %v3538, 7
  %v3541 = vrot.slane %v3540, 4
  %v3543 = vshrl.u32 %v3100, 16
  %v3545 = vrot.slane %v3543, 7
  %v3546 = vshll.u32 %v3100, 16
  %v3548 = vor.u32 %v3545, %v3546
  %v3549 = vsel %vm1857, %v3541, %v3548
  %v3550 = vrot.slane %v3545, 4
  %v3552 = vshrl.u32 %v3101, 16
  %v3554 = vrot.slane %v3552, 7
  %v3555 = vshll.u32 %v3101, 16
  %v3557 = vor.u32 %v3554, %v3555
  %v3558 = vsel %vm1857, %v3550, %v3557
  %v3560 = vshrl.u32 %v3102, 16
  %v3562 = vrot.slane %v3560, 7
  %v3563 = vrot.slane %v3562, 4
  %v3565 = vshrl.u32 %v3103, 16
  %v3567 = vrot.slane %v3565, 7
  %v3568 = vshll.u32 %v3103, 16
  %v3570 = vor.u32 %v3567, %v3568
  %v3571 = vsel %vm1857, %v3563, %v3570
  %v3572 = vrot.slane %v3567, 4
  %v3574 = vshrl.u32 %v3104, 16
  %v3576 = vrot.slane %v3574, 7
  %v3577 = vshll.u32 %v3104, 16
  %v3579 = vor.u32 %v3576, %v3577
  %v3580 = vsel %vm1857, %v3572, %v3579
  %v3582 = vshrl.u32 %v3105, 16
  %v3584 = vrot.slane %v3582, 7
  %v3585 = vrot.slane %v3584, 4
  %v3587 = vshrl.u32 %v3106, 16
  %v3589 = vrot.slane %v3587, 7
  %v3590 = vshll.u32 %v3106, 16
  %v3592 = vor.u32 %v3589, %v3590
  %v3593 = vsel %vm1857, %v3585, %v3592
  %v3594 = vrot.slane %v3589, 4
  %v3596 = vshrl.u32 %v3107, 16
  %v3598 = vrot.slane %v3596, 7
  %v3599 = vshll.u32 %v3107, 16
  %v3601 = vor.u32 %v3598, %v3599
  %v3602 = vsel %vm1857, %v3594, %v3601
  %v3604 = vshrl.u32 %v3108, 16
  %v3606 = vrot.slane %v3604, 7
  %v3607 = vrot.slane %v3606, 4
  %v3609 = vshrl.u32 %v3109, 16
  %v3611 = vrot.slane %v3609, 7
  %v3612 = vshll.u32 %v3109, 16
  %v3614 = vor.u32 %v3611, %v3612
  %v3615 = vsel %vm1857, %v3607, %v3614
  %v3616 = vrot.slane %v3611, 4
  %v3618 = vshrl.u32 %v3110, 16
  %v3620 = vrot.slane %v3618, 7
  %v3621 = vshll.u32 %v3110, 16
  %v3623 = vor.u32 %v3620, %v3621
  %v3624 = vsel %vm1857, %v3616, %v3623
  %v3626 = vshrl.u32 %v3111, 16
  %v3628 = vrot.slane %v3626, 7
  %v3629 = vrot.slane %v3628, 4
  %v3631 = vshrl.u32 %v3112, 16
  %v3633 = vrot.slane %v3631, 7
  %v3634 = vshll.u32 %v3112, 16
  %v3636 = vor.u32 %v3633, %v3634
  %v3637 = vsel %vm1857, %v3629, %v3636
  %v3638 = vrot.slane %v3633, 4
  %v3640 = vshrl.u32 %v3113, 16
  %v3642 = vrot.slane %v3640, 7
  %v3643 = vshll.u32 %v3113, 16
  %v3645 = vor.u32 %v3642, %v3643
  %v3646 = vsel %vm1857, %v3638, %v3645
  %v3648 = vshrl.u32 %v3114, 16
  %v3650 = vrot.slane %v3648, 7
  %v3651 = vrot.slane %v3650, 4
  %v3653 = vshrl.u32 %v3115, 16
  %v3655 = vrot.slane %v3653, 7
  %v3656 = vshll.u32 %v3115, 16
  %v3658 = vor.u32 %v3655, %v3656
  %v3659 = vsel %vm1857, %v3651, %v3658
  %v3660 = vrot.slane %v3655, 4
  %v3662 = vshrl.u32 %v3116, 16
  %v3664 = vrot.slane %v3662, 7
  %v3665 = vshll.u32 %v3116, 16
  %v3667 = vor.u32 %v3664, %v3665
  %v3668 = vsel %vm1857, %v3660, %v3667
  %v3670 = vshrl.u32 %v3117, 16
  %v3672 = vrot.slane %v3670, 7
  %v3673 = vrot.slane %v3672, 4
  %v3675 = vshrl.u32 %v3118, 16
  %v3677 = vrot.slane %v3675, 7
  %v3678 = vshll.u32 %v3118, 16
  %v3680 = vor.u32 %v3677, %v3678
  %v3681 = vsel %vm1857, %v3673, %v3680
  %v3682 = vrot.slane %v3677, 4
  %v3684 = vshrl.u32 %v3119, 16
  %v3686 = vrot.slane %v3684, 7
  %v3687 = vshll.u32 %v3119, 16
  %v3689 = vor.u32 %v3686, %v3687
  %v3690 = vsel %vm1857, %v3682, %v3689
  %v3692 = vshrl.u32 %v3120, 16
  %v3694 = vrot.slane %v3692, 7
  %v3695 = vrot.slane %v3694, 4
  %v3697 = vshrl.u32 %v3121, 16
  %v3699 = vrot.slane %v3697, 7
  %v3700 = vshll.u32 %v3121, 16
  %v3702 = vor.u32 %v3699, %v3700
  %v3703 = vsel %vm1857, %v3695, %v3702
  %v3704 = vrot.slane %v3699, 4
  %v3706 = vshrl.u32 %v3122, 16
  %v3708 = vrot.slane %v3706, 7
  %v3709 = vshll.u32 %v3122, 16
  %v3711 = vor.u32 %v3708, %v3709
  %v3712 = vsel %vm1857, %v3704, %v3711
  %v3714 = vshrl.u32 %v3123, 16
  %v3716 = vrot.slane %v3714, 7
  %v3717 = vrot.slane %v3716, 4
  %v3719 = vshrl.u32 %v3124, 16
  %v3721 = vrot.slane %v3719, 7
  %v3722 = vshll.u32 %v3124, 16
  %v3724 = vor.u32 %v3721, %v3722
  %v3725 = vsel %vm1857, %v3717, %v3724
  %v3726 = vrot.slane %v3721, 4
  %v3728 = vshrl.u32 %v3125, 16
  %v3730 = vrot.slane %v3728, 7
  %v3731 = vshll.u32 %v3125, 16
  %v3733 = vor.u32 %v3730, %v3731
  %v3734 = vsel %vm1857, %v3726, %v3733
  %v3736 = vshrl.u32 %v3126, 16
  %v3738 = vrot.slane %v3736, 7
  %v3739 = vrot.slane %v3738, 4
  %v3741 = vshrl.u32 %v3127, 16
  %v3743 = vrot.slane %v3741, 7
  %v3744 = vshll.u32 %v3127, 16
  %v3746 = vor.u32 %v3743, %v3744
  %v3747 = vsel %vm1857, %v3739, %v3746
  %v3748 = vrot.slane %v3743, 4
  %v3750 = vshrl.u32 %v3128, 16
  %v3752 = vrot.slane %v3750, 7
  %v3753 = vshll.u32 %v3128, 16
  %v3755 = vor.u32 %v3752, %v3753
  %v3756 = vsel %vm1857, %v3748, %v3755
  %v3758 = vshrl.u32 %v3129, 16
  %v3760 = vrot.slane %v3758, 7
  %v3761 = vrot.slane %v3760, 4
  %v3763 = vshrl.u32 %v3130, 16
  %v3765 = vrot.slane %v3763, 7
  %v3766 = vshll.u32 %v3130, 16
  %v3768 = vor.u32 %v3765, %v3766
  %v3769 = vsel %vm1857, %v3761, %v3768
  %v3770 = vrot.slane %v3765, 4
  %v3772 = vshrl.u32 %v3131, 16
  %v3774 = vrot.slane %v3772, 7
  %v3775 = vshll.u32 %v3131, 16
  %v3777 = vor.u32 %v3774, %v3775
  %v3778 = vsel %vm1857, %v3770, %v3777
  %v3780 = vshrl.u32 %v3132, 16
  %v3782 = vrot.slane %v3780, 7
  %v3783 = vrot.slane %v3782, 4
  %v3785 = vshrl.u32 %v3133, 16
  %v3787 = vrot.slane %v3785, 7
  %v3788 = vshll.u32 %v3133, 16
  %v3790 = vor.u32 %v3787, %v3788
  %v3791 = vsel %vm1857, %v3783, %v3790
  %v3792 = vrot.slane %v3787, 4
  %v3794 = vshrl.u32 %v3134, 16
  %v3796 = vrot.slane %v3794, 7
  %v3797 = vshll.u32 %v3134, 16
  %v3799 = vor.u32 %v3796, %v3797
  %v3800 = vsel %vm1857, %v3792, %v3799
  %v3802 = vshrl.u32 %v3135, 16
  %v3804 = vrot.slane %v3802, 7
  %v3805 = vrot.slane %v3804, 4
  %v3807 = vshrl.u32 %v3136, 16
  %v3809 = vrot.slane %v3807, 7
  %v3810 = vshll.u32 %v3136, 16
  %v3812 = vor.u32 %v3809, %v3810
  %v3813 = vsel %vm1857, %v3805, %v3812
  %v3814 = vrot.slane %v3809, 4
  %v3816 = vshrl.u32 %v3137, 16
  %v3818 = vrot.slane %v3816, 7
  %v3819 = vshll.u32 %v3137, 16
  %v3821 = vor.u32 %v3818, %v3819
  %v3822 = vsel %vm1857, %v3814, %v3821
  %v3824 = vshrl.u32 %v3138, 16
  %v3826 = vrot.slane %v3824, 7
  %v3827 = vrot.slane %v3826, 4
  %v3829 = vshrl.u32 %v3139, 16
  %v3831 = vrot.slane %v3829, 7
  %v3832 = vshll.u32 %v3139, 16
  %v3834 = vor.u32 %v3831, %v3832
  %v3835 = vsel %vm1857, %v3827, %v3834
  %v3836 = vrot.slane %v3831, 4
  %v3838 = vshrl.u32 %v3140, 16
  %v3840 = vrot.slane %v3838, 7
  %v3841 = vshll.u32 %v3140, 16
  %v3843 = vor.u32 %v3840, %v3841
  %v3844 = vsel %vm1857, %v3836, %v3843
  %v3845 = vld [vmem:[%s1694 + $0xc] sm:$0x1]
  %v3846 = vld [vmem:[%s1694 + $0x1c] sm:$0x1]
  %v3847 = vld [vmem:[%s1694 + $0x2c] sm:$0x1]
  %v3848 = vld [vmem:[%s1694 + $0x3c] sm:$0x1]
  %v3849 = vld [vmem:[%s1694 + $0x4c] sm:$0x1]
  %v3850 = vld [vmem:[%s1694 + $0x5c] sm:$0x1]
  %v3851 = vld [vmem:[%s1694 + $0x6c] sm:$0x1]
  %v3852 = vld [vmem:[%s1694 + $0x7c] sm:$0x1]
  %v3853 = vld [vmem:[%s1694 + $0x8c] sm:$0x1]
  %v3854 = vld [vmem:[%s1694 + $0x9c] sm:$0x1]
  %v3855 = vld [vmem:[%s1694 + $0xac] sm:$0x1]
  %v3856 = vld [vmem:[%s1694 + $0xbc] sm:$0x1]
  %v3857 = vld [vmem:[%s1694 + $0xcc] sm:$0x1]
  %v3858 = vld [vmem:[%s1694 + $0xdc] sm:$0x1]
  %v3859 = vld [vmem:[%s1694 + $0xec] sm:$0x1]
  %v3860 = vld [vmem:[%s1694 + $0xfc] sm:$0x1]
  %v3861 = vld [vmem:[%s1694 + $0x12c] sm:$0x1]
  %v3862 = vld [vmem:[%s1694 + $0x13c] sm:$0x1]
  %v3863 = vld [vmem:[%s1694 + $0x14c] sm:$0x1]
  %v3864 = vld [vmem:[%s1694 + $0x15c] sm:$0x1]
  %v3865 = vld [vmem:[%s1694 + $0x16c] sm:$0x1]
  %v3866 = vld [vmem:[%s1694 + $0x17c] sm:$0x1]
  %v3867 = vld [vmem:[%s1694 + $0x18c] sm:$0x1]
  %v3868 = vld [vmem:[%s1694 + $0x19c] sm:$0x1]
  %v3869 = vld [vmem:[%s1694 + $0x1ac] sm:$0x1]
  %v3870 = vld [vmem:[%s1694 + $0x1bc] sm:$0x1]
  %v3871 = vld [vmem:[%s1694 + $0x1cc] sm:$0x1]
  %v3872 = vld [vmem:[%s1694 + $0x1dc] sm:$0x1]
  %v3873 = vld [vmem:[%s1694 + $0x1ec] sm:$0x1]
  %v3874 = vld [vmem:[%s1694 + $0x1fc] sm:$0x1]
  %v3875 = vld [vmem:[%s1694 + $0x20c] sm:$0x1]
  %v3876 = vld [vmem:[%s1694 + $0x21c] sm:$0x1]
  %v3877 = vrot.slane %v3147, 4
  %v3878 = vrot.slane %v3150, 5
  %v3879 = vor.u32 %v3877, %v3878
  %v3880 = vrot.slane %v3879, 4
  %v3881 = vrot.slane %v3159, 5
  %v3882 = vsel %vm2596, %v3880, %v3881
  %v3883 = vrot.slane %v3156, 4
  %v3884 = vor.u32 %v3883, %v3881
  %v3885 = vrot.slane %v3884, 4
  %v3887 = vshll.u32 %v3845, 16
  %v3889 = vrot.slane %v3887, 5
  %v3890 = vsel %vm2596, %v3885, %v3889
  %v3891 = vrot.slane %v3169, 4
  %v3892 = vrot.slane %v3172, 5
  %v3893 = vor.u32 %v3891, %v3892
  %v3894 = vrot.slane %v3893, 4
  %v3895 = vrot.slane %v3181, 5
  %v3896 = vsel %vm2596, %v3894, %v3895
  %v3897 = vrot.slane %v3178, 4
  %v3898 = vor.u32 %v3897, %v3895
  %v3899 = vrot.slane %v3898, 4
  %v3901 = vshll.u32 %v3846, 16
  %v3903 = vrot.slane %v3901, 5
  %v3904 = vsel %vm2596, %v3899, %v3903
  %v3905 = vrot.slane %v3191, 4
  %v3906 = vrot.slane %v3194, 5
  %v3907 = vor.u32 %v3905, %v3906
  %v3908 = vrot.slane %v3907, 4
  %v3909 = vrot.slane %v3203, 5
  %v3910 = vsel %vm2596, %v3908, %v3909
  %v3911 = vrot.slane %v3200, 4
  %v3912 = vor.u32 %v3911, %v3909
  %v3913 = vrot.slane %v3912, 4
  %v3915 = vshll.u32 %v3847, 16
  %v3917 = vrot.slane %v3915, 5
  %v3918 = vsel %vm2596, %v3913, %v3917
  %v3919 = vrot.slane %v3213, 4
  %v3920 = vrot.slane %v3216, 5
  %v3921 = vor.u32 %v3919, %v3920
  %v3922 = vrot.slane %v3921, 4
  %v3923 = vrot.slane %v3225, 5
  %v3924 = vsel %vm2596, %v3922, %v3923
  %v3925 = vrot.slane %v3222, 4
  %v3926 = vor.u32 %v3925, %v3923
  %v3927 = vrot.slane %v3926, 4
  %v3929 = vshll.u32 %v3848, 16
  %v3931 = vrot.slane %v3929, 5
  %v3932 = vsel %vm2596, %v3927, %v3931
  %v3933 = vrot.slane %v3235, 4
  %v3934 = vrot.slane %v3238, 5
  %v3935 = vor.u32 %v3933, %v3934
  %v3936 = vrot.slane %v3935, 4
  %v3937 = vrot.slane %v3247, 5
  %v3938 = vsel %vm2596, %v3936, %v3937
  %v3939 = vrot.slane %v3244, 4
  %v3940 = vor.u32 %v3939, %v3937
  %v3941 = vrot.slane %v3940, 4
  %v3943 = vshll.u32 %v3849, 16
  %v3945 = vrot.slane %v3943, 5
  %v3946 = vsel %vm2596, %v3941, %v3945
  %v3947 = vrot.slane %v3257, 4
  %v3948 = vrot.slane %v3260, 5
  %v3949 = vor.u32 %v3947, %v3948
  %v3950 = vrot.slane %v3949, 4
  %v3951 = vrot.slane %v3269, 5
  %v3952 = vsel %vm2596, %v3950, %v3951
  %v3953 = vrot.slane %v3266, 4
  %v3954 = vor.u32 %v3953, %v3951
  %v3955 = vrot.slane %v3954, 4
  %v3957 = vshll.u32 %v3850, 16
  %v3959 = vrot.slane %v3957, 5
  %v3960 = vsel %vm2596, %v3955, %v3959
  %v3961 = vrot.slane %v3279, 4
  %v3962 = vrot.slane %v3282, 5
  %v3963 = vor.u32 %v3961, %v3962
  %v3964 = vrot.slane %v3963, 4
  %v3965 = vrot.slane %v3291, 5
  %v3966 = vsel %vm2596, %v3964, %v3965
  %v3967 = vrot.slane %v3288, 4
  %v3968 = vor.u32 %v3967, %v3965
  %v3969 = vrot.slane %v3968, 4
  %v3971 = vshll.u32 %v3851, 16
  %v3973 = vrot.slane %v3971, 5
  %v3974 = vsel %vm2596, %v3969, %v3973
  %v3975 = vrot.slane %v3301, 4
  %v3976 = vrot.slane %v3304, 5
  %v3977 = vor.u32 %v3975, %v3976
  %v3978 = vrot.slane %v3977, 4
  %v3979 = vrot.slane %v3313, 5
  %v3980 = vsel %vm2596, %v3978, %v3979
  %v3981 = vrot.slane %v3310, 4
  %v3982 = vor.u32 %v3981, %v3979
  %v3983 = vrot.slane %v3982, 4
  %v3985 = vshll.u32 %v3852, 16
  %v3987 = vrot.slane %v3985, 5
  %v3988 = vsel %vm2596, %v3983, %v3987
  %v3989 = vrot.slane %v3323, 4
  %v3990 = vrot.slane %v3326, 5
  %v3991 = vor.u32 %v3989, %v3990
  %v3992 = vrot.slane %v3991, 4
  %v3993 = vrot.slane %v3335, 5
  %v3994 = vsel %vm2596, %v3992, %v3993
  %v3995 = vrot.slane %v3332, 4
  %v3996 = vor.u32 %v3995, %v3993
  %v3997 = vrot.slane %v3996, 4
  %v3999 = vshll.u32 %v3853, 16
  %v4001 = vrot.slane %v3999, 5
  %v4002 = vsel %vm2596, %v3997, %v4001
  %v4003 = vrot.slane %v3345, 4
  %v4004 = vrot.slane %v3348, 5
  %v4005 = vor.u32 %v4003, %v4004
  %v4006 = vrot.slane %v4005, 4
  %v4007 = vrot.slane %v3357, 5
  %v4008 = vsel %vm2596, %v4006, %v4007
  %v4009 = vrot.slane %v3354, 4
  %v4010 = vor.u32 %v4009, %v4007
  %v4011 = vrot.slane %v4010, 4
  %v4013 = vshll.u32 %v3854, 16
  %v4015 = vrot.slane %v4013, 5
  %v4016 = vsel %vm2596, %v4011, %v4015
  %v4017 = vrot.slane %v3367, 4
  %v4018 = vrot.slane %v3370, 5
  %v4019 = vor.u32 %v4017, %v4018
  %v4020 = vrot.slane %v4019, 4
  %v4021 = vrot.slane %v3379, 5
  %v4022 = vsel %vm2596, %v4020, %v4021
  %v4023 = vrot.slane %v3376, 4
  %v4024 = vor.u32 %v4023, %v4021
  %v4025 = vrot.slane %v4024, 4
  %v4027 = vshll.u32 %v3855, 16
  %v4029 = vrot.slane %v4027, 5
  %v4030 = vsel %vm2596, %v4025, %v4029
  %v4031 = vrot.slane %v3389, 4
  %v4032 = vrot.slane %v3392, 5
  %v4033 = vor.u32 %v4031, %v4032
  %v4034 = vrot.slane %v4033, 4
  %v4035 = vrot.slane %v3401, 5
  %v4036 = vsel %vm2596, %v4034, %v4035
  %v4037 = vrot.slane %v3398, 4
  %v4038 = vor.u32 %v4037, %v4035
  %v4039 = vrot.slane %v4038, 4
  %v4041 = vshll.u32 %v3856, 16
  %v4043 = vrot.slane %v4041, 5
  %v4044 = vsel %vm2596, %v4039, %v4043
  %v4045 = vrot.slane %v3411, 4
  %v4046 = vrot.slane %v3414, 5
  %v4047 = vor.u32 %v4045, %v4046
  %v4048 = vrot.slane %v4047, 4
  %v4049 = vrot.slane %v3423, 5
  %v4050 = vsel %vm2596, %v4048, %v4049
  %v4051 = vrot.slane %v3420, 4
  %v4052 = vor.u32 %v4051, %v4049
  %v4053 = vrot.slane %v4052, 4
  %v4055 = vshll.u32 %v3857, 16
  %v4057 = vrot.slane %v4055, 5
  %v4058 = vsel %vm2596, %v4053, %v4057
  %v4059 = vrot.slane %v3433, 4
  %v4060 = vrot.slane %v3436, 5
  %v4061 = vor.u32 %v4059, %v4060
  %v4062 = vrot.slane %v4061, 4
  %v4063 = vrot.slane %v3445, 5
  %v4064 = vsel %vm2596, %v4062, %v4063
  %v4065 = vrot.slane %v3442, 4
  %v4066 = vor.u32 %v4065, %v4063
  %v4067 = vrot.slane %v4066, 4
  %v4069 = vshll.u32 %v3858, 16
  %v4071 = vrot.slane %v4069, 5
  %v4072 = vsel %vm2596, %v4067, %v4071
  %v4073 = vrot.slane %v3455, 4
  %v4074 = vrot.slane %v3458, 5
  %v4075 = vor.u32 %v4073, %v4074
  %v4076 = vrot.slane %v4075, 4
  %v4077 = vrot.slane %v3467, 5
  %v4078 = vsel %vm2596, %v4076, %v4077
  %v4079 = vrot.slane %v3464, 4
  %v4080 = vor.u32 %v4079, %v4077
  %v4081 = vrot.slane %v4080, 4
  %v4083 = vshll.u32 %v3859, 16
  %v4085 = vrot.slane %v4083, 5
  %v4086 = vsel %vm2596, %v4081, %v4085
  %v4087 = vrot.slane %v3477, 4
  %v4088 = vrot.slane %v3480, 5
  %v4089 = vor.u32 %v4087, %v4088
  %v4090 = vrot.slane %v4089, 4
  %v4091 = vrot.slane %v3489, 5
  %v4092 = vsel %vm2596, %v4090, %v4091
  %v4093 = vrot.slane %v3486, 4
  %v4094 = vor.u32 %v4093, %v4091
  %v4095 = vrot.slane %v4094, 4
  %v4097 = vshll.u32 %v3860, 16
  %v4099 = vrot.slane %v4097, 5
  %v4100 = vsel %vm2596, %v4095, %v4099
  %v4101 = vrot.slane %v3499, 4
  %v4102 = vrot.slane %v3502, 5
  %v4103 = vor.u32 %v4101, %v4102
  %v4104 = vrot.slane %v4103, 4
  %v4105 = vrot.slane %v3511, 5
  %v4106 = vsel %vm2596, %v4104, %v4105
  %v4107 = vrot.slane %v3508, 4
  %v4108 = vor.u32 %v4107, %v4105
  %v4109 = vrot.slane %v4108, 4
  %v4111 = vshll.u32 %v3861, 16
  %v4113 = vrot.slane %v4111, 5
  %v4114 = vsel %vm2596, %v4109, %v4113
  %v4115 = vrot.slane %v3521, 4
  %v4116 = vrot.slane %v3524, 5
  %v4117 = vor.u32 %v4115, %v4116
  %v4118 = vrot.slane %v4117, 4
  %v4119 = vrot.slane %v3533, 5
  %v4120 = vsel %vm2596, %v4118, %v4119
  %v4121 = vrot.slane %v3530, 4
  %v4122 = vor.u32 %v4121, %v4119
  %v4123 = vrot.slane %v4122, 4
  %v4125 = vshll.u32 %v3862, 16
  %v4127 = vrot.slane %v4125, 5
  %v4128 = vsel %vm2596, %v4123, %v4127
  %v4129 = vrot.slane %v3543, 4
  %v4130 = vrot.slane %v3546, 5
  %v4131 = vor.u32 %v4129, %v4130
  %v4132 = vrot.slane %v4131, 4
  %v4133 = vrot.slane %v3555, 5
  %v4134 = vsel %vm2596, %v4132, %v4133
  %v4135 = vrot.slane %v3552, 4
  %v4136 = vor.u32 %v4135, %v4133
  %v4137 = vrot.slane %v4136, 4
  %v4139 = vshll.u32 %v3863, 16
  %v4141 = vrot.slane %v4139, 5
  %v4142 = vsel %vm2596, %v4137, %v4141
  %v4143 = vrot.slane %v3565, 4
  %v4144 = vrot.slane %v3568, 5
  %v4145 = vor.u32 %v4143, %v4144
  %v4146 = vrot.slane %v4145, 4
  %v4147 = vrot.slane %v3577, 5
  %v4148 = vsel %vm2596, %v4146, %v4147
  %v4149 = vrot.slane %v3574, 4
  %v4150 = vor.u32 %v4149, %v4147
  %v4151 = vrot.slane %v4150, 4
  %v4153 = vshll.u32 %v3864, 16
  %v4155 = vrot.slane %v4153, 5
  %v4156 = vsel %vm2596, %v4151, %v4155
  %v4157 = vrot.slane %v3587, 4
  %v4158 = vrot.slane %v3590, 5
  %v4159 = vor.u32 %v4157, %v4158
  %v4160 = vrot.slane %v4159, 4
  %v4161 = vrot.slane %v3599, 5
  %v4162 = vsel %vm2596, %v4160, %v4161
  %v4163 = vrot.slane %v3596, 4
  %v4164 = vor.u32 %v4163, %v4161
  %v4165 = vrot.slane %v4164, 4
  %v4167 = vshll.u32 %v3865, 16
  %v4169 = vrot.slane %v4167, 5
  %v4170 = vsel %vm2596, %v4165, %v4169
  %v4171 = vrot.slane %v3609, 4
  %v4172 = vrot.slane %v3612, 5
  %v4173 = vor.u32 %v4171, %v4172
  %v4174 = vrot.slane %v4173, 4
  %v4175 = vrot.slane %v3621, 5
  %v4176 = vsel %vm2596, %v4174, %v4175
  %v4177 = vrot.slane %v3618, 4
  %v4178 = vor.u32 %v4177, %v4175
  %v4179 = vrot.slane %v4178, 4
  %v4181 = vshll.u32 %v3866, 16
  %v4183 = vrot.slane %v4181, 5
  %v4184 = vsel %vm2596, %v4179, %v4183
  %v4185 = vrot.slane %v3631, 4
  %v4186 = vrot.slane %v3634, 5
  %v4187 = vor.u32 %v4185, %v4186
  %v4188 = vrot.slane %v4187, 4
  %v4189 = vrot.slane %v3643, 5
  %v4190 = vsel %vm2596, %v4188, %v4189
  %v4191 = vrot.slane %v3640, 4
  %v4192 = vor.u32 %v4191, %v4189
  %v4193 = vrot.slane %v4192, 4
  %v4195 = vshll.u32 %v3867, 16
  %v4197 = vrot.slane %v4195, 5
  %v4198 = vsel %vm2596, %v4193, %v4197
  %v4199 = vrot.slane %v3653, 4
  %v4200 = vrot.slane %v3656, 5
  %v4201 = vor.u32 %v4199, %v4200
  %v4202 = vrot.slane %v4201, 4
  %v4203 = vrot.slane %v3665, 5
  %v4204 = vsel %vm2596, %v4202, %v4203
  %v4205 = vrot.slane %v3662, 4
  %v4206 = vor.u32 %v4205, %v4203
  %v4207 = vrot.slane %v4206, 4
  %v4209 = vshll.u32 %v3868, 16
  %v4211 = vrot.slane %v4209, 5
  %v4212 = vsel %vm2596, %v4207, %v4211
  %v4213 = vrot.slane %v3675, 4
  %v4214 = vrot.slane %v3678, 5
  %v4215 = vor.u32 %v4213, %v4214
  %v4216 = vrot.slane %v4215, 4
  %v4217 = vrot.slane %v3687, 5
  %v4218 = vsel %vm2596, %v4216, %v4217
  %v4219 = vrot.slane %v3684, 4
  %v4220 = vor.u32 %v4219, %v4217
  %v4221 = vrot.slane %v4220, 4
  %v4223 = vshll.u32 %v3869, 16
  %v4225 = vrot.slane %v4223, 5
  %v4226 = vsel %vm2596, %v4221, %v4225
  %v4227 = vrot.slane %v3697, 4
  %v4228 = vrot.slane %v3700, 5
  %v4229 = vor.u32 %v4227, %v4228
  %v4230 = vrot.slane %v4229, 4
  %v4231 = vrot.slane %v3709, 5
  %v4232 = vsel %vm2596, %v4230, %v4231
  %v4233 = vrot.slane %v3706, 4
  %v4234 = vor.u32 %v4233, %v4231
  %v4235 = vrot.slane %v4234, 4
  %v4237 = vshll.u32 %v3870, 16
  %v4239 = vrot.slane %v4237, 5
  %v4240 = vsel %vm2596, %v4235, %v4239
  %v4241 = vrot.slane %v3719, 4
  %v4242 = vrot.slane %v3722, 5
  %v4243 = vor.u32 %v4241, %v4242
  %v4244 = vrot.slane %v4243, 4
  %v4245 = vrot.slane %v3731, 5
  %v4246 = vsel %vm2596, %v4244, %v4245
  %v4247 = vrot.slane %v3728, 4
  %v4248 = vor.u32 %v4247, %v4245
  %v4249 = vrot.slane %v4248, 4
  %v4251 = vshll.u32 %v3871, 16
  %v4253 = vrot.slane %v4251, 5
  %v4254 = vsel %vm2596, %v4249, %v4253
  %v4255 = vrot.slane %v3741, 4
  %v4256 = vrot.slane %v3744, 5
  %v4257 = vor.u32 %v4255, %v4256
  %v4258 = vrot.slane %v4257, 4
  %v4259 = vrot.slane %v3753, 5
  %v4260 = vsel %vm2596, %v4258, %v4259
  %v4261 = vrot.slane %v3750, 4
  %v4262 = vor.u32 %v4261, %v4259
  %v4263 = vrot.slane %v4262, 4
  %v4265 = vshll.u32 %v3872, 16
  %v4267 = vrot.slane %v4265, 5
  %v4268 = vsel %vm2596, %v4263, %v4267
  %v4269 = vrot.slane %v3763, 4
  %v4270 = vrot.slane %v3766, 5
  %v4271 = vor.u32 %v4269, %v4270
  %v4272 = vrot.slane %v4271, 4
  %v4273 = vrot.slane %v3775, 5
  %v4274 = vsel %vm2596, %v4272, %v4273
  %v4275 = vrot.slane %v3772, 4
  %v4276 = vor.u32 %v4275, %v4273
  %v4277 = vrot.slane %v4276, 4
  %v4279 = vshll.u32 %v3873, 16
  %v4281 = vrot.slane %v4279, 5
  %v4282 = vsel %vm2596, %v4277, %v4281
  %v4283 = vrot.slane %v3785, 4
  %v4284 = vrot.slane %v3788, 5
  %v4285 = vor.u32 %v4283, %v4284
  %v4286 = vrot.slane %v4285, 4
  %v4287 = vrot.slane %v3797, 5
  %v4288 = vsel %vm2596, %v4286, %v4287
  %v4289 = vrot.slane %v3794, 4
  %v4290 = vor.u32 %v4289, %v4287
  %v4291 = vrot.slane %v4290, 4
  %v4293 = vshll.u32 %v3874, 16
  %v4295 = vrot.slane %v4293, 5
  %v4296 = vsel %vm2596, %v4291, %v4295
  %v4297 = vrot.slane %v3807, 4
  %v4298 = vrot.slane %v3810, 5
  %v4299 = vor.u32 %v4297, %v4298
  %v4300 = vrot.slane %v4299, 4
  %v4301 = vrot.slane %v3819, 5
  %v4302 = vsel %vm2596, %v4300, %v4301
  %v4303 = vrot.slane %v3816, 4
  %v4304 = vor.u32 %v4303, %v4301
  %v4305 = vrot.slane %v4304, 4
  %v4307 = vshll.u32 %v3875, 16
  %v4309 = vrot.slane %v4307, 5
  %v4310 = vsel %vm2596, %v4305, %v4309
  %v4311 = vrot.slane %v3829, 4
  %v4312 = vrot.slane %v3832, 5
  %v4313 = vor.u32 %v4311, %v4312
  %v4314 = vrot.slane %v4313, 4
  %v4315 = vrot.slane %v3841, 5
  %v4316 = vsel %vm2596, %v4314, %v4315
  %v4317 = vrot.slane %v3838, 4
  %v4318 = vor.u32 %v4317, %v4315
  %v4319 = vrot.slane %v4318, 4
  %v4321 = vshll.u32 %v3876, 16
  %v4323 = vrot.slane %v4321, 5
  %v4324 = vsel %vm2596, %v4319, %v4323
  %s4325 = scalar_lea.vmem [#allocation2], 32
  %v4326 = vld [vmem:[%s4325] sm:$0x8]
  %v4327 = vld [vmem:[%s4325 + $0x4] sm:$0xf]
  %v4328 = vld [vmem:[%s4325 + $0x8] sm:$0xf]
  %v4329 = vld [vmem:[%s4325 + $0x10] sm:$0x8]
  %v4330 = vld [vmem:[%s4325 + $0x14] sm:$0xf]
  %v4331 = vld [vmem:[%s4325 + $0x18] sm:$0xf]
  %v4332 = vld [vmem:[%s4325 + $0x20] sm:$0x8]
  %v4333 = vld [vmem:[%s4325 + $0x24] sm:$0xf]
  %v4334 = vld [vmem:[%s4325 + $0x28] sm:$0xf]
  %v4335 = vld [vmem:[%s4325 + $0x30] sm:$0x8]
  %v4336 = vld [vmem:[%s4325 + $0x34] sm:$0xf]
  %v4337 = vld [vmem:[%s4325 + $0x38] sm:$0xf]
  %v4338 = vld [vmem:[%s4325 + $0x40] sm:$0x8]
  %v4339 = vld [vmem:[%s4325 + $0x44] sm:$0xf]
  %v4340 = vld [vmem:[%s4325 + $0x48] sm:$0xf]
  %v4341 = vld [vmem:[%s4325 + $0x50] sm:$0x8]
  %v4342 = vld [vmem:[%s4325 + $0x54] sm:$0xf]
  %v4343 = vld [vmem:[%s4325 + $0x58] sm:$0xf]
  %v4344 = vld [vmem:[%s4325 + $0x60] sm:$0x8]
  %v4345 = vld [vmem:[%s4325 + $0x64] sm:$0xf]
  %v4346 = vld [vmem:[%s4325 + $0x68] sm:$0xf]
  %v4347 = vld [vmem:[%s4325 + $0x70] sm:$0x8]
  %v4348 = vld [vmem:[%s4325 + $0x74] sm:$0xf]
  %v4349 = vld [vmem:[%s4325 + $0x78] sm:$0xf]
  %v4350 = vld [vmem:[%s4325 + $0x80] sm:$0x8]
  %v4351 = vld [vmem:[%s4325 + $0x84] sm:$0xf]
  %v4352 = vld [vmem:[%s4325 + $0x88] sm:$0xf]
  %v4353 = vld [vmem:[%s4325 + $0x90] sm:$0x8]
  %v4354 = vld [vmem:[%s4325 + $0x94] sm:$0xf]
  %v4355 = vld [vmem:[%s4325 + $0x98] sm:$0xf]
  %v4356 = vld [vmem:[%s4325 + $0xa0] sm:$0x8]
  %v4357 = vld [vmem:[%s4325 + $0xa4] sm:$0xf]
  %v4358 = vld [vmem:[%s4325 + $0xa8] sm:$0xf]
  %v4359 = vld [vmem:[%s4325 + $0xb0] sm:$0x8]
  %v4360 = vld [vmem:[%s4325 + $0xb4] sm:$0xf]
  %v4361 = vld [vmem:[%s4325 + $0xb8] sm:$0xf]
  %v4362 = vld [vmem:[%s4325 + $0xc0] sm:$0x8]
  %v4363 = vld [vmem:[%s4325 + $0xc4] sm:$0xf]
  %v4364 = vld [vmem:[%s4325 + $0xc8] sm:$0xf]
  %v4365 = vld [vmem:[%s4325 + $0xd0] sm:$0x8]
  %v4366 = vld [vmem:[%s4325 + $0xd4] sm:$0xf]
  %v4367 = vld [vmem:[%s4325 + $0xd8] sm:$0xf]
  %v4368 = vld [vmem:[%s4325 + $0xe0] sm:$0x8]
  %v4369 = vld [vmem:[%s4325 + $0xe4] sm:$0xf]
  %v4370 = vld [vmem:[%s4325 + $0xe8] sm:$0xf]
  %v4371 = vld [vmem:[%s4325 + $0xf0] sm:$0x8]
  %v4372 = vld [vmem:[%s4325 + $0xf4] sm:$0xf]
  %v4373 = vld [vmem:[%s4325 + $0xf8] sm:$0xf]
  %v4374 = vld [vmem:[%s4325 + $0x120] sm:$0x8]
  %v4375 = vld [vmem:[%s4325 + $0x124] sm:$0xf]
  %v4376 = vld [vmem:[%s4325 + $0x128] sm:$0xf]
  %v4377 = vld [vmem:[%s4325 + $0x130] sm:$0x8]
  %v4378 = vld [vmem:[%s4325 + $0x134] sm:$0xf]
  %v4379 = vld [vmem:[%s4325 + $0x138] sm:$0xf]
  %v4380 = vld [vmem:[%s4325 + $0x140] sm:$0x8]
  %v4381 = vld [vmem:[%s4325 + $0x144] sm:$0xf]
  %v4382 = vld [vmem:[%s4325 + $0x148] sm:$0xf]
  %v4383 = vld [vmem:[%s4325 + $0x150] sm:$0x8]
  %v4384 = vld [vmem:[%s4325 + $0x154] sm:$0xf]
  %v4385 = vld [vmem:[%s4325 + $0x158] sm:$0xf]
  %v4386 = vld [vmem:[%s4325 + $0x160] sm:$0x8]
  %v4387 = vld [vmem:[%s4325 + $0x164] sm:$0xf]
  %v4388 = vld [vmem:[%s4325 + $0x168] sm:$0xf]
  %v4389 = vld [vmem:[%s4325 + $0x170] sm:$0x8]
  %v4390 = vld [vmem:[%s4325 + $0x174] sm:$0xf]
  %v4391 = vld [vmem:[%s4325 + $0x178] sm:$0xf]
  %v4392 = vld [vmem:[%s4325 + $0x180] sm:$0x8]
  %v4393 = vld [vmem:[%s4325 + $0x184] sm:$0xf]
  %v4394 = vld [vmem:[%s4325 + $0x188] sm:$0xf]
  %v4395 = vld [vmem:[%s4325 + $0x190] sm:$0x8]
  %v4396 = vld [vmem:[%s4325 + $0x194] sm:$0xf]
  %v4397 = vld [vmem:[%s4325 + $0x198] sm:$0xf]
  %v4398 = vld [vmem:[%s4325 + $0x1a0] sm:$0x8]
  %v4399 = vld [vmem:[%s4325 + $0x1a4] sm:$0xf]
  %v4400 = vld [vmem:[%s4325 + $0x1a8] sm:$0xf]
  %v4401 = vld [vmem:[%s4325 + $0x1b0] sm:$0x8]
  %v4402 = vld [vmem:[%s4325 + $0x1b4] sm:$0xf]
  %v4403 = vld [vmem:[%s4325 + $0x1b8] sm:$0xf]
  %v4404 = vld [vmem:[%s4325 + $0x1c0] sm:$0x8]
  %v4405 = vld [vmem:[%s4325 + $0x1c4] sm:$0xf]
  %v4406 = vld [vmem:[%s4325 + $0x1c8] sm:$0xf]
  %v4407 = vld [vmem:[%s4325 + $0x1d0] sm:$0x8]
  %v4408 = vld [vmem:[%s4325 + $0x1d4] sm:$0xf]
  %v4409 = vld [vmem:[%s4325 + $0x1d8] sm:$0xf]
  %v4410 = vld [vmem:[%s4325 + $0x1e0] sm:$0x8]
  %v4411 = vld [vmem:[%s4325 + $0x1e4] sm:$0xf]
  %v4412 = vld [vmem:[%s4325 + $0x1e8] sm:$0xf]
  %v4413 = vld [vmem:[%s4325 + $0x1f0] sm:$0x8]
  %v4414 = vld [vmem:[%s4325 + $0x1f4] sm:$0xf]
  %v4415 = vld [vmem:[%s4325 + $0x1f8] sm:$0xf]
  %v4416 = vld [vmem:[%s4325 + $0x200] sm:$0x8]
  %v4417 = vld [vmem:[%s4325 + $0x204] sm:$0xf]
  %v4418 = vld [vmem:[%s4325 + $0x208] sm:$0xf]
  %v4419 = vld [vmem:[%s4325 + $0x210] sm:$0x8]
  %v4420 = vld [vmem:[%s4325 + $0x214] sm:$0xf]
  %v4421 = vld [vmem:[%s4325 + $0x218] sm:$0xf]
  %v4423 = vshrl.u32 %v4326, 16
  %v4425 = vrot.slane %v4423, 7
  %v4426 = vrot.slane %v4425, 4
  %v4428 = vshrl.u32 %v4327, 16
  %v4430 = vrot.slane %v4428, 7
  %v4431 = vshll.u32 %v4327, 16
  %v4433 = vor.u32 %v4430, %v4431
  %v4434 = vsel %vm1857, %v4426, %v4433
  %v4435 = vrot.slane %v4430, 4
  %v4437 = vshrl.u32 %v4328, 16
  %v4439 = vrot.slane %v4437, 7
  %v4440 = vshll.u32 %v4328, 16
  %v4442 = vor.u32 %v4439, %v4440
  %v4443 = vsel %vm1857, %v4435, %v4442
  %v4445 = vshrl.u32 %v4329, 16
  %v4447 = vrot.slane %v4445, 7
  %v4448 = vrot.slane %v4447, 4
  %v4450 = vshrl.u32 %v4330, 16
  %v4452 = vrot.slane %v4450, 7
  %v4453 = vshll.u32 %v4330, 16
  %v4455 = vor.u32 %v4452, %v4453
  %v4456 = vsel %vm1857, %v4448, %v4455
  %v4457 = vrot.slane %v4452, 4
  %v4459 = vshrl.u32 %v4331, 16
  %v4461 = vrot.slane %v4459, 7
  %v4462 = vshll.u32 %v4331, 16
  %v4464 = vor.u32 %v4461, %v4462
  %v4465 = vsel %vm1857, %v4457, %v4464
  %v4467 = vshrl.u32 %v4332, 16
  %v4469 = vrot.slane %v4467, 7
  %v4470 = vrot.slane %v4469, 4
  %v4472 = vshrl.u32 %v4333, 16
  %v4474 = vrot.slane %v4472, 7
  %v4475 = vshll.u32 %v4333, 16
  %v4477 = vor.u32 %v4474, %v4475
  %v4478 = vsel %vm1857, %v4470, %v4477
  %v4479 = vrot.slane %v4474, 4
  %v4481 = vshrl.u32 %v4334, 16
  %v4483 = vrot.slane %v4481, 7
  %v4484 = vshll.u32 %v4334, 16
  %v4486 = vor.u32 %v4483, %v4484
  %v4487 = vsel %vm1857, %v4479, %v4486
  %v4489 = vshrl.u32 %v4335, 16
  %v4491 = vrot.slane %v4489, 7
  %v4492 = vrot.slane %v4491, 4
  %v4494 = vshrl.u32 %v4336, 16
  %v4496 = vrot.slane %v4494, 7
  %v4497 = vshll.u32 %v4336, 16
  %v4499 = vor.u32 %v4496, %v4497
  %v4500 = vsel %vm1857, %v4492, %v4499
  %v4501 = vrot.slane %v4496, 4
  %v4503 = vshrl.u32 %v4337, 16
  %v4505 = vrot.slane %v4503, 7
  %v4506 = vshll.u32 %v4337, 16
  %v4508 = vor.u32 %v4505, %v4506
  %v4509 = vsel %vm1857, %v4501, %v4508
  %v4511 = vshrl.u32 %v4338, 16
  %v4513 = vrot.slane %v4511, 7
  %v4514 = vrot.slane %v4513, 4
  %v4516 = vshrl.u32 %v4339, 16
  %v4518 = vrot.slane %v4516, 7
  %v4519 = vshll.u32 %v4339, 16
  %v4521 = vor.u32 %v4518, %v4519
  %v4522 = vsel %vm1857, %v4514, %v4521
  %v4523 = vrot.slane %v4518, 4
  %v4525 = vshrl.u32 %v4340, 16
  %v4527 = vrot.slane %v4525, 7
  %v4528 = vshll.u32 %v4340, 16
  %v4530 = vor.u32 %v4527, %v4528
  %v4531 = vsel %vm1857, %v4523, %v4530
  %v4533 = vshrl.u32 %v4341, 16
  %v4535 = vrot.slane %v4533, 7
  %v4536 = vrot.slane %v4535, 4
  %v4538 = vshrl.u32 %v4342, 16
  %v4540 = vrot.slane %v4538, 7
  %v4541 = vshll.u32 %v4342, 16
  %v4543 = vor.u32 %v4540, %v4541
  %v4544 = vsel %vm1857, %v4536, %v4543
  %v4545 = vrot.slane %v4540, 4
  %v4547 = vshrl.u32 %v4343, 16
  %v4549 = vrot.slane %v4547, 7
  %v4550 = vshll.u32 %v4343, 16
  %v4552 = vor.u32 %v4549, %v4550
  %v4553 = vsel %vm1857, %v4545, %v4552
  %v4555 = vshrl.u32 %v4344, 16
  %v4557 = vrot.slane %v4555, 7
  %v4558 = vrot.slane %v4557, 4
  %v4560 = vshrl.u32 %v4345, 16
  %v4562 = vrot.slane %v4560, 7
  %v4563 = vshll.u32 %v4345, 16
  %v4565 = vor.u32 %v4562, %v4563
  %v4566 = vsel %vm1857, %v4558, %v4565
  %v4567 = vrot.slane %v4562, 4
  %v4569 = vshrl.u32 %v4346, 16
  %v4571 = vrot.slane %v4569, 7
  %v4572 = vshll.u32 %v4346, 16
  %v4574 = vor.u32 %v4571, %v4572
  %v4575 = vsel %vm1857, %v4567, %v4574
  %v4577 = vshrl.u32 %v4347, 16
  %v4579 = vrot.slane %v4577, 7
  %v4580 = vrot.slane %v4579, 4
  %v4582 = vshrl.u32 %v4348, 16
  %v4584 = vrot.slane %v4582, 7
  %v4585 = vshll.u32 %v4348, 16
  %v4587 = vor.u32 %v4584, %v4585
  %v4588 = vsel %vm1857, %v4580, %v4587
  %v4589 = vrot.slane %v4584, 4
  %v4591 = vshrl.u32 %v4349, 16
  %v4593 = vrot.slane %v4591, 7
  %v4594 = vshll.u32 %v4349, 16
  %v4596 = vor.u32 %v4593, %v4594
  %v4597 = vsel %vm1857, %v4589, %v4596
  %v4599 = vshrl.u32 %v4350, 16
  %v4601 = vrot.slane %v4599, 7
  %v4602 = vrot.slane %v4601, 4
  %v4604 = vshrl.u32 %v4351, 16
  %v4606 = vrot.slane %v4604, 7
  %v4607 = vshll.u32 %v4351, 16
  %v4609 = vor.u32 %v4606, %v4607
  %v4610 = vsel %vm1857, %v4602, %v4609
  %v4611 = vrot.slane %v4606, 4
  %v4613 = vshrl.u32 %v4352, 16
  %v4615 = vrot.slane %v4613, 7
  %v4616 = vshll.u32 %v4352, 16
  %v4618 = vor.u32 %v4615, %v4616
  %v4619 = vsel %vm1857, %v4611, %v4618
  %v4621 = vshrl.u32 %v4353, 16
  %v4623 = vrot.slane %v4621, 7
  %v4624 = vrot.slane %v4623, 4
  %v4626 = vshrl.u32 %v4354, 16
  %v4628 = vrot.slane %v4626, 7
  %v4629 = vshll.u32 %v4354, 16
  %v4631 = vor.u32 %v4628, %v4629
  %v4632 = vsel %vm1857, %v4624, %v4631
  %v4633 = vrot.slane %v4628, 4
  %v4635 = vshrl.u32 %v4355, 16
  %v4637 = vrot.slane %v4635, 7
  %v4638 = vshll.u32 %v4355, 16
  %v4640 = vor.u32 %v4637, %v4638
  %v4641 = vsel %vm1857, %v4633, %v4640
  %v4643 = vshrl.u32 %v4356, 16
  %v4645 = vrot.slane %v4643, 7
  %v4646 = vrot.slane %v4645, 4
  %v4648 = vshrl.u32 %v4357, 16
  %v4650 = vrot.slane %v4648, 7
  %v4651 = vshll.u32 %v4357, 16
  %v4653 = vor.u32 %v4650, %v4651
  %v4654 = vsel %vm1857, %v4646, %v4653
  %v4655 = vrot.slane %v4650, 4
  %v4657 = vshrl.u32 %v4358, 16
  %v4659 = vrot.slane %v4657, 7
  %v4660 = vshll.u32 %v4358, 16
  %v4662 = vor.u32 %v4659, %v4660
  %v4663 = vsel %vm1857, %v4655, %v4662
  %v4665 = vshrl.u32 %v4359, 16
  %v4667 = vrot.slane %v4665, 7
  %v4668 = vrot.slane %v4667, 4
  %v4670 = vshrl.u32 %v4360, 16
  %v4672 = vrot.slane %v4670, 7
  %v4673 = vshll.u32 %v4360, 16
  %v4675 = vor.u32 %v4672, %v4673
  %v4676 = vsel %vm1857, %v4668, %v4675
  %v4677 = vrot.slane %v4672, 4
  %v4679 = vshrl.u32 %v4361, 16
  %v4681 = vrot.slane %v4679, 7
  %v4682 = vshll.u32 %v4361, 16
  %v4684 = vor.u32 %v4681, %v4682
  %v4685 = vsel %vm1857, %v4677, %v4684
  %v4687 = vshrl.u32 %v4362, 16
  %v4689 = vrot.slane %v4687, 7
  %v4690 = vrot.slane %v4689, 4
  %v4692 = vshrl.u32 %v4363, 16
  %v4694 = vrot.slane %v4692, 7
  %v4695 = vshll.u32 %v4363, 16
  %v4697 = vor.u32 %v4694, %v4695
  %v4698 = vsel %vm1857, %v4690, %v4697
  %v4699 = vrot.slane %v4694, 4
  %v4701 = vshrl.u32 %v4364, 16
  %v4703 = vrot.slane %v4701, 7
  %v4704 = vshll.u32 %v4364, 16
  %v4706 = vor.u32 %v4703, %v4704
  %v4707 = vsel %vm1857, %v4699, %v4706
  %v4709 = vshrl.u32 %v4365, 16
  %v4711 = vrot.slane %v4709, 7
  %v4712 = vrot.slane %v4711, 4
  %v4714 = vshrl.u32 %v4366, 16
  %v4716 = vrot.slane %v4714, 7
  %v4717 = vshll.u32 %v4366, 16
  %v4719 = vor.u32 %v4716, %v4717
  %v4720 = vsel %vm1857, %v4712, %v4719
  %v4721 = vrot.slane %v4716, 4
  %v4723 = vshrl.u32 %v4367, 16
  %v4725 = vrot.slane %v4723, 7
  %v4726 = vshll.u32 %v4367, 16
  %v4728 = vor.u32 %v4725, %v4726
  %v4729 = vsel %vm1857, %v4721, %v4728
  %v4731 = vshrl.u32 %v4368, 16
  %v4733 = vrot.slane %v4731, 7
  %v4734 = vrot.slane %v4733, 4
  %v4736 = vshrl.u32 %v4369, 16
  %v4738 = vrot.slane %v4736, 7
  %v4739 = vshll.u32 %v4369, 16
  %v4741 = vor.u32 %v4738, %v4739
  %v4742 = vsel %vm1857, %v4734, %v4741
  %v4743 = vrot.slane %v4738, 4
  %v4745 = vshrl.u32 %v4370, 16
  %v4747 = vrot.slane %v4745, 7
  %v4748 = vshll.u32 %v4370, 16
  %v4750 = vor.u32 %v4747, %v4748
  %v4751 = vsel %vm1857, %v4743, %v4750
  %v4753 = vshrl.u32 %v4371, 16
  %v4755 = vrot.slane %v4753, 7
  %v4756 = vrot.slane %v4755, 4
  %v4758 = vshrl.u32 %v4372, 16
  %v4760 = vrot.slane %v4758, 7
  %v4761 = vshll.u32 %v4372, 16
  %v4763 = vor.u32 %v4760, %v4761
  %v4764 = vsel %vm1857, %v4756, %v4763
  %v4765 = vrot.slane %v4760, 4
  %v4767 = vshrl.u32 %v4373, 16
  %v4769 = vrot.slane %v4767, 7
  %v4770 = vshll.u32 %v4373, 16
  %v4772 = vor.u32 %v4769, %v4770
  %v4773 = vsel %vm1857, %v4765, %v4772
  %v4775 = vshrl.u32 %v4374, 16
  %v4777 = vrot.slane %v4775, 7
  %v4778 = vrot.slane %v4777, 4
  %v4780 = vshrl.u32 %v4375, 16
  %v4782 = vrot.slane %v4780, 7
  %v4783 = vshll.u32 %v4375, 16
  %v4785 = vor.u32 %v4782, %v4783
  %v4786 = vsel %vm1857, %v4778, %v4785
  %v4787 = vrot.slane %v4782, 4
  %v4789 = vshrl.u32 %v4376, 16
  %v4791 = vrot.slane %v4789, 7
  %v4792 = vshll.u32 %v4376, 16
  %v4794 = vor.u32 %v4791, %v4792
  %v4795 = vsel %vm1857, %v4787, %v4794
  %v4797 = vshrl.u32 %v4377, 16
  %v4799 = vrot.slane %v4797, 7
  %v4800 = vrot.slane %v4799, 4
  %v4802 = vshrl.u32 %v4378, 16
  %v4804 = vrot.slane %v4802, 7
  %v4805 = vshll.u32 %v4378, 16
  %v4807 = vor.u32 %v4804, %v4805
  %v4808 = vsel %vm1857, %v4800, %v4807
  %v4809 = vrot.slane %v4804, 4
  %v4811 = vshrl.u32 %v4379, 16
  %v4813 = vrot.slane %v4811, 7
  %v4814 = vshll.u32 %v4379, 16
  %v4816 = vor.u32 %v4813, %v4814
  %v4817 = vsel %vm1857, %v4809, %v4816
  %v4819 = vshrl.u32 %v4380, 16
  %v4821 = vrot.slane %v4819, 7
  %v4822 = vrot.slane %v4821, 4
  %v4824 = vshrl.u32 %v4381, 16
  %v4826 = vrot.slane %v4824, 7
  %v4827 = vshll.u32 %v4381, 16
  %v4829 = vor.u32 %v4826, %v4827
  %v4830 = vsel %vm1857, %v4822, %v4829
  %v4831 = vrot.slane %v4826, 4
  %v4833 = vshrl.u32 %v4382, 16
  %v4835 = vrot.slane %v4833, 7
  %v4836 = vshll.u32 %v4382, 16
  %v4838 = vor.u32 %v4835, %v4836
  %v4839 = vsel %vm1857, %v4831, %v4838
  %v4841 = vshrl.u32 %v4383, 16
  %v4843 = vrot.slane %v4841, 7
  %v4844 = vrot.slane %v4843, 4
  %v4846 = vshrl.u32 %v4384, 16
  %v4848 = vrot.slane %v4846, 7
  %v4849 = vshll.u32 %v4384, 16
  %v4851 = vor.u32 %v4848, %v4849
  %v4852 = vsel %vm1857, %v4844, %v4851
  %v4853 = vrot.slane %v4848, 4
  %v4855 = vshrl.u32 %v4385, 16
  %v4857 = vrot.slane %v4855, 7
  %v4858 = vshll.u32 %v4385, 16
  %v4860 = vor.u32 %v4857, %v4858
  %v4861 = vsel %vm1857, %v4853, %v4860
  %v4863 = vshrl.u32 %v4386, 16
  %v4865 = vrot.slane %v4863, 7
  %v4866 = vrot.slane %v4865, 4
  %v4868 = vshrl.u32 %v4387, 16
  %v4870 = vrot.slane %v4868, 7
  %v4871 = vshll.u32 %v4387, 16
  %v4873 = vor.u32 %v4870, %v4871
  %v4874 = vsel %vm1857, %v4866, %v4873
  %v4875 = vrot.slane %v4870, 4
  %v4877 = vshrl.u32 %v4388, 16
  %v4879 = vrot.slane %v4877, 7
  %v4880 = vshll.u32 %v4388, 16
  %v4882 = vor.u32 %v4879, %v4880
  %v4883 = vsel %vm1857, %v4875, %v4882
  %v4885 = vshrl.u32 %v4389, 16
  %v4887 = vrot.slane %v4885, 7
  %v4888 = vrot.slane %v4887, 4
  %v4890 = vshrl.u32 %v4390, 16
  %v4892 = vrot.slane %v4890, 7
  %v4893 = vshll.u32 %v4390, 16
  %v4895 = vor.u32 %v4892, %v4893
  %v4896 = vsel %vm1857, %v4888, %v4895
  %v4897 = vrot.slane %v4892, 4
  %v4899 = vshrl.u32 %v4391, 16
  %v4901 = vrot.slane %v4899, 7
  %v4902 = vshll.u32 %v4391, 16
  %v4904 = vor.u32 %v4901, %v4902
  %v4905 = vsel %vm1857, %v4897, %v4904
  %v4907 = vshrl.u32 %v4392, 16
  %v4909 = vrot.slane %v4907, 7
  %v4910 = vrot.slane %v4909, 4
  %v4912 = vshrl.u32 %v4393, 16
  %v4914 = vrot.slane %v4912, 7
  %v4915 = vshll.u32 %v4393, 16
  %v4917 = vor.u32 %v4914, %v4915
  %v4918 = vsel %vm1857, %v4910, %v4917
  %v4919 = vrot.slane %v4914, 4
  %v4921 = vshrl.u32 %v4394, 16
  %v4923 = vrot.slane %v4921, 7
  %v4924 = vshll.u32 %v4394, 16
  %v4926 = vor.u32 %v4923, %v4924
  %v4927 = vsel %vm1857, %v4919, %v4926
  %v4929 = vshrl.u32 %v4395, 16
  %v4931 = vrot.slane %v4929, 7
  %v4932 = vrot.slane %v4931, 4
  %v4934 = vshrl.u32 %v4396, 16
  %v4936 = vrot.slane %v4934, 7
  %v4937 = vshll.u32 %v4396, 16
  %v4939 = vor.u32 %v4936, %v4937
  %v4940 = vsel %vm1857, %v4932, %v4939
  %v4941 = vrot.slane %v4936, 4
  %v4943 = vshrl.u32 %v4397, 16
  %v4945 = vrot.slane %v4943, 7
  %v4946 = vshll.u32 %v4397, 16
  %v4948 = vor.u32 %v4945, %v4946
  %v4949 = vsel %vm1857, %v4941, %v4948
  %v4951 = vshrl.u32 %v4398, 16
  %v4953 = vrot.slane %v4951, 7
  %v4954 = vrot.slane %v4953, 4
  %v4956 = vshrl.u32 %v4399, 16
  %v4958 = vrot.slane %v4956, 7
  %v4959 = vshll.u32 %v4399, 16
  %v4961 = vor.u32 %v4958, %v4959
  %v4962 = vsel %vm1857, %v4954, %v4961
  %v4963 = vrot.slane %v4958, 4
  %v4965 = vshrl.u32 %v4400, 16
  %v4967 = vrot.slane %v4965, 7
  %v4968 = vshll.u32 %v4400, 16
  %v4970 = vor.u32 %v4967, %v4968
  %v4971 = vsel %vm1857, %v4963, %v4970
  %v4973 = vshrl.u32 %v4401, 16
  %v4975 = vrot.slane %v4973, 7
  %v4976 = vrot.slane %v4975, 4
  %v4978 = vshrl.u32 %v4402, 16
  %v4980 = vrot.slane %v4978, 7
  %v4981 = vshll.u32 %v4402, 16
  %v4983 = vor.u32 %v4980, %v4981
  %v4984 = vsel %vm1857, %v4976, %v4983
  %v4985 = vrot.slane %v4980, 4
  %v4987 = vshrl.u32 %v4403, 16
  %v4989 = vrot.slane %v4987, 7
  %v4990 = vshll.u32 %v4403, 16
  %v4992 = vor.u32 %v4989, %v4990
  %v4993 = vsel %vm1857, %v4985, %v4992
  %v4995 = vshrl.u32 %v4404, 16
  %v4997 = vrot.slane %v4995, 7
  %v4998 = vrot.slane %v4997, 4
  %v5000 = vshrl.u32 %v4405, 16
  %v5002 = vrot.slane %v5000, 7
  %v5003 = vshll.u32 %v4405, 16
  %v5005 = vor.u32 %v5002, %v5003
  %v5006 = vsel %vm1857, %v4998, %v5005
  %v5007 = vrot.slane %v5002, 4
  %v5009 = vshrl.u32 %v4406, 16
  %v5011 = vrot.slane %v5009, 7
  %v5012 = vshll.u32 %v4406, 16
  %v5014 = vor.u32 %v5011, %v5012
  %v5015 = vsel %vm1857, %v5007, %v5014
  %v5017 = vshrl.u32 %v4407, 16
  %v5019 = vrot.slane %v5017, 7
  %v5020 = vrot.slane %v5019, 4
  %v5022 = vshrl.u32 %v4408, 16
  %v5024 = vrot.slane %v5022, 7
  %v5025 = vshll.u32 %v4408, 16
  %v5027 = vor.u32 %v5024, %v5025
  %v5028 = vsel %vm1857, %v5020, %v5027
  %v5029 = vrot.slane %v5024, 4
  %v5031 = vshrl.u32 %v4409, 16
  %v5033 = vrot.slane %v5031, 7
  %v5034 = vshll.u32 %v4409, 16
  %v5036 = vor.u32 %v5033, %v5034
  %v5037 = vsel %vm1857, %v5029, %v5036
  %v5039 = vshrl.u32 %v4410, 16
  %v5041 = vrot.slane %v5039, 7
  %v5042 = vrot.slane %v5041, 4
  %v5044 = vshrl.u32 %v4411, 16
  %v5046 = vrot.slane %v5044, 7
  %v5047 = vshll.u32 %v4411, 16
  %v5049 = vor.u32 %v5046, %v5047
  %v5050 = vsel %vm1857, %v5042, %v5049
  %v5051 = vrot.slane %v5046, 4
  %v5053 = vshrl.u32 %v4412, 16
  %v5055 = vrot.slane %v5053, 7
  %v5056 = vshll.u32 %v4412, 16
  %v5058 = vor.u32 %v5055, %v5056
  %v5059 = vsel %vm1857, %v5051, %v5058
  %v5061 = vshrl.u32 %v4413, 16
  %v5063 = vrot.slane %v5061, 7
  %v5064 = vrot.slane %v5063, 4
  %v5066 = vshrl.u32 %v4414, 16
  %v5068 = vrot.slane %v5066, 7
  %v5069 = vshll.u32 %v4414, 16
  %v5071 = vor.u32 %v5068, %v5069
  %v5072 = vsel %vm1857, %v5064, %v5071
  %v5073 = vrot.slane %v5068, 4
  %v5075 = vshrl.u32 %v4415, 16
  %v5077 = vrot.slane %v5075, 7
  %v5078 = vshll.u32 %v4415, 16
  %v5080 = vor.u32 %v5077, %v5078
  %v5081 = vsel %vm1857, %v5073, %v5080
  %v5083 = vshrl.u32 %v4416, 16
  %v5085 = vrot.slane %v5083, 7
  %v5086 = vrot.slane %v5085, 4
  %v5088 = vshrl.u32 %v4417, 16
  %v5090 = vrot.slane %v5088, 7
  %v5091 = vshll.u32 %v4417, 16
  %v5093 = vor.u32 %v5090, %v5091
  %v5094 = vsel %vm1857, %v5086, %v5093
  %v5095 = vrot.slane %v5090, 4
  %v5097 = vshrl.u32 %v4418, 16
  %v5099 = vrot.slane %v5097, 7
  %v5100 = vshll.u32 %v4418, 16
  %v5102 = vor.u32 %v5099, %v5100
  %v5103 = vsel %vm1857, %v5095, %v5102
  %v5105 = vshrl.u32 %v4419, 16
  %v5107 = vrot.slane %v5105, 7
  %v5108 = vrot.slane %v5107, 4
  %v5110 = vshrl.u32 %v4420, 16
  %v5112 = vrot.slane %v5110, 7
  %v5113 = vshll.u32 %v4420, 16
  %v5115 = vor.u32 %v5112, %v5113
  %v5116 = vsel %vm1857, %v5108, %v5115
  %v5117 = vrot.slane %v5112, 4
  %v5119 = vshrl.u32 %v4421, 16
  %v5121 = vrot.slane %v5119, 7
  %v5122 = vshll.u32 %v4421, 16
  %v5124 = vor.u32 %v5121, %v5122
  %v5125 = vsel %vm1857, %v5117, %v5124
  %v5126 = vld [vmem:[%s4325 + $0xc] sm:$0x1]
  %v5127 = vld [vmem:[%s4325 + $0x1c] sm:$0x1]
  %v5128 = vld [vmem:[%s4325 + $0x2c] sm:$0x1]
  %v5129 = vld [vmem:[%s4325 + $0x3c] sm:$0x1]
  %v5130 = vld [vmem:[%s4325 + $0x4c] sm:$0x1]
  %v5131 = vld [vmem:[%s4325 + $0x5c] sm:$0x1]
  %v5132 = vld [vmem:[%s4325 + $0x6c] sm:$0x1]
  %v5133 = vld [vmem:[%s4325 + $0x7c] sm:$0x1]
  %v5134 = vld [vmem:[%s4325 + $0x8c] sm:$0x1]
  %v5135 = vld [vmem:[%s4325 + $0x9c] sm:$0x1]
  %v5136 = vld [vmem:[%s4325 + $0xac] sm:$0x1]
  %v5137 = vld [vmem:[%s4325 + $0xbc] sm:$0x1]
  %v5138 = vld [vmem:[%s4325 + $0xcc] sm:$0x1]
  %v5139 = vld [vmem:[%s4325 + $0xdc] sm:$0x1]
  %v5140 = vld [vmem:[%s4325 + $0xec] sm:$0x1]
  %v5141 = vld [vmem:[%s4325 + $0xfc] sm:$0x1]
  %v5142 = vld [vmem:[%s4325 + $0x12c] sm:$0x1]
  %v5143 = vld [vmem:[%s4325 + $0x13c] sm:$0x1]
  %v5144 = vld [vmem:[%s4325 + $0x14c] sm:$0x1]
  %v5145 = vld [vmem:[%s4325 + $0x15c] sm:$0x1]
  %v5146 = vld [vmem:[%s4325 + $0x16c] sm:$0x1]
  %v5147 = vld [vmem:[%s4325 + $0x17c] sm:$0x1]
  %v5148 = vld [vmem:[%s4325 + $0x18c] sm:$0x1]
  %v5149 = vld [vmem:[%s4325 + $0x19c] sm:$0x1]
  %v5150 = vld [vmem:[%s4325 + $0x1ac] sm:$0x1]
  %v5151 = vld [vmem:[%s4325 + $0x1bc] sm:$0x1]
  %v5152 = vld [vmem:[%s4325 + $0x1cc] sm:$0x1]
  %v5153 = vld [vmem:[%s4325 + $0x1dc] sm:$0x1]
  %v5154 = vld [vmem:[%s4325 + $0x1ec] sm:$0x1]
  %v5155 = vld [vmem:[%s4325 + $0x1fc] sm:$0x1]
  %v5156 = vld [vmem:[%s4325 + $0x20c] sm:$0x1]
  %v5157 = vld [vmem:[%s4325 + $0x21c] sm:$0x1]
  %v5158 = vrot.slane %v4428, 4
  %v5159 = vrot.slane %v4431, 5
  %v5160 = vor.u32 %v5158, %v5159
  %v5161 = vrot.slane %v5160, 4
  %v5162 = vrot.slane %v4440, 5
  %v5163 = vsel %vm2596, %v5161, %v5162
  %v5164 = vrot.slane %v4437, 4
  %v5165 = vor.u32 %v5164, %v5162
  %v5166 = vrot.slane %v5165, 4
  %v5168 = vshll.u32 %v5126, 16
  %v5170 = vrot.slane %v5168, 5
  %v5171 = vsel %vm2596, %v5166, %v5170
  %v5172 = vrot.slane %v4450, 4
  %v5173 = vrot.slane %v4453, 5
  %v5174 = vor.u32 %v5172, %v5173
  %v5175 = vrot.slane %v5174, 4
  %v5176 = vrot.slane %v4462, 5
  %v5177 = vsel %vm2596, %v5175, %v5176
  %v5178 = vrot.slane %v4459, 4
  %v5179 = vor.u32 %v5178, %v5176
  %v5180 = vrot.slane %v5179, 4
  %v5182 = vshll.u32 %v5127, 16
  %v5184 = vrot.slane %v5182, 5
  %v5185 = vsel %vm2596, %v5180, %v5184
  %v5186 = vrot.slane %v4472, 4
  %v5187 = vrot.slane %v4475, 5
  %v5188 = vor.u32 %v5186, %v5187
  %v5189 = vrot.slane %v5188, 4
  %v5190 = vrot.slane %v4484, 5
  %v5191 = vsel %vm2596, %v5189, %v5190
  %v5192 = vrot.slane %v4481, 4
  %v5193 = vor.u32 %v5192, %v5190
  %v5194 = vrot.slane %v5193, 4
  %v5196 = vshll.u32 %v5128, 16
  %v5198 = vrot.slane %v5196, 5
  %v5199 = vsel %vm2596, %v5194, %v5198
  %v5200 = vrot.slane %v4494, 4
  %v5201 = vrot.slane %v4497, 5
  %v5202 = vor.u32 %v5200, %v5201
  %v5203 = vrot.slane %v5202, 4
  %v5204 = vrot.slane %v4506, 5
  %v5205 = vsel %vm2596, %v5203, %v5204
  %v5206 = vrot.slane %v4503, 4
  %v5207 = vor.u32 %v5206, %v5204
  %v5208 = vrot.slane %v5207, 4
  %v5210 = vshll.u32 %v5129, 16
  %v5212 = vrot.slane %v5210, 5
  %v5213 = vsel %vm2596, %v5208, %v5212
  %v5214 = vrot.slane %v4516, 4
  %v5215 = vrot.slane %v4519, 5
  %v5216 = vor.u32 %v5214, %v5215
  %v5217 = vrot.slane %v5216, 4
  %v5218 = vrot.slane %v4528, 5
  %v5219 = vsel %vm2596, %v5217, %v5218
  %v5220 = vrot.slane %v4525, 4
  %v5221 = vor.u32 %v5220, %v5218
  %v5222 = vrot.slane %v5221, 4
  %v5224 = vshll.u32 %v5130, 16
  %v5226 = vrot.slane %v5224, 5
  %v5227 = vsel %vm2596, %v5222, %v5226
  %v5228 = vrot.slane %v4538, 4
  %v5229 = vrot.slane %v4541, 5
  %v5230 = vor.u32 %v5228, %v5229
  %v5231 = vrot.slane %v5230, 4
  %v5232 = vrot.slane %v4550, 5
  %v5233 = vsel %vm2596, %v5231, %v5232
  %v5234 = vrot.slane %v4547, 4
  %v5235 = vor.u32 %v5234, %v5232
  %v5236 = vrot.slane %v5235, 4
  %v5238 = vshll.u32 %v5131, 16
  %v5240 = vrot.slane %v5238, 5
  %v5241 = vsel %vm2596, %v5236, %v5240
  %v5242 = vrot.slane %v4560, 4
  %v5243 = vrot.slane %v4563, 5
  %v5244 = vor.u32 %v5242, %v5243
  %v5245 = vrot.slane %v5244, 4
  %v5246 = vrot.slane %v4572, 5
  %v5247 = vsel %vm2596, %v5245, %v5246
  %v5248 = vrot.slane %v4569, 4
  %v5249 = vor.u32 %v5248, %v5246
  %v5250 = vrot.slane %v5249, 4
  %v5252 = vshll.u32 %v5132, 16
  %v5254 = vrot.slane %v5252, 5
  %v5255 = vsel %vm2596, %v5250, %v5254
  %v5256 = vrot.slane %v4582, 4
  %v5257 = vrot.slane %v4585, 5
  %v5258 = vor.u32 %v5256, %v5257
  %v5259 = vrot.slane %v5258, 4
  %v5260 = vrot.slane %v4594, 5
  %v5261 = vsel %vm2596, %v5259, %v5260
  %v5262 = vrot.slane %v4591, 4
  %v5263 = vor.u32 %v5262, %v5260
  %v5264 = vrot.slane %v5263, 4
  %v5266 = vshll.u32 %v5133, 16
  %v5268 = vrot.slane %v5266, 5
  %v5269 = vsel %vm2596, %v5264, %v5268
  %v5270 = vrot.slane %v4604, 4
  %v5271 = vrot.slane %v4607, 5
  %v5272 = vor.u32 %v5270, %v5271
  %v5273 = vrot.slane %v5272, 4
  %v5274 = vrot.slane %v4616, 5
  %v5275 = vsel %vm2596, %v5273, %v5274
  %v5276 = vrot.slane %v4613, 4
  %v5277 = vor.u32 %v5276, %v5274
  %v5278 = vrot.slane %v5277, 4
  %v5280 = vshll.u32 %v5134, 16
  %v5282 = vrot.slane %v5280, 5
  %v5283 = vsel %vm2596, %v5278, %v5282
  %v5284 = vrot.slane %v4626, 4
  %v5285 = vrot.slane %v4629, 5
  %v5286 = vor.u32 %v5284, %v5285
  %v5287 = vrot.slane %v5286, 4
  %v5288 = vrot.slane %v4638, 5
  %v5289 = vsel %vm2596, %v5287, %v5288
  %v5290 = vrot.slane %v4635, 4
  %v5291 = vor.u32 %v5290, %v5288
  %v5292 = vrot.slane %v5291, 4
  %v5294 = vshll.u32 %v5135, 16
  %v5296 = vrot.slane %v5294, 5
  %v5297 = vsel %vm2596, %v5292, %v5296
  %v5298 = vrot.slane %v4648, 4
  %v5299 = vrot.slane %v4651, 5
  %v5300 = vor.u32 %v5298, %v5299
  %v5301 = vrot.slane %v5300, 4
  %v5302 = vrot.slane %v4660, 5
  %v5303 = vsel %vm2596, %v5301, %v5302
  %v5304 = vrot.slane %v4657, 4
  %v5305 = vor.u32 %v5304, %v5302
  %v5306 = vrot.slane %v5305, 4
  %v5308 = vshll.u32 %v5136, 16
  %v5310 = vrot.slane %v5308, 5
  %v5311 = vsel %vm2596, %v5306, %v5310
  %v5312 = vrot.slane %v4670, 4
  %v5313 = vrot.slane %v4673, 5
  %v5314 = vor.u32 %v5312, %v5313
  %v5315 = vrot.slane %v5314, 4
  %v5316 = vrot.slane %v4682, 5
  %v5317 = vsel %vm2596, %v5315, %v5316
  %v5318 = vrot.slane %v4679, 4
  %v5319 = vor.u32 %v5318, %v5316
  %v5320 = vrot.slane %v5319, 4
  %v5322 = vshll.u32 %v5137, 16
  %v5324 = vrot.slane %v5322, 5
  %v5325 = vsel %vm2596, %v5320, %v5324
  %v5326 = vrot.slane %v4692, 4
  %v5327 = vrot.slane %v4695, 5
  %v5328 = vor.u32 %v5326, %v5327
  %v5329 = vrot.slane %v5328, 4
  %v5330 = vrot.slane %v4704, 5
  %v5331 = vsel %vm2596, %v5329, %v5330
  %v5332 = vrot.slane %v4701, 4
  %v5333 = vor.u32 %v5332, %v5330
  %v5334 = vrot.slane %v5333, 4
  %v5336 = vshll.u32 %v5138, 16
  %v5338 = vrot.slane %v5336, 5
  %v5339 = vsel %vm2596, %v5334, %v5338
  %v5340 = vrot.slane %v4714, 4
  %v5341 = vrot.slane %v4717, 5
  %v5342 = vor.u32 %v5340, %v5341
  %v5343 = vrot.slane %v5342, 4
  %v5344 = vrot.slane %v4726, 5
  %v5345 = vsel %vm2596, %v5343, %v5344
  %v5346 = vrot.slane %v4723, 4
  %v5347 = vor.u32 %v5346, %v5344
  %v5348 = vrot.slane %v5347, 4
  %v5350 = vshll.u32 %v5139, 16
  %v5352 = vrot.slane %v5350, 5
  %v5353 = vsel %vm2596, %v5348, %v5352
  %v5354 = vrot.slane %v4736, 4
  %v5355 = vrot.slane %v4739, 5
  %v5356 = vor.u32 %v5354, %v5355
  %v5357 = vrot.slane %v5356, 4
  %v5358 = vrot.slane %v4748, 5
  %v5359 = vsel %vm2596, %v5357, %v5358
  %v5360 = vrot.slane %v4745, 4
  %v5361 = vor.u32 %v5360, %v5358
  %v5362 = vrot.slane %v5361, 4
  %v5364 = vshll.u32 %v5140, 16
  %v5366 = vrot.slane %v5364, 5
  %v5367 = vsel %vm2596, %v5362, %v5366
  %v5368 = vrot.slane %v4758, 4
  %v5369 = vrot.slane %v4761, 5
  %v5370 = vor.u32 %v5368, %v5369
  %v5371 = vrot.slane %v5370, 4
  %v5372 = vrot.slane %v4770, 5
  %v5373 = vsel %vm2596, %v5371, %v5372
  %v5374 = vrot.slane %v4767, 4
  %v5375 = vor.u32 %v5374, %v5372
  %v5376 = vrot.slane %v5375, 4
  %v5378 = vshll.u32 %v5141, 16
  %v5380 = vrot.slane %v5378, 5
  %v5381 = vsel %vm2596, %v5376, %v5380
  %v5382 = vrot.slane %v4780, 4
  %v5383 = vrot.slane %v4783, 5
  %v5384 = vor.u32 %v5382, %v5383
  %v5385 = vrot.slane %v5384, 4
  %v5386 = vrot.slane %v4792, 5
  %v5387 = vsel %vm2596, %v5385, %v5386
  %v5388 = vrot.slane %v4789, 4
  %v5389 = vor.u32 %v5388, %v5386
  %v5390 = vrot.slane %v5389, 4
  %v5392 = vshll.u32 %v5142, 16
  %v5394 = vrot.slane %v5392, 5
  %v5395 = vsel %vm2596, %v5390, %v5394
  %v5396 = vrot.slane %v4802, 4
  %v5397 = vrot.slane %v4805, 5
  %v5398 = vor.u32 %v5396, %v5397
  %v5399 = vrot.slane %v5398, 4
  %v5400 = vrot.slane %v4814, 5
  %v5401 = vsel %vm2596, %v5399, %v5400
  %v5402 = vrot.slane %v4811, 4
  %v5403 = vor.u32 %v5402, %v5400
  %v5404 = vrot.slane %v5403, 4
  %v5406 = vshll.u32 %v5143, 16
  %v5408 = vrot.slane %v5406, 5
  %v5409 = vsel %vm2596, %v5404, %v5408
  %v5410 = vrot.slane %v4824, 4
  %v5411 = vrot.slane %v4827, 5
  %v5412 = vor.u32 %v5410, %v5411
  %v5413 = vrot.slane %v5412, 4
  %v5414 = vrot.slane %v4836, 5
  %v5415 = vsel %vm2596, %v5413, %v5414
  %v5416 = vrot.slane %v4833, 4
  %v5417 = vor.u32 %v5416, %v5414
  %v5418 = vrot.slane %v5417, 4
  %v5420 = vshll.u32 %v5144, 16
  %v5422 = vrot.slane %v5420, 5
  %v5423 = vsel %vm2596, %v5418, %v5422
  %v5424 = vrot.slane %v4846, 4
  %v5425 = vrot.slane %v4849, 5
  %v5426 = vor.u32 %v5424, %v5425
  %v5427 = vrot.slane %v5426, 4
  %v5428 = vrot.slane %v4858, 5
  %v5429 = vsel %vm2596, %v5427, %v5428
  %v5430 = vrot.slane %v4855, 4
  %v5431 = vor.u32 %v5430, %v5428
  %v5432 = vrot.slane %v5431, 4
  %v5434 = vshll.u32 %v5145, 16
  %v5436 = vrot.slane %v5434, 5
  %v5437 = vsel %vm2596, %v5432, %v5436
  %v5438 = vrot.slane %v4868, 4
  %v5439 = vrot.slane %v4871, 5
  %v5440 = vor.u32 %v5438, %v5439
  %v5441 = vrot.slane %v5440, 4
  %v5442 = vrot.slane %v4880, 5
  %v5443 = vsel %vm2596, %v5441, %v5442
  %v5444 = vrot.slane %v4877, 4
  %v5445 = vor.u32 %v5444, %v5442
  %v5446 = vrot.slane %v5445, 4
  %v5448 = vshll.u32 %v5146, 16
  %v5450 = vrot.slane %v5448, 5
  %v5451 = vsel %vm2596, %v5446, %v5450
  %v5452 = vrot.slane %v4890, 4
  %v5453 = vrot.slane %v4893, 5
  %v5454 = vor.u32 %v5452, %v5453
  %v5455 = vrot.slane %v5454, 4
  %v5456 = vrot.slane %v4902, 5
  %v5457 = vsel %vm2596, %v5455, %v5456
  %v5458 = vrot.slane %v4899, 4
  %v5459 = vor.u32 %v5458, %v5456
  %v5460 = vrot.slane %v5459, 4
  %v5462 = vshll.u32 %v5147, 16
  %v5464 = vrot.slane %v5462, 5
  %v5465 = vsel %vm2596, %v5460, %v5464
  %v5466 = vrot.slane %v4912, 4
  %v5467 = vrot.slane %v4915, 5
  %v5468 = vor.u32 %v5466, %v5467
  %v5469 = vrot.slane %v5468, 4
  %v5470 = vrot.slane %v4924, 5
  %v5471 = vsel %vm2596, %v5469, %v5470
  %v5472 = vrot.slane %v4921, 4
  %v5473 = vor.u32 %v5472, %v5470
  %v5474 = vrot.slane %v5473, 4
  %v5476 = vshll.u32 %v5148, 16
  %v5478 = vrot.slane %v5476, 5
  %v5479 = vsel %vm2596, %v5474, %v5478
  %v5480 = vrot.slane %v4934, 4
  %v5481 = vrot.slane %v4937, 5
  %v5482 = vor.u32 %v5480, %v5481
  %v5483 = vrot.slane %v5482, 4
  %v5484 = vrot.slane %v4946, 5
  %v5485 = vsel %vm2596, %v5483, %v5484
  %v5486 = vrot.slane %v4943, 4
  %v5487 = vor.u32 %v5486, %v5484
  %v5488 = vrot.slane %v5487, 4
  %v5490 = vshll.u32 %v5149, 16
  %v5492 = vrot.slane %v5490, 5
  %v5493 = vsel %vm2596, %v5488, %v5492
  %v5494 = vrot.slane %v4956, 4
  %v5495 = vrot.slane %v4959, 5
  %v5496 = vor.u32 %v5494, %v5495
  %v5497 = vrot.slane %v5496, 4
  %v5498 = vrot.slane %v4968, 5
  %v5499 = vsel %vm2596, %v5497, %v5498
  %v5500 = vrot.slane %v4965, 4
  %v5501 = vor.u32 %v5500, %v5498
  %v5502 = vrot.slane %v5501, 4
  %v5504 = vshll.u32 %v5150, 16
  %v5506 = vrot.slane %v5504, 5
  %v5507 = vsel %vm2596, %v5502, %v5506
  %v5508 = vrot.slane %v4978, 4
  %v5509 = vrot.slane %v4981, 5
  %v5510 = vor.u32 %v5508, %v5509
  %v5511 = vrot.slane %v5510, 4
  %v5512 = vrot.slane %v4990, 5
  %v5513 = vsel %vm2596, %v5511, %v5512
  %v5514 = vrot.slane %v4987, 4
  %v5515 = vor.u32 %v5514, %v5512
  %v5516 = vrot.slane %v5515, 4
  %v5518 = vshll.u32 %v5151, 16
  %v5520 = vrot.slane %v5518, 5
  %v5521 = vsel %vm2596, %v5516, %v5520
  %v5522 = vrot.slane %v5000, 4
  %v5523 = vrot.slane %v5003, 5
  %v5524 = vor.u32 %v5522, %v5523
  %v5525 = vrot.slane %v5524, 4
  %v5526 = vrot.slane %v5012, 5
  %v5527 = vsel %vm2596, %v5525, %v5526
  %v5528 = vrot.slane %v5009, 4
  %v5529 = vor.u32 %v5528, %v5526
  %v5530 = vrot.slane %v5529, 4
  %v5532 = vshll.u32 %v5152, 16
  %v5534 = vrot.slane %v5532, 5
  %v5535 = vsel %vm2596, %v5530, %v5534
  %v5536 = vrot.slane %v5022, 4
  %v5537 = vrot.slane %v5025, 5
  %v5538 = vor.u32 %v5536, %v5537
  %v5539 = vrot.slane %v5538, 4
  %v5540 = vrot.slane %v5034, 5
  %v5541 = vsel %vm2596, %v5539, %v5540
  %v5542 = vrot.slane %v5031, 4
  %v5543 = vor.u32 %v5542, %v5540
  %v5544 = vrot.slane %v5543, 4
  %v5546 = vshll.u32 %v5153, 16
  %v5548 = vrot.slane %v5546, 5
  %v5549 = vsel %vm2596, %v5544, %v5548
  %v5550 = vrot.slane %v5044, 4
  %v5551 = vrot.slane %v5047, 5
  %v5552 = vor.u32 %v5550, %v5551
  %v5553 = vrot.slane %v5552, 4
  %v5554 = vrot.slane %v5056, 5
  %v5555 = vsel %vm2596, %v5553, %v5554
  %v5556 = vrot.slane %v5053, 4
  %v5557 = vor.u32 %v5556, %v5554
  %v5558 = vrot.slane %v5557, 4
  %v5560 = vshll.u32 %v5154, 16
  %v5562 = vrot.slane %v5560, 5
  %v5563 = vsel %vm2596, %v5558, %v5562
  %v5564 = vrot.slane %v5066, 4
  %v5565 = vrot.slane %v5069, 5
  %v5566 = vor.u32 %v5564, %v5565
  %v5567 = vrot.slane %v5566, 4
  %v5568 = vrot.slane %v5078, 5
  %v5569 = vsel %vm2596, %v5567, %v5568
  %v5570 = vrot.slane %v5075, 4
  %v5571 = vor.u32 %v5570, %v5568
  %v5572 = vrot.slane %v5571, 4
  %v5574 = vshll.u32 %v5155, 16
  %v5576 = vrot.slane %v5574, 5
  %v5577 = vsel %vm2596, %v5572, %v5576
  %v5578 = vrot.slane %v5088, 4
  %v5579 = vrot.slane %v5091, 5
  %v5580 = vor.u32 %v5578, %v5579
  %v5581 = vrot.slane %v5580, 4
  %v5582 = vrot.slane %v5100, 5
  %v5583 = vsel %vm2596, %v5581, %v5582
  %v5584 = vrot.slane %v5097, 4
  %v5585 = vor.u32 %v5584, %v5582
  %v5586 = vrot.slane %v5585, 4
  %v5588 = vshll.u32 %v5156, 16
  %v5590 = vrot.slane %v5588, 5
  %v5591 = vsel %vm2596, %v5586, %v5590
  %v5592 = vrot.slane %v5110, 4
  %v5593 = vrot.slane %v5113, 5
  %v5594 = vor.u32 %v5592, %v5593
  %v5595 = vrot.slane %v5594, 4
  %v5596 = vrot.slane %v5122, 5
  %v5597 = vsel %vm2596, %v5595, %v5596
  %v5598 = vrot.slane %v5119, 4
  %v5599 = vor.u32 %v5598, %v5596
  %v5600 = vrot.slane %v5599, 4
  %v5602 = vshll.u32 %v5157, 16
  %v5604 = vrot.slane %v5602, 5
  %v5605 = vsel %vm2596, %v5600, %v5604
  %v5606 = vunpack.c.l.b16 %v1870
  %v5607 = vunpack.c.l.b16 %v1879
  %v5608 = vunpack.c.l.b16 %v1892
  %v5609 = vunpack.c.l.b16 %v1901
  %v5610 = vunpack.c.l.b16 %v1914
  %v5611 = vunpack.c.l.b16 %v1923
  %v5612 = vunpack.c.l.b16 %v1936
  %v5613 = vunpack.c.l.b16 %v1945
  %v5614 = vunpack.c.l.b16 %v1958
  %v5615 = vunpack.c.l.b16 %v1967
  %v5616 = vunpack.c.l.b16 %v1980
  %v5617 = vunpack.c.l.b16 %v1989
  %v5618 = vunpack.c.l.b16 %v2002
  %v5619 = vunpack.c.l.b16 %v2011
  %v5620 = vunpack.c.l.b16 %v2024
  %v5621 = vunpack.c.l.b16 %v2033
  %v5622 = vunpack.c.l.b16 %v2046
  %v5623 = vunpack.c.l.b16 %v2055
  %v5624 = vunpack.c.l.b16 %v2068
  %v5625 = vunpack.c.l.b16 %v2077
  %v5626 = vunpack.c.l.b16 %v2090
  %v5627 = vunpack.c.l.b16 %v2099
  %v5628 = vunpack.c.l.b16 %v2112
  %v5629 = vunpack.c.l.b16 %v2121
  %v5630 = vunpack.c.l.b16 %v2134
  %v5631 = vunpack.c.l.b16 %v2143
  %v5632 = vunpack.c.l.b16 %v2156
  %v5633 = vunpack.c.l.b16 %v2165
  %v5634 = vunpack.c.l.b16 %v2178
  %v5635 = vunpack.c.l.b16 %v2187
  %v5636 = vunpack.c.l.b16 %v2200
  %v5637 = vunpack.c.l.b16 %v2209
  %v5638 = vunpack.c.l.b16 %v2222
  %v5639 = vunpack.c.l.b16 %v2231
  %v5640 = vunpack.c.l.b16 %v2244
  %v5641 = vunpack.c.l.b16 %v2253
  %v5642 = vunpack.c.l.b16 %v2266
  %v5643 = vunpack.c.l.b16 %v2275
  %v5644 = vunpack.c.l.b16 %v2288
  %v5645 = vunpack.c.l.b16 %v2297
  %v5646 = vunpack.c.l.b16 %v2310
  %v5647 = vunpack.c.l.b16 %v2319
  %v5648 = vunpack.c.l.b16 %v2332
  %v5649 = vunpack.c.l.b16 %v2341
  %v5650 = vunpack.c.l.b16 %v2354
  %v5651 = vunpack.c.l.b16 %v2363
  %v5652 = vunpack.c.l.b16 %v2376
  %v5653 = vunpack.c.l.b16 %v2385
  %v5654 = vunpack.c.l.b16 %v2398
  %v5655 = vunpack.c.l.b16 %v2407
  %v5656 = vunpack.c.l.b16 %v2420
  %v5657 = vunpack.c.l.b16 %v2429
  %v5658 = vunpack.c.l.b16 %v2442
  %v5659 = vunpack.c.l.b16 %v2451
  %v5660 = vunpack.c.l.b16 %v2464
  %v5661 = vunpack.c.l.b16 %v2473
  %v5662 = vunpack.c.l.b16 %v2486
  %v5663 = vunpack.c.l.b16 %v2495
  %v5664 = vunpack.c.l.b16 %v2508
  %v5665 = vunpack.c.l.b16 %v2517
  %v5666 = vunpack.c.l.b16 %v2530
  %v5667 = vunpack.c.l.b16 %v2539
  %v5668 = vunpack.c.l.b16 %v2552
  %v5669 = vunpack.c.l.b16 %v2561
  %v5670 = vpack.c.b16 %v5607, %v5606
  %v5671 = vpack.c.b16 %v5609, %v5608
  %v5672 = vpack.c.b16 %v5611, %v5610
  %v5673 = vpack.c.b16 %v5613, %v5612
  %v5674 = vpack.c.b16 %v5615, %v5614
  %v5675 = vpack.c.b16 %v5617, %v5616
  %v5676 = vpack.c.b16 %v5619, %v5618
  %v5677 = vpack.c.b16 %v5621, %v5620
  %v5678 = vpack.c.b16 %v5623, %v5622
  %v5679 = vpack.c.b16 %v5625, %v5624
  %v5680 = vpack.c.b16 %v5627, %v5626
  %v5681 = vpack.c.b16 %v5629, %v5628
  %v5682 = vpack.c.b16 %v5631, %v5630
  %v5683 = vpack.c.b16 %v5633, %v5632
  %v5684 = vpack.c.b16 %v5635, %v5634
  %v5685 = vpack.c.b16 %v5637, %v5636
  %v5686 = vpack.c.b16 %v5639, %v5638
  %v5687 = vpack.c.b16 %v5641, %v5640
  %v5688 = vpack.c.b16 %v5643, %v5642
  %v5689 = vpack.c.b16 %v5645, %v5644
  %v5690 = vpack.c.b16 %v5647, %v5646
  %v5691 = vpack.c.b16 %v5649, %v5648
  %v5692 = vpack.c.b16 %v5651, %v5650
  %v5693 = vpack.c.b16 %v5653, %v5652
  %v5694 = vpack.c.b16 %v5655, %v5654
  %v5695 = vpack.c.b16 %v5657, %v5656
  %v5696 = vpack.c.b16 %v5659, %v5658
  %v5697 = vpack.c.b16 %v5661, %v5660
  %v5698 = vpack.c.b16 %v5663, %v5662
  %v5699 = vpack.c.b16 %v5665, %v5664
  %v5700 = vpack.c.b16 %v5667, %v5666
  %v5701 = vpack.c.b16 %v5669, %v5668
  %v5766 = vunpack.c.l.b16 %v1760
  %v5767 = vunpack.c.l.b16 %v1761
  %v5768 = vunpack.c.l.b16 %v1763
  %v5769 = vunpack.c.l.b16 %v1764
  %v5770 = vunpack.c.l.b16 %v1766
  %v5771 = vunpack.c.l.b16 %v1767
  %v5772 = vunpack.c.l.b16 %v1769
  %v5773 = vunpack.c.l.b16 %v1770
  %v5774 = vunpack.c.l.b16 %v1772
  %v5775 = vunpack.c.l.b16 %v1773
  %v5776 = vunpack.c.l.b16 %v1775
  %v5777 = vunpack.c.l.b16 %v1776
  %v5778 = vunpack.c.l.b16 %v1778
  %v5779 = vunpack.c.l.b16 %v1779
  %v5780 = vunpack.c.l.b16 %v1781
  %v5781 = vunpack.c.l.b16 %v1782
  %v5782 = vunpack.c.l.b16 %v1784
  %v5783 = vunpack.c.l.b16 %v1785
  %v5784 = vunpack.c.l.b16 %v1787
  %v5785 = vunpack.c.l.b16 %v1788
  %v5786 = vunpack.c.l.b16 %v1790
  %v5787 = vunpack.c.l.b16 %v1791
  %v5788 = vunpack.c.l.b16 %v1793
  %v5789 = vunpack.c.l.b16 %v1794
  %v5790 = vunpack.c.l.b16 %v1796
  %v5791 = vunpack.c.l.b16 %v1797
  %v5792 = vunpack.c.l.b16 %v1799
  %v5793 = vunpack.c.l.b16 %v1800
  %v5794 = vunpack.c.l.b16 %v1802
  %v5795 = vunpack.c.l.b16 %v1803
  %v5796 = vunpack.c.l.b16 %v1805
  %v5797 = vunpack.c.l.b16 %v1806
  %v5798 = vunpack.c.l.b16 %v1808
  %v5799 = vunpack.c.l.b16 %v1809
  %v5800 = vunpack.c.l.b16 %v1811
  %v5801 = vunpack.c.l.b16 %v1812
  %v5802 = vunpack.c.l.b16 %v1814
  %v5803 = vunpack.c.l.b16 %v1815
  %v5804 = vunpack.c.l.b16 %v1817
  %v5805 = vunpack.c.l.b16 %v1818
  %v5806 = vunpack.c.l.b16 %v1820
  %v5807 = vunpack.c.l.b16 %v1821
  %v5808 = vunpack.c.l.b16 %v1823
  %v5809 = vunpack.c.l.b16 %v1824
  %v5810 = vunpack.c.l.b16 %v1826
  %v5811 = vunpack.c.l.b16 %v1827
  %v5812 = vunpack.c.l.b16 %v1829
  %v5813 = vunpack.c.l.b16 %v1830
  %v5814 = vunpack.c.l.b16 %v1832
  %v5815 = vunpack.c.l.b16 %v1833
  %v5816 = vunpack.c.l.b16 %v1835
  %v5817 = vunpack.c.l.b16 %v1836
  %v5818 = vunpack.c.l.b16 %v1838
  %v5819 = vunpack.c.l.b16 %v1839
  %v5820 = vunpack.c.l.b16 %v1841
  %v5821 = vunpack.c.l.b16 %v1842
  %v5822 = vunpack.c.l.b16 %v1844
  %v5823 = vunpack.c.l.b16 %v1845
  %v5824 = vunpack.c.l.b16 %v1847
  %v5825 = vunpack.c.l.b16 %v1848
  %v5826 = vunpack.c.l.b16 %v1850
  %v5827 = vunpack.c.l.b16 %v1851
  %v5828 = vunpack.c.l.b16 %v1853
  %v5829 = vunpack.c.l.b16 %v1854
  %v5830 = vpack.c.b16 %v5767, %v5766
  %v5831 = vpack.c.b16 %v5769, %v5768
  %v5832 = vpack.c.b16 %v5771, %v5770
  %v5833 = vpack.c.b16 %v5773, %v5772
  %v5834 = vpack.c.b16 %v5775, %v5774
  %v5835 = vpack.c.b16 %v5777, %v5776
  %v5836 = vpack.c.b16 %v5779, %v5778
  %v5837 = vpack.c.b16 %v5781, %v5780
  %v5838 = vpack.c.b16 %v5783, %v5782
  %v5839 = vpack.c.b16 %v5785, %v5784
  %v5840 = vpack.c.b16 %v5787, %v5786
  %v5841 = vpack.c.b16 %v5789, %v5788
  %v5842 = vpack.c.b16 %v5791, %v5790
  %v5843 = vpack.c.b16 %v5793, %v5792
  %v5844 = vpack.c.b16 %v5795, %v5794
  %v5845 = vpack.c.b16 %v5797, %v5796
  %v5846 = vpack.c.b16 %v5799, %v5798
  %v5847 = vpack.c.b16 %v5801, %v5800
  %v5848 = vpack.c.b16 %v5803, %v5802
  %v5849 = vpack.c.b16 %v5805, %v5804
  %v5850 = vpack.c.b16 %v5807, %v5806
  %v5851 = vpack.c.b16 %v5809, %v5808
  %v5852 = vpack.c.b16 %v5811, %v5810
  %v5853 = vpack.c.b16 %v5813, %v5812
  %v5854 = vpack.c.b16 %v5815, %v5814
  %v5855 = vpack.c.b16 %v5817, %v5816
  %v5856 = vpack.c.b16 %v5819, %v5818
  %v5857 = vpack.c.b16 %v5821, %v5820
  %v5858 = vpack.c.b16 %v5823, %v5822
  %v5859 = vpack.c.b16 %v5825, %v5824
  %v5860 = vpack.c.b16 %v5827, %v5826
  %v5861 = vpack.c.b16 %v5829, %v5828
  %5862 = vrot.lane.b32.xlu0 %v5830, 64
  %v5863 = vpop.permute.xlu0 %5862
  %5864 = vrot.lane.b32.xlu0 %v5831, 64
  %v5865 = vpop.permute.xlu0 %5864
  %5866 = vrot.lane.b32.xlu0 %v5832, 64
  %v5867 = vpop.permute.xlu0 %5866
  %5868 = vrot.lane.b32.xlu0 %v5833, 64
  %v5869 = vpop.permute.xlu0 %5868
  %5870 = vrot.lane.b32.xlu0 %v5834, 64
  %v5871 = vpop.permute.xlu0 %5870
  %5872 = vrot.lane.b32.xlu0 %v5835, 64
  %v5873 = vpop.permute.xlu0 %5872
  %5874 = vrot.lane.b32.xlu0 %v5836, 64
  %v5875 = vpop.permute.xlu0 %5874
  %5876 = vrot.lane.b32.xlu0 %v5837, 64
  %v5877 = vpop.permute.xlu0 %5876
  %5878 = vrot.lane.b32.xlu0 %v5838, 64
  %v5879 = vpop.permute.xlu0 %5878
  %5880 = vrot.lane.b32.xlu0 %v5839, 64
  %v5881 = vpop.permute.xlu0 %5880
  %5882 = vrot.lane.b32.xlu0 %v5840, 64
  %v5883 = vpop.permute.xlu0 %5882
  %5884 = vrot.lane.b32.xlu0 %v5841, 64
  %v5885 = vpop.permute.xlu0 %5884
  %5886 = vrot.lane.b32.xlu0 %v5842, 64
  %v5887 = vpop.permute.xlu0 %5886
  %5888 = vrot.lane.b32.xlu0 %v5843, 64
  %v5889 = vpop.permute.xlu0 %5888
  %5890 = vrot.lane.b32.xlu0 %v5844, 64
  %v5891 = vpop.permute.xlu0 %5890
  %5892 = vrot.lane.b32.xlu0 %v5845, 64
  %v5893 = vpop.permute.xlu0 %5892
  %5894 = vrot.lane.b32.xlu0 %v5846, 64
  %v5895 = vpop.permute.xlu0 %5894
  %5896 = vrot.lane.b32.xlu0 %v5847, 64
  %v5897 = vpop.permute.xlu0 %5896
  %5898 = vrot.lane.b32.xlu0 %v5848, 64
  %v5899 = vpop.permute.xlu0 %5898
  %5900 = vrot.lane.b32.xlu0 %v5849, 64
  %v5901 = vpop.permute.xlu0 %5900
  %5902 = vrot.lane.b32.xlu0 %v5850, 64
  %v5903 = vpop.permute.xlu0 %5902
  %5904 = vrot.lane.b32.xlu0 %v5851, 64
  %v5905 = vpop.permute.xlu0 %5904
  %5906 = vrot.lane.b32.xlu0 %v5852, 64
  %v5907 = vpop.permute.xlu0 %5906
  %5908 = vrot.lane.b32.xlu0 %v5853, 64
  %v5909 = vpop.permute.xlu0 %5908
  %5910 = vrot.lane.b32.xlu0 %v5854, 64
  %v5911 = vpop.permute.xlu0 %5910
  %5912 = vrot.lane.b32.xlu0 %v5855, 64
  %v5913 = vpop.permute.xlu0 %5912
  %5914 = vrot.lane.b32.xlu0 %v5856, 64
  %v5915 = vpop.permute.xlu0 %5914
  %5916 = vrot.lane.b32.xlu0 %v5857, 64
  %v5917 = vpop.permute.xlu0 %5916
  %5918 = vrot.lane.b32.xlu0 %v5858, 64
  %v5919 = vpop.permute.xlu0 %5918
  %5920 = vrot.lane.b32.xlu0 %v5859, 64
  %v5921 = vpop.permute.xlu0 %5920
  %5922 = vrot.lane.b32.xlu0 %v5860, 64
  %v5923 = vpop.permute.xlu0 %5922
  %5924 = vrot.lane.b32.xlu0 %v5861, 64
  %v5925 = vpop.permute.xlu0 %5924
  %v5926 = vunpack.c.l.b16 %v2602
  %v5927 = vunpack.c.l.b16 %v2610
  %v5928 = vunpack.c.l.b16 %v2616
  %v5929 = vunpack.c.l.b16 %v2624
  %v5930 = vunpack.c.l.b16 %v2630
  %v5931 = vunpack.c.l.b16 %v2638
  %v5932 = vunpack.c.l.b16 %v2644
  %v5933 = vunpack.c.l.b16 %v2652
  %v5934 = vunpack.c.l.b16 %v2658
  %v5935 = vunpack.c.l.b16 %v2666
  %v5936 = vunpack.c.l.b16 %v2672
  %v5937 = vunpack.c.l.b16 %v2680
  %v5938 = vunpack.c.l.b16 %v2686
  %v5939 = vunpack.c.l.b16 %v2694
  %v5940 = vunpack.c.l.b16 %v2700
  %v5941 = vunpack.c.l.b16 %v2708
  %v5942 = vunpack.c.l.b16 %v2714
  %v5943 = vunpack.c.l.b16 %v2722
  %v5944 = vunpack.c.l.b16 %v2728
  %v5945 = vunpack.c.l.b16 %v2736
  %v5946 = vunpack.c.l.b16 %v2742
  %v5947 = vunpack.c.l.b16 %v2750
  %v5948 = vunpack.c.l.b16 %v2756
  %v5949 = vunpack.c.l.b16 %v2764
  %v5950 = vunpack.c.l.b16 %v2770
  %v5951 = vunpack.c.l.b16 %v2778
  %v5952 = vunpack.c.l.b16 %v2784
  %v5953 = vunpack.c.l.b16 %v2792
  %v5954 = vunpack.c.l.b16 %v2798
  %v5955 = vunpack.c.l.b16 %v2806
  %v5956 = vunpack.c.l.b16 %v2812
  %v5957 = vunpack.c.l.b16 %v2820
  %v5958 = vunpack.c.l.b16 %v2826
  %v5959 = vunpack.c.l.b16 %v2834
  %v5960 = vunpack.c.l.b16 %v2840
  %v5961 = vunpack.c.l.b16 %v2848
  %v5962 = vunpack.c.l.b16 %v2854
  %v5963 = vunpack.c.l.b16 %v2862
  %v5964 = vunpack.c.l.b16 %v2868
  %v5965 = vunpack.c.l.b16 %v2876
  %v5966 = vunpack.c.l.b16 %v2882
  %v5967 = vunpack.c.l.b16 %v2890
  %v5968 = vunpack.c.l.b16 %v2896
  %v5969 = vunpack.c.l.b16 %v2904
  %v5970 = vunpack.c.l.b16 %v2910
  %v5971 = vunpack.c.l.b16 %v2918
  %v5972 = vunpack.c.l.b16 %v2924
  %v5973 = vunpack.c.l.b16 %v2932
  %v5974 = vunpack.c.l.b16 %v2938
  %v5975 = vunpack.c.l.b16 %v2946
  %v5976 = vunpack.c.l.b16 %v2952
  %v5977 = vunpack.c.l.b16 %v2960
  %v5978 = vunpack.c.l.b16 %v2966
  %v5979 = vunpack.c.l.b16 %v2974
  %v5980 = vunpack.c.l.b16 %v2980
  %v5981 = vunpack.c.l.b16 %v2988
  %v5982 = vunpack.c.l.b16 %v2994
  %v5983 = vunpack.c.l.b16 %v3002
  %v5984 = vunpack.c.l.b16 %v3008
  %v5985 = vunpack.c.l.b16 %v3016
  %v5986 = vunpack.c.l.b16 %v3022
  %v5987 = vunpack.c.l.b16 %v3030
  %v5988 = vunpack.c.l.b16 %v3036
  %v5989 = vunpack.c.l.b16 %v3044
  %v5990 = vpack.c.b16 %v5927, %v5926
  %v5991 = vpack.c.b16 %v5929, %v5928
  %v5992 = vpack.c.b16 %v5931, %v5930
  %v5993 = vpack.c.b16 %v5933, %v5932
  %v5994 = vpack.c.b16 %v5935, %v5934
  %v5995 = vpack.c.b16 %v5937, %v5936
  %v5996 = vpack.c.b16 %v5939, %v5938
  %v5997 = vpack.c.b16 %v5941, %v5940
  %v5998 = vpack.c.b16 %v5943, %v5942
  %v5999 = vpack.c.b16 %v5945, %v5944
  %v6000 = vpack.c.b16 %v5947, %v5946
  %v6001 = vpack.c.b16 %v5949, %v5948
  %v6002 = vpack.c.b16 %v5951, %v5950
  %v6003 = vpack.c.b16 %v5953, %v5952
  %v6004 = vpack.c.b16 %v5955, %v5954
  %v6005 = vpack.c.b16 %v5957, %v5956
  %v6006 = vpack.c.b16 %v5959, %v5958
  %v6007 = vpack.c.b16 %v5961, %v5960
  %v6008 = vpack.c.b16 %v5963, %v5962
  %v6009 = vpack.c.b16 %v5965, %v5964
  %v6010 = vpack.c.b16 %v5967, %v5966
  %v6011 = vpack.c.b16 %v5969, %v5968
  %v6012 = vpack.c.b16 %v5971, %v5970
  %v6013 = vpack.c.b16 %v5973, %v5972
  %v6014 = vpack.c.b16 %v5975, %v5974
  %v6015 = vpack.c.b16 %v5977, %v5976
  %v6016 = vpack.c.b16 %v5979, %v5978
  %v6017 = vpack.c.b16 %v5981, %v5980
  %v6018 = vpack.c.b16 %v5983, %v5982
  %v6019 = vpack.c.b16 %v5985, %v5984
  %v6020 = vpack.c.b16 %v5987, %v5986
  %v6021 = vpack.c.b16 %v5989, %v5988
  %v6022 = vunpack.c.l.b16 %v3153
  %v6023 = vunpack.c.l.b16 %v3162
  %v6024 = vunpack.c.l.b16 %v3175
  %v6025 = vunpack.c.l.b16 %v3184
  %v6026 = vunpack.c.l.b16 %v3197
  %v6027 = vunpack.c.l.b16 %v3206
  %v6028 = vunpack.c.l.b16 %v3219
  %v6029 = vunpack.c.l.b16 %v3228
  %v6030 = vunpack.c.l.b16 %v3241
  %v6031 = vunpack.c.l.b16 %v3250
  %v6032 = vunpack.c.l.b16 %v3263
  %v6033 = vunpack.c.l.b16 %v3272
  %v6034 = vunpack.c.l.b16 %v3285
  %v6035 = vunpack.c.l.b16 %v3294
  %v6036 = vunpack.c.l.b16 %v3307
  %v6037 = vunpack.c.l.b16 %v3316
  %v6038 = vunpack.c.l.b16 %v3329
  %v6039 = vunpack.c.l.b16 %v3338
  %v6040 = vunpack.c.l.b16 %v3351
  %v6041 = vunpack.c.l.b16 %v3360
  %v6042 = vunpack.c.l.b16 %v3373
  %v6043 = vunpack.c.l.b16 %v3382
  %v6044 = vunpack.c.l.b16 %v3395
  %v6045 = vunpack.c.l.b16 %v3404
  %v6046 = vunpack.c.l.b16 %v3417
  %v6047 = vunpack.c.l.b16 %v3426
  %v6048 = vunpack.c.l.b16 %v3439
  %v6049 = vunpack.c.l.b16 %v3448
  %v6050 = vunpack.c.l.b16 %v3461
  %v6051 = vunpack.c.l.b16 %v3470
  %v6052 = vunpack.c.l.b16 %v3483
  %v6053 = vunpack.c.l.b16 %v3492
  %v6054 = vunpack.c.l.b16 %v3505
  %v6055 = vunpack.c.l.b16 %v3514
  %v6056 = vunpack.c.l.b16 %v3527
  %v6057 = vunpack.c.l.b16 %v3536
  %v6058 = vunpack.c.l.b16 %v3549
  %v6059 = vunpack.c.l.b16 %v3558
  %v6060 = vunpack.c.l.b16 %v3571
  %v6061 = vunpack.c.l.b16 %v3580
  %v6062 = vunpack.c.l.b16 %v3593
  %v6063 = vunpack.c.l.b16 %v3602
  %v6064 = vunpack.c.l.b16 %v3615
  %v6065 = vunpack.c.l.b16 %v3624
  %v6066 = vunpack.c.l.b16 %v3637
  %v6067 = vunpack.c.l.b16 %v3646
  %v6068 = vunpack.c.l.b16 %v3659
  %v6069 = vunpack.c.l.b16 %v3668
  %v6070 = vunpack.c.l.b16 %v3681
  %v6071 = vunpack.c.l.b16 %v3690
  %v6072 = vunpack.c.l.b16 %v3703
  %v6073 = vunpack.c.l.b16 %v3712
  %v6074 = vunpack.c.l.b16 %v3725
  %v6075 = vunpack.c.l.b16 %v3734
  %v6076 = vunpack.c.l.b16 %v3747
  %v6077 = vunpack.c.l.b16 %v3756
  %v6078 = vunpack.c.l.b16 %v3769
  %v6079 = vunpack.c.l.b16 %v3778
  %v6080 = vunpack.c.l.b16 %v3791
  %v6081 = vunpack.c.l.b16 %v3800
  %v6082 = vunpack.c.l.b16 %v3813
  %v6083 = vunpack.c.l.b16 %v3822
  %v6084 = vunpack.c.l.b16 %v3835
  %v6085 = vunpack.c.l.b16 %v3844
  %v6086 = vpack.c.b16 %v6023, %v6022
  %v6087 = vpack.c.b16 %v6025, %v6024
  %v6088 = vpack.c.b16 %v6027, %v6026
  %v6089 = vpack.c.b16 %v6029, %v6028
  %v6090 = vpack.c.b16 %v6031, %v6030
  %v6091 = vpack.c.b16 %v6033, %v6032
  %v6092 = vpack.c.b16 %v6035, %v6034
  %v6093 = vpack.c.b16 %v6037, %v6036
  %v6094 = vpack.c.b16 %v6039, %v6038
  %v6095 = vpack.c.b16 %v6041, %v6040
  %v6096 = vpack.c.b16 %v6043, %v6042
  %v6097 = vpack.c.b16 %v6045, %v6044
  %v6098 = vpack.c.b16 %v6047, %v6046
  %v6099 = vpack.c.b16 %v6049, %v6048
  %v6100 = vpack.c.b16 %v6051, %v6050
  %v6101 = vpack.c.b16 %v6053, %v6052
  %v6102 = vpack.c.b16 %v6055, %v6054
  %v6103 = vpack.c.b16 %v6057, %v6056
  %v6104 = vpack.c.b16 %v6059, %v6058
  %v6105 = vpack.c.b16 %v6061, %v6060
  %v6106 = vpack.c.b16 %v6063, %v6062
  %v6107 = vpack.c.b16 %v6065, %v6064
  %v6108 = vpack.c.b16 %v6067, %v6066
  %v6109 = vpack.c.b16 %v6069, %v6068
  %v6110 = vpack.c.b16 %v6071, %v6070
  %v6111 = vpack.c.b16 %v6073, %v6072
  %v6112 = vpack.c.b16 %v6075, %v6074
  %v6113 = vpack.c.b16 %v6077, %v6076
  %v6114 = vpack.c.b16 %v6079, %v6078
  %v6115 = vpack.c.b16 %v6081, %v6080
  %v6116 = vpack.c.b16 %v6083, %v6082
  %v6117 = vpack.c.b16 %v6085, %v6084
  %6118 = vrot.lane.b32.xlu0 %v6086, 64
  %v6119 = vpop.permute.xlu0 %6118
  %6120 = vrot.lane.b32.xlu0 %v6087, 64
  %v6121 = vpop.permute.xlu0 %6120
  %6122 = vrot.lane.b32.xlu0 %v6088, 64
  %v6123 = vpop.permute.xlu0 %6122
  %6124 = vrot.lane.b32.xlu0 %v6089, 64
  %v6125 = vpop.permute.xlu0 %6124
  %6126 = vrot.lane.b32.xlu0 %v6090, 64
  %v6127 = vpop.permute.xlu0 %6126
  %6128 = vrot.lane.b32.xlu0 %v6091, 64
  %v6129 = vpop.permute.xlu0 %6128
  %6130 = vrot.lane.b32.xlu0 %v6092, 64
  %v6131 = vpop.permute.xlu0 %6130
  %6132 = vrot.lane.b32.xlu0 %v6093, 64
  %v6133 = vpop.permute.xlu0 %6132
  %6134 = vrot.lane.b32.xlu0 %v6094, 64
  %v6135 = vpop.permute.xlu0 %6134
  %6136 = vrot.lane.b32.xlu0 %v6095, 64
  %v6137 = vpop.permute.xlu0 %6136
  %6138 = vrot.lane.b32.xlu0 %v6096, 64
  %v6139 = vpop.permute.xlu0 %6138
  %6140 = vrot.lane.b32.xlu0 %v6097, 64
  %v6141 = vpop.permute.xlu0 %6140
  %6142 = vrot.lane.b32.xlu0 %v6098, 64
  %v6143 = vpop.permute.xlu0 %6142
  %6144 = vrot.lane.b32.xlu0 %v6099, 64
  %v6145 = vpop.permute.xlu0 %6144
  %6146 = vrot.lane.b32.xlu0 %v6100, 64
  %v6147 = vpop.permute.xlu0 %6146
  %6148 = vrot.lane.b32.xlu0 %v6101, 64
  %v6149 = vpop.permute.xlu0 %6148
  %6150 = vrot.lane.b32.xlu0 %v6102, 64
  %v6151 = vpop.permute.xlu0 %6150
  %6152 = vrot.lane.b32.xlu0 %v6103, 64
  %v6153 = vpop.permute.xlu0 %6152
  %6154 = vrot.lane.b32.xlu0 %v6104, 64
  %v6155 = vpop.permute.xlu0 %6154
  %6156 = vrot.lane.b32.xlu0 %v6105, 64
  %v6157 = vpop.permute.xlu0 %6156
  %6158 = vrot.lane.b32.xlu0 %v6106, 64
  %v6159 = vpop.permute.xlu0 %6158
  %6160 = vrot.lane.b32.xlu0 %v6107, 64
  %v6161 = vpop.permute.xlu0 %6160
  %6162 = vrot.lane.b32.xlu0 %v6108, 64
  %v6163 = vpop.permute.xlu0 %6162
  %6164 = vrot.lane.b32.xlu0 %v6109, 64
  %v6165 = vpop.permute.xlu0 %6164
  %6166 = vrot.lane.b32.xlu0 %v6110, 64
  %v6167 = vpop.permute.xlu0 %6166
  %6168 = vrot.lane.b32.xlu0 %v6111, 64
  %v6169 = vpop.permute.xlu0 %6168
  %6170 = vrot.lane.b32.xlu0 %v6112, 64
  %v6171 = vpop.permute.xlu0 %6170
  %6172 = vrot.lane.b32.xlu0 %v6113, 64
  %v6173 = vpop.permute.xlu0 %6172
  %6174 = vrot.lane.b32.xlu0 %v6114, 64
  %v6175 = vpop.permute.xlu0 %6174
  %6176 = vrot.lane.b32.xlu0 %v6115, 64
  %v6177 = vpop.permute.xlu0 %6176
  %6178 = vrot.lane.b32.xlu0 %v6116, 64
  %v6179 = vpop.permute.xlu0 %6178
  %6180 = vrot.lane.b32.xlu0 %v6117, 64
  %v6181 = vpop.permute.xlu0 %6180
  %v6246 = vunpack.c.l.b16 %v3046
  %v6247 = vunpack.c.l.b16 %v3047
  %v6248 = vunpack.c.l.b16 %v3049
  %v6249 = vunpack.c.l.b16 %v3050
  %v6250 = vunpack.c.l.b16 %v3052
  %v6251 = vunpack.c.l.b16 %v3053
  %v6252 = vunpack.c.l.b16 %v3055
  %v6253 = vunpack.c.l.b16 %v3056
  %v6254 = vunpack.c.l.b16 %v3058
  %v6255 = vunpack.c.l.b16 %v3059
  %v6256 = vunpack.c.l.b16 %v3061
  %v6257 = vunpack.c.l.b16 %v3062
  %v6258 = vunpack.c.l.b16 %v3064
  %v6259 = vunpack.c.l.b16 %v3065
  %v6260 = vunpack.c.l.b16 %v3067
  %v6261 = vunpack.c.l.b16 %v3068
  %v6262 = vunpack.c.l.b16 %v3070
  %v6263 = vunpack.c.l.b16 %v3071
  %v6264 = vunpack.c.l.b16 %v3073
  %v6265 = vunpack.c.l.b16 %v3074
  %v6266 = vunpack.c.l.b16 %v3076
  %v6267 = vunpack.c.l.b16 %v3077
  %v6268 = vunpack.c.l.b16 %v3079
  %v6269 = vunpack.c.l.b16 %v3080
  %v6270 = vunpack.c.l.b16 %v3082
  %v6271 = vunpack.c.l.b16 %v3083
  %v6272 = vunpack.c.l.b16 %v3085
  %v6273 = vunpack.c.l.b16 %v3086
  %v6274 = vunpack.c.l.b16 %v3088
  %v6275 = vunpack.c.l.b16 %v3089
  %v6276 = vunpack.c.l.b16 %v3091
  %v6277 = vunpack.c.l.b16 %v3092
  %v6278 = vunpack.c.l.b16 %v3094
  %v6279 = vunpack.c.l.b16 %v3095
  %v6280 = vunpack.c.l.b16 %v3097
  %v6281 = vunpack.c.l.b16 %v3098
  %v6282 = vunpack.c.l.b16 %v3100
  %v6283 = vunpack.c.l.b16 %v3101
  %v6284 = vunpack.c.l.b16 %v3103
  %v6285 = vunpack.c.l.b16 %v3104
  %v6286 = vunpack.c.l.b16 %v3106
  %v6287 = vunpack.c.l.b16 %v3107
  %v6288 = vunpack.c.l.b16 %v3109
  %v6289 = vunpack.c.l.b16 %v3110
  %v6290 = vunpack.c.l.b16 %v3112
  %v6291 = vunpack.c.l.b16 %v3113
  %v6292 = vunpack.c.l.b16 %v3115
  %v6293 = vunpack.c.l.b16 %v3116
  %v6294 = vunpack.c.l.b16 %v3118
  %v6295 = vunpack.c.l.b16 %v3119
  %v6296 = vunpack.c.l.b16 %v3121
  %v6297 = vunpack.c.l.b16 %v3122
  %v6298 = vunpack.c.l.b16 %v3124
  %v6299 = vunpack.c.l.b16 %v3125
  %v6300 = vunpack.c.l.b16 %v3127
  %v6301 = vunpack.c.l.b16 %v3128
  %v6302 = vunpack.c.l.b16 %v3130
  %v6303 = vunpack.c.l.b16 %v3131
  %v6304 = vunpack.c.l.b16 %v3133
  %v6305 = vunpack.c.l.b16 %v3134
  %v6306 = vunpack.c.l.b16 %v3136
  %v6307 = vunpack.c.l.b16 %v3137
  %v6308 = vunpack.c.l.b16 %v3139
  %v6309 = vunpack.c.l.b16 %v3140
  %v6310 = vpack.c.b16 %v6247, %v6246
  %v6311 = vpack.c.b16 %v6249, %v6248
  %v6312 = vpack.c.b16 %v6251, %v6250
  %v6313 = vpack.c.b16 %v6253, %v6252
  %v6314 = vpack.c.b16 %v6255, %v6254
  %v6315 = vpack.c.b16 %v6257, %v6256
  %v6316 = vpack.c.b16 %v6259, %v6258
  %v6317 = vpack.c.b16 %v6261, %v6260
  %v6318 = vpack.c.b16 %v6263, %v6262
  %v6319 = vpack.c.b16 %v6265, %v6264
  %v6320 = vpack.c.b16 %v6267, %v6266
  %v6321 = vpack.c.b16 %v6269, %v6268
  %v6322 = vpack.c.b16 %v6271, %v6270
  %v6323 = vpack.c.b16 %v6273, %v6272
  %v6324 = vpack.c.b16 %v6275, %v6274
  %v6325 = vpack.c.b16 %v6277, %v6276
  %v6326 = vpack.c.b16 %v6279, %v6278
  %v6327 = vpack.c.b16 %v6281, %v6280
  %v6328 = vpack.c.b16 %v6283, %v6282
  %v6329 = vpack.c.b16 %v6285, %v6284
  %v6330 = vpack.c.b16 %v6287, %v6286
  %v6331 = vpack.c.b16 %v6289, %v6288
  %v6332 = vpack.c.b16 %v6291, %v6290
  %v6333 = vpack.c.b16 %v6293, %v6292
  %v6334 = vpack.c.b16 %v6295, %v6294
  %v6335 = vpack.c.b16 %v6297, %v6296
  %v6336 = vpack.c.b16 %v6299, %v6298
  %v6337 = vpack.c.b16 %v6301, %v6300
  %v6338 = vpack.c.b16 %v6303, %v6302
  %v6339 = vpack.c.b16 %v6305, %v6304
  %v6340 = vpack.c.b16 %v6307, %v6306
  %v6341 = vpack.c.b16 %v6309, %v6308
  %v6342 = vunpack.c.l.b16 %v3882
  %v6343 = vunpack.c.l.b16 %v3890
  %v6344 = vunpack.c.l.b16 %v3896
  %v6345 = vunpack.c.l.b16 %v3904
  %v6346 = vunpack.c.l.b16 %v3910
  %v6347 = vunpack.c.l.b16 %v3918
  %v6348 = vunpack.c.l.b16 %v3924
  %v6349 = vunpack.c.l.b16 %v3932
  %v6350 = vunpack.c.l.b16 %v3938
  %v6351 = vunpack.c.l.b16 %v3946
  %v6352 = vunpack.c.l.b16 %v3952
  %v6353 = vunpack.c.l.b16 %v3960
  %v6354 = vunpack.c.l.b16 %v3966
  %v6355 = vunpack.c.l.b16 %v3974
  %v6356 = vunpack.c.l.b16 %v3980
  %v6357 = vunpack.c.l.b16 %v3988
  %v6358 = vunpack.c.l.b16 %v3994
  %v6359 = vunpack.c.l.b16 %v4002
  %v6360 = vunpack.c.l.b16 %v4008
  %v6361 = vunpack.c.l.b16 %v4016
  %v6362 = vunpack.c.l.b16 %v4022
  %v6363 = vunpack.c.l.b16 %v4030
  %v6364 = vunpack.c.l.b16 %v4036
  %v6365 = vunpack.c.l.b16 %v4044
  %v6366 = vunpack.c.l.b16 %v4050
  %v6367 = vunpack.c.l.b16 %v4058
  %v6368 = vunpack.c.l.b16 %v4064
  %v6369 = vunpack.c.l.b16 %v4072
  %v6370 = vunpack.c.l.b16 %v4078
  %v6371 = vunpack.c.l.b16 %v4086
  %v6372 = vunpack.c.l.b16 %v4092
  %v6373 = vunpack.c.l.b16 %v4100
  %v6374 = vunpack.c.l.b16 %v4106
  %v6375 = vunpack.c.l.b16 %v4114
  %v6376 = vunpack.c.l.b16 %v4120
  %v6377 = vunpack.c.l.b16 %v4128
  %v6378 = vunpack.c.l.b16 %v4134
  %v6379 = vunpack.c.l.b16 %v4142
  %v6380 = vunpack.c.l.b16 %v4148
  %v6381 = vunpack.c.l.b16 %v4156
  %v6382 = vunpack.c.l.b16 %v4162
  %v6383 = vunpack.c.l.b16 %v4170
  %v6384 = vunpack.c.l.b16 %v4176
  %v6385 = vunpack.c.l.b16 %v4184
  %v6386 = vunpack.c.l.b16 %v4190
  %v6387 = vunpack.c.l.b16 %v4198
  %v6388 = vunpack.c.l.b16 %v4204
  %v6389 = vunpack.c.l.b16 %v4212
  %v6390 = vunpack.c.l.b16 %v4218
  %v6391 = vunpack.c.l.b16 %v4226
  %v6392 = vunpack.c.l.b16 %v4232
  %v6393 = vunpack.c.l.b16 %v4240
  %v6394 = vunpack.c.l.b16 %v4246
  %v6395 = vunpack.c.l.b16 %v4254
  %v6396 = vunpack.c.l.b16 %v4260
  %v6397 = vunpack.c.l.b16 %v4268
  %v6398 = vunpack.c.l.b16 %v4274
  %v6399 = vunpack.c.l.b16 %v4282
  %v6400 = vunpack.c.l.b16 %v4288
  %v6401 = vunpack.c.l.b16 %v4296
  %v6402 = vunpack.c.l.b16 %v4302
  %v6403 = vunpack.c.l.b16 %v4310
  %v6404 = vunpack.c.l.b16 %v4316
  %v6405 = vunpack.c.l.b16 %v4324
  %v6406 = vpack.c.b16 %v6343, %v6342
  %v6407 = vpack.c.b16 %v6345, %v6344
  %v6408 = vpack.c.b16 %v6347, %v6346
  %v6409 = vpack.c.b16 %v6349, %v6348
  %v6410 = vpack.c.b16 %v6351, %v6350
  %v6411 = vpack.c.b16 %v6353, %v6352
  %v6412 = vpack.c.b16 %v6355, %v6354
  %v6413 = vpack.c.b16 %v6357, %v6356
  %v6414 = vpack.c.b16 %v6359, %v6358
  %v6415 = vpack.c.b16 %v6361, %v6360
  %v6416 = vpack.c.b16 %v6363, %v6362
  %v6417 = vpack.c.b16 %v6365, %v6364
  %v6418 = vpack.c.b16 %v6367, %v6366
  %v6419 = vpack.c.b16 %v6369, %v6368
  %v6420 = vpack.c.b16 %v6371, %v6370
  %v6421 = vpack.c.b16 %v6373, %v6372
  %v6422 = vpack.c.b16 %v6375, %v6374
  %v6423 = vpack.c.b16 %v6377, %v6376
  %v6424 = vpack.c.b16 %v6379, %v6378
  %v6425 = vpack.c.b16 %v6381, %v6380
  %v6426 = vpack.c.b16 %v6383, %v6382
  %v6427 = vpack.c.b16 %v6385, %v6384
  %v6428 = vpack.c.b16 %v6387, %v6386
  %v6429 = vpack.c.b16 %v6389, %v6388
  %v6430 = vpack.c.b16 %v6391, %v6390
  %v6431 = vpack.c.b16 %v6393, %v6392
  %v6432 = vpack.c.b16 %v6395, %v6394
  %v6433 = vpack.c.b16 %v6397, %v6396
  %v6434 = vpack.c.b16 %v6399, %v6398
  %v6435 = vpack.c.b16 %v6401, %v6400
  %v6436 = vpack.c.b16 %v6403, %v6402
  %v6437 = vpack.c.b16 %v6405, %v6404
  %6438 = vrot.lane.b32.xlu0 %v6406, 64
  %v6439 = vpop.permute.xlu0 %6438
  %6440 = vrot.lane.b32.xlu0 %v6407, 64
  %v6441 = vpop.permute.xlu0 %6440
  %6442 = vrot.lane.b32.xlu0 %v6408, 64
  %v6443 = vpop.permute.xlu0 %6442
  %6444 = vrot.lane.b32.xlu0 %v6409, 64
  %v6445 = vpop.permute.xlu0 %6444
  %6446 = vrot.lane.b32.xlu0 %v6410, 64
  %v6447 = vpop.permute.xlu0 %6446
  %6448 = vrot.lane.b32.xlu0 %v6411, 64
  %v6449 = vpop.permute.xlu0 %6448
  %6450 = vrot.lane.b32.xlu0 %v6412, 64
  %v6451 = vpop.permute.xlu0 %6450
  %6452 = vrot.lane.b32.xlu0 %v6413, 64
  %v6453 = vpop.permute.xlu0 %6452
  %6454 = vrot.lane.b32.xlu0 %v6414, 64
  %v6455 = vpop.permute.xlu0 %6454
  %6456 = vrot.lane.b32.xlu0 %v6415, 64
  %v6457 = vpop.permute.xlu0 %6456
  %6458 = vrot.lane.b32.xlu0 %v6416, 64
  %v6459 = vpop.permute.xlu0 %6458
  %6460 = vrot.lane.b32.xlu0 %v6417, 64
  %v6461 = vpop.permute.xlu0 %6460
  %6462 = vrot.lane.b32.xlu0 %v6418, 64
  %v6463 = vpop.permute.xlu0 %6462
  %6464 = vrot.lane.b32.xlu0 %v6419, 64
  %v6465 = vpop.permute.xlu0 %6464
  %6466 = vrot.lane.b32.xlu0 %v6420, 64
  %v6467 = vpop.permute.xlu0 %6466
  %6468 = vrot.lane.b32.xlu0 %v6421, 64
  %v6469 = vpop.permute.xlu0 %6468
  %6470 = vrot.lane.b32.xlu0 %v6422, 64
  %v6471 = vpop.permute.xlu0 %6470
  %6472 = vrot.lane.b32.xlu0 %v6423, 64
  %v6473 = vpop.permute.xlu0 %6472
  %6474 = vrot.lane.b32.xlu0 %v6424, 64
  %v6475 = vpop.permute.xlu0 %6474
  %6476 = vrot.lane.b32.xlu0 %v6425, 64
  %v6477 = vpop.permute.xlu0 %6476
  %6478 = vrot.lane.b32.xlu0 %v6426, 64
  %v6479 = vpop.permute.xlu0 %6478
  %6480 = vrot.lane.b32.xlu0 %v6427, 64
  %v6481 = vpop.permute.xlu0 %6480
  %6482 = vrot.lane.b32.xlu0 %v6428, 64
  %v6483 = vpop.permute.xlu0 %6482
  %6484 = vrot.lane.b32.xlu0 %v6429, 64
  %v6485 = vpop.permute.xlu0 %6484
  %6486 = vrot.lane.b32.xlu0 %v6430, 64
  %v6487 = vpop.permute.xlu0 %6486
  %6488 = vrot.lane.b32.xlu0 %v6431, 64
  %v6489 = vpop.permute.xlu0 %6488
  %6490 = vrot.lane.b32.xlu0 %v6432, 64
  %v6491 = vpop.permute.xlu0 %6490
  %6492 = vrot.lane.b32.xlu0 %v6433, 64
  %v6493 = vpop.permute.xlu0 %6492
  %6494 = vrot.lane.b32.xlu0 %v6434, 64
  %v6495 = vpop.permute.xlu0 %6494
  %6496 = vrot.lane.b32.xlu0 %v6435, 64
  %v6497 = vpop.permute.xlu0 %6496
  %6498 = vrot.lane.b32.xlu0 %v6436, 64
  %v6499 = vpop.permute.xlu0 %6498
  %6500 = vrot.lane.b32.xlu0 %v6437, 64
  %v6501 = vpop.permute.xlu0 %6500
  %v6502 = vunpack.c.l.b16 %v4434
  %v6503 = vunpack.c.l.b16 %v4443
  %v6504 = vunpack.c.l.b16 %v4456
  %v6505 = vunpack.c.l.b16 %v4465
  %v6506 = vunpack.c.l.b16 %v4478
  %v6507 = vunpack.c.l.b16 %v4487
  %v6508 = vunpack.c.l.b16 %v4500
  %v6509 = vunpack.c.l.b16 %v4509
  %v6510 = vunpack.c.l.b16 %v4522
  %v6511 = vunpack.c.l.b16 %v4531
  %v6512 = vunpack.c.l.b16 %v4544
  %v6513 = vunpack.c.l.b16 %v4553
  %v6514 = vunpack.c.l.b16 %v4566
  %v6515 = vunpack.c.l.b16 %v4575
  %v6516 = vunpack.c.l.b16 %v4588
  %v6517 = vunpack.c.l.b16 %v4597
  %v6518 = vunpack.c.l.b16 %v4610
  %v6519 = vunpack.c.l.b16 %v4619
  %v6520 = vunpack.c.l.b16 %v4632
  %v6521 = vunpack.c.l.b16 %v4641
  %v6522 = vunpack.c.l.b16 %v4654
  %v6523 = vunpack.c.l.b16 %v4663
  %v6524 = vunpack.c.l.b16 %v4676
  %v6525 = vunpack.c.l.b16 %v4685
  %v6526 = vunpack.c.l.b16 %v4698
  %v6527 = vunpack.c.l.b16 %v4707
  %v6528 = vunpack.c.l.b16 %v4720
  %v6529 = vunpack.c.l.b16 %v4729
  %v6530 = vunpack.c.l.b16 %v4742
  %v6531 = vunpack.c.l.b16 %v4751
  %v6532 = vunpack.c.l.b16 %v4764
  %v6533 = vunpack.c.l.b16 %v4773
  %v6534 = vunpack.c.l.b16 %v4786
  %v6535 = vunpack.c.l.b16 %v4795
  %v6536 = vunpack.c.l.b16 %v4808
  %v6537 = vunpack.c.l.b16 %v4817
  %v6538 = vunpack.c.l.b16 %v4830
  %v6539 = vunpack.c.l.b16 %v4839
  %v6540 = vunpack.c.l.b16 %v4852
  %v6541 = vunpack.c.l.b16 %v4861
  %v6542 = vunpack.c.l.b16 %v4874
  %v6543 = vunpack.c.l.b16 %v4883
  %v6544 = vunpack.c.l.b16 %v4896
  %v6545 = vunpack.c.l.b16 %v4905
  %v6546 = vunpack.c.l.b16 %v4918
  %v6547 = vunpack.c.l.b16 %v4927
  %v6548 = vunpack.c.l.b16 %v4940
  %v6549 = vunpack.c.l.b16 %v4949
  %v6550 = vunpack.c.l.b16 %v4962
  %v6551 = vunpack.c.l.b16 %v4971
  %v6552 = vunpack.c.l.b16 %v4984
  %v6553 = vunpack.c.l.b16 %v4993
  %v6554 = vunpack.c.l.b16 %v5006
  %v6555 = vunpack.c.l.b16 %v5015
  %v6556 = vunpack.c.l.b16 %v5028
  %v6557 = vunpack.c.l.b16 %v5037
  %v6558 = vunpack.c.l.b16 %v5050
  %v6559 = vunpack.c.l.b16 %v5059
  %v6560 = vunpack.c.l.b16 %v5072
  %v6561 = vunpack.c.l.b16 %v5081
  %v6562 = vunpack.c.l.b16 %v5094
  %v6563 = vunpack.c.l.b16 %v5103
  %v6564 = vunpack.c.l.b16 %v5116
  %v6565 = vunpack.c.l.b16 %v5125
  %v6566 = vpack.c.b16 %v6503, %v6502
  %v6567 = vpack.c.b16 %v6505, %v6504
  %v6568 = vpack.c.b16 %v6507, %v6506
  %v6569 = vpack.c.b16 %v6509, %v6508
  %v6570 = vpack.c.b16 %v6511, %v6510
  %v6571 = vpack.c.b16 %v6513, %v6512
  %v6572 = vpack.c.b16 %v6515, %v6514
  %v6573 = vpack.c.b16 %v6517, %v6516
  %v6574 = vpack.c.b16 %v6519, %v6518
  %v6575 = vpack.c.b16 %v6521, %v6520
  %v6576 = vpack.c.b16 %v6523, %v6522
  %v6577 = vpack.c.b16 %v6525, %v6524
  %v6578 = vpack.c.b16 %v6527, %v6526
  %v6579 = vpack.c.b16 %v6529, %v6528
  %v6580 = vpack.c.b16 %v6531, %v6530
  %v6581 = vpack.c.b16 %v6533, %v6532
  %v6582 = vpack.c.b16 %v6535, %v6534
  %v6583 = vpack.c.b16 %v6537, %v6536
  %v6584 = vpack.c.b16 %v6539, %v6538
  %v6585 = vpack.c.b16 %v6541, %v6540
  %v6586 = vpack.c.b16 %v6543, %v6542
  %v6587 = vpack.c.b16 %v6545, %v6544
  %v6588 = vpack.c.b16 %v6547, %v6546
  %v6589 = vpack.c.b16 %v6549, %v6548
  %v6590 = vpack.c.b16 %v6551, %v6550
  %v6591 = vpack.c.b16 %v6553, %v6552
  %v6592 = vpack.c.b16 %v6555, %v6554
  %v6593 = vpack.c.b16 %v6557, %v6556
  %v6594 = vpack.c.b16 %v6559, %v6558
  %v6595 = vpack.c.b16 %v6561, %v6560
  %v6596 = vpack.c.b16 %v6563, %v6562
  %v6597 = vpack.c.b16 %v6565, %v6564
  %v6662 = vunpack.c.l.b16 %v4327
  %v6663 = vunpack.c.l.b16 %v4328
  %v6664 = vunpack.c.l.b16 %v4330
  %v6665 = vunpack.c.l.b16 %v4331
  %v6666 = vunpack.c.l.b16 %v4333
  %v6667 = vunpack.c.l.b16 %v4334
  %v6668 = vunpack.c.l.b16 %v4336
  %v6669 = vunpack.c.l.b16 %v4337
  %v6670 = vunpack.c.l.b16 %v4339
  %v6671 = vunpack.c.l.b16 %v4340
  %v6672 = vunpack.c.l.b16 %v4342
  %v6673 = vunpack.c.l.b16 %v4343
  %v6674 = vunpack.c.l.b16 %v4345
  %v6675 = vunpack.c.l.b16 %v4346
  %v6676 = vunpack.c.l.b16 %v4348
  %v6677 = vunpack.c.l.b16 %v4349
  %v6678 = vunpack.c.l.b16 %v4351
  %v6679 = vunpack.c.l.b16 %v4352
  %v6680 = vunpack.c.l.b16 %v4354
  %v6681 = vunpack.c.l.b16 %v4355
  %v6682 = vunpack.c.l.b16 %v4357
  %v6683 = vunpack.c.l.b16 %v4358
  %v6684 = vunpack.c.l.b16 %v4360
  %v6685 = vunpack.c.l.b16 %v4361
  %v6686 = vunpack.c.l.b16 %v4363
  %v6687 = vunpack.c.l.b16 %v4364
  %v6688 = vunpack.c.l.b16 %v4366
  %v6689 = vunpack.c.l.b16 %v4367
  %v6690 = vunpack.c.l.b16 %v4369
  %v6691 = vunpack.c.l.b16 %v4370
  %v6692 = vunpack.c.l.b16 %v4372
  %v6693 = vunpack.c.l.b16 %v4373
  %v6694 = vunpack.c.l.b16 %v4375
  %v6695 = vunpack.c.l.b16 %v4376
  %v6696 = vunpack.c.l.b16 %v4378
  %v6697 = vunpack.c.l.b16 %v4379
  %v6698 = vunpack.c.l.b16 %v4381
  %v6699 = vunpack.c.l.b16 %v4382
  %v6700 = vunpack.c.l.b16 %v4384
  %v6701 = vunpack.c.l.b16 %v4385
  %v6702 = vunpack.c.l.b16 %v4387
  %v6703 = vunpack.c.l.b16 %v4388
  %v6704 = vunpack.c.l.b16 %v4390
  %v6705 = vunpack.c.l.b16 %v4391
  %v6706 = vunpack.c.l.b16 %v4393
  %v6707 = vunpack.c.l.b16 %v4394
  %v6708 = vunpack.c.l.b16 %v4396
  %v6709 = vunpack.c.l.b16 %v4397
  %v6710 = vunpack.c.l.b16 %v4399
  %v6711 = vunpack.c.l.b16 %v4400
  %v6712 = vunpack.c.l.b16 %v4402
  %v6713 = vunpack.c.l.b16 %v4403
  %v6714 = vunpack.c.l.b16 %v4405
  %v6715 = vunpack.c.l.b16 %v4406
  %v6716 = vunpack.c.l.b16 %v4408
  %v6717 = vunpack.c.l.b16 %v4409
  %v6718 = vunpack.c.l.b16 %v4411
  %v6719 = vunpack.c.l.b16 %v4412
  %v6720 = vunpack.c.l.b16 %v4414
  %v6721 = vunpack.c.l.b16 %v4415
  %v6722 = vunpack.c.l.b16 %v4417
  %v6723 = vunpack.c.l.b16 %v4418
  %v6724 = vunpack.c.l.b16 %v4420
  %v6725 = vunpack.c.l.b16 %v4421
  %v6726 = vpack.c.b16 %v6663, %v6662
  %v6727 = vpack.c.b16 %v6665, %v6664
  %v6728 = vpack.c.b16 %v6667, %v6666
  %v6729 = vpack.c.b16 %v6669, %v6668
  %v6730 = vpack.c.b16 %v6671, %v6670
  %v6731 = vpack.c.b16 %v6673, %v6672
  %v6732 = vpack.c.b16 %v6675, %v6674
  %v6733 = vpack.c.b16 %v6677, %v6676
  %v6734 = vpack.c.b16 %v6679, %v6678
  %v6735 = vpack.c.b16 %v6681, %v6680
  %v6736 = vpack.c.b16 %v6683, %v6682
  %v6737 = vpack.c.b16 %v6685, %v6684
  %v6738 = vpack.c.b16 %v6687, %v6686
  %v6739 = vpack.c.b16 %v6689, %v6688
  %v6740 = vpack.c.b16 %v6691, %v6690
  %v6741 = vpack.c.b16 %v6693, %v6692
  %v6742 = vpack.c.b16 %v6695, %v6694
  %v6743 = vpack.c.b16 %v6697, %v6696
  %v6744 = vpack.c.b16 %v6699, %v6698
  %v6745 = vpack.c.b16 %v6701, %v6700
  %v6746 = vpack.c.b16 %v6703, %v6702
  %v6747 = vpack.c.b16 %v6705, %v6704
  %v6748 = vpack.c.b16 %v6707, %v6706
  %v6749 = vpack.c.b16 %v6709, %v6708
  %v6750 = vpack.c.b16 %v6711, %v6710
  %v6751 = vpack.c.b16 %v6713, %v6712
  %v6752 = vpack.c.b16 %v6715, %v6714
  %v6753 = vpack.c.b16 %v6717, %v6716
  %v6754 = vpack.c.b16 %v6719, %v6718
  %v6755 = vpack.c.b16 %v6721, %v6720
  %v6756 = vpack.c.b16 %v6723, %v6722
  %v6757 = vpack.c.b16 %v6725, %v6724
  %6758 = vrot.lane.b32.xlu0 %v6726, 64
  %v6759 = vpop.permute.xlu0 %6758
  %6760 = vrot.lane.b32.xlu0 %v6727, 64
  %v6761 = vpop.permute.xlu0 %6760
  %6762 = vrot.lane.b32.xlu0 %v6728, 64
  %v6763 = vpop.permute.xlu0 %6762
  %6764 = vrot.lane.b32.xlu0 %v6729, 64
  %v6765 = vpop.permute.xlu0 %6764
  %6766 = vrot.lane.b32.xlu0 %v6730, 64
  %v6767 = vpop.permute.xlu0 %6766
  %6768 = vrot.lane.b32.xlu0 %v6731, 64
  %v6769 = vpop.permute.xlu0 %6768
  %6770 = vrot.lane.b32.xlu0 %v6732, 64
  %v6771 = vpop.permute.xlu0 %6770
  %6772 = vrot.lane.b32.xlu0 %v6733, 64
  %v6773 = vpop.permute.xlu0 %6772
  %6774 = vrot.lane.b32.xlu0 %v6734, 64
  %v6775 = vpop.permute.xlu0 %6774
  %6776 = vrot.lane.b32.xlu0 %v6735, 64
  %v6777 = vpop.permute.xlu0 %6776
  %6778 = vrot.lane.b32.xlu0 %v6736, 64
  %v6779 = vpop.permute.xlu0 %6778
  %6780 = vrot.lane.b32.xlu0 %v6737, 64
  %v6781 = vpop.permute.xlu0 %6780
  %6782 = vrot.lane.b32.xlu0 %v6738, 64
  %v6783 = vpop.permute.xlu0 %6782
  %6784 = vrot.lane.b32.xlu0 %v6739, 64
  %v6785 = vpop.permute.xlu0 %6784
  %6786 = vrot.lane.b32.xlu0 %v6740, 64
  %v6787 = vpop.permute.xlu0 %6786
  %6788 = vrot.lane.b32.xlu0 %v6741, 64
  %v6789 = vpop.permute.xlu0 %6788
  %6790 = vrot.lane.b32.xlu0 %v6742, 64
  %v6791 = vpop.permute.xlu0 %6790
  %6792 = vrot.lane.b32.xlu0 %v6743, 64
  %v6793 = vpop.permute.xlu0 %6792
  %6794 = vrot.lane.b32.xlu0 %v6744, 64
  %v6795 = vpop.permute.xlu0 %6794
  %6796 = vrot.lane.b32.xlu0 %v6745, 64
  %v6797 = vpop.permute.xlu0 %6796
  %6798 = vrot.lane.b32.xlu0 %v6746, 64
  %v6799 = vpop.permute.xlu0 %6798
  %6800 = vrot.lane.b32.xlu0 %v6747, 64
  %v6801 = vpop.permute.xlu0 %6800
  %6802 = vrot.lane.b32.xlu0 %v6748, 64
  %v6803 = vpop.permute.xlu0 %6802
  %6804 = vrot.lane.b32.xlu0 %v6749, 64
  %v6805 = vpop.permute.xlu0 %6804
  %6806 = vrot.lane.b32.xlu0 %v6750, 64
  %v6807 = vpop.permute.xlu0 %6806
  %6808 = vrot.lane.b32.xlu0 %v6751, 64
  %v6809 = vpop.permute.xlu0 %6808
  %6810 = vrot.lane.b32.xlu0 %v6752, 64
  %v6811 = vpop.permute.xlu0 %6810
  %6812 = vrot.lane.b32.xlu0 %v6753, 64
  %v6813 = vpop.permute.xlu0 %6812
  %6814 = vrot.lane.b32.xlu0 %v6754, 64
  %v6815 = vpop.permute.xlu0 %6814
  %6816 = vrot.lane.b32.xlu0 %v6755, 64
  %v6817 = vpop.permute.xlu0 %6816
  %6818 = vrot.lane.b32.xlu0 %v6756, 64
  %v6819 = vpop.permute.xlu0 %6818
  %6820 = vrot.lane.b32.xlu0 %v6757, 64
  %v6821 = vpop.permute.xlu0 %6820
  %v6822 = vunpack.c.l.b16 %v5163
  %v6823 = vunpack.c.l.b16 %v5171
  %v6824 = vunpack.c.l.b16 %v5177
  %v6825 = vunpack.c.l.b16 %v5185
  %v6826 = vunpack.c.l.b16 %v5191
  %v6827 = vunpack.c.l.b16 %v5199
  %v6828 = vunpack.c.l.b16 %v5205
  %v6829 = vunpack.c.l.b16 %v5213
  %v6830 = vunpack.c.l.b16 %v5219
  %v6831 = vunpack.c.l.b16 %v5227
  %v6832 = vunpack.c.l.b16 %v5233
  %v6833 = vunpack.c.l.b16 %v5241
  %v6834 = vunpack.c.l.b16 %v5247
  %v6835 = vunpack.c.l.b16 %v5255
  %v6836 = vunpack.c.l.b16 %v5261
  %v6837 = vunpack.c.l.b16 %v5269
  %v6838 = vunpack.c.l.b16 %v5275
  %v6839 = vunpack.c.l.b16 %v5283
  %v6840 = vunpack.c.l.b16 %v5289
  %v6841 = vunpack.c.l.b16 %v5297
  %v6842 = vunpack.c.l.b16 %v5303
  %v6843 = vunpack.c.l.b16 %v5311
  %v6844 = vunpack.c.l.b16 %v5317
  %v6845 = vunpack.c.l.b16 %v5325
  %v6846 = vunpack.c.l.b16 %v5331
  %v6847 = vunpack.c.l.b16 %v5339
  %v6848 = vunpack.c.l.b16 %v5345
  %v6849 = vunpack.c.l.b16 %v5353
  %v6850 = vunpack.c.l.b16 %v5359
  %v6851 = vunpack.c.l.b16 %v5367
  %v6852 = vunpack.c.l.b16 %v5373
  %v6853 = vunpack.c.l.b16 %v5381
  %v6854 = vunpack.c.l.b16 %v5387
  %v6855 = vunpack.c.l.b16 %v5395
  %v6856 = vunpack.c.l.b16 %v5401
  %v6857 = vunpack.c.l.b16 %v5409
  %v6858 = vunpack.c.l.b16 %v5415
  %v6859 = vunpack.c.l.b16 %v5423
  %v6860 = vunpack.c.l.b16 %v5429
  %v6861 = vunpack.c.l.b16 %v5437
  %v6862 = vunpack.c.l.b16 %v5443
  %v6863 = vunpack.c.l.b16 %v5451
  %v6864 = vunpack.c.l.b16 %v5457
  %v6865 = vunpack.c.l.b16 %v5465
  %v6866 = vunpack.c.l.b16 %v5471
  %v6867 = vunpack.c.l.b16 %v5479
  %v6868 = vunpack.c.l.b16 %v5485
  %v6869 = vunpack.c.l.b16 %v5493
  %v6870 = vunpack.c.l.b16 %v5499
  %v6871 = vunpack.c.l.b16 %v5507
  %v6872 = vunpack.c.l.b16 %v5513
  %v6873 = vunpack.c.l.b16 %v5521
  %v6874 = vunpack.c.l.b16 %v5527
  %v6875 = vunpack.c.l.b16 %v5535
  %v6876 = vunpack.c.l.b16 %v5541
  %v6877 = vunpack.c.l.b16 %v5549
  %v6878 = vunpack.c.l.b16 %v5555
  %v6879 = vunpack.c.l.b16 %v5563
  %v6880 = vunpack.c.l.b16 %v5569
  %v6881 = vunpack.c.l.b16 %v5577
  %v6882 = vunpack.c.l.b16 %v5583
  %v6883 = vunpack.c.l.b16 %v5591
  %v6884 = vunpack.c.l.b16 %v5597
  %v6885 = vunpack.c.l.b16 %v5605
  %v6886 = vpack.c.b16 %v6823, %v6822
  %v6887 = vpack.c.b16 %v6825, %v6824
  %v6888 = vpack.c.b16 %v6827, %v6826
  %v6889 = vpack.c.b16 %v6829, %v6828
  %v6890 = vpack.c.b16 %v6831, %v6830
  %v6891 = vpack.c.b16 %v6833, %v6832
  %v6892 = vpack.c.b16 %v6835, %v6834
  %v6893 = vpack.c.b16 %v6837, %v6836
  %v6894 = vpack.c.b16 %v6839, %v6838
  %v6895 = vpack.c.b16 %v6841, %v6840
  %v6896 = vpack.c.b16 %v6843, %v6842
  %v6897 = vpack.c.b16 %v6845, %v6844
  %v6898 = vpack.c.b16 %v6847, %v6846
  %v6899 = vpack.c.b16 %v6849, %v6848
  %v6900 = vpack.c.b16 %v6851, %v6850
  %v6901 = vpack.c.b16 %v6853, %v6852
  %v6902 = vpack.c.b16 %v6855, %v6854
  %v6903 = vpack.c.b16 %v6857, %v6856
  %v6904 = vpack.c.b16 %v6859, %v6858
  %v6905 = vpack.c.b16 %v6861, %v6860
  %v6906 = vpack.c.b16 %v6863, %v6862
  %v6907 = vpack.c.b16 %v6865, %v6864
  %v6908 = vpack.c.b16 %v6867, %v6866
  %v6909 = vpack.c.b16 %v6869, %v6868
  %v6910 = vpack.c.b16 %v6871, %v6870
  %v6911 = vpack.c.b16 %v6873, %v6872
  %v6912 = vpack.c.b16 %v6875, %v6874
  %v6913 = vpack.c.b16 %v6877, %v6876
  %v6914 = vpack.c.b16 %v6879, %v6878
  %v6915 = vpack.c.b16 %v6881, %v6880
  %v6916 = vpack.c.b16 %v6883, %v6882
  %v6917 = vpack.c.b16 %v6885, %v6884
  %v6920 = vsel %vm334, %v5670, %v5863
  %v6924 = vsel %vm334, %v5671, %v5865
  %v6928 = vsel %vm334, %v5672, %v5867
  %v6932 = vsel %vm334, %v5673, %v5869
  %v6936 = vsel %vm334, %v5674, %v5871
  %v6940 = vsel %vm334, %v5675, %v5873
  %v6944 = vsel %vm334, %v5676, %v5875
  %v6948 = vsel %vm334, %v5677, %v5877
  %v6952 = vsel %vm334, %v5678, %v5879
  %v6956 = vsel %vm334, %v5679, %v5881
  %v6960 = vsel %vm334, %v5680, %v5883
  %v6964 = vsel %vm334, %v5681, %v5885
  %v6968 = vsel %vm334, %v5682, %v5887
  %v6972 = vsel %vm334, %v5683, %v5889
  %v6976 = vsel %vm334, %v5684, %v5891
  %v6980 = vsel %vm334, %v5685, %v5893
  %v6984 = vsel %vm334, %v5686, %v5895
  %v6988 = vsel %vm334, %v5687, %v5897
  %v6992 = vsel %vm334, %v5688, %v5899
  %v6996 = vsel %vm334, %v5689, %v5901
  %v7000 = vsel %vm334, %v5690, %v5903
  %v7004 = vsel %vm334, %v5691, %v5905
  %v7008 = vsel %vm334, %v5692, %v5907
  %v7012 = vsel %vm334, %v5693, %v5909
  %v7016 = vsel %vm334, %v5694, %v5911
  %v7020 = vsel %vm334, %v5695, %v5913
  %v7024 = vsel %vm334, %v5696, %v5915
  %v7028 = vsel %vm334, %v5697, %v5917
  %v7032 = vsel %vm334, %v5698, %v5919
  %v7036 = vsel %vm334, %v5699, %v5921
  %v7040 = vsel %vm334, %v5700, %v5923
  %v7044 = vsel %vm334, %v5701, %v5925
  %v7048 = vsel %vm334, %v5990, %v6119
  %v7052 = vsel %vm334, %v5991, %v6121
  %v7056 = vsel %vm334, %v5992, %v6123
  %v7060 = vsel %vm334, %v5993, %v6125
  %v7064 = vsel %vm334, %v5994, %v6127
  %v7068 = vsel %vm334, %v5995, %v6129
  %v7072 = vsel %vm334, %v5996, %v6131
  %v7076 = vsel %vm334, %v5997, %v6133
  %v7080 = vsel %vm334, %v5998, %v6135
  %v7084 = vsel %vm334, %v5999, %v6137
  %v7088 = vsel %vm334, %v6000, %v6139
  %v7092 = vsel %vm334, %v6001, %v6141
  %v7096 = vsel %vm334, %v6002, %v6143
  %v7100 = vsel %vm334, %v6003, %v6145
  %v7104 = vsel %vm334, %v6004, %v6147
  %v7108 = vsel %vm334, %v6005, %v6149
  %v7112 = vsel %vm334, %v6006, %v6151
  %v7116 = vsel %vm334, %v6007, %v6153
  %v7120 = vsel %vm334, %v6008, %v6155
  %v7124 = vsel %vm334, %v6009, %v6157
  %v7128 = vsel %vm334, %v6010, %v6159
  %v7132 = vsel %vm334, %v6011, %v6161
  %v7136 = vsel %vm334, %v6012, %v6163
  %v7140 = vsel %vm334, %v6013, %v6165
  %v7144 = vsel %vm334, %v6014, %v6167
  %v7148 = vsel %vm334, %v6015, %v6169
  %v7152 = vsel %vm334, %v6016, %v6171
  %v7156 = vsel %vm334, %v6017, %v6173
  %v7160 = vsel %vm334, %v6018, %v6175
  %v7164 = vsel %vm334, %v6019, %v6177
  %v7168 = vsel %vm334, %v6020, %v6179
  %v7172 = vsel %vm334, %v6021, %v6181
  %v7176 = vsel %vm334, %v6310, %v6439
  %v7180 = vsel %vm334, %v6311, %v6441
  %v7184 = vsel %vm334, %v6312, %v6443
  %v7188 = vsel %vm334, %v6313, %v6445
  %v7192 = vsel %vm334, %v6314, %v6447
  %v7196 = vsel %vm334, %v6315, %v6449
  %v7200 = vsel %vm334, %v6316, %v6451
  %v7204 = vsel %vm334, %v6317, %v6453
  %v7208 = vsel %vm334, %v6318, %v6455
  %v7212 = vsel %vm334, %v6319, %v6457
  %v7216 = vsel %vm334, %v6320, %v6459
  %v7220 = vsel %vm334, %v6321, %v6461
  %v7224 = vsel %vm334, %v6322, %v6463
  %v7228 = vsel %vm334, %v6323, %v6465
  %v7232 = vsel %vm334, %v6324, %v6467
  %v7236 = vsel %vm334, %v6325, %v6469
  %v7240 = vsel %vm334, %v6326, %v6471
  %v7244 = vsel %vm334, %v6327, %v6473
  %v7248 = vsel %vm334, %v6328, %v6475
  %v7252 = vsel %vm334, %v6329, %v6477
  %v7256 = vsel %vm334, %v6330, %v6479
  %v7260 = vsel %vm334, %v6331, %v6481
  %v7264 = vsel %vm334, %v6332, %v6483
  %v7268 = vsel %vm334, %v6333, %v6485
  %v7272 = vsel %vm334, %v6334, %v6487
  %v7276 = vsel %vm334, %v6335, %v6489
  %v7280 = vsel %vm334, %v6336, %v6491
  %v7284 = vsel %vm334, %v6337, %v6493
  %v7288 = vsel %vm334, %v6338, %v6495
  %v7292 = vsel %vm334, %v6339, %v6497
  %v7296 = vsel %vm334, %v6340, %v6499
  %v7300 = vsel %vm334, %v6341, %v6501
  %v7304 = vsel %vm334, %v6566, %v6759
  %v7308 = vsel %vm334, %v6567, %v6761
  %v7312 = vsel %vm334, %v6568, %v6763
  %v7316 = vsel %vm334, %v6569, %v6765
  %v7320 = vsel %vm334, %v6570, %v6767
  %v7324 = vsel %vm334, %v6571, %v6769
  %v7328 = vsel %vm334, %v6572, %v6771
  %v7332 = vsel %vm334, %v6573, %v6773
  %v7336 = vsel %vm334, %v6574, %v6775
  %v7340 = vsel %vm334, %v6575, %v6777
  %v7344 = vsel %vm334, %v6576, %v6779
  %v7348 = vsel %vm334, %v6577, %v6781
  %v7352 = vsel %vm334, %v6578, %v6783
  %v7356 = vsel %vm334, %v6579, %v6785
  %v7360 = vsel %vm334, %v6580, %v6787
  %v7364 = vsel %vm334, %v6581, %v6789
  %v7368 = vsel %vm334, %v6582, %v6791
  %v7372 = vsel %vm334, %v6583, %v6793
  %v7376 = vsel %vm334, %v6584, %v6795
  %v7380 = vsel %vm334, %v6585, %v6797
  %v7384 = vsel %vm334, %v6586, %v6799
  %v7388 = vsel %vm334, %v6587, %v6801
  %v7392 = vsel %vm334, %v6588, %v6803
  %v7396 = vsel %vm334, %v6589, %v6805
  %v7400 = vsel %vm334, %v6590, %v6807
  %v7404 = vsel %vm334, %v6591, %v6809
  %v7408 = vsel %vm334, %v6592, %v6811
  %v7412 = vsel %vm334, %v6593, %v6813
  %v7416 = vsel %vm334, %v6594, %v6815
  %v7420 = vsel %vm334, %v6595, %v6817
  %v7424 = vsel %vm334, %v6596, %v6819
  %v7428 = vsel %vm334, %v6597, %v6821
  %v7430 = vld [vmem:[%s4] sm:$0xf]
  %v7431 = vld [vmem:[%s4 + $0x4] sm:$0xf]
  %v7432 = vld [vmem:[%s4 + $0x8] sm:$0xf]
  %v7433 = vld [vmem:[%s4 + $0xc] sm:$0xf]
  %v7434 = vld [vmem:[%s4 + $0x10] sm:$0xf]
  %v7435 = vld [vmem:[%s4 + $0x14] sm:$0xf]
  %v7436 = vld [vmem:[%s4 + $0x18] sm:$0xf]
  %v7437 = vld [vmem:[%s4 + $0x1c] sm:$0xf]
  %v7438 = vld [vmem:[%s4 + $0x20] sm:$0xf]
  %v7439 = vld [vmem:[%s4 + $0x24] sm:$0xf]
  %v7440 = vld [vmem:[%s4 + $0x28] sm:$0xf]
  %v7441 = vld [vmem:[%s4 + $0x2c] sm:$0xf]
  %v7442 = vld [vmem:[%s4 + $0x30] sm:$0xf]
  %v7443 = vld [vmem:[%s4 + $0x34] sm:$0xf]
  %v7444 = vld [vmem:[%s4 + $0x38] sm:$0xf]
  %v7445 = vld [vmem:[%s4 + $0x3c] sm:$0xf]
  %v7446 = vld [vmem:[%s4 + $0x40] sm:$0xf]
  %v7447 = vld [vmem:[%s4 + $0x44] sm:$0xf]
  %v7448 = vld [vmem:[%s4 + $0x48] sm:$0xf]
  %v7449 = vld [vmem:[%s4 + $0x4c] sm:$0xf]
  %v7450 = vld [vmem:[%s4 + $0x50] sm:$0xf]
  %v7451 = vld [vmem:[%s4 + $0x54] sm:$0xf]
  %v7452 = vld [vmem:[%s4 + $0x58] sm:$0xf]
  %v7453 = vld [vmem:[%s4 + $0x5c] sm:$0xf]
  %v7454 = vld [vmem:[%s4 + $0x60] sm:$0xf]
  %v7455 = vld [vmem:[%s4 + $0x64] sm:$0xf]
  %v7456 = vld [vmem:[%s4 + $0x68] sm:$0xf]
  %v7457 = vld [vmem:[%s4 + $0x6c] sm:$0xf]
  %v7458 = vld [vmem:[%s4 + $0x70] sm:$0xf]
  %v7459 = vld [vmem:[%s4 + $0x74] sm:$0xf]
  %v7460 = vld [vmem:[%s4 + $0x78] sm:$0xf]
  %v7461 = vld [vmem:[%s4 + $0x7c] sm:$0xf]
  %v7462 = vld [vmem:[%s4 + $0x80] sm:$0xf]
  %v7463 = vld [vmem:[%s4 + $0x84] sm:$0xf]
  %v7464 = vld [vmem:[%s4 + $0x88] sm:$0xf]
  %v7465 = vld [vmem:[%s4 + $0x8c] sm:$0xf]
  %v7466 = vld [vmem:[%s4 + $0x90] sm:$0xf]
  %v7467 = vld [vmem:[%s4 + $0x94] sm:$0xf]
  %v7468 = vld [vmem:[%s4 + $0x98] sm:$0xf]
  %v7469 = vld [vmem:[%s4 + $0x9c] sm:$0xf]
  %v7470 = vld [vmem:[%s4 + $0xa0] sm:$0xf]
  %v7471 = vld [vmem:[%s4 + $0xa4] sm:$0xf]
  %v7472 = vld [vmem:[%s4 + $0xa8] sm:$0xf]
  %v7473 = vld [vmem:[%s4 + $0xac] sm:$0xf]
  %v7474 = vld [vmem:[%s4 + $0xb0] sm:$0xf]
  %v7475 = vld [vmem:[%s4 + $0xb4] sm:$0xf]
  %v7476 = vld [vmem:[%s4 + $0xb8] sm:$0xf]
  %v7477 = vld [vmem:[%s4 + $0xbc] sm:$0xf]
  %v7478 = vld [vmem:[%s4 + $0xc0] sm:$0xf]
  %v7479 = vld [vmem:[%s4 + $0xc4] sm:$0xf]
  %v7480 = vld [vmem:[%s4 + $0xc8] sm:$0xf]
  %v7481 = vld [vmem:[%s4 + $0xcc] sm:$0xf]
  %v7482 = vld [vmem:[%s4 + $0xd0] sm:$0xf]
  %v7483 = vld [vmem:[%s4 + $0xd4] sm:$0xf]
  %v7484 = vld [vmem:[%s4 + $0xd8] sm:$0xf]
  %v7485 = vld [vmem:[%s4 + $0xdc] sm:$0xf]
  %v7486 = vld [vmem:[%s4 + $0xe0] sm:$0xf]
  %v7487 = vld [vmem:[%s4 + $0xe4] sm:$0xf]
  %v7488 = vld [vmem:[%s4 + $0xe8] sm:$0xf]
  %v7489 = vld [vmem:[%s4 + $0xec] sm:$0xf]
  %v7490 = vld [vmem:[%s4 + $0xf0] sm:$0xf]
  %v7491 = vld [vmem:[%s4 + $0xf4] sm:$0xf]
  %v7492 = vld [vmem:[%s4 + $0xf8] sm:$0xf]
  %v7493 = vld [vmem:[%s4 + $0xfc] sm:$0xf]
  %v7494 = vld [vmem:[%s4 + $0x100] sm:$0xf]
  %v7495 = vld [vmem:[%s4 + $0x104] sm:$0xf]
  %v7496 = vld [vmem:[%s4 + $0x108] sm:$0xf]
  %v7497 = vld [vmem:[%s4 + $0x10c] sm:$0xf]
  %v7498 = vld [vmem:[%s4 + $0x110] sm:$0xf]
  %v7499 = vld [vmem:[%s4 + $0x114] sm:$0xf]
  %v7500 = vld [vmem:[%s4 + $0x118] sm:$0xf]
  %v7501 = vld [vmem:[%s4 + $0x11c] sm:$0xf]
  %v7502 = vld [vmem:[%s5] sm:$0x1]
  %v7504 = vlaneseq
  %v7505 = vshrl.u32 %v7504, 7
  %v7506 = vsub.s32 0, %v7505
  %v7507 = vrot.slane %v7502, %v7506
  %v7581 = vunpack.c.l.b16 %v7430
  %v7582 = vunpack.c.l.b16 %v7431
  %v7583 = vunpack.c.l.b16 %v7432
  %v7584 = vunpack.c.l.b16 %v7433
  %v7585 = vunpack.c.l.b16 %v7434
  %v7586 = vunpack.c.l.b16 %v7435
  %v7587 = vunpack.c.l.b16 %v7436
  %v7588 = vunpack.c.l.b16 %v7437
  %v7589 = vunpack.c.l.b16 %v7438
  %v7590 = vunpack.c.l.b16 %v7439
  %v7591 = vunpack.c.l.b16 %v7440
  %v7592 = vunpack.c.l.b16 %v7441
  %v7593 = vunpack.c.l.b16 %v7442
  %v7594 = vunpack.c.l.b16 %v7443
  %v7595 = vunpack.c.l.b16 %v7444
  %v7596 = vunpack.c.l.b16 %v7445
  %v7597 = vunpack.c.l.b16 %v7446
  %v7598 = vunpack.c.l.b16 %v7447
  %v7599 = vunpack.c.l.b16 %v7448
  %v7600 = vunpack.c.l.b16 %v7449
  %v7601 = vunpack.c.l.b16 %v7450
  %v7602 = vunpack.c.l.b16 %v7451
  %v7603 = vunpack.c.l.b16 %v7452
  %v7604 = vunpack.c.l.b16 %v7453
  %v7605 = vunpack.c.l.b16 %v7454
  %v7606 = vunpack.c.l.b16 %v7455
  %v7607 = vunpack.c.l.b16 %v7456
  %v7608 = vunpack.c.l.b16 %v7457
  %v7609 = vunpack.c.l.b16 %v7458
  %v7610 = vunpack.c.l.b16 %v7459
  %v7611 = vunpack.c.l.b16 %v7460
  %v7612 = vunpack.c.l.b16 %v7461
  %v7613 = vunpack.c.l.b16 %v7462
  %v7614 = vunpack.c.l.b16 %v7463
  %v7615 = vunpack.c.l.b16 %v7464
  %v7616 = vunpack.c.l.b16 %v7465
  %v7617 = vunpack.c.l.b16 %v7466
  %v7618 = vunpack.c.l.b16 %v7467
  %v7619 = vunpack.c.l.b16 %v7468
  %v7620 = vunpack.c.l.b16 %v7469
  %v7621 = vunpack.c.l.b16 %v7470
  %v7622 = vunpack.c.l.b16 %v7471
  %v7623 = vunpack.c.l.b16 %v7472
  %v7624 = vunpack.c.l.b16 %v7473
  %v7625 = vunpack.c.l.b16 %v7474
  %v7626 = vunpack.c.l.b16 %v7475
  %v7627 = vunpack.c.l.b16 %v7476
  %v7628 = vunpack.c.l.b16 %v7477
  %v7629 = vunpack.c.l.b16 %v7478
  %v7630 = vunpack.c.l.b16 %v7479
  %v7631 = vunpack.c.l.b16 %v7480
  %v7632 = vunpack.c.l.b16 %v7481
  %v7633 = vunpack.c.l.b16 %v7482
  %v7634 = vunpack.c.l.b16 %v7483
  %v7635 = vunpack.c.l.b16 %v7484
  %v7636 = vunpack.c.l.b16 %v7485
  %v7637 = vunpack.c.l.b16 %v7486
  %v7638 = vunpack.c.l.b16 %v7487
  %v7639 = vunpack.c.l.b16 %v7488
  %v7640 = vunpack.c.l.b16 %v7489
  %v7641 = vunpack.c.l.b16 %v7490
  %v7642 = vunpack.c.l.b16 %v7491
  %v7643 = vunpack.c.l.b16 %v7492
  %v7644 = vunpack.c.l.b16 %v7493
  %v7645 = vunpack.c.l.b16 %v7494
  %v7646 = vunpack.c.l.b16 %v7495
  %v7647 = vunpack.c.l.b16 %v7496
  %v7648 = vunpack.c.l.b16 %v7497
  %v7649 = vunpack.c.l.b16 %v7498
  %v7650 = vunpack.c.l.b16 %v7499
  %v7651 = vunpack.c.l.b16 %v7500
  %v7652 = vunpack.c.l.b16 %v7501
  %v7653 = vpack.c.b16 %v7582, %v7581
  %v7654 = vpack.c.b16 %v7584, %v7583
  %v7655 = vpack.c.b16 %v7586, %v7585
  %v7656 = vpack.c.b16 %v7588, %v7587
  %v7657 = vpack.c.b16 %v7590, %v7589
  %v7658 = vpack.c.b16 %v7592, %v7591
  %v7659 = vpack.c.b16 %v7594, %v7593
  %v7660 = vpack.c.b16 %v7596, %v7595
  %v7661 = vpack.c.b16 %v7598, %v7597
  %v7662 = vpack.c.b16 %v7600, %v7599
  %v7663 = vpack.c.b16 %v7602, %v7601
  %v7664 = vpack.c.b16 %v7604, %v7603
  %v7665 = vpack.c.b16 %v7606, %v7605
  %v7666 = vpack.c.b16 %v7608, %v7607
  %v7667 = vpack.c.b16 %v7610, %v7609
  %v7668 = vpack.c.b16 %v7612, %v7611
  %v7669 = vpack.c.b16 %v7614, %v7613
  %v7670 = vpack.c.b16 %v7616, %v7615
  %v7671 = vpack.c.b16 %v7618, %v7617
  %v7672 = vpack.c.b16 %v7620, %v7619
  %v7673 = vpack.c.b16 %v7622, %v7621
  %v7674 = vpack.c.b16 %v7624, %v7623
  %v7675 = vpack.c.b16 %v7626, %v7625
  %v7676 = vpack.c.b16 %v7628, %v7627
  %v7677 = vpack.c.b16 %v7630, %v7629
  %v7678 = vpack.c.b16 %v7632, %v7631
  %v7679 = vpack.c.b16 %v7634, %v7633
  %v7680 = vpack.c.b16 %v7636, %v7635
  %v7681 = vpack.c.b16 %v7638, %v7637
  %v7682 = vpack.c.b16 %v7640, %v7639
  %v7683 = vpack.c.b16 %v7642, %v7641
  %v7684 = vpack.c.b16 %v7644, %v7643
  %v7685 = vpack.c.b16 %v7646, %v7645
  %v7686 = vpack.c.b16 %v7648, %v7647
  %v7687 = vpack.c.b16 %v7650, %v7649
  %v7688 = vpack.c.b16 %v7652, %v7651
  %v7726 = vsel %vm334, %v6886, 0
  %v7729 = vsel %vm334, %v6887, 0
  %v7732 = vsel %vm334, %v6888, 0
  %v7735 = vsel %vm334, %v6889, 0
  %v7738 = vsel %vm334, %v6890, 0
  %v7741 = vsel %vm334, %v6891, 0
  %v7744 = vsel %vm334, %v6892, 0
  %v7747 = vsel %vm334, %v6893, 0
  %v7750 = vsel %vm334, %v6894, 0
  %v7753 = vsel %vm334, %v6895, 0
  %v7756 = vsel %vm334, %v6896, 0
  %v7759 = vsel %vm334, %v6897, 0
  %v7762 = vsel %vm334, %v6898, 0
  %v7765 = vsel %vm334, %v6899, 0
  %v7768 = vsel %vm334, %v6900, 0
  %v7771 = vsel %vm334, %v6901, 0
  %v7774 = vsel %vm334, %v6902, 0
  %v7777 = vsel %vm334, %v6903, 0
  %v7780 = vsel %vm334, %v6904, 0
  %v7783 = vsel %vm334, %v6905, 0
  %v7786 = vsel %vm334, %v6906, 0
  %v7789 = vsel %vm334, %v6907, 0
  %v7792 = vsel %vm334, %v6908, 0
  %v7795 = vsel %vm334, %v6909, 0
  %v7798 = vsel %vm334, %v6910, 0
  %v7801 = vsel %vm334, %v6911, 0
  %v7804 = vsel %vm334, %v6912, 0
  %v7807 = vsel %vm334, %v6913, 0
  %v7810 = vsel %vm334, %v6914, 0
  %v7813 = vsel %vm334, %v6915, 0
  %v7816 = vsel %vm334, %v6916, 0
  %v7819 = vsel %vm334, %v6917, 0
  %7821 = vmatprep.subr.bf16.mxu0 0
  %7822 = vmatpush1.bf16.msra.mxu0 %v7660
  %7823 = vmatprep.subr.bf16.mxu0 0
  %7824 = vmatpush1.bf16.msra.mxu0 %v7659
  %7825 = vmatprep.subr.bf16.mxu0 0
  %7826 = vmatpush1.bf16.msra.mxu0 %v7658
  %7827 = vmatprep.subr.bf16.mxu0 0
  %7828 = vmatpush1.bf16.msra.mxu0 %v7657
  %7829 = vmatprep.subr.bf16.mxu0 0
  %7830 = vmatpush1.bf16.msra.mxu0 %v7656
  %7831 = vmatprep.subr.bf16.mxu0 0
  %7832 = vmatpush1.bf16.msra.mxu0 %v7655
  %7833 = vmatprep.subr.bf16.mxu0 0
  %7834 = vmatpush1.bf16.msra.mxu0 %v7654
  %7835 = vmatprep.subr.bf16.mxu0 0
  %7836 = vmatpush1.bf16.msra.mxu0 %v7653
  %7837 = vmatprep.subr.bf16.mxu0 0
  %7838 = vmatpush2.bf16.msra.mxu0 %v7668
  %7839 = vmatprep.subr.bf16.mxu0 0
  %7840 = vmatpush2.bf16.msra.mxu0 %v7667
  %7841 = vmatprep.subr.bf16.mxu0 0
  %7842 = vmatpush2.bf16.msra.mxu0 %v7666
  %7843 = vmatprep.subr.bf16.mxu0 0
  %7844 = vmatpush2.bf16.msra.mxu0 %v7665
  %7845 = vmatprep.subr.bf16.mxu0 0
  %7846 = vmatpush2.bf16.msra.mxu0 %v7664
  %7847 = vmatprep.subr.bf16.mxu0 0
  %7848 = vmatpush2.bf16.msra.mxu0 %v7663
  %7849 = vmatprep.subr.bf16.mxu0 0
  %7850 = vmatpush2.bf16.msra.mxu0 %v7662
  %7851 = vmatprep.subr.bf16.mxu0 0
  %7852 = vmatpush2.bf16.msra.mxu0 %v7661
  %7853 = vmatprep.mubr.bf16.mxu0 %v7048
  %7854 = vmatmul.mubr.bf16.gmra.mxu0 %v6920
  %v7855 = vpop.f32.mrf.mxu0
  %v7856 = vadd.f32 %v7507, %v7855
  %v7857 = vpop.f32.mrf.mxu0
  %v7858 = vpop.f32.mrf.mxu0
  %v7859 = vadd.f32 %v7507, %v7858
  %v7860 = vpop.f32.mrf.mxu0
  %7861 = vmatprep.mubr.bf16.mxu0 %v7052
  %7862 = vmatmul.mubr.bf16.gmra.mxu0 %v6924
  %v7863 = vpop.f32.mrf.mxu0
  %v7864 = vadd.f32 %v7507, %v7863
  %v7865 = vpop.f32.mrf.mxu0
  %v7866 = vpop.f32.mrf.mxu0
  %v7867 = vadd.f32 %v7507, %v7866
  %v7868 = vpop.f32.mrf.mxu0
  %7869 = vmatprep.mubr.bf16.mxu0 %v7056
  %7870 = vmatmul.mubr.bf16.gmra.mxu0 %v6928
  %v7871 = vpop.f32.mrf.mxu0
  %v7872 = vadd.f32 %v7507, %v7871
  %v7873 = vpop.f32.mrf.mxu0
  %v7874 = vpop.f32.mrf.mxu0
  %v7875 = vadd.f32 %v7507, %v7874
  %v7876 = vpop.f32.mrf.mxu0
  %7877 = vmatprep.mubr.bf16.mxu0 %v7060
  %7878 = vmatmul.mubr.bf16.gmra.mxu0 %v6932
  %v7879 = vpop.f32.mrf.mxu0
  %v7880 = vadd.f32 %v7507, %v7879
  %v7881 = vpop.f32.mrf.mxu0
  %v7882 = vpop.f32.mrf.mxu0
  %v7883 = vadd.f32 %v7507, %v7882
  %v7884 = vpop.f32.mrf.mxu0
  %7885 = vmatprep.mubr.bf16.mxu0 %v7064
  %7886 = vmatmul.mubr.bf16.gmra.mxu0 %v6936
  %v7887 = vpop.f32.mrf.mxu0
  %v7888 = vadd.f32 %v7507, %v7887
  %v7889 = vpop.f32.mrf.mxu0
  %v7890 = vpop.f32.mrf.mxu0
  %v7891 = vadd.f32 %v7507, %v7890
  %v7892 = vpop.f32.mrf.mxu0
  %7893 = vmatprep.mubr.bf16.mxu0 %v7068
  %7894 = vmatmul.mubr.bf16.gmra.mxu0 %v6940
  %v7895 = vpop.f32.mrf.mxu0
  %v7896 = vadd.f32 %v7507, %v7895
  %v7897 = vpop.f32.mrf.mxu0
  %v7898 = vpop.f32.mrf.mxu0
  %v7899 = vadd.f32 %v7507, %v7898
  %v7900 = vpop.f32.mrf.mxu0
  %7901 = vmatprep.mubr.bf16.mxu0 %v7072
  %7902 = vmatmul.mubr.bf16.gmra.mxu0 %v6944
  %v7903 = vpop.f32.mrf.mxu0
  %v7904 = vadd.f32 %v7507, %v7903
  %v7905 = vpop.f32.mrf.mxu0
  %v7906 = vpop.f32.mrf.mxu0
  %v7907 = vadd.f32 %v7507, %v7906
  %v7908 = vpop.f32.mrf.mxu0
  %7909 = vmatprep.mubr.bf16.mxu0 %v7076
  %7910 = vmatmul.mubr.bf16.gmra.mxu0 %v6948
  %v7911 = vpop.f32.mrf.mxu0
  %v7912 = vadd.f32 %v7507, %v7911
  %v7913 = vpop.f32.mrf.mxu0
  %v7914 = vpop.f32.mrf.mxu0
  %v7915 = vadd.f32 %v7507, %v7914
  %v7916 = vpop.f32.mrf.mxu0
  %7917 = vmatprep.mubr.bf16.mxu0 %v7080
  %7918 = vmatmul.mubr.bf16.gmra.mxu0 %v6952
  %v7919 = vpop.f32.mrf.mxu0
  %v7920 = vadd.f32 %v7507, %v7919
  %v7921 = vpop.f32.mrf.mxu0
  %v7922 = vpop.f32.mrf.mxu0
  %v7923 = vadd.f32 %v7507, %v7922
  %v7924 = vpop.f32.mrf.mxu0
  %7925 = vmatprep.mubr.bf16.mxu0 %v7084
  %7926 = vmatmul.mubr.bf16.gmra.mxu0 %v6956
  %v7927 = vpop.f32.mrf.mxu0
  %v7928 = vadd.f32 %v7507, %v7927
  %v7929 = vpop.f32.mrf.mxu0
  %v7930 = vpop.f32.mrf.mxu0
  %v7931 = vadd.f32 %v7507, %v7930
  %v7932 = vpop.f32.mrf.mxu0
  %7933 = vmatprep.mubr.bf16.mxu0 %v7088
  %7934 = vmatmul.mubr.bf16.gmra.mxu0 %v6960
  %v7935 = vpop.f32.mrf.mxu0
  %v7936 = vadd.f32 %v7507, %v7935
  %v7937 = vpop.f32.mrf.mxu0
  %v7938 = vpop.f32.mrf.mxu0
  %v7939 = vadd.f32 %v7507, %v7938
  %v7940 = vpop.f32.mrf.mxu0
  %7941 = vmatprep.mubr.bf16.mxu0 %v7092
  %7942 = vmatmul.mubr.bf16.gmra.mxu0 %v6964
  %v7943 = vpop.f32.mrf.mxu0
  %v7944 = vadd.f32 %v7507, %v7943
  %v7945 = vpop.f32.mrf.mxu0
  %v7946 = vpop.f32.mrf.mxu0
  %v7947 = vadd.f32 %v7507, %v7946
  %v7948 = vpop.f32.mrf.mxu0
  %7949 = vmatprep.mubr.bf16.mxu0 %v7096
  %7950 = vmatmul.mubr.bf16.gmra.mxu0 %v6968
  %v7951 = vpop.f32.mrf.mxu0
  %v7952 = vadd.f32 %v7507, %v7951
  %v7953 = vpop.f32.mrf.mxu0
  %v7954 = vpop.f32.mrf.mxu0
  %v7955 = vadd.f32 %v7507, %v7954
  %v7956 = vpop.f32.mrf.mxu0
  %7957 = vmatprep.mubr.bf16.mxu0 %v7100
  %7958 = vmatmul.mubr.bf16.gmra.mxu0 %v6972
  %v7959 = vpop.f32.mrf.mxu0
  %v7960 = vadd.f32 %v7507, %v7959
  %v7961 = vpop.f32.mrf.mxu0
  %v7962 = vpop.f32.mrf.mxu0
  %v7963 = vadd.f32 %v7507, %v7962
  %v7964 = vpop.f32.mrf.mxu0
  %7965 = vmatprep.mubr.bf16.mxu0 %v7104
  %7966 = vmatmul.mubr.bf16.gmra.mxu0 %v6976
  %v7967 = vpop.f32.mrf.mxu0
  %v7968 = vadd.f32 %v7507, %v7967
  %v7969 = vpop.f32.mrf.mxu0
  %v7970 = vpop.f32.mrf.mxu0
  %v7971 = vadd.f32 %v7507, %v7970
  %v7972 = vpop.f32.mrf.mxu0
  %7973 = vmatprep.mubr.bf16.mxu0 %v7108
  %7974 = vmatmul.mubr.bf16.gmra.mxu0 %v6980
  %v7975 = vpop.f32.mrf.mxu0
  %v7976 = vadd.f32 %v7507, %v7975
  %v7977 = vpop.f32.mrf.mxu0
  %v7978 = vpop.f32.mrf.mxu0
  %v7979 = vadd.f32 %v7507, %v7978
  %v7980 = vpop.f32.mrf.mxu0
  %7981 = vmatprep.mubr.bf16.mxu0 %v7112
  %7982 = vmatmul.mubr.bf16.gmra.mxu0 %v6984
  %v7983 = vpop.f32.mrf.mxu0
  %v7984 = vadd.f32 %v7507, %v7983
  %v7985 = vpop.f32.mrf.mxu0
  %v7986 = vpop.f32.mrf.mxu0
  %v7987 = vadd.f32 %v7507, %v7986
  %v7988 = vpop.f32.mrf.mxu0
  %7989 = vmatprep.mubr.bf16.mxu0 %v7116
  %7990 = vmatmul.mubr.bf16.gmra.mxu0 %v6988
  %v7991 = vpop.f32.mrf.mxu0
  %v7992 = vadd.f32 %v7507, %v7991
  %v7993 = vpop.f32.mrf.mxu0
  %v7994 = vpop.f32.mrf.mxu0
  %v7995 = vadd.f32 %v7507, %v7994
  %v7996 = vpop.f32.mrf.mxu0
  %7997 = vmatprep.mubr.bf16.mxu0 %v7120
  %7998 = vmatmul.mubr.bf16.gmra.mxu0 %v6992
  %v7999 = vpop.f32.mrf.mxu0
  %v8000 = vadd.f32 %v7507, %v7999
  %v8001 = vpop.f32.mrf.mxu0
  %v8002 = vpop.f32.mrf.mxu0
  %v8003 = vadd.f32 %v7507, %v8002
  %v8004 = vpop.f32.mrf.mxu0
  %8005 = vmatprep.mubr.bf16.mxu0 %v7124
  %8006 = vmatmul.mubr.bf16.gmra.mxu0 %v6996
  %v8007 = vpop.f32.mrf.mxu0
  %v8008 = vadd.f32 %v7507, %v8007
  %v8009 = vpop.f32.mrf.mxu0
  %v8010 = vpop.f32.mrf.mxu0
  %v8011 = vadd.f32 %v7507, %v8010
  %v8012 = vpop.f32.mrf.mxu0
  %8013 = vmatprep.mubr.bf16.mxu0 %v7128
  %8014 = vmatmul.mubr.bf16.gmra.mxu0 %v7000
  %v8015 = vpop.f32.mrf.mxu0
  %v8016 = vadd.f32 %v7507, %v8015
  %v8017 = vpop.f32.mrf.mxu0
  %v8018 = vpop.f32.mrf.mxu0
  %v8019 = vadd.f32 %v7507, %v8018
  %v8020 = vpop.f32.mrf.mxu0
  %8021 = vmatprep.mubr.bf16.mxu0 %v7132
  %8022 = vmatmul.mubr.bf16.gmra.mxu0 %v7004
  %v8023 = vpop.f32.mrf.mxu0
  %v8024 = vadd.f32 %v7507, %v8023
  %v8025 = vpop.f32.mrf.mxu0
  %v8026 = vpop.f32.mrf.mxu0
  %v8027 = vadd.f32 %v7507, %v8026
  %v8028 = vpop.f32.mrf.mxu0
  %8029 = vmatprep.mubr.bf16.mxu0 %v7136
  %8030 = vmatmul.mubr.bf16.gmra.mxu0 %v7008
  %v8031 = vpop.f32.mrf.mxu0
  %v8032 = vadd.f32 %v7507, %v8031
  %v8033 = vpop.f32.mrf.mxu0
  %v8034 = vpop.f32.mrf.mxu0
  %v8035 = vadd.f32 %v7507, %v8034
  %v8036 = vpop.f32.mrf.mxu0
  %8037 = vmatprep.mubr.bf16.mxu0 %v7140
  %8038 = vmatmul.mubr.bf16.gmra.mxu0 %v7012
  %v8039 = vpop.f32.mrf.mxu0
  %v8040 = vadd.f32 %v7507, %v8039
  %v8041 = vpop.f32.mrf.mxu0
  %v8042 = vpop.f32.mrf.mxu0
  %v8043 = vadd.f32 %v7507, %v8042
  %v8044 = vpop.f32.mrf.mxu0
  %8045 = vmatprep.mubr.bf16.mxu0 %v7144
  %8046 = vmatmul.mubr.bf16.gmra.mxu0 %v7016
  %v8047 = vpop.f32.mrf.mxu0
  %v8048 = vadd.f32 %v7507, %v8047
  %v8049 = vpop.f32.mrf.mxu0
  %v8050 = vpop.f32.mrf.mxu0
  %v8051 = vadd.f32 %v7507, %v8050
  %v8052 = vpop.f32.mrf.mxu0
  %8053 = vmatprep.mubr.bf16.mxu0 %v7148
  %8054 = vmatmul.mubr.bf16.gmra.mxu0 %v7020
  %v8055 = vpop.f32.mrf.mxu0
  %v8056 = vadd.f32 %v7507, %v8055
  %v8057 = vpop.f32.mrf.mxu0
  %v8058 = vpop.f32.mrf.mxu0
  %v8059 = vadd.f32 %v7507, %v8058
  %v8060 = vpop.f32.mrf.mxu0
  %8061 = vmatprep.mubr.bf16.mxu0 %v7152
  %8062 = vmatmul.mubr.bf16.gmra.mxu0 %v7024
  %v8063 = vpop.f32.mrf.mxu0
  %v8064 = vadd.f32 %v7507, %v8063
  %v8065 = vpop.f32.mrf.mxu0
  %v8066 = vpop.f32.mrf.mxu0
  %v8067 = vadd.f32 %v7507, %v8066
  %v8068 = vpop.f32.mrf.mxu0
  %8069 = vmatprep.mubr.bf16.mxu0 %v7156
  %8070 = vmatmul.mubr.bf16.gmra.mxu0 %v7028
  %v8071 = vpop.f32.mrf.mxu0
  %v8072 = vadd.f32 %v7507, %v8071
  %v8073 = vpop.f32.mrf.mxu0
  %v8074 = vpop.f32.mrf.mxu0
  %v8075 = vadd.f32 %v7507, %v8074
  %v8076 = vpop.f32.mrf.mxu0
  %8077 = vmatprep.mubr.bf16.mxu0 %v7160
  %8078 = vmatmul.mubr.bf16.gmra.mxu0 %v7032
  %v8079 = vpop.f32.mrf.mxu0
  %v8080 = vadd.f32 %v7507, %v8079
  %v8081 = vpop.f32.mrf.mxu0
  %v8082 = vpop.f32.mrf.mxu0
  %v8083 = vadd.f32 %v7507, %v8082
  %v8084 = vpop.f32.mrf.mxu0
  %8085 = vmatprep.mubr.bf16.mxu0 %v7164
  %8086 = vmatmul.mubr.bf16.gmra.mxu0 %v7036
  %v8087 = vpop.f32.mrf.mxu0
  %v8088 = vadd.f32 %v7507, %v8087
  %v8089 = vpop.f32.mrf.mxu0
  %v8090 = vpop.f32.mrf.mxu0
  %v8091 = vadd.f32 %v7507, %v8090
  %v8092 = vpop.f32.mrf.mxu0
  %8093 = vmatprep.mubr.bf16.mxu0 %v7168
  %8094 = vmatmul.mubr.bf16.gmra.mxu0 %v7040
  %v8095 = vpop.f32.mrf.mxu0
  %v8096 = vadd.f32 %v7507, %v8095
  %v8097 = vpop.f32.mrf.mxu0
  %v8098 = vpop.f32.mrf.mxu0
  %v8099 = vadd.f32 %v7507, %v8098
  %v8100 = vpop.f32.mrf.mxu0
  %8101 = vmatprep.mubr.bf16.mxu0 %v7172
  %8102 = vmatmul.mubr.bf16.gmra.mxu0 %v7044
  %v8103 = vpop.f32.mrf.mxu0
  %v8104 = vadd.f32 %v7507, %v8103
  %v8105 = vpop.f32.mrf.mxu0
  %v8106 = vpop.f32.mrf.mxu0
  %v8107 = vadd.f32 %v7507, %v8106
  %v8108 = vpop.f32.mrf.mxu0
  %8109 = vdwg.mxu0
  %8110 = vmatprep.subr.bf16.mxu0 0
  %8111 = vmatpush1.bf16.msra.mxu0 %v7676
  %8112 = vmatprep.subr.bf16.mxu0 0
  %8113 = vmatpush1.bf16.msra.mxu0 %v7675
  %8114 = vmatprep.subr.bf16.mxu0 0
  %8115 = vmatpush1.bf16.msra.mxu0 %v7674
  %8116 = vmatprep.subr.bf16.mxu0 0
  %8117 = vmatpush1.bf16.msra.mxu0 %v7673
  %8118 = vmatprep.subr.bf16.mxu0 0
  %8119 = vmatpush1.bf16.msra.mxu0 %v7672
  %8120 = vmatprep.subr.bf16.mxu0 0
  %8121 = vmatpush1.bf16.msra.mxu0 %v7671
  %8122 = vmatprep.subr.bf16.mxu0 0
  %8123 = vmatpush1.bf16.msra.mxu0 %v7670
  %8124 = vmatprep.subr.bf16.mxu0 0
  %8125 = vmatpush1.bf16.msra.mxu0 %v7669
  %8126 = vmatprep.subr.bf16.mxu0 0
  %8127 = vmatpush2.bf16.msra.mxu0 %v7684
  %8128 = vmatprep.subr.bf16.mxu0 0
  %8129 = vmatpush2.bf16.msra.mxu0 %v7683
  %8130 = vmatprep.subr.bf16.mxu0 0
  %8131 = vmatpush2.bf16.msra.mxu0 %v7682
  %8132 = vmatprep.subr.bf16.mxu0 0
  %8133 = vmatpush2.bf16.msra.mxu0 %v7681
  %8134 = vmatprep.subr.bf16.mxu0 0
  %8135 = vmatpush2.bf16.msra.mxu0 %v7680
  %8136 = vmatprep.subr.bf16.mxu0 0
  %8137 = vmatpush2.bf16.msra.mxu0 %v7679
  %8138 = vmatprep.subr.bf16.mxu0 0
  %8139 = vmatpush2.bf16.msra.mxu0 %v7678
  %8140 = vmatprep.subr.bf16.mxu0 0
  %8141 = vmatpush2.bf16.msra.mxu0 %v7677
  %8142 = vmatprep.mubr.bf16.mxu0 %v7304
  %8143 = vmatmul.mubr.bf16.gmra.mxu0 %v7176
  %v8144 = vpop.f32.mrf.mxu0
  %v8145 = vadd.f32 %v7856, %v8144
  %v8146 = vpop.f32.mrf.mxu0
  %v8147 = vpop.f32.mrf.mxu0
  %v8148 = vadd.f32 %v7859, %v8147
  %v8149 = vpop.f32.mrf.mxu0
  %8150 = vmatprep.mubr.bf16.mxu0 %v7308
  %8151 = vmatmul.mubr.bf16.gmra.mxu0 %v7180
  %v8152 = vpop.f32.mrf.mxu0
  %v8153 = vadd.f32 %v7864, %v8152
  %v8154 = vpop.f32.mrf.mxu0
  %v8155 = vpop.f32.mrf.mxu0
  %v8156 = vadd.f32 %v7867, %v8155
  %v8157 = vpop.f32.mrf.mxu0
  %8158 = vmatprep.mubr.bf16.mxu0 %v7312
  %8159 = vmatmul.mubr.bf16.gmra.mxu0 %v7184
  %v8160 = vpop.f32.mrf.mxu0
  %v8161 = vadd.f32 %v7872, %v8160
  %v8162 = vpop.f32.mrf.mxu0
  %v8163 = vpop.f32.mrf.mxu0
  %v8164 = vadd.f32 %v7875, %v8163
  %v8165 = vpop.f32.mrf.mxu0
  %8166 = vmatprep.mubr.bf16.mxu0 %v7316
  %8167 = vmatmul.mubr.bf16.gmra.mxu0 %v7188
  %v8168 = vpop.f32.mrf.mxu0
  %v8169 = vadd.f32 %v7880, %v8168
  %v8170 = vpop.f32.mrf.mxu0
  %v8171 = vpop.f32.mrf.mxu0
  %v8172 = vadd.f32 %v7883, %v8171
  %v8173 = vpop.f32.mrf.mxu0
  %8174 = vmatprep.mubr.bf16.mxu0 %v7320
  %8175 = vmatmul.mubr.bf16.gmra.mxu0 %v7192
  %v8176 = vpop.f32.mrf.mxu0
  %v8177 = vadd.f32 %v7888, %v8176
  %v8178 = vpop.f32.mrf.mxu0
  %v8179 = vpop.f32.mrf.mxu0
  %v8180 = vadd.f32 %v7891, %v8179
  %v8181 = vpop.f32.mrf.mxu0
  %8182 = vmatprep.mubr.bf16.mxu0 %v7324
  %8183 = vmatmul.mubr.bf16.gmra.mxu0 %v7196
  %v8184 = vpop.f32.mrf.mxu0
  %v8185 = vadd.f32 %v7896, %v8184
  %v8186 = vpop.f32.mrf.mxu0
  %v8187 = vpop.f32.mrf.mxu0
  %v8188 = vadd.f32 %v7899, %v8187
  %v8189 = vpop.f32.mrf.mxu0
  %8190 = vmatprep.mubr.bf16.mxu0 %v7328
  %8191 = vmatmul.mubr.bf16.gmra.mxu0 %v7200
  %v8192 = vpop.f32.mrf.mxu0
  %v8193 = vadd.f32 %v7904, %v8192
  %v8194 = vpop.f32.mrf.mxu0
  %v8195 = vpop.f32.mrf.mxu0
  %v8196 = vadd.f32 %v7907, %v8195
  %v8197 = vpop.f32.mrf.mxu0
  %8198 = vmatprep.mubr.bf16.mxu0 %v7332
  %8199 = vmatmul.mubr.bf16.gmra.mxu0 %v7204
  %v8200 = vpop.f32.mrf.mxu0
  %v8201 = vadd.f32 %v7912, %v8200
  %v8202 = vpop.f32.mrf.mxu0
  %v8203 = vpop.f32.mrf.mxu0
  %v8204 = vadd.f32 %v7915, %v8203
  %v8205 = vpop.f32.mrf.mxu0
  %8206 = vmatprep.mubr.bf16.mxu0 %v7336
  %8207 = vmatmul.mubr.bf16.gmra.mxu0 %v7208
  %v8208 = vpop.f32.mrf.mxu0
  %v8209 = vadd.f32 %v7920, %v8208
  %v8210 = vpop.f32.mrf.mxu0
  %v8211 = vpop.f32.mrf.mxu0
  %v8212 = vadd.f32 %v7923, %v8211
  %v8213 = vpop.f32.mrf.mxu0
  %8214 = vmatprep.mubr.bf16.mxu0 %v7340
  %8215 = vmatmul.mubr.bf16.gmra.mxu0 %v7212
  %v8216 = vpop.f32.mrf.mxu0
  %v8217 = vadd.f32 %v7928, %v8216
  %v8218 = vpop.f32.mrf.mxu0
  %v8219 = vpop.f32.mrf.mxu0
  %v8220 = vadd.f32 %v7931, %v8219
  %v8221 = vpop.f32.mrf.mxu0
  %8222 = vmatprep.mubr.bf16.mxu0 %v7344
  %8223 = vmatmul.mubr.bf16.gmra.mxu0 %v7216
  %v8224 = vpop.f32.mrf.mxu0
  %v8225 = vadd.f32 %v7936, %v8224
  %v8226 = vpop.f32.mrf.mxu0
  %v8227 = vpop.f32.mrf.mxu0
  %v8228 = vadd.f32 %v7939, %v8227
  %v8229 = vpop.f32.mrf.mxu0
  %8230 = vmatprep.mubr.bf16.mxu0 %v7348
  %8231 = vmatmul.mubr.bf16.gmra.mxu0 %v7220
  %v8232 = vpop.f32.mrf.mxu0
  %v8233 = vadd.f32 %v7944, %v8232
  %v8234 = vpop.f32.mrf.mxu0
  %v8235 = vpop.f32.mrf.mxu0
  %v8236 = vadd.f32 %v7947, %v8235
  %v8237 = vpop.f32.mrf.mxu0
  %8238 = vmatprep.mubr.bf16.mxu0 %v7352
  %8239 = vmatmul.mubr.bf16.gmra.mxu0 %v7224
  %v8240 = vpop.f32.mrf.mxu0
  %v8241 = vadd.f32 %v7952, %v8240
  %v8242 = vpop.f32.mrf.mxu0
  %v8243 = vpop.f32.mrf.mxu0
  %v8244 = vadd.f32 %v7955, %v8243
  %v8245 = vpop.f32.mrf.mxu0
  %8246 = vmatprep.mubr.bf16.mxu0 %v7356
  %8247 = vmatmul.mubr.bf16.gmra.mxu0 %v7228
  %v8248 = vpop.f32.mrf.mxu0
  %v8249 = vadd.f32 %v7960, %v8248
  %v8250 = vpop.f32.mrf.mxu0
  %v8251 = vpop.f32.mrf.mxu0
  %v8252 = vadd.f32 %v7963, %v8251
  %v8253 = vpop.f32.mrf.mxu0
  %8254 = vmatprep.mubr.bf16.mxu0 %v7360
  %8255 = vmatmul.mubr.bf16.gmra.mxu0 %v7232
  %v8256 = vpop.f32.mrf.mxu0
  %v8257 = vadd.f32 %v7968, %v8256
  %v8258 = vpop.f32.mrf.mxu0
  %v8259 = vpop.f32.mrf.mxu0
  %v8260 = vadd.f32 %v7971, %v8259
  %v8261 = vpop.f32.mrf.mxu0
  %8262 = vmatprep.mubr.bf16.mxu0 %v7364
  %8263 = vmatmul.mubr.bf16.gmra.mxu0 %v7236
  %v8264 = vpop.f32.mrf.mxu0
  %v8265 = vadd.f32 %v7976, %v8264
  %v8266 = vpop.f32.mrf.mxu0
  %v8267 = vpop.f32.mrf.mxu0
  %v8268 = vadd.f32 %v7979, %v8267
  %v8269 = vpop.f32.mrf.mxu0
  %8270 = vmatprep.mubr.bf16.mxu0 %v7368
  %8271 = vmatmul.mubr.bf16.gmra.mxu0 %v7240
  %v8272 = vpop.f32.mrf.mxu0
  %v8273 = vadd.f32 %v7984, %v8272
  %v8274 = vpop.f32.mrf.mxu0
  %v8275 = vpop.f32.mrf.mxu0
  %v8276 = vadd.f32 %v7987, %v8275
  %v8277 = vpop.f32.mrf.mxu0
  %8278 = vmatprep.mubr.bf16.mxu0 %v7372
  %8279 = vmatmul.mubr.bf16.gmra.mxu0 %v7244
  %v8280 = vpop.f32.mrf.mxu0
  %v8281 = vadd.f32 %v7992, %v8280
  %v8282 = vpop.f32.mrf.mxu0
  %v8283 = vpop.f32.mrf.mxu0
  %v8284 = vadd.f32 %v7995, %v8283
  %v8285 = vpop.f32.mrf.mxu0
  %8286 = vmatprep.mubr.bf16.mxu0 %v7376
  %8287 = vmatmul.mubr.bf16.gmra.mxu0 %v7248
  %v8288 = vpop.f32.mrf.mxu0
  %v8289 = vadd.f32 %v8000, %v8288
  %v8290 = vpop.f32.mrf.mxu0
  %v8291 = vpop.f32.mrf.mxu0
  %v8292 = vadd.f32 %v8003, %v8291
  %v8293 = vpop.f32.mrf.mxu0
  %8294 = vmatprep.mubr.bf16.mxu0 %v7380
  %8295 = vmatmul.mubr.bf16.gmra.mxu0 %v7252
  %v8296 = vpop.f32.mrf.mxu0
  %v8297 = vadd.f32 %v8008, %v8296
  %v8298 = vpop.f32.mrf.mxu0
  %v8299 = vpop.f32.mrf.mxu0
  %v8300 = vadd.f32 %v8011, %v8299
  %v8301 = vpop.f32.mrf.mxu0
  %8302 = vmatprep.mubr.bf16.mxu0 %v7384
  %8303 = vmatmul.mubr.bf16.gmra.mxu0 %v7256
  %v8304 = vpop.f32.mrf.mxu0
  %v8305 = vadd.f32 %v8016, %v8304
  %v8306 = vpop.f32.mrf.mxu0
  %v8307 = vpop.f32.mrf.mxu0
  %v8308 = vadd.f32 %v8019, %v8307
  %v8309 = vpop.f32.mrf.mxu0
  %8310 = vmatprep.mubr.bf16.mxu0 %v7388
  %8311 = vmatmul.mubr.bf16.gmra.mxu0 %v7260
  %v8312 = vpop.f32.mrf.mxu0
  %v8313 = vadd.f32 %v8024, %v8312
  %v8314 = vpop.f32.mrf.mxu0
  %v8315 = vpop.f32.mrf.mxu0
  %v8316 = vadd.f32 %v8027, %v8315
  %v8317 = vpop.f32.mrf.mxu0
  %8318 = vmatprep.mubr.bf16.mxu0 %v7392
  %8319 = vmatmul.mubr.bf16.gmra.mxu0 %v7264
  %v8320 = vpop.f32.mrf.mxu0
  %v8321 = vadd.f32 %v8032, %v8320
  %v8322 = vpop.f32.mrf.mxu0
  %v8323 = vpop.f32.mrf.mxu0
  %v8324 = vadd.f32 %v8035, %v8323
  %v8325 = vpop.f32.mrf.mxu0
  %8326 = vmatprep.mubr.bf16.mxu0 %v7396
  %8327 = vmatmul.mubr.bf16.gmra.mxu0 %v7268
  %v8328 = vpop.f32.mrf.mxu0
  %v8329 = vadd.f32 %v8040, %v8328
  %v8330 = vpop.f32.mrf.mxu0
  %v8331 = vpop.f32.mrf.mxu0
  %v8332 = vadd.f32 %v8043, %v8331
  %v8333 = vpop.f32.mrf.mxu0
  %8334 = vmatprep.mubr.bf16.mxu0 %v7400
  %8335 = vmatmul.mubr.bf16.gmra.mxu0 %v7272
  %v8336 = vpop.f32.mrf.mxu0
  %v8337 = vadd.f32 %v8048, %v8336
  %v8338 = vpop.f32.mrf.mxu0
  %v8339 = vpop.f32.mrf.mxu0
  %v8340 = vadd.f32 %v8051, %v8339
  %v8341 = vpop.f32.mrf.mxu0
  %8342 = vmatprep.mubr.bf16.mxu0 %v7404
  %8343 = vmatmul.mubr.bf16.gmra.mxu0 %v7276
  %v8344 = vpop.f32.mrf.mxu0
  %v8345 = vadd.f32 %v8056, %v8344
  %v8346 = vpop.f32.mrf.mxu0
  %v8347 = vpop.f32.mrf.mxu0
  %v8348 = vadd.f32 %v8059, %v8347
  %v8349 = vpop.f32.mrf.mxu0
  %8350 = vmatprep.mubr.bf16.mxu0 %v7408
  %8351 = vmatmul.mubr.bf16.gmra.mxu0 %v7280
  %v8352 = vpop.f32.mrf.mxu0
  %v8353 = vadd.f32 %v8064, %v8352
  %v8354 = vpop.f32.mrf.mxu0
  %v8355 = vpop.f32.mrf.mxu0
  %v8356 = vadd.f32 %v8067, %v8355
  %v8357 = vpop.f32.mrf.mxu0
  %8358 = vmatprep.mubr.bf16.mxu0 %v7412
  %8359 = vmatmul.mubr.bf16.gmra.mxu0 %v7284
  %v8360 = vpop.f32.mrf.mxu0
  %v8361 = vadd.f32 %v8072, %v8360
  %v8362 = vpop.f32.mrf.mxu0
  %v8363 = vpop.f32.mrf.mxu0
  %v8364 = vadd.f32 %v8075, %v8363
  %v8365 = vpop.f32.mrf.mxu0
  %8366 = vmatprep.mubr.bf16.mxu0 %v7416
  %8367 = vmatmul.mubr.bf16.gmra.mxu0 %v7288
  %v8368 = vpop.f32.mrf.mxu0
  %v8369 = vadd.f32 %v8080, %v8368
  %v8370 = vpop.f32.mrf.mxu0
  %v8371 = vpop.f32.mrf.mxu0
  %v8372 = vadd.f32 %v8083, %v8371
  %v8373 = vpop.f32.mrf.mxu0
  %8374 = vmatprep.mubr.bf16.mxu0 %v7420
  %8375 = vmatmul.mubr.bf16.gmra.mxu0 %v7292
  %v8376 = vpop.f32.mrf.mxu0
  %v8377 = vadd.f32 %v8088, %v8376
  %v8378 = vpop.f32.mrf.mxu0
  %v8379 = vpop.f32.mrf.mxu0
  %v8380 = vadd.f32 %v8091, %v8379
  %v8381 = vpop.f32.mrf.mxu0
  %8382 = vmatprep.mubr.bf16.mxu0 %v7424
  %8383 = vmatmul.mubr.bf16.gmra.mxu0 %v7296
  %v8384 = vpop.f32.mrf.mxu0
  %v8385 = vadd.f32 %v8096, %v8384
  %v8386 = vpop.f32.mrf.mxu0
  %v8387 = vpop.f32.mrf.mxu0
  %v8388 = vadd.f32 %v8099, %v8387
  %v8389 = vpop.f32.mrf.mxu0
  %8390 = vmatprep.mubr.bf16.mxu0 %v7428
  %8391 = vmatmul.mubr.bf16.gmra.mxu0 %v7300
  %v8392 = vpop.f32.mrf.mxu0
  %v8393 = vadd.f32 %v8104, %v8392
  %v8394 = vpop.f32.mrf.mxu0
  %v8395 = vpop.f32.mrf.mxu0
  %v8396 = vadd.f32 %v8107, %v8395
  %v8397 = vpop.f32.mrf.mxu0
  %8398 = vdwg.mxu0
  %8399 = vmatprep.subr.bf16.mxu0 0
  %8400 = vmatpush1.bf16.msra.mxu0 0
  %8401 = vmatprep.subr.bf16.mxu0 0
  %8402 = vmatpush1.bf16.msra.mxu0 0
  %8403 = vmatprep.subr.bf16.mxu0 0
  %8404 = vmatpush1.bf16.msra.mxu0 0
  %8405 = vmatprep.subr.bf16.mxu0 0
  %8406 = vmatpush1.bf16.msra.mxu0 0
  %8407 = vmatprep.subr.bf16.mxu0 0
  %8408 = vmatpush1.bf16.msra.mxu0 %v7688
  %8409 = vmatprep.subr.bf16.mxu0 0
  %8410 = vmatpush1.bf16.msra.mxu0 %v7687
  %8411 = vmatprep.subr.bf16.mxu0 0
  %8412 = vmatpush1.bf16.msra.mxu0 %v7686
  %8413 = vmatprep.subr.bf16.mxu0 0
  %8414 = vmatpush1.bf16.msra.mxu0 %v7685
  %8415 = vmatprep.subr.bf16.mxu0 0
  %8416 = vmatpush2.bf16.msra.mxu0 0
  %8417 = vmatprep.subr.bf16.mxu0 0
  %8418 = vmatpush2.bf16.msra.mxu0 0
  %8419 = vmatprep.subr.bf16.mxu0 0
  %8420 = vmatpush2.bf16.msra.mxu0 0
  %8421 = vmatprep.subr.bf16.mxu0 0
  %8422 = vmatpush2.bf16.msra.mxu0 0
  %8423 = vmatprep.subr.bf16.mxu0 0
  %8424 = vmatpush2.bf16.msra.mxu0 0
  %8425 = vmatprep.subr.bf16.mxu0 0
  %8426 = vmatpush2.bf16.msra.mxu0 0
  %8427 = vmatprep.subr.bf16.mxu0 0
  %8428 = vmatpush2.bf16.msra.mxu0 0
  %8429 = vmatprep.subr.bf16.mxu0 0
  %8430 = vmatpush2.bf16.msra.mxu0 0
  %8431 = vmatprep.mubr.bf16.mxu0 0
  %8432 = vmatmul.mubr.bf16.gmra.mxu0 %v7726
  %v8433 = vpop.f32.mrf.mxu0
  %v8434 = vadd.f32 %v8145, %v8433
  %v8435 = vpop.f32.mrf.mxu0
  %v8436 = vpop.f32.mrf.mxu0
  %v8437 = vadd.f32 %v8148, %v8436
  %v8438 = vpop.f32.mrf.mxu0
  %8439 = vmatprep.mubr.bf16.mxu0 0
  %8440 = vmatmul.mubr.bf16.gmra.mxu0 %v7729
  %v8441 = vpop.f32.mrf.mxu0
  %v8442 = vadd.f32 %v8153, %v8441
  %v8443 = vpop.f32.mrf.mxu0
  %v8444 = vpop.f32.mrf.mxu0
  %v8445 = vadd.f32 %v8156, %v8444
  %v8446 = vpop.f32.mrf.mxu0
  %8447 = vmatprep.mubr.bf16.mxu0 0
  %8448 = vmatmul.mubr.bf16.gmra.mxu0 %v7732
  %v8449 = vpop.f32.mrf.mxu0
  %v8450 = vadd.f32 %v8161, %v8449
  %v8451 = vpop.f32.mrf.mxu0
  %v8452 = vpop.f32.mrf.mxu0
  %v8453 = vadd.f32 %v8164, %v8452
  %v8454 = vpop.f32.mrf.mxu0
  %8455 = vmatprep.mubr.bf16.mxu0 0
  %8456 = vmatmul.mubr.bf16.gmra.mxu0 %v7735
  %v8457 = vpop.f32.mrf.mxu0
  %v8458 = vadd.f32 %v8169, %v8457
  %v8459 = vpop.f32.mrf.mxu0
  %v8460 = vpop.f32.mrf.mxu0
  %v8461 = vadd.f32 %v8172, %v8460
  %v8462 = vpop.f32.mrf.mxu0
  %8463 = vmatprep.mubr.bf16.mxu0 0
  %8464 = vmatmul.mubr.bf16.gmra.mxu0 %v7738
  %v8465 = vpop.f32.mrf.mxu0
  %v8466 = vadd.f32 %v8177, %v8465
  %v8467 = vpop.f32.mrf.mxu0
  %v8468 = vpop.f32.mrf.mxu0
  %v8469 = vadd.f32 %v8180, %v8468
  %v8470 = vpop.f32.mrf.mxu0
  %8471 = vmatprep.mubr.bf16.mxu0 0
  %8472 = vmatmul.mubr.bf16.gmra.mxu0 %v7741
  %v8473 = vpop.f32.mrf.mxu0
  %v8474 = vadd.f32 %v8185, %v8473
  %v8475 = vpop.f32.mrf.mxu0
  %v8476 = vpop.f32.mrf.mxu0
  %v8477 = vadd.f32 %v8188, %v8476
  %v8478 = vpop.f32.mrf.mxu0
  %8479 = vmatprep.mubr.bf16.mxu0 0
  %8480 = vmatmul.mubr.bf16.gmra.mxu0 %v7744
  %v8481 = vpop.f32.mrf.mxu0
  %v8482 = vadd.f32 %v8193, %v8481
  %v8483 = vpop.f32.mrf.mxu0
  %v8484 = vpop.f32.mrf.mxu0
  %v8485 = vadd.f32 %v8196, %v8484
  %v8486 = vpop.f32.mrf.mxu0
  %8487 = vmatprep.mubr.bf16.mxu0 0
  %8488 = vmatmul.mubr.bf16.gmra.mxu0 %v7747
  %v8489 = vpop.f32.mrf.mxu0
  %v8490 = vadd.f32 %v8201, %v8489
  %v8491 = vpop.f32.mrf.mxu0
  %v8492 = vpop.f32.mrf.mxu0
  %v8493 = vadd.f32 %v8204, %v8492
  %v8494 = vpop.f32.mrf.mxu0
  %8495 = vmatprep.mubr.bf16.mxu0 0
  %8496 = vmatmul.mubr.bf16.gmra.mxu0 %v7750
  %v8497 = vpop.f32.mrf.mxu0
  %v8498 = vadd.f32 %v8209, %v8497
  %v8499 = vpop.f32.mrf.mxu0
  %v8500 = vpop.f32.mrf.mxu0
  %v8501 = vadd.f32 %v8212, %v8500
  %v8502 = vpop.f32.mrf.mxu0
  %8503 = vmatprep.mubr.bf16.mxu0 0
  %8504 = vmatmul.mubr.bf16.gmra.mxu0 %v7753
  %v8505 = vpop.f32.mrf.mxu0
  %v8506 = vadd.f32 %v8217, %v8505
  %v8507 = vpop.f32.mrf.mxu0
  %v8508 = vpop.f32.mrf.mxu0
  %v8509 = vadd.f32 %v8220, %v8508
  %v8510 = vpop.f32.mrf.mxu0
  %8511 = vmatprep.mubr.bf16.mxu0 0
  %8512 = vmatmul.mubr.bf16.gmra.mxu0 %v7756
  %v8513 = vpop.f32.mrf.mxu0
  %v8514 = vadd.f32 %v8225, %v8513
  %v8515 = vpop.f32.mrf.mxu0
  %v8516 = vpop.f32.mrf.mxu0
  %v8517 = vadd.f32 %v8228, %v8516
  %v8518 = vpop.f32.mrf.mxu0
  %8519 = vmatprep.mubr.bf16.mxu0 0
  %8520 = vmatmul.mubr.bf16.gmra.mxu0 %v7759
  %v8521 = vpop.f32.mrf.mxu0
  %v8522 = vadd.f32 %v8233, %v8521
  %v8523 = vpop.f32.mrf.mxu0
  %v8524 = vpop.f32.mrf.mxu0
  %v8525 = vadd.f32 %v8236, %v8524
  %v8526 = vpop.f32.mrf.mxu0
  %8527 = vmatprep.mubr.bf16.mxu0 0
  %8528 = vmatmul.mubr.bf16.gmra.mxu0 %v7762
  %v8529 = vpop.f32.mrf.mxu0
  %v8530 = vadd.f32 %v8241, %v8529
  %v8531 = vpop.f32.mrf.mxu0
  %v8532 = vpop.f32.mrf.mxu0
  %v8533 = vadd.f32 %v8244, %v8532
  %v8534 = vpop.f32.mrf.mxu0
  %8535 = vmatprep.mubr.bf16.mxu0 0
  %8536 = vmatmul.mubr.bf16.gmra.mxu0 %v7765
  %v8537 = vpop.f32.mrf.mxu0
  %v8538 = vadd.f32 %v8249, %v8537
  %v8539 = vpop.f32.mrf.mxu0
  %v8540 = vpop.f32.mrf.mxu0
  %v8541 = vadd.f32 %v8252, %v8540
  %v8542 = vpop.f32.mrf.mxu0
  %8543 = vmatprep.mubr.bf16.mxu0 0
  %8544 = vmatmul.mubr.bf16.gmra.mxu0 %v7768
  %v8545 = vpop.f32.mrf.mxu0
  %v8546 = vadd.f32 %v8257, %v8545
  %v8547 = vpop.f32.mrf.mxu0
  %v8548 = vpop.f32.mrf.mxu0
  %v8549 = vadd.f32 %v8260, %v8548
  %v8550 = vpop.f32.mrf.mxu0
  %8551 = vmatprep.mubr.bf16.mxu0 0
  %8552 = vmatmul.mubr.bf16.gmra.mxu0 %v7771
  %v8553 = vpop.f32.mrf.mxu0
  %v8554 = vadd.f32 %v8265, %v8553
  %v8555 = vpop.f32.mrf.mxu0
  %v8556 = vpop.f32.mrf.mxu0
  %v8557 = vadd.f32 %v8268, %v8556
  %v8558 = vpop.f32.mrf.mxu0
  %8559 = vmatprep.mubr.bf16.mxu0 0
  %8560 = vmatmul.mubr.bf16.gmra.mxu0 %v7774
  %v8561 = vpop.f32.mrf.mxu0
  %v8562 = vadd.f32 %v8273, %v8561
  %v8563 = vpop.f32.mrf.mxu0
  %v8564 = vpop.f32.mrf.mxu0
  %v8565 = vadd.f32 %v8276, %v8564
  %v8566 = vpop.f32.mrf.mxu0
  %8567 = vmatprep.mubr.bf16.mxu0 0
  %8568 = vmatmul.mubr.bf16.gmra.mxu0 %v7777
  %v8569 = vpop.f32.mrf.mxu0
  %v8570 = vadd.f32 %v8281, %v8569
  %v8571 = vpop.f32.mrf.mxu0
  %v8572 = vpop.f32.mrf.mxu0
  %v8573 = vadd.f32 %v8284, %v8572
  %v8574 = vpop.f32.mrf.mxu0
  %8575 = vmatprep.mubr.bf16.mxu0 0
  %8576 = vmatmul.mubr.bf16.gmra.mxu0 %v7780
  %v8577 = vpop.f32.mrf.mxu0
  %v8578 = vadd.f32 %v8289, %v8577
  %v8579 = vpop.f32.mrf.mxu0
  %v8580 = vpop.f32.mrf.mxu0
  %v8581 = vadd.f32 %v8292, %v8580
  %v8582 = vpop.f32.mrf.mxu0
  %8583 = vmatprep.mubr.bf16.mxu0 0
  %8584 = vmatmul.mubr.bf16.gmra.mxu0 %v7783
  %v8585 = vpop.f32.mrf.mxu0
  %v8586 = vadd.f32 %v8297, %v8585
  %v8587 = vpop.f32.mrf.mxu0
  %v8588 = vpop.f32.mrf.mxu0
  %v8589 = vadd.f32 %v8300, %v8588
  %v8590 = vpop.f32.mrf.mxu0
  %8591 = vmatprep.mubr.bf16.mxu0 0
  %8592 = vmatmul.mubr.bf16.gmra.mxu0 %v7786
  %v8593 = vpop.f32.mrf.mxu0
  %v8594 = vadd.f32 %v8305, %v8593
  %v8595 = vpop.f32.mrf.mxu0
  %v8596 = vpop.f32.mrf.mxu0
  %v8597 = vadd.f32 %v8308, %v8596
  %v8598 = vpop.f32.mrf.mxu0
  %8599 = vmatprep.mubr.bf16.mxu0 0
  %8600 = vmatmul.mubr.bf16.gmra.mxu0 %v7789
  %v8601 = vpop.f32.mrf.mxu0
  %v8602 = vadd.f32 %v8313, %v8601
  %v8603 = vpop.f32.mrf.mxu0
  %v8604 = vpop.f32.mrf.mxu0
  %v8605 = vadd.f32 %v8316, %v8604
  %v8606 = vpop.f32.mrf.mxu0
  %8607 = vmatprep.mubr.bf16.mxu0 0
  %8608 = vmatmul.mubr.bf16.gmra.mxu0 %v7792
  %v8609 = vpop.f32.mrf.mxu0
  %v8610 = vadd.f32 %v8321, %v8609
  %v8611 = vpop.f32.mrf.mxu0
  %v8612 = vpop.f32.mrf.mxu0
  %v8613 = vadd.f32 %v8324, %v8612
  %v8614 = vpop.f32.mrf.mxu0
  %8615 = vmatprep.mubr.bf16.mxu0 0
  %8616 = vmatmul.mubr.bf16.gmra.mxu0 %v7795
  %v8617 = vpop.f32.mrf.mxu0
  %v8618 = vadd.f32 %v8329, %v8617
  %v8619 = vpop.f32.mrf.mxu0
  %v8620 = vpop.f32.mrf.mxu0
  %v8621 = vadd.f32 %v8332, %v8620
  %v8622 = vpop.f32.mrf.mxu0
  %8623 = vmatprep.mubr.bf16.mxu0 0
  %8624 = vmatmul.mubr.bf16.gmra.mxu0 %v7798
  %v8625 = vpop.f32.mrf.mxu0
  %v8626 = vadd.f32 %v8337, %v8625
  %v8627 = vpop.f32.mrf.mxu0
  %v8628 = vpop.f32.mrf.mxu0
  %v8629 = vadd.f32 %v8340, %v8628
  %v8630 = vpop.f32.mrf.mxu0
  %8631 = vmatprep.mubr.bf16.mxu0 0
  %8632 = vmatmul.mubr.bf16.gmra.mxu0 %v7801
  %v8633 = vpop.f32.mrf.mxu0
  %v8634 = vadd.f32 %v8345, %v8633
  %v8635 = vpop.f32.mrf.mxu0
  %v8636 = vpop.f32.mrf.mxu0
  %v8637 = vadd.f32 %v8348, %v8636
  %v8638 = vpop.f32.mrf.mxu0
  %8639 = vmatprep.mubr.bf16.mxu0 0
  %8640 = vmatmul.mubr.bf16.gmra.mxu0 %v7804
  %v8641 = vpop.f32.mrf.mxu0
  %v8642 = vadd.f32 %v8353, %v8641
  %v8643 = vpop.f32.mrf.mxu0
  %v8644 = vpop.f32.mrf.mxu0
  %v8645 = vadd.f32 %v8356, %v8644
  %v8646 = vpop.f32.mrf.mxu0
  %8647 = vmatprep.mubr.bf16.mxu0 0
  %8648 = vmatmul.mubr.bf16.gmra.mxu0 %v7807
  %v8649 = vpop.f32.mrf.mxu0
  %v8650 = vadd.f32 %v8361, %v8649
  %v8651 = vpop.f32.mrf.mxu0
  %v8652 = vpop.f32.mrf.mxu0
  %v8653 = vadd.f32 %v8364, %v8652
  %v8654 = vpop.f32.mrf.mxu0
  %8655 = vmatprep.mubr.bf16.mxu0 0
  %8656 = vmatmul.mubr.bf16.gmra.mxu0 %v7810
  %v8657 = vpop.f32.mrf.mxu0
  %v8658 = vadd.f32 %v8369, %v8657
  %v8659 = vpop.f32.mrf.mxu0
  %v8660 = vpop.f32.mrf.mxu0
  %v8661 = vadd.f32 %v8372, %v8660
  %v8662 = vpop.f32.mrf.mxu0
  %8663 = vmatprep.mubr.bf16.mxu0 0
  %8664 = vmatmul.mubr.bf16.gmra.mxu0 %v7813
  %v8665 = vpop.f32.mrf.mxu0
  %v8666 = vadd.f32 %v8377, %v8665
  %v8667 = vpop.f32.mrf.mxu0
  %v8668 = vpop.f32.mrf.mxu0
  %v8669 = vadd.f32 %v8380, %v8668
  %v8670 = vpop.f32.mrf.mxu0
  %8671 = vmatprep.mubr.bf16.mxu0 0
  %8672 = vmatmul.mubr.bf16.gmra.mxu0 %v7816
  %v8673 = vpop.f32.mrf.mxu0
  %v8674 = vadd.f32 %v8385, %v8673
  %v8675 = vpop.f32.mrf.mxu0
  %v8676 = vpop.f32.mrf.mxu0
  %v8677 = vadd.f32 %v8388, %v8676
  %v8678 = vpop.f32.mrf.mxu0
  %8679 = vmatprep.mubr.bf16.mxu0 0
  %8680 = vmatmul.mubr.bf16.gmra.mxu0 %v7819
  %v8681 = vpop.f32.mrf.mxu0
  %v8682 = vadd.f32 %v8393, %v8681
  %v8683 = vpop.f32.mrf.mxu0
  %v8684 = vpop.f32.mrf.mxu0
  %v8685 = vadd.f32 %v8396, %v8684
  %v8686 = vpop.f32.mrf.mxu0
  %8687 = vdwg.mxu0
  %v8688 = vmax.f32 %v8434, 0.0
  %v8689 = vmax.f32 %v8437, 0.0
  %v8690 = vmax.f32 %v8442, 0.0
  %v8691 = vmax.f32 %v8445, 0.0
  %v8692 = vmax.f32 %v8450, 0.0
  %v8693 = vmax.f32 %v8453, 0.0
  %v8694 = vmax.f32 %v8458, 0.0
  %v8695 = vmax.f32 %v8461, 0.0
  %v8696 = vmax.f32 %v8466, 0.0
  %v8697 = vmax.f32 %v8469, 0.0
  %v8698 = vmax.f32 %v8474, 0.0
  %v8699 = vmax.f32 %v8477, 0.0
  %v8700 = vmax.f32 %v8482, 0.0
  %v8701 = vmax.f32 %v8485, 0.0
  %v8702 = vmax.f32 %v8490, 0.0
  %v8703 = vmax.f32 %v8493, 0.0
  %v8704 = vmax.f32 %v8498, 0.0
  %v8705 = vmax.f32 %v8501, 0.0
  %v8706 = vmax.f32 %v8506, 0.0
  %v8707 = vmax.f32 %v8509, 0.0
  %v8708 = vmax.f32 %v8514, 0.0
  %v8709 = vmax.f32 %v8517, 0.0
  %v8710 = vmax.f32 %v8522, 0.0
  %v8711 = vmax.f32 %v8525, 0.0
  %v8712 = vmax.f32 %v8530, 0.0
  %v8713 = vmax.f32 %v8533, 0.0
  %v8714 = vmax.f32 %v8538, 0.0
  %v8715 = vmax.f32 %v8541, 0.0
  %v8716 = vmax.f32 %v8546, 0.0
  %v8717 = vmax.f32 %v8549, 0.0
  %v8718 = vmax.f32 %v8554, 0.0
  %v8719 = vmax.f32 %v8557, 0.0
  %v8720 = vmax.f32 %v8562, 0.0
  %v8721 = vmax.f32 %v8565, 0.0
  %v8722 = vmax.f32 %v8570, 0.0
  %v8723 = vmax.f32 %v8573, 0.0
  %v8724 = vmax.f32 %v8578, 0.0
  %v8725 = vmax.f32 %v8581, 0.0
  %v8726 = vmax.f32 %v8586, 0.0
  %v8727 = vmax.f32 %v8589, 0.0
  %v8728 = vmax.f32 %v8594, 0.0
  %v8729 = vmax.f32 %v8597, 0.0
  %v8730 = vmax.f32 %v8602, 0.0
  %v8731 = vmax.f32 %v8605, 0.0
  %v8732 = vmax.f32 %v8610, 0.0
  %v8733 = vmax.f32 %v8613, 0.0
  %v8734 = vmax.f32 %v8618, 0.0
  %v8735 = vmax.f32 %v8621, 0.0
  %v8736 = vmax.f32 %v8626, 0.0
  %v8737 = vmax.f32 %v8629, 0.0
  %v8738 = vmax.f32 %v8634, 0.0
  %v8739 = vmax.f32 %v8637, 0.0
  %v8740 = vmax.f32 %v8642, 0.0
  %v8741 = vmax.f32 %v8645, 0.0
  %v8742 = vmax.f32 %v8650, 0.0
  %v8743 = vmax.f32 %v8653, 0.0
  %v8744 = vmax.f32 %v8658, 0.0
  %v8745 = vmax.f32 %v8661, 0.0
  %v8746 = vmax.f32 %v8666, 0.0
  %v8747 = vmax.f32 %v8669, 0.0
  %v8748 = vmax.f32 %v8674, 0.0
  %v8749 = vmax.f32 %v8677, 0.0
  %v8750 = vmax.f32 %v8682, 0.0
  %v8751 = vmax.f32 %v8685, 0.0
  %v8752 = vpack.c.bf16 %v8689, %v8688
  %v8753 = vpack.c.bf16 %v8691, %v8690
  %v8754 = vpack.c.bf16 %v8693, %v8692
  %v8755 = vpack.c.bf16 %v8695, %v8694
  %v8756 = vpack.c.bf16 %v8697, %v8696
  %v8757 = vpack.c.bf16 %v8699, %v8698
  %v8758 = vpack.c.bf16 %v8701, %v8700
  %v8759 = vpack.c.bf16 %v8703, %v8702
  %v8760 = vpack.c.bf16 %v8705, %v8704
  %v8761 = vpack.c.bf16 %v8707, %v8706
  %v8762 = vpack.c.bf16 %v8709, %v8708
  %v8763 = vpack.c.bf16 %v8711, %v8710
  %v8764 = vpack.c.bf16 %v8713, %v8712
  %v8765 = vpack.c.bf16 %v8715, %v8714
  %v8766 = vpack.c.bf16 %v8717, %v8716
  %v8767 = vpack.c.bf16 %v8719, %v8718
  %v8768 = vpack.c.bf16 %v8721, %v8720
  %v8769 = vpack.c.bf16 %v8723, %v8722
  %v8770 = vpack.c.bf16 %v8725, %v8724
  %v8771 = vpack.c.bf16 %v8727, %v8726
  %v8772 = vpack.c.bf16 %v8729, %v8728
  %v8773 = vpack.c.bf16 %v8731, %v8730
  %v8774 = vpack.c.bf16 %v8733, %v8732
  %v8775 = vpack.c.bf16 %v8735, %v8734
  %v8776 = vpack.c.bf16 %v8737, %v8736
  %v8777 = vpack.c.bf16 %v8739, %v8738
  %v8778 = vpack.c.bf16 %v8741, %v8740
  %v8779 = vpack.c.bf16 %v8743, %v8742
  %v8780 = vpack.c.bf16 %v8745, %v8744
  %v8781 = vpack.c.bf16 %v8747, %v8746
  %v8782 = vpack.c.bf16 %v8749, %v8748
  %v8783 = vpack.c.bf16 %v8751, %v8750
  %v8784 = vld [vmem:[%s6] sm:$0xff]
  %v8785 = vld [vmem:[%s6 + $0x8] sm:$0xff]
  %v8786 = vld [vmem:[%s6 + $0x10] sm:$0xff]
  %v8787 = vld [vmem:[%s6 + $0x18] sm:$0xff]
  %v8788 = vld [vmem:[%s6 + $0x20] sm:$0xff]
  %v8789 = vld [vmem:[%s6 + $0x28] sm:$0xff]
  %v8790 = vld [vmem:[%s6 + $0x30] sm:$0xff]
  %v8791 = vld [vmem:[%s6 + $0x38] sm:$0xff]
  %v8792 = vld [vmem:[%s7] sm:$0x3]
  %v8794 = vlaneseq
  %v8795 = vshrl.u32 %v8794, 7
  %v8796 = vsub.s32 0, %v8795
  %v8797 = vrot.slane %v8792, %v8796
  %v8798 = vlaneseq
  %v8799 = vshrl.u32 %v8798, 7
  %v8800 = vsub.s32 1, %v8799
  %v8801 = vrot.slane %v8792, %v8800
  %v8812 = vunpack.c.l.b16 %v8784
  %v8813 = vunpack.c.h.b16 %v8784
  %v8814 = vunpack.c.l.b16 %v8785
  %v8815 = vunpack.c.h.b16 %v8785
  %v8816 = vunpack.c.l.b16 %v8786
  %v8817 = vunpack.c.h.b16 %v8786
  %v8818 = vunpack.c.l.b16 %v8787
  %v8819 = vunpack.c.h.b16 %v8787
  %v8820 = vunpack.c.l.b16 %v8788
  %v8821 = vunpack.c.h.b16 %v8788
  %v8822 = vunpack.c.l.b16 %v8789
  %v8823 = vunpack.c.h.b16 %v8789
  %v8824 = vunpack.c.l.b16 %v8790
  %v8825 = vunpack.c.h.b16 %v8790
  %v8826 = vunpack.c.l.b16 %v8791
  %v8827 = vunpack.c.h.b16 %v8791
  %v8828 = vpack.c.b16 %v8814, %v8812
  %v8829 = vpack.c.b16 %v8815, %v8813
  %v8830 = vpack.c.b16 %v8818, %v8816
  %v8831 = vpack.c.b16 %v8819, %v8817
  %v8832 = vpack.c.b16 %v8822, %v8820
  %v8833 = vpack.c.b16 %v8823, %v8821
  %v8834 = vpack.c.b16 %v8826, %v8824
  %v8835 = vpack.c.b16 %v8827, %v8825
  %v8845 = vsel %vm334, %v8752, 0
  %v8848 = vsel %vm334, %v8753, 0
  %v8851 = vsel %vm334, %v8754, 0
  %v8854 = vsel %vm334, %v8755, 0
  %v8857 = vsel %vm334, %v8756, 0
  %v8860 = vsel %vm334, %v8757, 0
  %v8863 = vsel %vm334, %v8758, 0
  %v8866 = vsel %vm334, %v8759, 0
  %v8869 = vsel %vm334, %v8760, 0
  %v8872 = vsel %vm334, %v8761, 0
  %v8875 = vsel %vm334, %v8762, 0
  %v8878 = vsel %vm334, %v8763, 0
  %v8881 = vsel %vm334, %v8764, 0
  %v8884 = vsel %vm334, %v8765, 0
  %v8887 = vsel %vm334, %v8766, 0
  %v8890 = vsel %vm334, %v8767, 0
  %v8893 = vsel %vm334, %v8768, 0
  %v8896 = vsel %vm334, %v8769, 0
  %v8899 = vsel %vm334, %v8770, 0
  %v8902 = vsel %vm334, %v8771, 0
  %v8905 = vsel %vm334, %v8772, 0
  %v8908 = vsel %vm334, %v8773, 0
  %v8911 = vsel %vm334, %v8774, 0
  %v8914 = vsel %vm334, %v8775, 0
  %v8917 = vsel %vm334, %v8776, 0
  %v8920 = vsel %vm334, %v8777, 0
  %v8923 = vsel %vm334, %v8778, 0
  %v8926 = vsel %vm334, %v8779, 0
  %v8929 = vsel %vm334, %v8780, 0
  %v8932 = vsel %vm334, %v8781, 0
  %v8935 = vsel %vm334, %v8782, 0
  %v8938 = vsel %vm334, %v8783, 0
  %8940 = vmatprep.subr.bf16.mxu0 0
  %8941 = vmatpush1.bf16.msra.mxu0 0
  %8942 = vmatprep.subr.bf16.mxu0 0
  %8943 = vmatpush1.bf16.msra.mxu0 0
  %8944 = vmatprep.subr.bf16.mxu0 0
  %8945 = vmatpush1.bf16.msra.mxu0 0
  %8946 = vmatprep.subr.bf16.mxu0 0
  %8947 = vmatpush1.bf16.msra.mxu0 0
  %8948 = vmatprep.subr.bf16.mxu0 %v8835
  %8949 = vmatpush1.bf16.msra.mxu0 %v8834
  %8950 = vmatprep.subr.bf16.mxu0 %v8833
  %8951 = vmatpush1.bf16.msra.mxu0 %v8832
  %8952 = vmatprep.subr.bf16.mxu0 %v8831
  %8953 = vmatpush1.bf16.msra.mxu0 %v8830
  %8954 = vmatprep.subr.bf16.mxu0 %v8829
  %8955 = vmatpush1.bf16.msra.mxu0 %v8828
  %8956 = vmatprep.subr.bf16.mxu0 0
  %8957 = vmatpush2.bf16.msra.mxu0 0
  %8958 = vmatprep.subr.bf16.mxu0 0
  %8959 = vmatpush2.bf16.msra.mxu0 0
  %8960 = vmatprep.subr.bf16.mxu0 0
  %8961 = vmatpush2.bf16.msra.mxu0 0
  %8962 = vmatprep.subr.bf16.mxu0 0
  %8963 = vmatpush2.bf16.msra.mxu0 0
  %8964 = vmatprep.subr.bf16.mxu0 0
  %8965 = vmatpush2.bf16.msra.mxu0 0
  %8966 = vmatprep.subr.bf16.mxu0 0
  %8967 = vmatpush2.bf16.msra.mxu0 0
  %8968 = vmatprep.subr.bf16.mxu0 0
  %8969 = vmatpush2.bf16.msra.mxu0 0
  %8970 = vmatprep.subr.bf16.mxu0 0
  %8971 = vmatpush2.bf16.msra.mxu0 0
  %8972 = vmatprep.mubr.bf16.mxu0 0
  %8973 = vmatmul.mubr.bf16.gmra.mxu0 %v8845
  %v8974 = vpop.f32.mrf.mxu0
  %v8975 = vadd.f32 %v8797, %v8974
  %v8976 = vpop.f32.mrf.mxu0
  %v8977 = vadd.f32 %v8801, %v8976
  %v8978 = vpop.f32.mrf.mxu0
  %v8979 = vadd.f32 %v8797, %v8978
  %v8980 = vpop.f32.mrf.mxu0
  %v8981 = vadd.f32 %v8801, %v8980
  %8982 = vmatprep.mubr.bf16.mxu0 0
  %8983 = vmatmul.mubr.bf16.gmra.mxu0 %v8848
  %v8984 = vpop.f32.mrf.mxu0
  %v8985 = vadd.f32 %v8797, %v8984
  %v8986 = vpop.f32.mrf.mxu0
  %v8987 = vadd.f32 %v8801, %v8986
  %v8988 = vpop.f32.mrf.mxu0
  %v8989 = vadd.f32 %v8797, %v8988
  %v8990 = vpop.f32.mrf.mxu0
  %v8991 = vadd.f32 %v8801, %v8990
  %8992 = vmatprep.mubr.bf16.mxu0 0
  %8993 = vmatmul.mubr.bf16.gmra.mxu0 %v8851
  %v8994 = vpop.f32.mrf.mxu0
  %v8995 = vadd.f32 %v8797, %v8994
  %v8996 = vpop.f32.mrf.mxu0
  %v8997 = vadd.f32 %v8801, %v8996
  %v8998 = vpop.f32.mrf.mxu0
  %v8999 = vadd.f32 %v8797, %v8998
  %v9000 = vpop.f32.mrf.mxu0
  %v9001 = vadd.f32 %v8801, %v9000
  %9002 = vmatprep.mubr.bf16.mxu0 0
  %9003 = vmatmul.mubr.bf16.gmra.mxu0 %v8854
  %v9004 = vpop.f32.mrf.mxu0
  %v9005 = vadd.f32 %v8797, %v9004
  %v9006 = vpop.f32.mrf.mxu0
  %v9007 = vadd.f32 %v8801, %v9006
  %v9008 = vpop.f32.mrf.mxu0
  %v9009 = vadd.f32 %v8797, %v9008
  %v9010 = vpop.f32.mrf.mxu0
  %v9011 = vadd.f32 %v8801, %v9010
  %9012 = vmatprep.mubr.bf16.mxu0 0
  %9013 = vmatmul.mubr.bf16.gmra.mxu0 %v8857
  %v9014 = vpop.f32.mrf.mxu0
  %v9015 = vadd.f32 %v8797, %v9014
  %v9016 = vpop.f32.mrf.mxu0
  %v9017 = vadd.f32 %v8801, %v9016
  %v9018 = vpop.f32.mrf.mxu0
  %v9019 = vadd.f32 %v8797, %v9018
  %v9020 = vpop.f32.mrf.mxu0
  %v9021 = vadd.f32 %v8801, %v9020
  %9022 = vmatprep.mubr.bf16.mxu0 0
  %9023 = vmatmul.mubr.bf16.gmra.mxu0 %v8860
  %v9024 = vpop.f32.mrf.mxu0
  %v9025 = vadd.f32 %v8797, %v9024
  %v9026 = vpop.f32.mrf.mxu0
  %v9027 = vadd.f32 %v8801, %v9026
  %v9028 = vpop.f32.mrf.mxu0
  %v9029 = vadd.f32 %v8797, %v9028
  %v9030 = vpop.f32.mrf.mxu0
  %v9031 = vadd.f32 %v8801, %v9030
  %9032 = vmatprep.mubr.bf16.mxu0 0
  %9033 = vmatmul.mubr.bf16.gmra.mxu0 %v8863
  %v9034 = vpop.f32.mrf.mxu0
  %v9035 = vadd.f32 %v8797, %v9034
  %v9036 = vpop.f32.mrf.mxu0
  %v9037 = vadd.f32 %v8801, %v9036
  %v9038 = vpop.f32.mrf.mxu0
  %v9039 = vadd.f32 %v8797, %v9038
  %v9040 = vpop.f32.mrf.mxu0
  %v9041 = vadd.f32 %v8801, %v9040
  %9042 = vmatprep.mubr.bf16.mxu0 0
  %9043 = vmatmul.mubr.bf16.gmra.mxu0 %v8866
  %v9044 = vpop.f32.mrf.mxu0
  %v9045 = vadd.f32 %v8797, %v9044
  %v9046 = vpop.f32.mrf.mxu0
  %v9047 = vadd.f32 %v8801, %v9046
  %v9048 = vpop.f32.mrf.mxu0
  %v9049 = vadd.f32 %v8797, %v9048
  %v9050 = vpop.f32.mrf.mxu0
  %v9051 = vadd.f32 %v8801, %v9050
  %9052 = vmatprep.mubr.bf16.mxu0 0
  %9053 = vmatmul.mubr.bf16.gmra.mxu0 %v8869
  %v9054 = vpop.f32.mrf.mxu0
  %v9055 = vadd.f32 %v8797, %v9054
  %v9056 = vpop.f32.mrf.mxu0
  %v9057 = vadd.f32 %v8801, %v9056
  %v9058 = vpop.f32.mrf.mxu0
  %v9059 = vadd.f32 %v8797, %v9058
  %v9060 = vpop.f32.mrf.mxu0
  %v9061 = vadd.f32 %v8801, %v9060
  %9062 = vmatprep.mubr.bf16.mxu0 0
  %9063 = vmatmul.mubr.bf16.gmra.mxu0 %v8872
  %v9064 = vpop.f32.mrf.mxu0
  %v9065 = vadd.f32 %v8797, %v9064
  %v9066 = vpop.f32.mrf.mxu0
  %v9067 = vadd.f32 %v8801, %v9066
  %v9068 = vpop.f32.mrf.mxu0
  %v9069 = vadd.f32 %v8797, %v9068
  %v9070 = vpop.f32.mrf.mxu0
  %v9071 = vadd.f32 %v8801, %v9070
  %9072 = vmatprep.mubr.bf16.mxu0 0
  %9073 = vmatmul.mubr.bf16.gmra.mxu0 %v8875
  %v9074 = vpop.f32.mrf.mxu0
  %v9075 = vadd.f32 %v8797, %v9074
  %v9076 = vpop.f32.mrf.mxu0
  %v9077 = vadd.f32 %v8801, %v9076
  %v9078 = vpop.f32.mrf.mxu0
  %v9079 = vadd.f32 %v8797, %v9078
  %v9080 = vpop.f32.mrf.mxu0
  %v9081 = vadd.f32 %v8801, %v9080
  %9082 = vmatprep.mubr.bf16.mxu0 0
  %9083 = vmatmul.mubr.bf16.gmra.mxu0 %v8878
  %v9084 = vpop.f32.mrf.mxu0
  %v9085 = vadd.f32 %v8797, %v9084
  %v9086 = vpop.f32.mrf.mxu0
  %v9087 = vadd.f32 %v8801, %v9086
  %v9088 = vpop.f32.mrf.mxu0
  %v9089 = vadd.f32 %v8797, %v9088
  %v9090 = vpop.f32.mrf.mxu0
  %v9091 = vadd.f32 %v8801, %v9090
  %9092 = vmatprep.mubr.bf16.mxu0 0
  %9093 = vmatmul.mubr.bf16.gmra.mxu0 %v8881
  %v9094 = vpop.f32.mrf.mxu0
  %v9095 = vadd.f32 %v8797, %v9094
  %v9096 = vpop.f32.mrf.mxu0
  %v9097 = vadd.f32 %v8801, %v9096
  %v9098 = vpop.f32.mrf.mxu0
  %v9099 = vadd.f32 %v8797, %v9098
  %v9100 = vpop.f32.mrf.mxu0
  %v9101 = vadd.f32 %v8801, %v9100
  %9102 = vmatprep.mubr.bf16.mxu0 0
  %9103 = vmatmul.mubr.bf16.gmra.mxu0 %v8884
  %v9104 = vpop.f32.mrf.mxu0
  %v9105 = vadd.f32 %v8797, %v9104
  %v9106 = vpop.f32.mrf.mxu0
  %v9107 = vadd.f32 %v8801, %v9106
  %v9108 = vpop.f32.mrf.mxu0
  %v9109 = vadd.f32 %v8797, %v9108
  %v9110 = vpop.f32.mrf.mxu0
  %v9111 = vadd.f32 %v8801, %v9110
  %9112 = vmatprep.mubr.bf16.mxu0 0
  %9113 = vmatmul.mubr.bf16.gmra.mxu0 %v8887
  %v9114 = vpop.f32.mrf.mxu0
  %v9115 = vadd.f32 %v8797, %v9114
  %v9116 = vpop.f32.mrf.mxu0
  %v9117 = vadd.f32 %v8801, %v9116
  %v9118 = vpop.f32.mrf.mxu0
  %v9119 = vadd.f32 %v8797, %v9118
  %v9120 = vpop.f32.mrf.mxu0
  %v9121 = vadd.f32 %v8801, %v9120
  %9122 = vmatprep.mubr.bf16.mxu0 0
  %9123 = vmatmul.mubr.bf16.gmra.mxu0 %v8890
  %v9124 = vpop.f32.mrf.mxu0
  %v9125 = vadd.f32 %v8797, %v9124
  %v9126 = vpop.f32.mrf.mxu0
  %v9127 = vadd.f32 %v8801, %v9126
  %v9128 = vpop.f32.mrf.mxu0
  %v9129 = vadd.f32 %v8797, %v9128
  %v9130 = vpop.f32.mrf.mxu0
  %v9131 = vadd.f32 %v8801, %v9130
  %9132 = vmatprep.mubr.bf16.mxu0 0
  %9133 = vmatmul.mubr.bf16.gmra.mxu0 %v8893
  %v9134 = vpop.f32.mrf.mxu0
  %v9135 = vadd.f32 %v8797, %v9134
  %v9136 = vpop.f32.mrf.mxu0
  %v9137 = vadd.f32 %v8801, %v9136
  %v9138 = vpop.f32.mrf.mxu0
  %v9139 = vadd.f32 %v8797, %v9138
  %v9140 = vpop.f32.mrf.mxu0
  %v9141 = vadd.f32 %v8801, %v9140
  %9142 = vmatprep.mubr.bf16.mxu0 0
  %9143 = vmatmul.mubr.bf16.gmra.mxu0 %v8896
  %v9144 = vpop.f32.mrf.mxu0
  %v9145 = vadd.f32 %v8797, %v9144
  %v9146 = vpop.f32.mrf.mxu0
  %v9147 = vadd.f32 %v8801, %v9146
  %v9148 = vpop.f32.mrf.mxu0
  %v9149 = vadd.f32 %v8797, %v9148
  %v9150 = vpop.f32.mrf.mxu0
  %v9151 = vadd.f32 %v8801, %v9150
  %9152 = vmatprep.mubr.bf16.mxu0 0
  %9153 = vmatmul.mubr.bf16.gmra.mxu0 %v8899
  %v9154 = vpop.f32.mrf.mxu0
  %v9155 = vadd.f32 %v8797, %v9154
  %v9156 = vpop.f32.mrf.mxu0
  %v9157 = vadd.f32 %v8801, %v9156
  %v9158 = vpop.f32.mrf.mxu0
  %v9159 = vadd.f32 %v8797, %v9158
  %v9160 = vpop.f32.mrf.mxu0
  %v9161 = vadd.f32 %v8801, %v9160
  %9162 = vmatprep.mubr.bf16.mxu0 0
  %9163 = vmatmul.mubr.bf16.gmra.mxu0 %v8902
  %v9164 = vpop.f32.mrf.mxu0
  %v9165 = vadd.f32 %v8797, %v9164
  %v9166 = vpop.f32.mrf.mxu0
  %v9167 = vadd.f32 %v8801, %v9166
  %v9168 = vpop.f32.mrf.mxu0
  %v9169 = vadd.f32 %v8797, %v9168
  %v9170 = vpop.f32.mrf.mxu0
  %v9171 = vadd.f32 %v8801, %v9170
  %9172 = vmatprep.mubr.bf16.mxu0 0
  %9173 = vmatmul.mubr.bf16.gmra.mxu0 %v8905
  %v9174 = vpop.f32.mrf.mxu0
  %v9175 = vadd.f32 %v8797, %v9174
  %v9176 = vpop.f32.mrf.mxu0
  %v9177 = vadd.f32 %v8801, %v9176
  %v9178 = vpop.f32.mrf.mxu0
  %v9179 = vadd.f32 %v8797, %v9178
  %v9180 = vpop.f32.mrf.mxu0
  %v9181 = vadd.f32 %v8801, %v9180
  %9182 = vmatprep.mubr.bf16.mxu0 0
  %9183 = vmatmul.mubr.bf16.gmra.mxu0 %v8908
  %v9184 = vpop.f32.mrf.mxu0
  %v9185 = vadd.f32 %v8797, %v9184
  %v9186 = vpop.f32.mrf.mxu0
  %v9187 = vadd.f32 %v8801, %v9186
  %v9188 = vpop.f32.mrf.mxu0
  %v9189 = vadd.f32 %v8797, %v9188
  %v9190 = vpop.f32.mrf.mxu0
  %v9191 = vadd.f32 %v8801, %v9190
  %9192 = vmatprep.mubr.bf16.mxu0 0
  %9193 = vmatmul.mubr.bf16.gmra.mxu0 %v8911
  %v9194 = vpop.f32.mrf.mxu0
  %v9195 = vadd.f32 %v8797, %v9194
  %v9196 = vpop.f32.mrf.mxu0
  %v9197 = vadd.f32 %v8801, %v9196
  %v9198 = vpop.f32.mrf.mxu0
  %v9199 = vadd.f32 %v8797, %v9198
  %v9200 = vpop.f32.mrf.mxu0
  %v9201 = vadd.f32 %v8801, %v9200
  %9202 = vmatprep.mubr.bf16.mxu0 0
  %9203 = vmatmul.mubr.bf16.gmra.mxu0 %v8914
  %v9204 = vpop.f32.mrf.mxu0
  %v9205 = vadd.f32 %v8797, %v9204
  %v9206 = vpop.f32.mrf.mxu0
  %v9207 = vadd.f32 %v8801, %v9206
  %v9208 = vpop.f32.mrf.mxu0
  %v9209 = vadd.f32 %v8797, %v9208
  %v9210 = vpop.f32.mrf.mxu0
  %v9211 = vadd.f32 %v8801, %v9210
  %9212 = vmatprep.mubr.bf16.mxu0 0
  %9213 = vmatmul.mubr.bf16.gmra.mxu0 %v8917
  %v9214 = vpop.f32.mrf.mxu0
  %v9215 = vadd.f32 %v8797, %v9214
  %v9216 = vpop.f32.mrf.mxu0
  %v9217 = vadd.f32 %v8801, %v9216
  %v9218 = vpop.f32.mrf.mxu0
  %v9219 = vadd.f32 %v8797, %v9218
  %v9220 = vpop.f32.mrf.mxu0
  %v9221 = vadd.f32 %v8801, %v9220
  %9222 = vmatprep.mubr.bf16.mxu0 0
  %9223 = vmatmul.mubr.bf16.gmra.mxu0 %v8920
  %v9224 = vpop.f32.mrf.mxu0
  %v9225 = vadd.f32 %v8797, %v9224
  %v9226 = vpop.f32.mrf.mxu0
  %v9227 = vadd.f32 %v8801, %v9226
  %v9228 = vpop.f32.mrf.mxu0
  %v9229 = vadd.f32 %v8797, %v9228
  %v9230 = vpop.f32.mrf.mxu0
  %v9231 = vadd.f32 %v8801, %v9230
  %9232 = vmatprep.mubr.bf16.mxu0 0
  %9233 = vmatmul.mubr.bf16.gmra.mxu0 %v8923
  %v9234 = vpop.f32.mrf.mxu0
  %v9235 = vadd.f32 %v8797, %v9234
  %v9236 = vpop.f32.mrf.mxu0
  %v9237 = vadd.f32 %v8801, %v9236
  %v9238 = vpop.f32.mrf.mxu0
  %v9239 = vadd.f32 %v8797, %v9238
  %v9240 = vpop.f32.mrf.mxu0
  %v9241 = vadd.f32 %v8801, %v9240
  %9242 = vmatprep.mubr.bf16.mxu0 0
  %9243 = vmatmul.mubr.bf16.gmra.mxu0 %v8926
  %v9244 = vpop.f32.mrf.mxu0
  %v9245 = vadd.f32 %v8797, %v9244
  %v9246 = vpop.f32.mrf.mxu0
  %v9247 = vadd.f32 %v8801, %v9246
  %v9248 = vpop.f32.mrf.mxu0
  %v9249 = vadd.f32 %v8797, %v9248
  %v9250 = vpop.f32.mrf.mxu0
  %v9251 = vadd.f32 %v8801, %v9250
  %9252 = vmatprep.mubr.bf16.mxu0 0
  %9253 = vmatmul.mubr.bf16.gmra.mxu0 %v8929
  %v9254 = vpop.f32.mrf.mxu0
  %v9255 = vadd.f32 %v8797, %v9254
  %v9256 = vpop.f32.mrf.mxu0
  %v9257 = vadd.f32 %v8801, %v9256
  %v9258 = vpop.f32.mrf.mxu0
  %v9259 = vadd.f32 %v8797, %v9258
  %v9260 = vpop.f32.mrf.mxu0
  %v9261 = vadd.f32 %v8801, %v9260
  %9262 = vmatprep.mubr.bf16.mxu0 0
  %9263 = vmatmul.mubr.bf16.gmra.mxu0 %v8932
  %v9264 = vpop.f32.mrf.mxu0
  %v9265 = vadd.f32 %v8797, %v9264
  %v9266 = vpop.f32.mrf.mxu0
  %v9267 = vadd.f32 %v8801, %v9266
  %v9268 = vpop.f32.mrf.mxu0
  %v9269 = vadd.f32 %v8797, %v9268
  %v9270 = vpop.f32.mrf.mxu0
  %v9271 = vadd.f32 %v8801, %v9270
  %9272 = vmatprep.mubr.bf16.mxu0 0
  %9273 = vmatmul.mubr.bf16.gmra.mxu0 %v8935
  %v9274 = vpop.f32.mrf.mxu0
  %v9275 = vadd.f32 %v8797, %v9274
  %v9276 = vpop.f32.mrf.mxu0
  %v9277 = vadd.f32 %v8801, %v9276
  %v9278 = vpop.f32.mrf.mxu0
  %v9279 = vadd.f32 %v8797, %v9278
  %v9280 = vpop.f32.mrf.mxu0
  %v9281 = vadd.f32 %v8801, %v9280
  %9282 = vmatprep.mubr.bf16.mxu0 0
  %9283 = vmatmul.mubr.bf16.gmra.mxu0 %v8938
  %v9284 = vpop.f32.mrf.mxu0
  %v9285 = vadd.f32 %v8797, %v9284
  %v9286 = vpop.f32.mrf.mxu0
  %v9287 = vadd.f32 %v8801, %v9286
  %v9288 = vpop.f32.mrf.mxu0
  %v9289 = vadd.f32 %v8797, %v9288
  %v9290 = vpop.f32.mrf.mxu0
  %v9291 = vadd.f32 %v8801, %v9290
  %9292 = vdwg.mxu0
  %v9293 = vadd.f32 %v8975, %v1085
  %v9294 = vadd.f32 %v8977, %v1086
  %v9295 = vadd.f32 %v8979, %v1087
  %v9296 = vadd.f32 %v8981, %v1088
  %v9297 = vadd.f32 %v8985, %v1089
  %v9298 = vadd.f32 %v8987, %v1090
  %v9299 = vadd.f32 %v8989, %v1091
  %v9300 = vadd.f32 %v8991, %v1092
  %v9301 = vadd.f32 %v8995, %v1093
  %v9302 = vadd.f32 %v8997, %v1094
  %v9303 = vadd.f32 %v8999, %v1095
  %v9304 = vadd.f32 %v9001, %v1096
  %v9305 = vadd.f32 %v9005, %v1097
  %v9306 = vadd.f32 %v9007, %v1098
  %v9307 = vadd.f32 %v9009, %v1099
  %v9308 = vadd.f32 %v9011, %v1100
  %v9309 = vadd.f32 %v9015, %v1101
  %v9310 = vadd.f32 %v9017, %v1102
  %v9311 = vadd.f32 %v9019, %v1103
  %v9312 = vadd.f32 %v9021, %v1104
  %v9313 = vadd.f32 %v9025, %v1105
  %v9314 = vadd.f32 %v9027, %v1106
  %v9315 = vadd.f32 %v9029, %v1107
  %v9316 = vadd.f32 %v9031, %v1108
  %v9317 = vadd.f32 %v9035, %v1109
  %v9318 = vadd.f32 %v9037, %v1110
  %v9319 = vadd.f32 %v9039, %v1111
  %v9320 = vadd.f32 %v9041, %v1112
  %v9321 = vadd.f32 %v9045, %v1113
  %v9322 = vadd.f32 %v9047, %v1114
  %v9323 = vadd.f32 %v9049, %v1115
  %v9324 = vadd.f32 %v9051, %v1116
  %v9325 = vadd.f32 %v9055, %v1117
  %v9326 = vadd.f32 %v9057, %v1118
  %v9327 = vadd.f32 %v9059, %v1119
  %v9328 = vadd.f32 %v9061, %v1120
  %v9329 = vadd.f32 %v9065, %v1121
  %v9330 = vadd.f32 %v9067, %v1122
  %v9331 = vadd.f32 %v9069, %v1123
  %v9332 = vadd.f32 %v9071, %v1124
  %v9333 = vadd.f32 %v9075, %v1125
  %v9334 = vadd.f32 %v9077, %v1126
  %v9335 = vadd.f32 %v9079, %v1127
  %v9336 = vadd.f32 %v9081, %v1128
  %v9337 = vadd.f32 %v9085, %v1129
  %v9338 = vadd.f32 %v9087, %v1130
  %v9339 = vadd.f32 %v9089, %v1131
  %v9340 = vadd.f32 %v9091, %v1132
  %v9341 = vadd.f32 %v9095, %v1133
  %v9342 = vadd.f32 %v9097, %v1134
  %v9343 = vadd.f32 %v9099, %v1135
  %v9344 = vadd.f32 %v9101, %v1136
  %v9345 = vadd.f32 %v9105, %v1137
  %v9346 = vadd.f32 %v9107, %v1138
  %v9347 = vadd.f32 %v9109, %v1139
  %v9348 = vadd.f32 %v9111, %v1140
  %v9349 = vadd.f32 %v9115, %v1141
  %v9350 = vadd.f32 %v9117, %v1142
  %v9351 = vadd.f32 %v9119, %v1143
  %v9352 = vadd.f32 %v9121, %v1144
  %v9353 = vadd.f32 %v9125, %v1145
  %v9354 = vadd.f32 %v9127, %v1146
  %v9355 = vadd.f32 %v9129, %v1147
  %v9356 = vadd.f32 %v9131, %v1148
  %v9357 = vadd.f32 %v9135, %v1149
  %v9358 = vadd.f32 %v9137, %v1150
  %v9359 = vadd.f32 %v9139, %v1151
  %v9360 = vadd.f32 %v9141, %v1152
  %v9361 = vadd.f32 %v9145, %v1153
  %v9362 = vadd.f32 %v9147, %v1154
  %v9363 = vadd.f32 %v9149, %v1155
  %v9364 = vadd.f32 %v9151, %v1156
  %v9365 = vadd.f32 %v9155, %v1157
  %v9366 = vadd.f32 %v9157, %v1158
  %v9367 = vadd.f32 %v9159, %v1159
  %v9368 = vadd.f32 %v9161, %v1160
  %v9369 = vadd.f32 %v9165, %v1161
  %v9370 = vadd.f32 %v9167, %v1162
  %v9371 = vadd.f32 %v9169, %v1163
  %v9372 = vadd.f32 %v9171, %v1164
  %v9373 = vadd.f32 %v9175, %v1165
  %v9374 = vadd.f32 %v9177, %v1166
  %v9375 = vadd.f32 %v9179, %v1167
  %v9376 = vadd.f32 %v9181, %v1168
  %v9377 = vadd.f32 %v9185, %v1169
  %v9378 = vadd.f32 %v9187, %v1170
  %v9379 = vadd.f32 %v9189, %v1171
  %v9380 = vadd.f32 %v9191, %v1172
  %v9381 = vadd.f32 %v9195, %v1173
  %v9382 = vadd.f32 %v9197, %v1174
  %v9383 = vadd.f32 %v9199, %v1175
  %v9384 = vadd.f32 %v9201, %v1176
  %v9385 = vadd.f32 %v9205, %v1177
  %v9386 = vadd.f32 %v9207, %v1178
  %v9387 = vadd.f32 %v9209, %v1179
  %v9388 = vadd.f32 %v9211, %v1180
  %v9389 = vadd.f32 %v9215, %v1181
  %v9390 = vadd.f32 %v9217, %v1182
  %v9391 = vadd.f32 %v9219, %v1183
  %v9392 = vadd.f32 %v9221, %v1184
  %v9393 = vadd.f32 %v9225, %v1185
  %v9394 = vadd.f32 %v9227, %v1186
  %v9395 = vadd.f32 %v9229, %v1187
  %v9396 = vadd.f32 %v9231, %v1188
  %v9397 = vadd.f32 %v9235, %v1189
  %v9398 = vadd.f32 %v9237, %v1190
  %v9399 = vadd.f32 %v9239, %v1191
  %v9400 = vadd.f32 %v9241, %v1192
  %v9401 = vadd.f32 %v9245, %v1193
  %v9402 = vadd.f32 %v9247, %v1194
  %v9403 = vadd.f32 %v9249, %v1195
  %v9404 = vadd.f32 %v9251, %v1196
  %v9405 = vadd.f32 %v9255, %v1197
  %v9406 = vadd.f32 %v9257, %v1198
  %v9407 = vadd.f32 %v9259, %v1199
  %v9408 = vadd.f32 %v9261, %v1200
  %v9409 = vadd.f32 %v9265, %v1201
  %v9410 = vadd.f32 %v9267, %v1202
  %v9411 = vadd.f32 %v9269, %v1203
  %v9412 = vadd.f32 %v9271, %v1204
  %v9413 = vadd.f32 %v9275, %v1205
  %v9414 = vadd.f32 %v9277, %v1206
  %v9415 = vadd.f32 %v9279, %v1207
  %v9416 = vadd.f32 %v9281, %v1208
  %v9417 = vadd.f32 %v9285, %v1209
  %v9418 = vadd.f32 %v9287, %v1210
  %v9419 = vadd.f32 %v9289, %v1211
  %v9420 = vadd.f32 %v9291, %v1212
  %v9421 = vmax.f32 %v9293, 0.0
  %v9422 = vmax.f32 %v9294, 0.0
  %v9423 = vmax.f32 %v9295, 0.0
  %v9424 = vmax.f32 %v9296, 0.0
  %v9425 = vmax.f32 %v9297, 0.0
  %v9426 = vmax.f32 %v9298, 0.0
  %v9427 = vmax.f32 %v9299, 0.0
  %v9428 = vmax.f32 %v9300, 0.0
  %v9429 = vmax.f32 %v9301, 0.0
  %v9430 = vmax.f32 %v9302, 0.0
  %v9431 = vmax.f32 %v9303, 0.0
  %v9432 = vmax.f32 %v9304, 0.0
  %v9433 = vmax.f32 %v9305, 0.0
  %v9434 = vmax.f32 %v9306, 0.0
  %v9435 = vmax.f32 %v9307, 0.0
  %v9436 = vmax.f32 %v9308, 0.0
  %v9437 = vmax.f32 %v9309, 0.0
  %v9438 = vmax.f32 %v9310, 0.0
  %v9439 = vmax.f32 %v9311, 0.0
  %v9440 = vmax.f32 %v9312, 0.0
  %v9441 = vmax.f32 %v9313, 0.0
  %v9442 = vmax.f32 %v9314, 0.0
  %v9443 = vmax.f32 %v9315, 0.0
  %v9444 = vmax.f32 %v9316, 0.0
  %v9445 = vmax.f32 %v9317, 0.0
  %v9446 = vmax.f32 %v9318, 0.0
  %v9447 = vmax.f32 %v9319, 0.0
  %v9448 = vmax.f32 %v9320, 0.0
  %v9449 = vmax.f32 %v9321, 0.0
  %v9450 = vmax.f32 %v9322, 0.0
  %v9451 = vmax.f32 %v9323, 0.0
  %v9452 = vmax.f32 %v9324, 0.0
  %v9453 = vmax.f32 %v9325, 0.0
  %v9454 = vmax.f32 %v9326, 0.0
  %v9455 = vmax.f32 %v9327, 0.0
  %v9456 = vmax.f32 %v9328, 0.0
  %v9457 = vmax.f32 %v9329, 0.0
  %v9458 = vmax.f32 %v9330, 0.0
  %v9459 = vmax.f32 %v9331, 0.0
  %v9460 = vmax.f32 %v9332, 0.0
  %v9461 = vmax.f32 %v9333, 0.0
  %v9462 = vmax.f32 %v9334, 0.0
  %v9463 = vmax.f32 %v9335, 0.0
  %v9464 = vmax.f32 %v9336, 0.0
  %v9465 = vmax.f32 %v9337, 0.0
  %v9466 = vmax.f32 %v9338, 0.0
  %v9467 = vmax.f32 %v9339, 0.0
  %v9468 = vmax.f32 %v9340, 0.0
  %v9469 = vmax.f32 %v9341, 0.0
  %v9470 = vmax.f32 %v9342, 0.0
  %v9471 = vmax.f32 %v9343, 0.0
  %v9472 = vmax.f32 %v9344, 0.0
  %v9473 = vmax.f32 %v9345, 0.0
  %v9474 = vmax.f32 %v9346, 0.0
  %v9475 = vmax.f32 %v9347, 0.0
  %v9476 = vmax.f32 %v9348, 0.0
  %v9477 = vmax.f32 %v9349, 0.0
  %v9478 = vmax.f32 %v9350, 0.0
  %v9479 = vmax.f32 %v9351, 0.0
  %v9480 = vmax.f32 %v9352, 0.0
  %v9481 = vmax.f32 %v9353, 0.0
  %v9482 = vmax.f32 %v9354, 0.0
  %v9483 = vmax.f32 %v9355, 0.0
  %v9484 = vmax.f32 %v9356, 0.0
  %v9485 = vmax.f32 %v9357, 0.0
  %v9486 = vmax.f32 %v9358, 0.0
  %v9487 = vmax.f32 %v9359, 0.0
  %v9488 = vmax.f32 %v9360, 0.0
  %v9489 = vmax.f32 %v9361, 0.0
  %v9490 = vmax.f32 %v9362, 0.0
  %v9491 = vmax.f32 %v9363, 0.0
  %v9492 = vmax.f32 %v9364, 0.0
  %v9493 = vmax.f32 %v9365, 0.0
  %v9494 = vmax.f32 %v9366, 0.0
  %v9495 = vmax.f32 %v9367, 0.0
  %v9496 = vmax.f32 %v9368, 0.0
  %v9497 = vmax.f32 %v9369, 0.0
  %v9498 = vmax.f32 %v9370, 0.0
  %v9499 = vmax.f32 %v9371, 0.0
  %v9500 = vmax.f32 %v9372, 0.0
  %v9501 = vmax.f32 %v9373, 0.0
  %v9502 = vmax.f32 %v9374, 0.0
  %v9503 = vmax.f32 %v9375, 0.0
  %v9504 = vmax.f32 %v9376, 0.0
  %v9505 = vmax.f32 %v9377, 0.0
  %v9506 = vmax.f32 %v9378, 0.0
  %v9507 = vmax.f32 %v9379, 0.0
  %v9508 = vmax.f32 %v9380, 0.0
  %v9509 = vmax.f32 %v9381, 0.0
  %v9510 = vmax.f32 %v9382, 0.0
  %v9511 = vmax.f32 %v9383, 0.0
  %v9512 = vmax.f32 %v9384, 0.0
  %v9513 = vmax.f32 %v9385, 0.0
  %v9514 = vmax.f32 %v9386, 0.0
  %v9515 = vmax.f32 %v9387, 0.0
  %v9516 = vmax.f32 %v9388, 0.0
  %v9517 = vmax.f32 %v9389, 0.0
  %v9518 = vmax.f32 %v9390, 0.0
  %v9519 = vmax.f32 %v9391, 0.0
  %v9520 = vmax.f32 %v9392, 0.0
  %v9521 = vmax.f32 %v9393, 0.0
  %v9522 = vmax.f32 %v9394, 0.0
  %v9523 = vmax.f32 %v9395, 0.0
  %v9524 = vmax.f32 %v9396, 0.0
  %v9525 = vmax.f32 %v9397, 0.0
  %v9526 = vmax.f32 %v9398, 0.0
  %v9527 = vmax.f32 %v9399, 0.0
  %v9528 = vmax.f32 %v9400, 0.0
  %v9529 = vmax.f32 %v9401, 0.0
  %v9530 = vmax.f32 %v9402, 0.0
  %v9531 = vmax.f32 %v9403, 0.0
  %v9532 = vmax.f32 %v9404, 0.0
  %v9533 = vmax.f32 %v9405, 0.0
  %v9534 = vmax.f32 %v9406, 0.0
  %v9535 = vmax.f32 %v9407, 0.0
  %v9536 = vmax.f32 %v9408, 0.0
  %v9537 = vmax.f32 %v9409, 0.0
  %v9538 = vmax.f32 %v9410, 0.0
  %v9539 = vmax.f32 %v9411, 0.0
  %v9540 = vmax.f32 %v9412, 0.0
  %v9541 = vmax.f32 %v9413, 0.0
  %v9542 = vmax.f32 %v9414, 0.0
  %v9543 = vmax.f32 %v9415, 0.0
  %v9544 = vmax.f32 %v9416, 0.0
  %v9545 = vmax.f32 %v9417, 0.0
  %v9546 = vmax.f32 %v9418, 0.0
  %v9547 = vmax.f32 %v9419, 0.0
  %v9548 = vmax.f32 %v9420, 0.0
  %v9549 = vpack.c.bf16 %v9423, %v9421
  %v9550 = vpack.c.bf16 %v9424, %v9422
  %v9551 = vpack.c.bf16 %v9427, %v9425
  %v9552 = vpack.c.bf16 %v9428, %v9426
  %v9553 = vpack.c.bf16 %v9431, %v9429
  %v9554 = vpack.c.bf16 %v9432, %v9430
  %v9555 = vpack.c.bf16 %v9435, %v9433
  %v9556 = vpack.c.bf16 %v9436, %v9434
  %v9557 = vpack.c.bf16 %v9439, %v9437
  %v9558 = vpack.c.bf16 %v9440, %v9438
  %v9559 = vpack.c.bf16 %v9443, %v9441
  %v9560 = vpack.c.bf16 %v9444, %v9442
  %v9561 = vpack.c.bf16 %v9447, %v9445
  %v9562 = vpack.c.bf16 %v9448, %v9446
  %v9563 = vpack.c.bf16 %v9451, %v9449
  %v9564 = vpack.c.bf16 %v9452, %v9450
  %v9565 = vpack.c.bf16 %v9455, %v9453
  %v9566 = vpack.c.bf16 %v9456, %v9454
  %v9567 = vpack.c.bf16 %v9459, %v9457
  %v9568 = vpack.c.bf16 %v9460, %v9458
  %v9569 = vpack.c.bf16 %v9463, %v9461
  %v9570 = vpack.c.bf16 %v9464, %v9462
  %v9571 = vpack.c.bf16 %v9467, %v9465
  %v9572 = vpack.c.bf16 %v9468, %v9466
  %v9573 = vpack.c.bf16 %v9471, %v9469
  %v9574 = vpack.c.bf16 %v9472, %v9470
  %v9575 = vpack.c.bf16 %v9475, %v9473
  %v9576 = vpack.c.bf16 %v9476, %v9474
  %v9577 = vpack.c.bf16 %v9479, %v9477
  %v9578 = vpack.c.bf16 %v9480, %v9478
  %v9579 = vpack.c.bf16 %v9483, %v9481
  %v9580 = vpack.c.bf16 %v9484, %v9482
  %v9581 = vpack.c.bf16 %v9487, %v9485
  %v9582 = vpack.c.bf16 %v9488, %v9486
  %v9583 = vpack.c.bf16 %v9491, %v9489
  %v9584 = vpack.c.bf16 %v9492, %v9490
  %v9585 = vpack.c.bf16 %v9495, %v9493
  %v9586 = vpack.c.bf16 %v9496, %v9494
  %v9587 = vpack.c.bf16 %v9499, %v9497
  %v9588 = vpack.c.bf16 %v9500, %v9498
  %v9589 = vpack.c.bf16 %v9503, %v9501
  %v9590 = vpack.c.bf16 %v9504, %v9502
  %v9591 = vpack.c.bf16 %v9507, %v9505
  %v9592 = vpack.c.bf16 %v9508, %v9506
  %v9593 = vpack.c.bf16 %v9511, %v9509
  %v9594 = vpack.c.bf16 %v9512, %v9510
  %v9595 = vpack.c.bf16 %v9515, %v9513
  %v9596 = vpack.c.bf16 %v9516, %v9514
  %v9597 = vpack.c.bf16 %v9519, %v9517
  %v9598 = vpack.c.bf16 %v9520, %v9518
  %v9599 = vpack.c.bf16 %v9523, %v9521
  %v9600 = vpack.c.bf16 %v9524, %v9522
  %v9601 = vpack.c.bf16 %v9527, %v9525
  %v9602 = vpack.c.bf16 %v9528, %v9526
  %v9603 = vpack.c.bf16 %v9531, %v9529
  %v9604 = vpack.c.bf16 %v9532, %v9530
  %v9605 = vpack.c.bf16 %v9535, %v9533
  %v9606 = vpack.c.bf16 %v9536, %v9534
  %v9607 = vpack.c.bf16 %v9539, %v9537
  %v9608 = vpack.c.bf16 %v9540, %v9538
  %v9609 = vpack.c.bf16 %v9543, %v9541
  %v9610 = vpack.c.bf16 %v9544, %v9542
  %v9611 = vpack.c.bf16 %v9547, %v9545
  %v9612 = vpack.c.bf16 %v9548, %v9546
  %v9677 = vunpack.c.l.b16 %v9549
  %v9678 = vunpack.c.l.b16 %v9550
  %v9679 = vunpack.c.h.b16 %v9549
  %v9680 = vunpack.c.h.b16 %v9550
  %v9681 = vunpack.c.l.b16 %v9551
  %v9682 = vunpack.c.l.b16 %v9552
  %v9683 = vunpack.c.h.b16 %v9551
  %v9684 = vunpack.c.h.b16 %v9552
  %v9685 = vunpack.c.l.b16 %v9553
  %v9686 = vunpack.c.l.b16 %v9554
  %v9687 = vunpack.c.h.b16 %v9553
  %v9688 = vunpack.c.h.b16 %v9554
  %v9689 = vunpack.c.l.b16 %v9555
  %v9690 = vunpack.c.l.b16 %v9556
  %v9691 = vunpack.c.h.b16 %v9555
  %v9692 = vunpack.c.h.b16 %v9556
  %v9693 = vunpack.c.l.b16 %v9557
  %v9694 = vunpack.c.l.b16 %v9558
  %v9695 = vunpack.c.h.b16 %v9557
  %v9696 = vunpack.c.h.b16 %v9558
  %v9697 = vunpack.c.l.b16 %v9559
  %v9698 = vunpack.c.l.b16 %v9560
  %v9699 = vunpack.c.h.b16 %v9559
  %v9700 = vunpack.c.h.b16 %v9560
  %v9701 = vunpack.c.l.b16 %v9561
  %v9702 = vunpack.c.l.b16 %v9562
  %v9703 = vunpack.c.h.b16 %v9561
  %v9704 = vunpack.c.h.b16 %v9562
  %v9705 = vunpack.c.l.b16 %v9563
  %v9706 = vunpack.c.l.b16 %v9564
  %v9707 = vunpack.c.h.b16 %v9563
  %v9708 = vunpack.c.h.b16 %v9564
  %v9709 = vunpack.c.l.b16 %v9565
  %v9710 = vunpack.c.l.b16 %v9566
  %v9711 = vunpack.c.h.b16 %v9565
  %v9712 = vunpack.c.h.b16 %v9566
  %v9713 = vunpack.c.l.b16 %v9567
  %v9714 = vunpack.c.l.b16 %v9568
  %v9715 = vunpack.c.h.b16 %v9567
  %v9716 = vunpack.c.h.b16 %v9568
  %v9717 = vunpack.c.l.b16 %v9569
  %v9718 = vunpack.c.l.b16 %v9570
  %v9719 = vunpack.c.h.b16 %v9569
  %v9720 = vunpack.c.h.b16 %v9570
  %v9721 = vunpack.c.l.b16 %v9571
  %v9722 = vunpack.c.l.b16 %v9572
  %v9723 = vunpack.c.h.b16 %v9571
  %v9724 = vunpack.c.h.b16 %v9572
  %v9725 = vunpack.c.l.b16 %v9573
  %v9726 = vunpack.c.l.b16 %v9574
  %v9727 = vunpack.c.h.b16 %v9573
  %v9728 = vunpack.c.h.b16 %v9574
  %v9729 = vunpack.c.l.b16 %v9575
  %v9730 = vunpack.c.l.b16 %v9576
  %v9731 = vunpack.c.h.b16 %v9575
  %v9732 = vunpack.c.h.b16 %v9576
  %v9733 = vunpack.c.l.b16 %v9577
  %v9734 = vunpack.c.l.b16 %v9578
  %v9735 = vunpack.c.h.b16 %v9577
  %v9736 = vunpack.c.h.b16 %v9578
  %v9737 = vunpack.c.l.b16 %v9579
  %v9738 = vunpack.c.l.b16 %v9580
  %v9739 = vunpack.c.h.b16 %v9579
  %v9740 = vunpack.c.h.b16 %v9580
  %v9741 = vunpack.c.l.b16 %v9581
  %v9742 = vunpack.c.l.b16 %v9582
  %v9743 = vunpack.c.h.b16 %v9581
  %v9744 = vunpack.c.h.b16 %v9582
  %v9745 = vunpack.c.l.b16 %v9583
  %v9746 = vunpack.c.l.b16 %v9584
  %v9747 = vunpack.c.h.b16 %v9583
  %v9748 = vunpack.c.h.b16 %v9584
  %v9749 = vunpack.c.l.b16 %v9585
  %v9750 = vunpack.c.l.b16 %v9586
  %v9751 = vunpack.c.h.b16 %v9585
  %v9752 = vunpack.c.h.b16 %v9586
  %v9753 = vunpack.c.l.b16 %v9587
  %v9754 = vunpack.c.l.b16 %v9588
  %v9755 = vunpack.c.h.b16 %v9587
  %v9756 = vunpack.c.h.b16 %v9588
  %v9757 = vunpack.c.l.b16 %v9589
  %v9758 = vunpack.c.l.b16 %v9590
  %v9759 = vunpack.c.h.b16 %v9589
  %v9760 = vunpack.c.h.b16 %v9590
  %v9761 = vunpack.c.l.b16 %v9591
  %v9762 = vunpack.c.l.b16 %v9592
  %v9763 = vunpack.c.h.b16 %v9591
  %v9764 = vunpack.c.h.b16 %v9592
  %v9765 = vunpack.c.l.b16 %v9593
  %v9766 = vunpack.c.l.b16 %v9594
  %v9767 = vunpack.c.h.b16 %v9593
  %v9768 = vunpack.c.h.b16 %v9594
  %v9769 = vunpack.c.l.b16 %v9595
  %v9770 = vunpack.c.l.b16 %v9596
  %v9771 = vunpack.c.h.b16 %v9595
  %v9772 = vunpack.c.h.b16 %v9596
  %v9773 = vunpack.c.l.b16 %v9597
  %v9774 = vunpack.c.l.b16 %v9598
  %v9775 = vunpack.c.h.b16 %v9597
  %v9776 = vunpack.c.h.b16 %v9598
  %v9777 = vunpack.c.l.b16 %v9599
  %v9778 = vunpack.c.l.b16 %v9600
  %v9779 = vunpack.c.h.b16 %v9599
  %v9780 = vunpack.c.h.b16 %v9600
  %v9781 = vunpack.c.l.b16 %v9601
  %v9782 = vunpack.c.l.b16 %v9602
  %v9783 = vunpack.c.h.b16 %v9601
  %v9784 = vunpack.c.h.b16 %v9602
  %v9785 = vunpack.c.l.b16 %v9603
  %v9786 = vunpack.c.l.b16 %v9604
  %v9787 = vunpack.c.h.b16 %v9603
  %v9788 = vunpack.c.h.b16 %v9604
  %v9789 = vunpack.c.l.b16 %v9605
  %v9790 = vunpack.c.l.b16 %v9606
  %v9791 = vunpack.c.h.b16 %v9605
  %v9792 = vunpack.c.h.b16 %v9606
  %v9793 = vunpack.c.l.b16 %v9607
  %v9794 = vunpack.c.l.b16 %v9608
  %v9795 = vunpack.c.h.b16 %v9607
  %v9796 = vunpack.c.h.b16 %v9608
  %v9797 = vunpack.c.l.b16 %v9609
  %v9798 = vunpack.c.l.b16 %v9610
  %v9799 = vunpack.c.h.b16 %v9609
  %v9800 = vunpack.c.h.b16 %v9610
  %v9801 = vunpack.c.l.b16 %v9611
  %v9802 = vunpack.c.l.b16 %v9612
  %v9803 = vunpack.c.h.b16 %v9611
  %v9804 = vunpack.c.h.b16 %v9612
  %v9805 = vpack.c.b16 %v9678, %v9677
  %v9806 = vpack.c.b16 %v9680, %v9679
  %v9807 = vpack.c.b16 %v9682, %v9681
  %v9808 = vpack.c.b16 %v9684, %v9683
  %v9809 = vpack.c.b16 %v9686, %v9685
  %v9810 = vpack.c.b16 %v9688, %v9687
  %v9811 = vpack.c.b16 %v9690, %v9689
  %v9812 = vpack.c.b16 %v9692, %v9691
  %v9813 = vpack.c.b16 %v9694, %v9693
  %v9814 = vpack.c.b16 %v9696, %v9695
  %v9815 = vpack.c.b16 %v9698, %v9697
  %v9816 = vpack.c.b16 %v9700, %v9699
  %v9817 = vpack.c.b16 %v9702, %v9701
  %v9818 = vpack.c.b16 %v9704, %v9703
  %v9819 = vpack.c.b16 %v9706, %v9705
  %v9820 = vpack.c.b16 %v9708, %v9707
  %v9821 = vpack.c.b16 %v9710, %v9709
  %v9822 = vpack.c.b16 %v9712, %v9711
  %v9823 = vpack.c.b16 %v9714, %v9713
  %v9824 = vpack.c.b16 %v9716, %v9715
  %v9825 = vpack.c.b16 %v9718, %v9717
  %v9826 = vpack.c.b16 %v9720, %v9719
  %v9827 = vpack.c.b16 %v9722, %v9721
  %v9828 = vpack.c.b16 %v9724, %v9723
  %v9829 = vpack.c.b16 %v9726, %v9725
  %v9830 = vpack.c.b16 %v9728, %v9727
  %v9831 = vpack.c.b16 %v9730, %v9729
  %v9832 = vpack.c.b16 %v9732, %v9731
  %v9833 = vpack.c.b16 %v9734, %v9733
  %v9834 = vpack.c.b16 %v9736, %v9735
  %v9835 = vpack.c.b16 %v9738, %v9737
  %v9836 = vpack.c.b16 %v9740, %v9739
  %v9837 = vpack.c.b16 %v9742, %v9741
  %v9838 = vpack.c.b16 %v9744, %v9743
  %v9839 = vpack.c.b16 %v9746, %v9745
  %v9840 = vpack.c.b16 %v9748, %v9747
  %v9841 = vpack.c.b16 %v9750, %v9749
  %v9842 = vpack.c.b16 %v9752, %v9751
  %v9843 = vpack.c.b16 %v9754, %v9753
  %v9844 = vpack.c.b16 %v9756, %v9755
  %v9845 = vpack.c.b16 %v9758, %v9757
  %v9846 = vpack.c.b16 %v9760, %v9759
  %v9847 = vpack.c.b16 %v9762, %v9761
  %v9848 = vpack.c.b16 %v9764, %v9763
  %v9849 = vpack.c.b16 %v9766, %v9765
  %v9850 = vpack.c.b16 %v9768, %v9767
  %v9851 = vpack.c.b16 %v9770, %v9769
  %v9852 = vpack.c.b16 %v9772, %v9771
  %v9853 = vpack.c.b16 %v9774, %v9773
  %v9854 = vpack.c.b16 %v9776, %v9775
  %v9855 = vpack.c.b16 %v9778, %v9777
  %v9856 = vpack.c.b16 %v9780, %v9779
  %v9857 = vpack.c.b16 %v9782, %v9781
  %v9858 = vpack.c.b16 %v9784, %v9783
  %v9859 = vpack.c.b16 %v9786, %v9785
  %v9860 = vpack.c.b16 %v9788, %v9787
  %v9861 = vpack.c.b16 %v9790, %v9789
  %v9862 = vpack.c.b16 %v9792, %v9791
  %v9863 = vpack.c.b16 %v9794, %v9793
  %v9864 = vpack.c.b16 %v9796, %v9795
  %v9865 = vpack.c.b16 %v9798, %v9797
  %v9866 = vpack.c.b16 %v9800, %v9799
  %v9867 = vpack.c.b16 %v9802, %v9801
  %v9868 = vpack.c.b16 %v9804, %v9803
  %9933 = vst [vmem:[%s8] sm:$0xff] %v9805
  %9934 = vst [vmem:[%s8 + $0x8] sm:$0xff] %v9806
  %9935 = vst [vmem:[%s8 + $0x10] sm:$0xff] %v9807
  %9936 = vst [vmem:[%s8 + $0x18] sm:$0xff] %v9808
  %9937 = vst [vmem:[%s8 + $0x20] sm:$0xff] %v9809
  %9938 = vst [vmem:[%s8 + $0x28] sm:$0xff] %v9810
  %9939 = vst [vmem:[%s8 + $0x30] sm:$0xff] %v9811
  %9940 = vst [vmem:[%s8 + $0x38] sm:$0xff] %v9812
  %9941 = vst [vmem:[%s8 + $0x40] sm:$0xff] %v9813
  %9942 = vst [vmem:[%s8 + $0x48] sm:$0xff] %v9814
  %9943 = vst [vmem:[%s8 + $0x50] sm:$0xff] %v9815
  %9944 = vst [vmem:[%s8 + $0x58] sm:$0xff] %v9816
  %9945 = vst [vmem:[%s8 + $0x60] sm:$0xff] %v9817
  %9946 = vst [vmem:[%s8 + $0x68] sm:$0xff] %v9818
  %9947 = vst [vmem:[%s8 + $0x70] sm:$0xff] %v9819
  %9948 = vst [vmem:[%s8 + $0x78] sm:$0xff] %v9820
  %9949 = vst [vmem:[%s8 + $0x80] sm:$0xff] %v9821
  %9950 = vst [vmem:[%s8 + $0x88] sm:$0xff] %v9822
  %9951 = vst [vmem:[%s8 + $0x90] sm:$0xff] %v9823
  %9952 = vst [vmem:[%s8 + $0x98] sm:$0xff] %v9824
  %9953 = vst [vmem:[%s8 + $0xa0] sm:$0xff] %v9825
  %9954 = vst [vmem:[%s8 + $0xa8] sm:$0xff] %v9826
  %9955 = vst [vmem:[%s8 + $0xb0] sm:$0xff] %v9827
  %9956 = vst [vmem:[%s8 + $0xb8] sm:$0xff] %v9828
  %9957 = vst [vmem:[%s8 + $0xc0] sm:$0xff] %v9829
  %9958 = vst [vmem:[%s8 + $0xc8] sm:$0xff] %v9830
  %9959 = vst [vmem:[%s8 + $0xd0] sm:$0xff] %v9831
  %9960 = vst [vmem:[%s8 + $0xd8] sm:$0xff] %v9832
  %9961 = vst [vmem:[%s8 + $0xe0] sm:$0xff] %v9833
  %9962 = vst [vmem:[%s8 + $0xe8] sm:$0xff] %v9834
  %9963 = vst [vmem:[%s8 + $0xf0] sm:$0xff] %v9835
  %9964 = vst [vmem:[%s8 + $0xf8] sm:$0xff] %v9836
  %9965 = vst [vmem:[%s8 + $0x100] sm:$0xff] %v9837
  %9966 = vst [vmem:[%s8 + $0x108] sm:$0xff] %v9838
  %9967 = vst [vmem:[%s8 + $0x110] sm:$0xff] %v9839
  %9968 = vst [vmem:[%s8 + $0x118] sm:$0xff] %v9840
  %9969 = vst [vmem:[%s8 + $0x120] sm:$0xff] %v9841
  %9970 = vst [vmem:[%s8 + $0x128] sm:$0xff] %v9842
  %9971 = vst [vmem:[%s8 + $0x130] sm:$0xff] %v9843
  %9972 = vst [vmem:[%s8 + $0x138] sm:$0xff] %v9844
  %9973 = vst [vmem:[%s8 + $0x140] sm:$0xff] %v9845
  %9974 = vst [vmem:[%s8 + $0x148] sm:$0xff] %v9846
  %9975 = vst [vmem:[%s8 + $0x150] sm:$0xff] %v9847
  %9976 = vst [vmem:[%s8 + $0x158] sm:$0xff] %v9848
  %9977 = vst [vmem:[%s8 + $0x160] sm:$0xff] %v9849
  %9978 = vst [vmem:[%s8 + $0x168] sm:$0xff] %v9850
  %9979 = vst [vmem:[%s8 + $0x170] sm:$0xff] %v9851
  %9980 = vst [vmem:[%s8 + $0x178] sm:$0xff] %v9852
  %9981 = vst [vmem:[%s8 + $0x180] sm:$0xff] %v9853
  %9982 = vst [vmem:[%s8 + $0x188] sm:$0xff] %v9854
  %9983 = vst [vmem:[%s8 + $0x190] sm:$0xff] %v9855
  %9984 = vst [vmem:[%s8 + $0x198] sm:$0xff] %v9856
  %9985 = vst [vmem:[%s8 + $0x1a0] sm:$0xff] %v9857
  %9986 = vst [vmem:[%s8 + $0x1a8] sm:$0xff] %v9858
  %9987 = vst [vmem:[%s8 + $0x1b0] sm:$0xff] %v9859
  %9988 = vst [vmem:[%s8 + $0x1b8] sm:$0xff] %v9860
  %9989 = vst [vmem:[%s8 + $0x1c0] sm:$0xff] %v9861
  %9990 = vst [vmem:[%s8 + $0x1c8] sm:$0xff] %v9862
  %9991 = vst [vmem:[%s8 + $0x1d0] sm:$0xff] %v9863
  %9992 = vst [vmem:[%s8 + $0x1d8] sm:$0xff] %v9864
  %9993 = vst [vmem:[%s8 + $0x1e0] sm:$0xff] %v9865
  %9994 = vst [vmem:[%s8 + $0x1e8] sm:$0xff] %v9866
  %9995 = vst [vmem:[%s8 + $0x1f0] sm:$0xff] %v9867
  %9996 = vst [vmem:[%s8 + $0x1f8] sm:$0xff] %v9868
  // Predicated region
  $region34: #{bottleneck_forward.1} parent=0 // pred_check
    _
  $region35: #{bottleneck_forward.1} parent=0 // pred_check_branch
    %9998 = sbr.rel (0) target = $region37
  $region36: #{bottleneck_forward.1} parent=0 // pred_region
    _
  $region37: #{bottleneck_forward.1} parent=0 // pred_fallthru
    _
  // Predicated region
  $region38: #{bottleneck_forward.1} parent=0 // pred_check
    _
  $region39: #{bottleneck_forward.1} parent=0 // pred_check_branch
    %10000 = sbr.rel (0) target = $region41
  $region40: #{bottleneck_forward.1} parent=0 // pred_region
    _
  $region41: #{bottleneck_forward.1} parent=0 // pred_fallthru
    _

</llo_original>
